<compile_context>
chip_gen: v7x
topology: tpu7x:2x2x1
jax: 0.10.0
libtpu: 0.0.40
codegen_flags: <defaults>
</compile_context>

<pallas_src>
import jax
import jax.numpy as jnp
from jax import lax
from jax.experimental import pallas as pl
from jax.experimental.pallas import tpu as pltpu

# ---- config (mirrors config['model']; hidden/embed = 128 because LocalEncoder hard-codes 128) ----
CFG = dict(
    batch_size=2, embed_size=128, hidden_size=128,
    com_vocab_size=40, code_vocab_size=50,
    max_code_len=8, max_com_len=5, max_node_num=4,
    gat_input_size=256, gat_hidden_size=256, gat_dropout=0,
)

VMEM = pl.BlockSpec(memory_space=pltpu.MemorySpace.VMEM)


# ----------------------------- fused bidirectional GRU -----------------------------

def _bigru_kernel(x_ref, wih_ref, whh_ref, bih_ref, bhh_ref,
                  outf_ref, outb_ref, hT_ref, gx_scr):
    # x_ref: (T, B, E) time-major
    # wih_ref: (E, 6H) = [wih_fwd | wih_bwd] ; whh_ref: (H, 6H) = [whh_fwd | whh_bwd]
    T, B, E = x_ref.shape
    H = whh_ref.shape[0]
    G = 3 * H

    # hoisted input-to-hidden matmul for BOTH directions: one (T*B, E) @ (E, 6H)
    x_flat = x_ref[...].reshape(T * B, E)
    gx_all = jnp.dot(x_flat, wih_ref[...],
                     preferred_element_type=jnp.float32) + bih_ref[...]
    gx_scr[...] = gx_all.reshape(T, B, 2 * G)

    def gru_gates(gx, gh, h):
        r = jax.nn.sigmoid(gx[:, 0:H] + gh[:, 0:H])
        z = jax.nn.sigmoid(gx[:, H:2 * H] + gh[:, H:2 * H])
        n = jnp.tanh(gx[:, 2 * H:3 * H] + r * gh[:, 2 * H:3 * H])
        return (1.0 - z) * n + z * h

    hf = jnp.zeros((B, H), jnp.float32)
    hb = jnp.zeros((B, H), jnp.float32)

    # T=8 is tiny & static: fully unrolled straight-line recurrence (scheduler sees everything).
    for t in range(T):
        tb = T - 1 - t
        h_all = jnp.concatenate([hf, hb], axis=0)                        # (2B, H)
        gh_all = jnp.dot(h_all, whh_ref[...],
                         preferred_element_type=jnp.float32) + bhh_ref[...]  # (2B, 6H)
        gh_f = gh_all[0:B, 0:G]
        gh_b = gh_all[B:2 * B, G:2 * G]
        gx_f = gx_scr[t][:, 0:G]
        gx_b = gx_scr[tb][:, G:2 * G]
        hf = gru_gates(gx_f, gh_f, hf)
        hb = gru_gates(gx_b, gh_b, hb)
        outf_ref[t] = hf              # forward output at time t
        outb_ref[tb] = hb             # backward output at time T-1-t

    hT_ref[...] = jnp.concatenate([hf, hb], axis=-1)                     # (B, 2H)


def bigru(x_tbe, p):
    T, B, E = x_tbe.shape
    H = CFG['hidden_size']
    wih = jnp.concatenate([p['gru_wih_f'], p['gru_wih_b']], axis=1)          # (E, 6H)
    whh = jnp.concatenate([p['gru_whh_f'], p['gru_whh_b']], axis=1)          # (H, 6H)
    bih = jnp.concatenate([p['gru_bih_f'], p['gru_bih_b']]).reshape(1, 6 * H)
    bhh = jnp.concatenate([p['gru_bhh_f'], p['gru_bhh_b']]).reshape(1, 6 * H)
    out_f, out_b, h_t = pl.pallas_call(
        _bigru_kernel,
        out_shape=(jax.ShapeDtypeStruct((T, B, H), jnp.float32),
                   jax.ShapeDtypeStruct((T, B, H), jnp.float32),
                   jax.ShapeDtypeStruct((B, 2 * H), jnp.float32)),
        in_specs=[VMEM] * 5,
        out_specs=(VMEM, VMEM, VMEM),
        scratch_shapes=[pltpu.VMEM((T, B, 6 * H), jnp.float32)],
    )(x_tbe.astype(jnp.float32), wih, whh, bih, bhh)
    return out_f, out_b, h_t


def local_encoder(x_tok, p):
    emb = p['code_embed'][x_tok]                 # (Nn, L, E) batch-first
    x_tm = jnp.transpose(emb, (1, 0, 2))         # time-major (L, Nn, E)
    out_f, out_b, h_t = bigru(x_tm, p)
    out_f_bf = jnp.transpose(out_f, (1, 0, 2))   # (Nn, L, H)
    out_b_bf = jnp.transpose(out_b, (1, 0, 2))   # (Nn, L, H)
    # reference hard-codes the split at 128 == hidden_size; flip is over the node/batch dim
    q = jnp.concatenate([out_f_bf, jnp.flip(out_b_bf, axis=0)], axis=2)   # (Nn, L, 2H)
    q_n = h_t                                                             # (Nn, 2H)
    return q, q_n


# ----------------------------- fused 4-layer GAT -----------------------------

def _gat4_kernel(x_ref, mask_ref, w_ref, asrc_ref, adst_ref, b_ref, o_ref):
    # Dense-mask equivalent of PyG GATConv (1 head, negative_slope=0.2, self-loops in mask),
    # applied 4 times with the same weights (as in the reference), fully VMEM-resident.
    mask = mask_ref[...]
    neg = jnp.full_like(mask, -1e30)
    g = x_ref[...]
    for _ in range(4):
        h = jnp.dot(g, w_ref[...], preferred_element_type=jnp.float32)        # (N, F)
        a_dst = lax.dot_general(h, adst_ref[...], (((1,), (1,)), ((), ())),
                                preferred_element_type=jnp.float32)           # (N, 1)
        a_src = lax.dot_general(asrc_ref[...], h, (((1,), (1,)), ((), ())),
                                preferred_element_type=jnp.float32)           # (1, N)
        e = a_dst + a_src                                                     # e[i,j] = adst.h_i + asrc.h_j
        e = jnp.where(e > 0, e, 0.2 * e)                                      # LeakyReLU(0.2)
        e = jnp.where(mask > 0, e, neg)
        e = e - jnp.max(e, axis=-1, keepdims=True)
        pexp = jnp.exp(e) * mask
        alpha = pexp / jnp.sum(pexp, axis=-1, keepdims=True)                  # softmax over sources j
        g = jnp.dot(alpha, h, preferred_element_type=jnp.float32) + b_ref[...]
    o_ref[...] = g


def global_encoder(g, mask, p):
    n = g.shape[0]
    fo = p['gat_w'].shape[1]
    return pl.pallas_call(
        _gat4_kernel,
        out_shape=jax.ShapeDtypeStruct((n, fo), jnp.float32),
        in_specs=[VMEM] * 6,
        out_specs=VMEM,
    )(g, mask, p['gat_w'], p['gat_att_src'].reshape(1, fo),
      p['gat_att_dst'].reshape(1, fo), p['gat_bias'].reshape(1, fo))


def build_adj_mask(edge_index, num_nodes):
    src, dst = edge_index[0], edge_index[1]
    mask = jnp.zeros((num_nodes, num_nodes), jnp.float32)
    mask = mask.at[dst, src].set(1.0)                                # messages src -> dst
    mask = jnp.maximum(mask, jnp.eye(num_nodes, dtype=jnp.float32))  # add self-loops
    return mask


# ----------------------------- fused (step-batched) decoder -----------------------------

def _decoder_kernel(tok_ref, fcin_ref, gflat_ref, qflat_ref,
                    fcw_ref, fcb_ref,
                    wih_ref, whh_ref, bih_ref, bhh_ref,
                    wga_ref, wla_ref, wh_ref, wc_ref, wy_ref,
                    wout_ref, bout_ref, pre_ref):
    tok = tok_ref[...]                                 # (SB, E) previous-token embeddings
    SB = tok.shape[0]
    H = fcw_ref.shape[1]
    F = gflat_ref.shape[1]                             # 2H
    N = gflat_ref.shape[0] // SB
    L = qflat_ref.shape[0] // SB

    # decoder GRU init state: fc(cat(qn_t, g_t)) (loop-invariant, inputs pre-tiled to SB rows)
    h0 = jnp.dot(fcin_ref[...], fcw_ref[...],
                 preferred_element_type=jnp.float32) + fcb_ref[...]           # (SB, H)

    # single-step GRU cell (seq len 1 -> straight-line, no loop)
    gx = jnp.dot(tok, wih_ref[...], preferred_element_type=jnp.float32) + bih_ref[...]
    gh = jnp.dot(h0, whh_ref[...], preferred_element_type=jnp.float32) + bhh_ref[...]
    r = jax.nn.sigmoid(gx[:, 0:H] + gh[:, 0:H])
    z = jax.nn.sigmoid(gx[:, H:2 * H] + gh[:, H:2 * H])
    n = jnp.tanh(gx[:, 2 * H:3 * H] + r * gh[:, 2 * H:3 * H])
    out_h = (1.0 - z) * n + z * h0                                            # (SB, H)

    # --- Graph Attention ---  (feeds only the dead W_v branch of the reference; kept for fidelity)
    g2 = gflat_ref[...]                                                       # (SB*N, 2H)
    gp = jnp.dot(g2, wga_ref[...], preferred_element_type=jnp.float32)        # (SB*N, H)
    s_g = jnp.sum(gp.reshape(SB, N, H) * out_h[:, None, :], axis=-1)          # (SB, N)
    s_g = s_g - jnp.max(s_g, axis=-1, keepdims=True)
    gamma = jnp.exp(s_g)
    gamma = gamma / jnp.sum(gamma, axis=-1, keepdims=True)
    cg = jnp.sum(gamma[:, :, None] * g2.reshape(SB, N, F), axis=1)            # (SB, 2H)
    del cg  # only consumed by W_v in the reference, whose softmax(dim=1) output is identically 1

    # --- Local Attention ---
    q2 = qflat_ref[...]                                                       # (SB*L, 2H)
    qp = jnp.dot(q2, wla_ref[...], preferred_element_type=jnp.float32)        # (SB*L, H)
    s_q = jnp.sum(qp.reshape(SB, L, H) * out_h[:, None, :], axis=-1)          # (SB, L)
    s_q = s_q - jnp.max(s_q, axis=-1, keepdims=True)
    beta = jnp.exp(s_q)
    beta = beta / jnp.sum(beta, axis=-1, keepdims=True)
    c = jnp.sum(beta[:, :, None] * q2.reshape(SB, L, F), axis=1)              # (SB, 2H)

    # --- Pointer ---  (W_v matmul removed: softmax over a size-1 dim == ones)
    pg = (jnp.sum(out_h * wh_ref[...], axis=-1, keepdims=True)
          + jnp.sum(c * wc_ref[...], axis=-1, keepdims=True)
          + jnp.sum(tok * wy_ref[...], axis=-1, keepdims=True))               # (SB, 1)
    pg = jnp.where(pg > 0, pg, 0.2 * pg)                                      # LeakyReLU(0.2)
    p_w = pg + beta * (1.0 - pg)                                              # (SB, L)

    pre_ref[...] = jnp.dot(p_w, wout_ref[...],
                           preferred_element_type=jnp.float32) + bout_ref[...]  # (SB, Vpad)


def decoder_batched(tokens, qn_t, g_t, g_resh, q_t, p):
    """tokens: (S, B) int32 previous tokens; returns (S, B, V) logits."""
    S, B = tokens.shape
    H = CFG['hidden_size']
    N = g_resh.shape[1]
    L = q_t.shape[1]
    V = CFG['com_vocab_size']
    Vp = ((V + 127) // 128) * 128            # lane-dense padded output width

    tok_emb = p['com_embed'][tokens.reshape(S * B)]                          # (SB, E)
    fc_in = jnp.tile(jnp.concatenate([qn_t, g_t], axis=1), (S, 1))           # (SB, 4H)
    g_flat = jnp.tile(g_resh, (S, 1, 1)).reshape(S * B * N, 2 * H)           # (SB*N, 2H)
    q_flat = jnp.tile(q_t, (S, 1, 1)).reshape(S * B * L, 2 * H)              # (SB*L, 2H)

    wout = jnp.pad(p['fc_out_w'], ((0, 0), (0, Vp - V)))                     # (L, Vp)
    bout = jnp.pad(p['fc_out_b'], (0, Vp - V)).reshape(1, Vp)

    pre = pl.pallas_call(
        _decoder_kernel,
        out_shape=jax.ShapeDtypeStruct((S * B, Vp), jnp.float32),
        in_specs=[VMEM] * 17,
        out_specs=VMEM,
    )(tok_emb, fc_in, g_flat, q_flat,
      p['fc_w'], p['fc_b'].reshape(1, H),
      p['de_wih'], p['de_whh'], p['de_bih'].reshape(1, -1), p['de_bhh'].reshape(1, -1),
      p['w_ga'], p['w_la'],
      p['w_h'].reshape(1, -1), p['w_c'].reshape(1, -1), p['w_y'].reshape(1, -1),
      wout, bout)
    return pre[:, :V].reshape(S, B, V)


# ----------------------------- full model -----------------------------

def net_forward(x_tok, edge_index, y, p, teacher_force=True):
    H = CFG['hidden_size']; N = CFG['max_node_num']; L = CFG['max_code_len']
    V = CFG['com_vocab_size']

    q, q_n = local_encoder(x_tok, p)
    num_nodes = q_n.shape[0]
    mask = build_adj_mask(edge_index, num_nodes)
    g = global_encoder(q_n, mask, p)

    B = g.shape[0] // N
    y_len = y.shape[1]
    g_resh = g.reshape(B, N, 2 * H)
    qn_resh = q_n.reshape(B, N, 2 * H)
    q_resh = q.reshape(B, N, L, 2 * H)
    g_t = g_resh[:, 0, :]
    qn_t = qn_resh[:, 0, :]
    q_t = q_resh[:, 0, :, :]

    y_t = jnp.transpose(y, (1, 0))                     # (y_len, B)

    if teacher_force:
        # All decode steps are independent under teacher forcing (hidden re-initialized from
        # de_init each step) -> batch every step into one fused kernel call.
        tokens = y_t[0:y_len - 1]                                            # (S, B)
        pre = decoder_batched(tokens, qn_t, g_t, g_resh, q_t, p)             # (S, B, V)
        outputs = jnp.concatenate([jnp.zeros((1, B, V), jnp.float32), pre], axis=0)
    else:
        outputs = jnp.zeros((y_len, B, V), jnp.float32)
        init_put = y_t[0]
        for t in range(1, y_len):
            pre = decoder_batched(init_put[None, :], qn_t, g_t, g_resh, q_t, p)[0]
            outputs = outputs.at[t].set(pre)
            init_put = jnp.argmax(pre, axis=1)
    return outputs


# ----------------------------- parameters -----------------------------

def init_params(key):
    H = CFG['hidden_size']; E = CFG['embed_size']
    Gi = CFG['gat_input_size']; Gh = CFG['gat_hidden_size']
    L = CFG['max_code_len']; V = CFG['com_vocab_size']; Vc = CFG['code_vocab_size']

    def nrm(k, shape, s=0.05):
        return s * jax.random.normal(k, shape, jnp.float32)

    ks = iter(jax.random.split(key, 40))
    return {
        'code_embed': nrm(next(ks), (Vc, E)),
        'gru_wih_f': nrm(next(ks), (E, 3 * H)), 'gru_whh_f': nrm(next(ks), (H, 3 * H)),
        'gru_bih_f': nrm(next(ks), (3 * H,)),   'gru_bhh_f': nrm(next(ks), (3 * H,)),
        'gru_wih_b': nrm(next(ks), (E, 3 * H)), 'gru_whh_b': nrm(next(ks), (H, 3 * H)),
        'gru_bih_b': nrm(next(ks), (3 * H,)),   'gru_bhh_b': nrm(next(ks), (3 * H,)),
        'gat_w': nrm(next(ks), (Gi, Gh)),
        'gat_att_src': nrm(next(ks), (Gh,)), 'gat_att_dst': nrm(next(ks), (Gh,)),
        'gat_bias': nrm(next(ks), (Gh,)),
        'fc_w': nrm(next(ks), (2 * Gi, H)), 'fc_b': nrm(next(ks), (H,)),
        'com_embed': nrm(next(ks), (V, E)),
        'de_wih': nrm(next(ks), (E, 3 * H)), 'de_whh': nrm(next(ks), (H, 3 * H)),
        'de_bih': nrm(next(ks), (3 * H,)),   'de_bhh': nrm(next(ks), (3 * H,)),
        'w_ga': nrm(next(ks), (Gi, H)), 'w_la': nrm(next(ks), (Gi, H)),
        # W_v / b_v are dead in the reference forward (softmax over a size-1 dim); kept for fidelity
        'w_v': nrm(next(ks), (5 * H, L)), 'b_v': nrm(next(ks), (L,)),
        'w_h': nrm(next(ks), (H,)), 'w_c': nrm(next(ks), (2 * H,)), 'w_y': nrm(next(ks), (H,)),
        'fc_out_w': nrm(next(ks), (L, V)), 'fc_out_b': nrm(next(ks), (V,)),
    }


# ----------------------------- main -----------------------------

if __name__ == "__main__":
    key = jax.random.PRNGKey(0)
    kp, kx, ky = jax.random.split(key, 3)
    params = init_params(kp)

    batch = CFG['batch_size']; N = CFG['max_node_num']
    num_nodes = batch * N
    L = CFG['max_code_len']; y_len = CFG['max_com_len']

    x_tok = jax.random.randint(kx, (num_nodes, L), 0, CFG['code_vocab_size'], dtype=jnp.int32)
    y = jax.random.randint(ky, (batch, y_len), 0, CFG['com_vocab_size'], dtype=jnp.int32)

    # deterministic graph: ring + one chord within each graph's node block
    src, dst = [], []
    for b in range(batch):
        o = b * N
        for i in range(N):
            src.append(o + i); dst.append(o + (i + 1) % N)
        src.append(o); dst.append(o + 2)
    edge_index = jnp.array([src, dst], dtype=jnp.int32)

    net_fwd = jax.jit(net_forward, static_argnames=('teacher_force',))
    outputs = net_fwd(x_tok, edge_index, y, params, teacher_force=True)
    jax.block_until_ready(outputs)
    assert outputs.shape == (y_len, batch, CFG['com_vocab_size'])
    assert bool(jnp.all(jnp.isfinite(outputs)))
    print("KERNEL_OK")
</pallas_src>

<mosaic_0001>
module attributes {stable_mosaic.version = 11 : i64} {
  func.func @_gat4_kernel(%arg0: memref<8x256xf32, #tpu.memory_space<vmem>>, %arg1: memref<8x8xf32, #tpu.memory_space<vmem>>, %arg2: memref<256x256xf32, #tpu.memory_space<vmem>>, %arg3: memref<1x256xf32, #tpu.memory_space<vmem>>, %arg4: memref<1x256xf32, #tpu.memory_space<vmem>>, %arg5: memref<1x256xf32, #tpu.memory_space<vmem>>, %arg6: memref<8x256xf32, #tpu.memory_space<vmem>>) attributes {dimension_semantics = [], scalar_prefetch = 0 : i64, scratch_operands = 0 : i64, tpu.core_type = #tpu.core_type<tc>} {
    %c0 = arith.constant 0 : index
    %c0_0 = arith.constant 0 : index
    %0 = vector.load %arg1[%c0, %c0_0] : memref<8x8xf32, #tpu.memory_space<vmem>>, vector<8x8xf32>
    %cst = arith.constant -1.000000e+30 : f32
    %1 = vector.broadcast %cst : f32 to vector<8x8xf32>
    %c0_1 = arith.constant 0 : index
    %c0_2 = arith.constant 0 : index
    %2 = vector.load %arg0[%c0_1, %c0_2] : memref<8x256xf32, #tpu.memory_space<vmem>>, vector<8x256xf32>
    %c0_3 = arith.constant 0 : index
    %c0_4 = arith.constant 0 : index
    %3 = vector.load %arg2[%c0_3, %c0_4] : memref<256x256xf32, #tpu.memory_space<vmem>>, vector<256x256xf32>
    %cst_5 = arith.constant dense<0.000000e+00> : vector<8x256xf32>
    %4 = tpu.matmul %2, %3, %cst_5 {dimension_numbers = #tpu.dot_dimension_numbers<[1], [0], [0], [1], [0, 0, 1, 1], [], []>} : vector<8x256xf32>, vector<256x256xf32>, vector<8x256xf32> -> vector<8x256xf32>
    %c0_6 = arith.constant 0 : index
    %c0_7 = arith.constant 0 : index
    %5 = vector.load %arg4[%c0_6, %c0_7] : memref<1x256xf32, #tpu.memory_space<vmem>>, vector<1x256xf32>
    %cst_8 = arith.constant dense<0.000000e+00> : vector<8x1xf32>
    %6 = tpu.matmul %4, %5, %cst_8 {dimension_numbers = #tpu.dot_dimension_numbers<[1], [1], [0], [0], [0, 0, 1, 0], [], []>} : vector<8x256xf32>, vector<1x256xf32>, vector<8x1xf32> -> vector<8x1xf32>
    %c0_9 = arith.constant 0 : index
    %c0_10 = arith.constant 0 : index
    %7 = vector.load %arg3[%c0_9, %c0_10] : memref<1x256xf32, #tpu.memory_space<vmem>>, vector<1x256xf32>
    %cst_11 = arith.constant dense<0.000000e+00> : vector<1x8xf32>
    %8 = tpu.matmul %7, %4, %cst_11 {dimension_numbers = #tpu.dot_dimension_numbers<[1], [1], [0], [0], [0, 0, 1, 0], [], []>} : vector<1x256xf32>, vector<8x256xf32>, vector<1x8xf32> -> vector<1x8xf32>
    %9 = vector.broadcast %6 : vector<8x1xf32> to vector<8x8xf32>
    %10 = vector.broadcast %8 : vector<1x8xf32> to vector<8x8xf32>
    %11 = arith.addf %9, %10 : vector<8x8xf32>
    %cst_12 = arith.constant 0.000000e+00 : f32
    %12 = vector.broadcast %cst_12 : f32 to vector<8x8xf32>
    %13 = arith.cmpf ogt, %11, %12 : vector<8x8xf32>
    %cst_13 = arith.constant 2.000000e-01 : f32
    %14 = vector.broadcast %cst_13 : f32 to vector<8x8xf32>
    %15 = arith.mulf %14, %11 : vector<8x8xf32>
    %16 = arith.select %13, %11, %15 : vector<8x8xi1>, vector<8x8xf32>
    %cst_14 = arith.constant 0.000000e+00 : f32
    %17 = vector.broadcast %cst_14 : f32 to vector<8x8xf32>
    %18 = arith.cmpf ogt, %0, %17 : vector<8x8xf32>
    %19 = arith.select %18, %16, %1 : vector<8x8xi1>, vector<8x8xf32>
    %cst_15 = arith.constant dense<0xFF800000> : vector<8xf32>
    %20 = vector.multi_reduction <maximumf>, %19, %cst_15 [1] : vector<8x8xf32> to vector<8xf32>
    %21 = vector.shape_cast %20 : vector<8xf32> to vector<8x1xf32>
    %22 = vector.broadcast %21 : vector<8x1xf32> to vector<8x8xf32>
    %23 = arith.subf %19, %22 : vector<8x8xf32>
    %24 = math.exp %23 : vector<8x8xf32>
    %25 = arith.mulf %24, %0 : vector<8x8xf32>
    %cst_16 = arith.constant dense<0.000000e+00> : vector<8xf32>
    %26 = vector.multi_reduction <add>, %25, %cst_16 [1] : vector<8x8xf32> to vector<8xf32>
    %27 = vector.shape_cast %26 : vector<8xf32> to vector<8x1xf32>
    %28 = vector.broadcast %27 : vector<8x1xf32> to vector<8x8xf32>
    %29 = arith.divf %25, %28 : vector<8x8xf32>
    %cst_17 = arith.constant dense<0.000000e+00> : vector<8x256xf32>
    %30 = tpu.matmul %29, %4, %cst_17 {dimension_numbers = #tpu.dot_dimension_numbers<[1], [0], [0], [1], [0, 0, 1, 1], [], []>} : vector<8x8xf32>, vector<8x256xf32>, vector<8x256xf32> -> vector<8x256xf32>
    %c0_18 = arith.constant 0 : index
    %c0_19 = arith.constant 0 : index
    %31 = vector.load %arg5[%c0_18, %c0_19] : memref<1x256xf32, #tpu.memory_space<vmem>>, vector<1x256xf32>
    %32 = vector.broadcast %31 : vector<1x256xf32> to vector<8x256xf32>
    %33 = arith.addf %30, %32 : vector<8x256xf32>
    %c0_20 = arith.constant 0 : index
    %c0_21 = arith.constant 0 : index
    %34 = vector.load %arg2[%c0_20, %c0_21] : memref<256x256xf32, #tpu.memory_space<vmem>>, vector<256x256xf32>
    %cst_22 = arith.constant dense<0.000000e+00> : vector<8x256xf32>
    %35 = tpu.matmul %33, %34, %cst_22 {dimension_numbers = #tpu.dot_dimension_numbers<[1], [0], [0], [1], [0, 0, 1, 1], [], []>} : vector<8x256xf32>, vector<256x256xf32>, vector<8x256xf32> -> vector<8x256xf32>
    %c0_23 = arith.constant 0 : index
    %c0_24 = arith.constant 0 : index
    %36 = vector.load %arg4[%c0_23, %c0_24] : memref<1x256xf32, #tpu.memory_space<vmem>>, vector<1x256xf32>
    %cst_25 = arith.constant dense<0.000000e+00> : vector<8x1xf32>
    %37 = tpu.matmul %35, %36, %cst_25 {dimension_numbers = #tpu.dot_dimension_numbers<[1], [1], [0], [0], [0, 0, 1, 0], [], []>} : vector<8x256xf32>, vector<1x256xf32>, vector<8x1xf32> -> vector<8x1xf32>
    %c0_26 = arith.constant 0 : index
    %c0_27 = arith.constant 0 : index
    %38 = vector.load %arg3[%c0_26, %c0_27] : memref<1x256xf32, #tpu.memory_space<vmem>>, vector<1x256xf32>
    %cst_28 = arith.constant dense<0.000000e+00> : vector<1x8xf32>
    %39 = tpu.matmul %38, %35, %cst_28 {dimension_numbers = #tpu.dot_dimension_numbers<[1], [1], [0], [0], [0, 0, 1, 0], [], []>} : vector<1x256xf32>, vector<8x256xf32>, vector<1x8xf32> -> vector<1x8xf32>
    %40 = vector.broadcast %37 : vector<8x1xf32> to vector<8x8xf32>
    %41 = vector.broadcast %39 : vector<1x8xf32> to vector<8x8xf32>
    %42 = arith.addf %40, %41 : vector<8x8xf32>
    %cst_29 = arith.constant 0.000000e+00 : f32
    %43 = vector.broadcast %cst_29 : f32 to vector<8x8xf32>
    %44 = arith.cmpf ogt, %42, %43 : vector<8x8xf32>
    %cst_30 = arith.constant 2.000000e-01 : f32
    %45 = vector.broadcast %cst_30 : f32 to vector<8x8xf32>
    %46 = arith.mulf %45, %42 : vector<8x8xf32>
    %47 = arith.select %44, %42, %46 : vector<8x8xi1>, vector<8x8xf32>
    %cst_31 = arith.constant 0.000000e+00 : f32
    %48 = vector.broadcast %cst_31 : f32 to vector<8x8xf32>
    %49 = arith.cmpf ogt, %0, %48 : vector<8x8xf32>
    %50 = arith.select %49, %47, %1 : vector<8x8xi1>, vector<8x8xf32>
    %cst_32 = arith.constant dense<0xFF800000> : vector<8xf32>
    %51 = vector.multi_reduction <maximumf>, %50, %cst_32 [1] : vector<8x8xf32> to vector<8xf32>
    %52 = vector.shape_cast %51 : vector<8xf32> to vector<8x1xf32>
    %53 = vector.broadcast %52 : vector<8x1xf32> to vector<8x8xf32>
    %54 = arith.subf %50, %53 : vector<8x8xf32>
    %55 = math.exp %54 : vector<8x8xf32>
    %56 = arith.mulf %55, %0 : vector<8x8xf32>
    %cst_33 = arith.constant dense<0.000000e+00> : vector<8xf32>
    %57 = vector.multi_reduction <add>, %56, %cst_33 [1] : vector<8x8xf32> to vector<8xf32>
    %58 = vector.shape_cast %57 : vector<8xf32> to vector<8x1xf32>
    %59 = vector.broadcast %58 : vector<8x1xf32> to vector<8x8xf32>
    %60 = arith.divf %56, %59 : vector<8x8xf32>
    %cst_34 = arith.constant dense<0.000000e+00> : vector<8x256xf32>
    %61 = tpu.matmul %60, %35, %cst_34 {dimension_numbers = #tpu.dot_dimension_numbers<[1], [0], [0], [1], [0, 0, 1, 1], [], []>} : vector<8x8xf32>, vector<8x256xf32>, vector<8x256xf32> -> vector<8x256xf32>
    %c0_35 = arith.constant 0 : index
    %c0_36 = arith.constant 0 : index
    %62 = vector.load %arg5[%c0_35, %c0_36] : memref<1x256xf32, #tpu.memory_space<vmem>>, vector<1x256xf32>
    %63 = vector.broadcast %62 : vector<1x256xf32> to vector<8x256xf32>
    %64 = arith.addf %61, %63 : vector<8x256xf32>
    %c0_37 = arith.constant 0 : index
    %c0_38 = arith.constant 0 : index
    %65 = vector.load %arg2[%c0_37, %c0_38] : memref<256x256xf32, #tpu.memory_space<vmem>>, vector<256x256xf32>
    %cst_39 = arith.constant dense<0.000000e+00> : vector<8x256xf32>
    %66 = tpu.matmul %64, %65, %cst_39 {dimension_numbers = #tpu.dot_dimension_numbers<[1], [0], [0], [1], [0, 0, 1, 1], [], []>} : vector<8x256xf32>, vector<256x256xf32>, vector<8x256xf32> -> vector<8x256xf32>
    %c0_40 = arith.constant 0 : index
    %c0_41 = arith.constant 0 : index
    %67 = vector.load %arg4[%c0_40, %c0_41] : memref<1x256xf32, #tpu.memory_space<vmem>>, vector<1x256xf32>
    %cst_42 = arith.constant dense<0.000000e+00> : vector<8x1xf32>
    %68 = tpu.matmul %66, %67, %cst_42 {dimension_numbers = #tpu.dot_dimension_numbers<[1], [1], [0], [0], [0, 0, 1, 0], [], []>} : vector<8x256xf32>, vector<1x256xf32>, vector<8x1xf32> -> vector<8x1xf32>
    %c0_43 = arith.constant 0 : index
    %c0_44 = arith.constant 0 : index
    %69 = vector.load %arg3[%c0_43, %c0_44] : memref<1x256xf32, #tpu.memory_space<vmem>>, vector<1x256xf32>
    %cst_45 = arith.constant dense<0.000000e+00> : vector<1x8xf32>
    %70 = tpu.matmul %69, %66, %cst_45 {dimension_numbers = #tpu.dot_dimension_numbers<[1], [1], [0], [0], [0, 0, 1, 0], [], []>} : vector<1x256xf32>, vector<8x256xf32>, vector<1x8xf32> -> vector<1x8xf32>
    %71 = vector.broadcast %68 : vector<8x1xf32> to vector<8x8xf32>
    %72 = vector.broadcast %70 : vector<1x8xf32> to vector<8x8xf32>
    %73 = arith.addf %71, %72 : vector<8x8xf32>
    %cst_46 = arith.constant 0.000000e+00 : f32
    %74 = vector.broadcast %cst_46 : f32 to vector<8x8xf32>
    %75 = arith.cmpf ogt, %73, %74 : vector<8x8xf32>
    %cst_47 = arith.constant 2.000000e-01 : f32
    %76 = vector.broadcast %cst_47 : f32 to vector<8x8xf32>
    %77 = arith.mulf %76, %73 : vector<8x8xf32>
    %78 = arith.select %75, %73, %77 : vector<8x8xi1>, vector<8x8xf32>
    %cst_48 = arith.constant 0.000000e+00 : f32
    %79 = vector.broadcast %cst_48 : f32 to vector<8x8xf32>
    %80 = arith.cmpf ogt, %0, %79 : vector<8x8xf32>
    %81 = arith.select %80, %78, %1 : vector<8x8xi1>, vector<8x8xf32>
    %cst_49 = arith.constant dense<0xFF800000> : vector<8xf32>
    %82 = vector.multi_reduction <maximumf>, %81, %cst_49 [1] : vector<8x8xf32> to vector<8xf32>
    %83 = vector.shape_cast %82 : vector<8xf32> to vector<8x1xf32>
    %84 = vector.broadcast %83 : vector<8x1xf32> to vector<8x8xf32>
    %85 = arith.subf %81, %84 : vector<8x8xf32>
    %86 = math.exp %85 : vector<8x8xf32>
    %87 = arith.mulf %86, %0 : vector<8x8xf32>
    %cst_50 = arith.constant dense<0.000000e+00> : vector<8xf32>
    %88 = vector.multi_reduction <add>, %87, %cst_50 [1] : vector<8x8xf32> to vector<8xf32>
    %89 = vector.shape_cast %88 : vector<8xf32> to vector<8x1xf32>
    %90 = vector.broadcast %89 : vector<8x1xf32> to vector<8x8xf32>
    %91 = arith.divf %87, %90 : vector<8x8xf32>
    %cst_51 = arith.constant dense<0.000000e+00> : vector<8x256xf32>
    %92 = tpu.matmul %91, %66, %cst_51 {dimension_numbers = #tpu.dot_dimension_numbers<[1], [0], [0], [1], [0, 0, 1, 1], [], []>} : vector<8x8xf32>, vector<8x256xf32>, vector<8x256xf32> -> vector<8x256xf32>
    %c0_52 = arith.constant 0 : index
    %c0_53 = arith.constant 0 : index
    %93 = vector.load %arg5[%c0_52, %c0_53] : memref<1x256xf32, #tpu.memory_space<vmem>>, vector<1x256xf32>
    %94 = vector.broadcast %93 : vector<1x256xf32> to vector<8x256xf32>
    %95 = arith.addf %92, %94 : vector<8x256xf32>
    %c0_54 = arith.constant 0 : index
    %c0_55 = arith.constant 0 : index
    %96 = vector.load %arg2[%c0_54, %c0_55] : memref<256x256xf32, #tpu.memory_space<vmem>>, vector<256x256xf32>
    %cst_56 = arith.constant dense<0.000000e+00> : vector<8x256xf32>
    %97 = tpu.matmul %95, %96, %cst_56 {dimension_numbers = #tpu.dot_dimension_numbers<[1], [0], [0], [1], [0, 0, 1, 1], [], []>} : vector<8x256xf32>, vector<256x256xf32>, vector<8x256xf32> -> vector<8x256xf32>
    %c0_57 = arith.constant 0 : index
    %c0_58 = arith.constant 0 : index
    %98 = vector.load %arg4[%c0_57, %c0_58] : memref<1x256xf32, #tpu.memory_space<vmem>>, vector<1x256xf32>
    %cst_59 = arith.constant dense<0.000000e+00> : vector<8x1xf32>
    %99 = tpu.matmul %97, %98, %cst_59 {dimension_numbers = #tpu.dot_dimension_numbers<[1], [1], [0], [0], [0, 0, 1, 0], [], []>} : vector<8x256xf32>, vector<1x256xf32>, vector<8x1xf32> -> vector<8x1xf32>
    %c0_60 = arith.constant 0 : index
    %c0_61 = arith.constant 0 : index
    %100 = vector.load %arg3[%c0_60, %c0_61] : memref<1x256xf32, #tpu.memory_space<vmem>>, vector<1x256xf32>
    %cst_62 = arith.constant dense<0.000000e+00> : vector<1x8xf32>
    %101 = tpu.matmul %100, %97, %cst_62 {dimension_numbers = #tpu.dot_dimension_numbers<[1], [1], [0], [0], [0, 0, 1, 0], [], []>} : vector<1x256xf32>, vector<8x256xf32>, vector<1x8xf32> -> vector<1x8xf32>
    %102 = vector.broadcast %99 : vector<8x1xf32> to vector<8x8xf32>
    %103 = vector.broadcast %101 : vector<1x8xf32> to vector<8x8xf32>
    %104 = arith.addf %102, %103 : vector<8x8xf32>
    %cst_63 = arith.constant 0.000000e+00 : f32
    %105 = vector.broadcast %cst_63 : f32 to vector<8x8xf32>
    %106 = arith.cmpf ogt, %104, %105 : vector<8x8xf32>
    %cst_64 = arith.constant 2.000000e-01 : f32
    %107 = vector.broadcast %cst_64 : f32 to vector<8x8xf32>
    %108 = arith.mulf %107, %104 : vector<8x8xf32>
    %109 = arith.select %106, %104, %108 : vector<8x8xi1>, vector<8x8xf32>
    %cst_65 = arith.constant 0.000000e+00 : f32
    %110 = vector.broadcast %cst_65 : f32 to vector<8x8xf32>
    %111 = arith.cmpf ogt, %0, %110 : vector<8x8xf32>
    %112 = arith.select %111, %109, %1 : vector<8x8xi1>, vector<8x8xf32>
    %cst_66 = arith.constant dense<0xFF800000> : vector<8xf32>
    %113 = vector.multi_reduction <maximumf>, %112, %cst_66 [1] : vector<8x8xf32> to vector<8xf32>
    %114 = vector.shape_cast %113 : vector<8xf32> to vector<8x1xf32>
    %115 = vector.broadcast %114 : vector<8x1xf32> to vector<8x8xf32>
    %116 = arith.subf %112, %115 : vector<8x8xf32>
    %117 = math.exp %116 : vector<8x8xf32>
    %118 = arith.mulf %117, %0 : vector<8x8xf32>
    %cst_67 = arith.constant dense<0.000000e+00> : vector<8xf32>
    %119 = vector.multi_reduction <add>, %118, %cst_67 [1] : vector<8x8xf32> to vector<8xf32>
    %120 = vector.shape_cast %119 : vector<8xf32> to vector<8x1xf32>
    %121 = vector.broadcast %120 : vector<8x1xf32> to vector<8x8xf32>
    %122 = arith.divf %118, %121 : vector<8x8xf32>
    %cst_68 = arith.constant dense<0.000000e+00> : vector<8x256xf32>
    %123 = tpu.matmul %122, %97, %cst_68 {dimension_numbers = #tpu.dot_dimension_numbers<[1], [0], [0], [1], [0, 0, 1, 1], [], []>} : vector<8x8xf32>, vector<8x256xf32>, vector<8x256xf32> -> vector<8x256xf32>
    %c0_69 = arith.constant 0 : index
    %c0_70 = arith.constant 0 : index
    %124 = vector.load %arg5[%c0_69, %c0_70] : memref<1x256xf32, #tpu.memory_space<vmem>>, vector<1x256xf32>
    %125 = vector.broadcast %124 : vector<1x256xf32> to vector<8x256xf32>
    %126 = arith.addf %123, %125 : vector<8x256xf32>
    %c0_71 = arith.constant 0 : index
    %c0_72 = arith.constant 0 : index
    %127 = vector.load %arg6[%c0_71, %c0_72] : memref<8x256xf32, #tpu.memory_space<vmem>>, vector<8x256xf32>
    tpu.vector_store %arg6[%c0_71, %c0_72], %126 {strides = array<i32>} : memref<8x256xf32, #tpu.memory_space<vmem>>, vector<8x256xf32>,
    return
  }
}

module attributes {stable_mosaic.version = 11 : i64} {
  func.func @_bigru_kernel(%arg0: memref<8x8x128xf32, #tpu.memory_space<vmem>>, %arg1: memref<128x768xf32, #tpu.memory_space<vmem>>, %arg2: memref<128x768xf32, #tpu.memory_space<vmem>>, %arg3: memref<1x768xf32, #tpu.memory_space<vmem>>, %arg4: memref<1x768xf32, #tpu.memory_space<vmem>>, %arg5: memref<8x8x128xf32, #tpu.memory_space<vmem>>, %arg6: memref<8x8x128xf32, #tpu.memory_space<vmem>>, %arg7: memref<8x256xf32, #tpu.memory_space<vmem>>, %arg8: memref<8x8x768xf32, #tpu.memory_space<vmem>>) attributes {dimension_semantics = [], scalar_prefetch = 0 : i64, scratch_operands = 1 : i64, tpu.core_type = #tpu.core_type<tc>} {
    %c0 = arith.constant 0 : index
    %c0_0 = arith.constant 0 : index
    %c0_1 = arith.constant 0 : index
    %0 = vector.load %arg0[%c0, %c0_0, %c0_1] : memref<8x8x128xf32, #tpu.memory_space<vmem>>, vector<8x8x128xf32>
    %1 = vector.shape_cast %0 : vector<8x8x128xf32> to vector<64x128xf32>
    %c0_2 = arith.constant 0 : index
    %c0_3 = arith.constant 0 : index
    %2 = vector.load %arg1[%c0_2, %c0_3] : memref<128x768xf32, #tpu.memory_space<vmem>>, vector<128x768xf32>
    %cst = arith.constant dense<0.000000e+00> : vector<64x768xf32>
    %3 = tpu.matmul %1, %2, %cst {dimension_numbers = #tpu.dot_dimension_numbers<[1], [0], [0], [1], [0, 0, 1, 1], [], []>} : vector<64x128xf32>, vector<128x768xf32>, vector<64x768xf32> -> vector<64x768xf32>
    %c0_4 = arith.constant 0 : index
    %c0_5 = arith.constant 0 : index
    %4 = vector.load %arg3[%c0_4, %c0_5] : memref<1x768xf32, #tpu.memory_space<vmem>>, vector<1x768xf32>
    %5 = vector.broadcast %4 : vector<1x768xf32> to vector<64x768xf32>
    %6 = arith.addf %3, %5 : vector<64x768xf32>
    %7 = vector.shape_cast %6 : vector<64x768xf32> to vector<8x8x768xf32>
    %c0_6 = arith.constant 0 : index
    %c0_7 = arith.constant 0 : index
    %c0_8 = arith.constant 0 : index
    %8 = vector.load %arg8[%c0_6, %c0_7, %c0_8] : memref<8x8x768xf32, #tpu.memory_space<vmem>>, vector<8x8x768xf32>
    tpu.vector_store %arg8[%c0_6, %c0_7, %c0_8], %7 {strides = array<i32>} : memref<8x8x768xf32, #tpu.memory_space<vmem>>, vector<8x8x768xf32>,
    %cst_9 = arith.constant 0.000000e+00 : f32
    %9 = vector.broadcast %cst_9 : f32 to vector<8x128xf32>
    %cst_10 = arith.constant 0.000000e+00 : f32
    %10 = vector.broadcast %cst_10 : f32 to vector<8x128xf32>
    %11 = tpu.concatenate %9, %10 in 0 : vector<8x128xf32>, vector<8x128xf32> -> vector<16x128xf32>
    %c0_11 = arith.constant 0 : index
    %c0_12 = arith.constant 0 : index
    %12 = vector.load %arg2[%c0_11, %c0_12] : memref<128x768xf32, #tpu.memory_space<vmem>>, vector<128x768xf32>
    %cst_13 = arith.constant dense<0.000000e+00> : vector<16x768xf32>
    %13 = tpu.matmul %11, %12, %cst_13 {dimension_numbers = #tpu.dot_dimension_numbers<[1], [0], [0], [1], [0, 0, 1, 1], [], []>} : vector<16x128xf32>, vector<128x768xf32>, vector<16x768xf32> -> vector<16x768xf32>
    %c0_14 = arith.constant 0 : index
    %c0_15 = arith.constant 0 : index
    %14 = vector.load %arg4[%c0_14, %c0_15] : memref<1x768xf32, #tpu.memory_space<vmem>>, vector<1x768xf32>
    %15 = vector.broadcast %14 : vector<1x768xf32> to vector<16x768xf32>
    %16 = arith.addf %13, %15 : vector<16x768xf32>
    %17 = vector.extract_strided_slice %16 {offsets = [0, 0], sizes = [8, 384], strides = [1, 1]} : vector<16x768xf32> to vector<8x384xf32>
    %18 = vector.extract_strided_slice %16 {offsets = [8, 384], sizes = [8, 384], strides = [1, 1]} : vector<16x768xf32> to vector<8x384xf32>
    %c0_16 = arith.constant 0 : index
    %c0_17 = arith.constant 0 : index
    %c0_18 = arith.constant 0 : index
    %19 = vector.load %arg8[%c0_16, %c0_17, %c0_18] : memref<8x8x768xf32, #tpu.memory_space<vmem>>, vector<1x8x768xf32>
    %20 = vector.shape_cast %19 : vector<1x8x768xf32> to vector<8x768xf32>
    %21 = vector.extract_strided_slice %20 {offsets = [0, 0], sizes = [8, 384], strides = [1, 1]} : vector<8x768xf32> to vector<8x384xf32>
    %c7 = arith.constant 7 : index
    %c0_19 = arith.constant 0 : index
    %c0_20 = arith.constant 0 : index
    %22 = vector.load %arg8[%c7, %c0_19, %c0_20] : memref<8x8x768xf32, #tpu.memory_space<vmem>>, vector<1x8x768xf32>
    %23 = vector.shape_cast %22 : vector<1x8x768xf32> to vector<8x768xf32>
    %24 = vector.extract_strided_slice %23 {offsets = [0, 384], sizes = [8, 384], strides = [1, 1]} : vector<8x768xf32> to vector<8x384xf32>
    %25 = vector.extract_strided_slice %21 {offsets = [0, 0], sizes = [8, 128], strides = [1, 1]} : vector<8x384xf32> to vector<8x128xf32>
    %26 = vector.extract_strided_slice %17 {offsets = [0, 0], sizes = [8, 128], strides = [1, 1]} : vector<8x384xf32> to vector<8x128xf32>
    %27 = arith.addf %25, %26 : vector<8x128xf32>
    %28 = arith.negf %27 : vector<8x128xf32>
    %29 = math.exp %28 : vector<8x128xf32>
    %cst_21 = arith.constant 1.000000e+00 : f32
    %30 = vector.broadcast %cst_21 : f32 to vector<8x128xf32>
    %31 = arith.addf %30, %29 : vector<8x128xf32>
    %32 = arith.divf %30, %31 : vector<8x128xf32>
    %33 = vector.extract_strided_slice %21 {offsets = [0, 128], sizes = [8, 128], strides = [1, 1]} : vector<8x384xf32> to vector<8x128xf32>
    %34 = vector.extract_strided_slice %17 {offsets = [0, 128], sizes = [8, 128], strides = [1, 1]} : vector<8x384xf32> to vector<8x128xf32>
    %35 = arith.addf %33, %34 : vector<8x128xf32>
    %36 = arith.negf %35 : vector<8x128xf32>
    %37 = math.exp %36 : vector<8x128xf32>
    %cst_22 = arith.constant 1.000000e+00 : f32
    %38 = vector.broadcast %cst_22 : f32 to vector<8x128xf32>
    %39 = arith.addf %38, %37 : vector<8x128xf32>
    %40 = arith.divf %38, %39 : vector<8x128xf32>
    %41 = vector.extract_strided_slice %21 {offsets = [0, 256], sizes = [8, 128], strides = [1, 1]} : vector<8x384xf32> to vector<8x128xf32>
    %42 = vector.extract_strided_slice %17 {offsets = [0, 256], sizes = [8, 128], strides = [1, 1]} : vector<8x384xf32> to vector<8x128xf32>
    %43 = arith.mulf %32, %42 : vector<8x128xf32>
    %44 = arith.addf %41, %43 : vector<8x128xf32>
    %45 = math.tanh %44 : vector<8x128xf32>
    %cst_23 = arith.constant 1.000000e+00 : f32
    %46 = vector.broadcast %cst_23 : f32 to vector<8x128xf32>
    %47 = arith.subf %46, %40 : vector<8x128xf32>
    %48 = arith.mulf %47, %45 : vector<8x128xf32>
    %49 = arith.mulf %40, %9 : vector<8x128xf32>
    %50 = arith.addf %48, %49 : vector<8x128xf32>
    %51 = vector.extract_strided_slice %24 {offsets = [0, 0], sizes = [8, 128], strides = [1, 1]} : vector<8x384xf32> to vector<8x128xf32>
    %52 = vector.extract_strided_slice %18 {offsets = [0, 0], sizes = [8, 128], strides = [1, 1]} : vector<8x384xf32> to vector<8x128xf32>
    %53 = arith.addf %51, %52 : vector<8x128xf32>
    %54 = arith.negf %53 : vector<8x128xf32>
    %55 = math.exp %54 : vector<8x128xf32>
    %cst_24 = arith.constant 1.000000e+00 : f32
    %56 = vector.broadcast %cst_24 : f32 to vector<8x128xf32>
    %57 = arith.addf %56, %55 : vector<8x128xf32>
    %58 = arith.divf %56, %57 : vector<8x128xf32>
    %59 = vector.extract_strided_slice %24 {offsets = [0, 128], sizes = [8, 128], strides = [1, 1]} : vector<8x384xf32> to vector<8x128xf32>
    %60 = vector.extract_strided_slice %18 {offsets = [0, 128], sizes = [8, 128], strides = [1, 1]} : vector<8x384xf32> to vector<8x128xf32>
    %61 = arith.addf %59, %60 : vector<8x128xf32>
    %62 = arith.negf %61 : vector<8x128xf32>
    %63 = math.exp %62 : vector<8x128xf32>
    %cst_25 = arith.constant 1.000000e+00 : f32
    %64 = vector.broadcast %cst_25 : f32 to vector<8x128xf32>
    %65 = arith.addf %64, %63 : vector<8x128xf32>
    %66 = arith.divf %64, %65 : vector<8x128xf32>
    %67 = vector.extract_strided_slice %24 {offsets = [0, 256], sizes = [8, 128], strides = [1, 1]} : vector<8x384xf32> to vector<8x128xf32>
    %68 = vector.extract_strided_slice %18 {offsets = [0, 256], sizes = [8, 128], strides = [1, 1]} : vector<8x384xf32> to vector<8x128xf32>
    %69 = arith.mulf %58, %68 : vector<8x128xf32>
    %70 = arith.addf %67, %69 : vector<8x128xf32>
    %71 = math.tanh %70 : vector<8x128xf32>
    %cst_26 = arith.constant 1.000000e+00 : f32
    %72 = vector.broadcast %cst_26 : f32 to vector<8x128xf32>
    %73 = arith.subf %72, %66 : vector<8x128xf32>
    %74 = arith.mulf %73, %71 : vector<8x128xf32>
    %75 = arith.mulf %66, %10 : vector<8x128xf32>
    %76 = arith.addf %74, %75 : vector<8x128xf32>
    %c0_27 = arith.constant 0 : index
    %c0_28 = arith.constant 0 : index
    %c0_29 = arith.constant 0 : index
    %77 = vector.load %arg5[%c0_27, %c0_28, %c0_29] : memref<8x8x128xf32, #tpu.memory_space<vmem>>, vector<1x8x128xf32>
    %78 = vector.shape_cast %77 : vector<1x8x128xf32> to vector<8x128xf32>
    %79 = vector.shape_cast %50 : vector<8x128xf32> to vector<1x8x128xf32>
    tpu.vector_store %arg5[%c0_27, %c0_28, %c0_29], %79 {strides = array<i32>} : memref<8x8x128xf32, #tpu.memory_space<vmem>>, vector<1x8x128xf32>,
    %c7_30 = arith.constant 7 : index
    %c0_31 = arith.constant 0 : index
    %c0_32 = arith.constant 0 : index
    %80 = vector.load %arg6[%c7_30, %c0_31, %c0_32] : memref<8x8x128xf32, #tpu.memory_space<vmem>>, vector<1x8x128xf32>
    %81 = vector.shape_cast %80 : vector<1x8x128xf32> to vector<8x128xf32>
    %82 = vector.shape_cast %76 : vector<8x128xf32> to vector<1x8x128xf32>
    tpu.vector_store %arg6[%c7_30, %c0_31, %c0_32], %82 {strides = array<i32>} : memref<8x8x128xf32, #tpu.memory_space<vmem>>, vector<1x8x128xf32>,
    %83 = tpu.concatenate %50, %76 in 0 : vector<8x128xf32>, vector<8x128xf32> -> vector<16x128xf32>
    %c0_33 = arith.constant 0 : index
    %c0_34 = arith.constant 0 : index
    %84 = vector.load %arg2[%c0_33, %c0_34] : memref<128x768xf32, #tpu.memory_space<vmem>>, vector<128x768xf32>
    %cst_35 = arith.constant dense<0.000000e+00> : vector<16x768xf32>
    %85 = tpu.matmul %83, %84, %cst_35 {dimension_numbers = #tpu.dot_dimension_numbers<[1], [0], [0], [1], [0, 0, 1, 1], [], []>} : vector<16x128xf32>, vector<128x768xf32>, vector<16x768xf32> -> vector<16x768xf32>
    %c0_36 = arith.constant 0 : index
    %c0_37 = arith.constant 0 : index
    %86 = vector.load %arg4[%c0_36, %c0_37] : memref<1x768xf32, #tpu.memory_space<vmem>>, vector<1x768xf32>
    %87 = vector.broadcast %86 : vector<1x768xf32> to vector<16x768xf32>
    %88 = arith.addf %85, %87 : vector<16x768xf32>
    %89 = vector.extract_strided_slice %88 {offsets = [0, 0], sizes = [8, 384], strides = [1, 1]} : vector<16x768xf32> to vector<8x384xf32>
    %90 = vector.extract_strided_slice %88 {offsets = [8, 384], sizes = [8, 384], strides = [1, 1]} : vector<16x768xf32> to vector<8x384xf32>
    %c1 = arith.constant 1 : index
    %c0_38 = arith.constant 0 : index
    %c0_39 = arith.constant 0 : index
    %91 = vector.load %arg8[%c1, %c0_38, %c0_39] : memref<8x8x768xf32, #tpu.memory_space<vmem>>, vector<1x8x768xf32>
    %92 = vector.shape_cast %91 : vector<1x8x768xf32> to vector<8x768xf32>
    %93 = vector.extract_strided_slice %92 {offsets = [0, 0], sizes = [8, 384], strides = [1, 1]} : vector<8x768xf32> to vector<8x384xf32>
    %c6 = arith.constant 6 : index
    %c0_40 = arith.constant 0 : index
    %c0_41 = arith.constant 0 : index
    %94 = vector.load %arg8[%c6, %c0_40, %c0_41] : memref<8x8x768xf32, #tpu.memory_space<vmem>>, vector<1x8x768xf32>
    %95 = vector.shape_cast %94 : vector<1x8x768xf32> to vector<8x768xf32>
    %96 = vector.extract_strided_slice %95 {offsets = [0, 384], sizes = [8, 384], strides = [1, 1]} : vector<8x768xf32> to vector<8x384xf32>
    %97 = vector.extract_strided_slice %93 {offsets = [0, 0], sizes = [8, 128], strides = [1, 1]} : vector<8x384xf32> to vector<8x128xf32>
    %98 = vector.extract_strided_slice %89 {offsets = [0, 0], sizes = [8, 128], strides = [1, 1]} : vector<8x384xf32> to vector<8x128xf32>
    %99 = arith.addf %97, %98 : vector<8x128xf32>
    %100 = arith.negf %99 : vector<8x128xf32>
    %101 = math.exp %100 : vector<8x128xf32>
    %cst_42 = arith.constant 1.000000e+00 : f32
    %102 = vector.broadcast %cst_42 : f32 to vector<8x128xf32>
    %103 = arith.addf %102, %101 : vector<8x128xf32>
    %104 = arith.divf %102, %103 : vector<8x128xf32>
    %105 = vector.extract_strided_slice %93 {offsets = [0, 128], sizes = [8, 128], strides = [1, 1]} : vector<8x384xf32> to vector<8x128xf32>
    %106 = vector.extract_strided_slice %89 {offsets = [0, 128], sizes = [8, 128], strides = [1, 1]} : vector<8x384xf32> to vector<8x128xf32>
    %107 = arith.addf %105, %106 : vector<8x128xf32>
    %108 = arith.negf %107 : vector<8x128xf32>
    %109 = math.exp %108 : vector<8x128xf32>
    %cst_43 = arith.constant 1.000000e+00 : f32
    %110 = vector.broadcast %cst_43 : f32 to vector<8x128xf32>
    %111 = arith.addf %110, %109 : vector<8x128xf32>
    %112 = arith.divf %110, %111 : vector<8x128xf32>
    %113 = vector.extract_strided_slice %93 {offsets = [0, 256], sizes = [8, 128], strides = [1, 1]} : vector<8x384xf32> to vector<8x128xf32>
    %114 = vector.extract_strided_slice %89 {offsets = [0, 256], sizes = [8, 128], strides = [1, 1]} : vector<8x384xf32> to vector<8x128xf32>
    %115 = arith.mulf %104, %114 : vector<8x128xf32>
    %116 = arith.addf %113, %115 : vector<8x128xf32>
    %117 = math.tanh %116 : vector<8x128xf32>
    %cst_44 = arith.constant 1.000000e+00 : f32
    %118 = vector.broadcast %cst_44 : f32 to vector<8x128xf32>
    %119 = arith.subf %118, %112 : vector<8x128xf32>
    %120 = arith.mulf %119, %117 : vector<8x128xf32>
    %121 = arith.mulf %112, %50 : vector<8x128xf32>
    %122 = arith.addf %120, %121 : vector<8x128xf32>
    %123 = vector.extract_strided_slice %96 {offsets = [0, 0], sizes = [8, 128], strides = [1, 1]} : vector<8x384xf32> to vector<8x128xf32>
    %124 = vector.extract_strided_slice %90 {offsets = [0, 0], sizes = [8, 128], strides = [1, 1]} : vector<8x384xf32> to vector<8x128xf32>
    %125 = arith.addf %123, %124 : vector<8x128xf32>
    %126 = arith.negf %125 : vector<8x128xf32>
    %127 = math.exp %126 : vector<8x128xf32>
    %cst_45 = arith.constant 1.000000e+00 : f32
    %128 = vector.broadcast %cst_45 : f32 to vector<8x128xf32>
    %129 = arith.addf %128, %127 : vector<8x128xf32>
    %130 = arith.divf %128, %129 : vector<8x128xf32>
    %131 = vector.extract_strided_slice %96 {offsets = [0, 128], sizes = [8, 128], strides = [1, 1]} : vector<8x384xf32> to vector<8x128xf32>
    %132 = vector.extract_strided_slice %90 {offsets = [0, 128], sizes = [8, 128], strides = [1, 1]} : vector<8x384xf32> to vector<8x128xf32>
    %133 = arith.addf %131, %132 : vector<8x128xf32>
    %134 = arith.negf %133 : vector<8x128xf32>
    %135 = math.exp %134 : vector<8x128xf32>
    %cst_46 = arith.constant 1.000000e+00 : f32
    %136 = vector.broadcast %cst_46 : f32 to vector<8x128xf32>
    %137 = arith.addf %136, %135 : vector<8x128xf32>
    %138 = arith.divf %136, %137 : vector<8x128xf32>
    %139 = vector.extract_strided_slice %96 {offsets = [0, 256], sizes = [8, 128], strides = [1, 1]} : vector<8x384xf32> to vector<8x128xf32>
    %140 = vector.extract_strided_slice %90 {offsets = [0, 256], sizes = [8, 128], strides = [1, 1]} : vector<8x384xf32> to vector<8x128xf32>
    %141 = arith.mulf %130, %140 : vector<8x128xf32>
    %142 = arith.addf %139, %141 : vector<8x128xf32>
    %143 = math.tanh %142 : vector<8x128xf32>
    %cst_47 = arith.constant 1.000000e+00 : f32
    %144 = vector.broadcast %cst_47 : f32 to vector<8x128xf32>
    %145 = arith.subf %144, %138 : vector<8x128xf32>
    %146 = arith.mulf %145, %143 : vector<8x128xf32>
    %147 = arith.mulf %138, %76 : vector<8x128xf32>
    %148 = arith.addf %146, %147 : vector<8x128xf32>
    %c1_48 = arith.constant 1 : index
    %c0_49 = arith.constant 0 : index
    %c0_50 = arith.constant 0 : index
    %149 = vector.load %arg5[%c1_48, %c0_49, %c0_50] : memref<8x8x128xf32, #tpu.memory_space<vmem>>, vector<1x8x128xf32>
    %150 = vector.shape_cast %149 : vector<1x8x128xf32> to vector<8x128xf32>
    %151 = vector.shape_cast %122 : vector<8x128xf32> to vector<1x8x128xf32>
    tpu.vector_store %arg5[%c1_48, %c0_49, %c0_50], %151 {strides = array<i32>} : memref<8x8x128xf32, #tpu.memory_space<vmem>>, vector<1x8x128xf32>,
    %c6_51 = arith.constant 6 : index
    %c0_52 = arith.constant 0 : index
    %c0_53 = arith.constant 0 : index
    %152 = vector.load %arg6[%c6_51, %c0_52, %c0_53] : memref<8x8x128xf32, #tpu.memory_space<vmem>>, vector<1x8x128xf32>
    %153 = vector.shape_cast %152 : vector<1x8x128xf32> to vector<8x128xf32>
    %154 = vector.shape_cast %148 : vector<8x128xf32> to vector<1x8x128xf32>
    tpu.vector_store %arg6[%c6_51, %c0_52, %c0_53], %154 {strides = array<i32>} : memref<8x8x128xf32, #tpu.memory_space<vmem>>, vector<1x8x128xf32>,
    %155 = tpu.concatenate %122, %148 in 0 : vector<8x128xf32>, vector<8x128xf32> -> vector<16x128xf32>
    %c0_54 = arith.constant 0 : index
    %c0_55 = arith.constant 0 : index
    %156 = vector.load %arg2[%c0_54, %c0_55] : memref<128x768xf32, #tpu.memory_space<vmem>>, vector<128x768xf32>
    %cst_56 = arith.constant dense<0.000000e+00> : vector<16x768xf32>
    %157 = tpu.matmul %155, %156, %cst_56 {dimension_numbers = #tpu.dot_dimension_numbers<[1], [0], [0], [1], [0, 0, 1, 1], [], []>} : vector<16x128xf32>, vector<128x768xf32>, vector<16x768xf32> -> vector<16x768xf32>
    %c0_57 = arith.constant 0 : index
    %c0_58 = arith.constant 0 : index
    %158 = vector.load %arg4[%c0_57, %c0_58] : memref<1x768xf32, #tpu.memory_space<vmem>>, vector<1x768xf32>
    %159 = vector.broadcast %158 : vector<1x768xf32> to vector<16x768xf32>
    %160 = arith.addf %157, %159 : vector<16x768xf32>
    %161 = vector.extract_strided_slice %160 {offsets = [0, 0], sizes = [8, 384], strides = [1, 1]} : vector<16x768xf32> to vector<8x384xf32>
    %162 = vector.extract_strided_slice %160 {offsets = [8, 384], sizes = [8, 384], strides = [1, 1]} : vector<16x768xf32> to vector<8x384xf32>
    %c2 = arith.constant 2 : index
    %c0_59 = arith.constant 0 : index
    %c0_60 = arith.constant 0 : index
    %163 = vector.load %arg8[%c2, %c0_59, %c0_60] : memref<8x8x768xf32, #tpu.memory_space<vmem>>, vector<1x8x768xf32>
    %164 = vector.shape_cast %163 : vector<1x8x768xf32> to vector<8x768xf32>
    %165 = vector.extract_strided_slice %164 {offsets = [0, 0], sizes = [8, 384], strides = [1, 1]} : vector<8x768xf32> to vector<8x384xf32>
    %c5 = arith.constant 5 : index
    %c0_61 = arith.constant 0 : index
    %c0_62 = arith.constant 0 : index
    %166 = vector.load %arg8[%c5, %c0_61, %c0_62] : memref<8x8x768xf32, #tpu.memory_space<vmem>>, vector<1x8x768xf32>
    %167 = vector.shape_cast %166 : vector<1x8x768xf32> to vector<8x768xf32>
    %168 = vector.extract_strided_slice %167 {offsets = [0, 384], sizes = [8, 384], strides = [1, 1]} : vector<8x768xf32> to vector<8x384xf32>
    %169 = vector.extract_strided_slice %165 {offsets = [0, 0], sizes = [8, 128], strides = [1, 1]} : vector<8x384xf32> to vector<8x128xf32>
    %170 = vector.extract_strided_slice %161 {offsets = [0, 0], sizes = [8, 128], strides = [1, 1]} : vector<8x384xf32> to vector<8x128xf32>
    %171 = arith.addf %169, %170 : vector<8x128xf32>
    %172 = arith.negf %171 : vector<8x128xf32>
    %173 = math.exp %172 : vector<8x128xf32>
    %cst_63 = arith.constant 1.000000e+00 : f32
    %174 = vector.broadcast %cst_63 : f32 to vector<8x128xf32>
    %175 = arith.addf %174, %173 : vector<8x128xf32>
    %176 = arith.divf %174, %175 : vector<8x128xf32>
    %177 = vector.extract_strided_slice %165 {offsets = [0, 128], sizes = [8, 128], strides = [1, 1]} : vector<8x384xf32> to vector<8x128xf32>
    %178 = vector.extract_strided_slice %161 {offsets = [0, 128], sizes = [8, 128], strides = [1, 1]} : vector<8x384xf32> to vector<8x128xf32>
    %179 = arith.addf %177, %178 : vector<8x128xf32>
    %180 = arith.negf %179 : vector<8x128xf32>
    %181 = math.exp %180 : vector<8x128xf32>
    %cst_64 = arith.constant 1.000000e+00 : f32
    %182 = vector.broadcast %cst_64 : f32 to vector<8x128xf32>
    %183 = arith.addf %182, %181 : vector<8x128xf32>
    %184 = arith.divf %182, %183 : vector<8x128xf32>
    %185 = vector.extract_strided_slice %165 {offsets = [0, 256], sizes = [8, 128], strides = [1, 1]} : vector<8x384xf32> to vector<8x128xf32>
    %186 = vector.extract_strided_slice %161 {offsets = [0, 256], sizes = [8, 128], strides = [1, 1]} : vector<8x384xf32> to vector<8x128xf32>
    %187 = arith.mulf %176, %186 : vector<8x128xf32>
    %188 = arith.addf %185, %187 : vector<8x128xf32>
    %189 = math.tanh %188 : vector<8x128xf32>
    %cst_65 = arith.constant 1.000000e+00 : f32
    %190 = vector.broadcast %cst_65 : f32 to vector<8x128xf32>
    %191 = arith.subf %190, %184 : vector<8x128xf32>
    %192 = arith.mulf %191, %189 : vector<8x128xf32>
    %193 = arith.mulf %184, %122 : vector<8x128xf32>
    %194 = arith.addf %192, %193 : vector<8x128xf32>
    %195 = vector.extract_strided_slice %168 {offsets = [0, 0], sizes = [8, 128], strides = [1, 1]} : vector<8x384xf32> to vector<8x128xf32>
    %196 = vector.extract_strided_slice %162 {offsets = [0, 0], sizes = [8, 128], strides = [1, 1]} : vector<8x384xf32> to vector<8x128xf32>
    %197 = arith.addf %195, %196 : vector<8x128xf32>
    %198 = arith.negf %197 : vector<8x128xf32>
    %199 = math.exp %198 : vector<8x128xf32>
    %cst_66 = arith.constant 1.000000e+00 : f32
    %200 = vector.broadcast %cst_66 : f32 to vector<8x128xf32>
    %201 = arith.addf %200, %199 : vector<8x128xf32>
    %202 = arith.divf %200, %201 : vector<8x128xf32>
    %203 = vector.extract_strided_slice %168 {offsets = [0, 128], sizes = [8, 128], strides = [1, 1]} : vector<8x384xf32> to vector<8x128xf32>
    %204 = vector.extract_strided_slice %162 {offsets = [0, 128], sizes = [8, 128], strides = [1, 1]} : vector<8x384xf32> to vector<8x128xf32>
    %205 = arith.addf %203, %204 : vector<8x128xf32>
    %206 = arith.negf %205 : vector<8x128xf32>
    %207 = math.exp %206 : vector<8x128xf32>
    %cst_67 = arith.constant 1.000000e+00 : f32
    %208 = vector.broadcast %cst_67 : f32 to vector<8x128xf32>
    %209 = arith.addf %208, %207 : vector<8x128xf32>
    %210 = arith.divf %208, %209 : vector<8x128xf32>
    %211 = vector.extract_strided_slice %168 {offsets = [0, 256], sizes = [8, 128], strides = [1, 1]} : vector<8x384xf32> to vector<8x128xf32>
    %212 = vector.extract_strided_slice %162 {offsets = [0, 256], sizes = [8, 128], strides = [1, 1]} : vector<8x384xf32> to vector<8x128xf32>
    %213 = arith.mulf %202, %212 : vector<8x128xf32>
    %214 = arith.addf %211, %213 : vector<8x128xf32>
    %215 = math.tanh %214 : vector<8x128xf32>
    %cst_68 = arith.constant 1.000000e+00 : f32
    %216 = vector.broadcast %cst_68 : f32 to vector<8x128xf32>
    %217 = arith.subf %216, %210 : vector<8x128xf32>
    %218 = arith.mulf %217, %215 : vector<8x128xf32>
    %219 = arith.mulf %210, %148 : vector<8x128xf32>
    %220 = arith.addf %218, %219 : vector<8x128xf32>
    %c2_69 = arith.constant 2 : index
    %c0_70 = arith.constant 0 : index
    %c0_71 = arith.constant 0 : index
    %221 = vector.load %arg5[%c2_69, %c0_70, %c0_71] : memref<8x8x128xf32, #tpu.memory_space<vmem>>, vector<1x8x128xf32>
    %222 = vector.shape_cast %221 : vector<1x8x128xf32> to vector<8x128xf32>
    %223 = vector.shape_cast %194 : vector<8x128xf32> to vector<1x8x128xf32>
    tpu.vector_store %arg5[%c2_69, %c0_70, %c0_71], %223 {strides = array<i32>} : memref<8x8x128xf32, #tpu.memory_space<vmem>>, vector<1x8x128xf32>,
    %c5_72 = arith.constant 5 : index
    %c0_73 = arith.constant 0 : index
    %c0_74 = arith.constant 0 : index
    %224 = vector.load %arg6[%c5_72, %c0_73, %c0_74] : memref<8x8x128xf32, #tpu.memory_space<vmem>>, vector<1x8x128xf32>
    %225 = vector.shape_cast %224 : vector<1x8x128xf32> to vector<8x128xf32>
    %226 = vector.shape_cast %220 : vector<8x128xf32> to vector<1x8x128xf32>
    tpu.vector_store %arg6[%c5_72, %c0_73, %c0_74], %226 {strides = array<i32>} : memref<8x8x128xf32, #tpu.memory_space<vmem>>, vector<1x8x128xf32>,
    %227 = tpu.concatenate %194, %220 in 0 : vector<8x128xf32>, vector<8x128xf32> -> vector<16x128xf32>
    %c0_75 = arith.constant 0 : index
    %c0_76 = arith.constant 0 : index
    %228 = vector.load %arg2[%c0_75, %c0_76] : memref<128x768xf32, #tpu.memory_space<vmem>>, vector<128x768xf32>
    %cst_77 = arith.constant dense<0.000000e+00> : vector<16x768xf32>
    %229 = tpu.matmul %227, %228, %cst_77 {dimension_numbers = #tpu.dot_dimension_numbers<[1], [0], [0], [1], [0, 0, 1, 1], [], []>} : vector<16x128xf32>, vector<128x768xf32>, vector<16x768xf32> -> vector<16x768xf32>
    %c0_78 = arith.constant 0 : index
    %c0_79 = arith.constant 0 : index
    %230 = vector.load %arg4[%c0_78, %c0_79] : memref<1x768xf32, #tpu.memory_space<vmem>>, vector<1x768xf32>
    %231 = vector.broadcast %230 : vector<1x768xf32> to vector<16x768xf32>
    %232 = arith.addf %229, %231 : vector<16x768xf32>
    %233 = vector.extract_strided_slice %232 {offsets = [0, 0], sizes = [8, 384], strides = [1, 1]} : vector<16x768xf32> to vector<8x384xf32>
    %234 = vector.extract_strided_slice %232 {offsets = [8, 384], sizes = [8, 384], strides = [1, 1]} : vector<16x768xf32> to vector<8x384xf32>
    %c3 = arith.constant 3 : index
    %c0_80 = arith.constant 0 : index
    %c0_81 = arith.constant 0 : index
    %235 = vector.load %arg8[%c3, %c0_80, %c0_81] : memref<8x8x768xf32, #tpu.memory_space<vmem>>, vector<1x8x768xf32>
    %236 = vector.shape_cast %235 : vector<1x8x768xf32> to vector<8x768xf32>
    %237 = vector.extract_strided_slice %236 {offsets = [0, 0], sizes = [8, 384], strides = [1, 1]} : vector<8x768xf32> to vector<8x384xf32>
    %c4 = arith.constant 4 : index
    %c0_82 = arith.constant 0 : index
    %c0_83 = arith.constant 0 : index
    %238 = vector.load %arg8[%c4, %c0_82, %c0_83] : memref<8x8x768xf32, #tpu.memory_space<vmem>>, vector<1x8x768xf32>
    %239 = vector.shape_cast %238 : vector<1x8x768xf32> to vector<8x768xf32>
    %240 = vector.extract_strided_slice %239 {offsets = [0, 384], sizes = [8, 384], strides = [1, 1]} : vector<8x768xf32> to vector<8x384xf32>
    %241 = vector.extract_strided_slice %237 {offsets = [0, 0], sizes = [8, 128], strides = [1, 1]} : vector<8x384xf32> to vector<8x128xf32>
    %242 = vector.extract_strided_slice %233 {offsets = [0, 0], sizes = [8, 128], strides = [1, 1]} : vector<8x384xf32> to vector<8x128xf32>
    %243 = arith.addf %241, %242 : vector<8x128xf32>
    %244 = arith.negf %243 : vector<8x128xf32>
    %245 = math.exp %244 : vector<8x128xf32>
    %cst_84 = arith.constant 1.000000e+00 : f32
    %246 = vector.broadcast %cst_84 : f32 to vector<8x128xf32>
    %247 = arith.addf %246, %245 : vector<8x128xf32>
    %248 = arith.divf %246, %247 : vector<8x128xf32>
    %249 = vector.extract_strided_slice %237 {offsets = [0, 128], sizes = [8, 128], strides = [1, 1]} : vector<8x384xf32> to vector<8x128xf32>
    %250 = vector.extract_strided_slice %233 {offsets = [0, 128], sizes = [8, 128], strides = [1, 1]} : vector<8x384xf32> to vector<8x128xf32>
    %251 = arith.addf %249, %250 : vector<8x128xf32>
    %252 = arith.negf %251 : vector<8x128xf32>
    %253 = math.exp %252 : vector<8x128xf32>
    %cst_85 = arith.constant 1.000000e+00 : f32
    %254 = vector.broadcast %cst_85 : f32 to vector<8x128xf32>
    %255 = arith.addf %254, %253 : vector<8x128xf32>
    %256 = arith.divf %254, %255 : vector<8x128xf32>
    %257 = vector.extract_strided_slice %237 {offsets = [0, 256], sizes = [8, 128], strides = [1, 1]} : vector<8x384xf32> to vector<8x128xf32>
    %258 = vector.extract_strided_slice %233 {offsets = [0, 256], sizes = [8, 128], strides = [1, 1]} : vector<8x384xf32> to vector<8x128xf32>
    %259 = arith.mulf %248, %258 : vector<8x128xf32>
    %260 = arith.addf %257, %259 : vector<8x128xf32>
    %261 = math.tanh %260 : vector<8x128xf32>
    %cst_86 = arith.constant 1.000000e+00 : f32
    %262 = vector.broadcast %cst_86 : f32 to vector<8x128xf32>
    %263 = arith.subf %262, %256 : vector<8x128xf32>
    %264 = arith.mulf %263, %261 : vector<8x128xf32>
    %265 = arith.mulf %256, %194 : vector<8x128xf32>
    %266 = arith.addf %264, %265 : vector<8x128xf32>
    %267 = vector.extract_strided_slice %240 {offsets = [0, 0], sizes = [8, 128], strides = [1, 1]} : vector<8x384xf32> to vector<8x128xf32>
    %268 = vector.extract_strided_slice %234 {offsets = [0, 0], sizes = [8, 128], strides = [1, 1]} : vector<8x384xf32> to vector<8x128xf32>
    %269 = arith.addf %267, %268 : vector<8x128xf32>
    %270 = arith.negf %269 : vector<8x128xf32>
    %271 = math.exp %270 : vector<8x128xf32>
    %cst_87 = arith.constant 1.000000e+00 : f32
    %272 = vector.broadcast %cst_87 : f32 to vector<8x128xf32>
    %273 = arith.addf %272, %271 : vector<8x128xf32>
    %274 = arith.divf %272, %273 : vector<8x128xf32>
    %275 = vector.extract_strided_slice %240 {offsets = [0, 128], sizes = [8, 128], strides = [1, 1]} : vector<8x384xf32> to vector<8x128xf32>
    %276 = vector.extract_strided_slice %234 {offsets = [0, 128], sizes = [8, 128], strides = [1, 1]} : vector<8x384xf32> to vector<8x128xf32>
    %277 = arith.addf %275, %276 : vector<8x128xf32>
    %278 = arith.negf %277 : vector<8x128xf32>
    %279 = math.exp %278 : vector<8x128xf32>
    %cst_88 = arith.constant 1.000000e+00 : f32
    %280 = vector.broadcast %cst_88 : f32 to vector<8x128xf32>
    %281 = arith.addf %280, %279 : vector<8x128xf32>
    %282 = arith.divf %280, %281 : vector<8x128xf32>
    %283 = vector.extract_strided_slice %240 {offsets = [0, 256], sizes = [8, 128], strides = [1, 1]} : vector<8x384xf32> to vector<8x128xf32>
    %284 = vector.extract_strided_slice %234 {offsets = [0, 256], sizes = [8, 128], strides = [1, 1]} : vector<8x384xf32> to vector<8x128xf32>
    %285 = arith.mulf %274, %284 : vector<8x128xf32>
    %286 = arith.addf %283, %285 : vector<8x128xf32>
    %287 = math.tanh %286 : vector<8x128xf32>
    %cst_89 = arith.constant 1.000000e+00 : f32
    %288 = vector.broadcast %cst_89 : f32 to vector<8x128xf32>
    %289 = arith.subf %288, %282 : vector<8x128xf32>
    %290 = arith.mulf %289, %287 : vector<8x128xf32>
    %291 = arith.mulf %282, %220 : vector<8x128xf32>
    %292 = arith.addf %290, %291 : vector<8x128xf32>
    %c3_90 = arith.constant 3 : index
    %c0_91 = arith.constant 0 : index
    %c0_92 = arith.constant 0 : index
    %293 = vector.load %arg5[%c3_90, %c0_91, %c0_92] : memref<8x8x128xf32, #tpu.memory_space<vmem>>, vector<1x8x128xf32>
    %294 = vector.shape_cast %293 : vector<1x8x128xf32> to vector<8x128xf32>
    %295 = vector.shape_cast %266 : vector<8x128xf32> to vector<1x8x128xf32>
    tpu.vector_store %arg5[%c3_90, %c0_91, %c0_92], %295 {strides = array<i32>} : memref<8x8x128xf32, #tpu.memory_space<vmem>>, vector<1x8x128xf32>,
    %c4_93 = arith.constant 4 : index
    %c0_94 = arith.constant 0 : index
    %c0_95 = arith.constant 0 : index
    %296 = vector.load %arg6[%c4_93, %c0_94, %c0_95] : memref<8x8x128xf32, #tpu.memory_space<vmem>>, vector<1x8x128xf32>
    %297 = vector.shape_cast %296 : vector<1x8x128xf32> to vector<8x128xf32>
    %298 = vector.shape_cast %292 : vector<8x128xf32> to vector<1x8x128xf32>
    tpu.vector_store %arg6[%c4_93, %c0_94, %c0_95], %298 {strides = array<i32>} : memref<8x8x128xf32, #tpu.memory_space<vmem>>, vector<1x8x128xf32>,
    %299 = tpu.concatenate %266, %292 in 0 : vector<8x128xf32>, vector<8x128xf32> -> vector<16x128xf32>
    %c0_96 = arith.constant 0 : index
    %c0_97 = arith.constant 0 : index
    %300 = vector.load %arg2[%c0_96, %c0_97] : memref<128x768xf32, #tpu.memory_space<vmem>>, vector<128x768xf32>
    %cst_98 = arith.constant dense<0.000000e+00> : vector<16x768xf32>
    %301 = tpu.matmul %299, %300, %cst_98 {dimension_numbers = #tpu.dot_dimension_numbers<[1], [0], [0], [1], [0, 0, 1, 1], [], []>} : vector<16x128xf32>, vector<128x768xf32>, vector<16x768xf32> -> vector<16x768xf32>
    %c0_99 = arith.constant 0 : index
    %c0_100 = arith.constant 0 : index
    %302 = vector.load %arg4[%c0_99, %c0_100] : memref<1x768xf32, #tpu.memory_space<vmem>>, vector<1x768xf32>
    %303 = vector.broadcast %302 : vector<1x768xf32> to vector<16x768xf32>
    %304 = arith.addf %301, %303 : vector<16x768xf32>
    %305 = vector.extract_strided_slice %304 {offsets = [0, 0], sizes = [8, 384], strides = [1, 1]} : vector<16x768xf32> to vector<8x384xf32>
    %306 = vector.extract_strided_slice %304 {offsets = [8, 384], sizes = [8, 384], strides = [1, 1]} : vector<16x768xf32> to vector<8x384xf32>
    %c4_101 = arith.constant 4 : index
    %c0_102 = arith.constant 0 : index
    %c0_103 = arith.constant 0 : index
    %307 = vector.load %arg8[%c4_101, %c0_102, %c0_103] : memref<8x8x768xf32, #tpu.memory_space<vmem>>, vector<1x8x768xf32>
    %308 = vector.shape_cast %307 : vector<1x8x768xf32> to vector<8x768xf32>
    %309 = vector.extract_strided_slice %308 {offsets = [0, 0], sizes = [8, 384], strides = [1, 1]} : vector<8x768xf32> to vector<8x384xf32>
    %c3_104 = arith.constant 3 : index
    %c0_105 = arith.constant 0 : index
    %c0_106 = arith.constant 0 : index
    %310 = vector.load %arg8[%c3_104, %c0_105, %c0_106] : memref<8x8x768xf32, #tpu.memory_space<vmem>>, vector<1x8x768xf32>
    %311 = vector.shape_cast %310 : vector<1x8x768xf32> to vector<8x768xf32>
    %312 = vector.extract_strided_slice %311 {offsets = [0, 384], sizes = [8, 384], strides = [1, 1]} : vector<8x768xf32> to vector<8x384xf32>
    %313 = vector.extract_strided_slice %309 {offsets = [0, 0], sizes = [8, 128], strides = [1, 1]} : vector<8x384xf32> to vector<8x128xf32>
    %314 = vector.extract_strided_slice %305 {offsets = [0, 0], sizes = [8, 128], strides = [1, 1]} : vector<8x384xf32> to vector<8x128xf32>
    %315 = arith.addf %313, %314 : vector<8x128xf32>
    %316 = arith.negf %315 : vector<8x128xf32>
    %317 = math.exp %316 : vector<8x128xf32>
    %cst_107 = arith.constant 1.000000e+00 : f32
    %318 = vector.broadcast %cst_107 : f32 to vector<8x128xf32>
    %319 = arith.addf %318, %317 : vector<8x128xf32>
    %320 = arith.divf %318, %319 : vector<8x128xf32>
    %321 = vector.extract_strided_slice %309 {offsets = [0, 128], sizes = [8, 128], strides = [1, 1]} : vector<8x384xf32> to vector<8x128xf32>
    %322 = vector.extract_strided_slice %305 {offsets = [0, 128], sizes = [8, 128], strides = [1, 1]} : vector<8x384xf32> to vector<8x128xf32>
    %323 = arith.addf %321, %322 : vector<8x128xf32>
    %324 = arith.negf %323 : vector<8x128xf32>
    %325 = math.exp %324 : vector<8x128xf32>
    %cst_108 = arith.constant 1.000000e+00 : f32
    %326 = vector.broadcast %cst_108 : f32 to vector<8x128xf32>
    %327 = arith.addf %326, %325 : vector<8x128xf32>
    %328 = arith.divf %326, %327 : vector<8x128xf32>
    %329 = vector.extract_strided_slice %309 {offsets = [0, 256], sizes = [8, 128], strides = [1, 1]} : vector<8x384xf32> to vector<8x128xf32>
    %330 = vector.extract_strided_slice %305 {offsets = [0, 256], sizes = [8, 128], strides = [1, 1]} : vector<8x384xf32> to vector<8x128xf32>
    %331 = arith.mulf %320, %330 : vector<8x128xf32>
    %332 = arith.addf %329, %331 : vector<8x128xf32>
    %333 = math.tanh %332 : vector<8x128xf32>
    %cst_109 = arith.constant 1.000000e+00 : f32
    %334 = vector.broadcast %cst_109 : f32 to vector<8x128xf32>
    %335 = arith.subf %334, %328 : vector<8x128xf32>
    %336 = arith.mulf %335, %333 : vector<8x128xf32>
    %337 = arith.mulf %328, %266 : vector<8x128xf32>
    %338 = arith.addf %336, %337 : vector<8x128xf32>
    %339 = vector.extract_strided_slice %312 {offsets = [0, 0], sizes = [8, 128], strides = [1, 1]} : vector<8x384xf32> to vector<8x128xf32>
    %340 = vector.extract_strided_slice %306 {offsets = [0, 0], sizes = [8, 128], strides = [1, 1]} : vector<8x384xf32> to vector<8x128xf32>
    %341 = arith.addf %339, %340 : vector<8x128xf32>
    %342 = arith.negf %341 : vector<8x128xf32>
    %343 = math.exp %342 : vector<8x128xf32>
    %cst_110 = arith.constant 1.000000e+00 : f32
    %344 = vector.broadcast %cst_110 : f32 to vector<8x128xf32>
    %345 = arith.addf %344, %343 : vector<8x128xf32>
    %346 = arith.divf %344, %345 : vector<8x128xf32>
    %347 = vector.extract_strided_slice %312 {offsets = [0, 128], sizes = [8, 128], strides = [1, 1]} : vector<8x384xf32> to vector<8x128xf32>
    %348 = vector.extract_strided_slice %306 {offsets = [0, 128], sizes = [8, 128], strides = [1, 1]} : vector<8x384xf32> to vector<8x128xf32>
    %349 = arith.addf %347, %348 : vector<8x128xf32>
    %350 = arith.negf %349 : vector<8x128xf32>
    %351 = math.exp %350 : vector<8x128xf32>
    %cst_111 = arith.constant 1.000000e+00 : f32
    %352 = vector.broadcast %cst_111 : f32 to vector<8x128xf32>
    %353 = arith.addf %352, %351 : vector<8x128xf32>
    %354 = arith.divf %352, %353 : vector<8x128xf32>
    %355 = vector.extract_strided_slice %312 {offsets = [0, 256], sizes = [8, 128], strides = [1, 1]} : vector<8x384xf32> to vector<8x128xf32>
    %356 = vector.extract_strided_slice %306 {offsets = [0, 256], sizes = [8, 128], strides = [1, 1]} : vector<8x384xf32> to vector<8x128xf32>
    %357 = arith.mulf %346, %356 : vector<8x128xf32>
    %358 = arith.addf %355, %357 : vector<8x128xf32>
    %359 = math.tanh %358 : vector<8x128xf32>
    %cst_112 = arith.constant 1.000000e+00 : f32
    %360 = vector.broadcast %cst_112 : f32 to vector<8x128xf32>
    %361 = arith.subf %360, %354 : vector<8x128xf32>
    %362 = arith.mulf %361, %359 : vector<8x128xf32>
    %363 = arith.mulf %354, %292 : vector<8x128xf32>
    %364 = arith.addf %362, %363 : vector<8x128xf32>
    %c4_113 = arith.constant 4 : index
    %c0_114 = arith.constant 0 : index
    %c0_115 = arith.constant 0 : index
    %365 = vector.load %arg5[%c4_113, %c0_114, %c0_115] : memref<8x8x128xf32, #tpu.memory_space<vmem>>, vector<1x8x128xf32>
    %366 = vector.shape_cast %365 : vector<1x8x128xf32> to vector<8x128xf32>
    %367 = vector.shape_cast %338 : vector<8x128xf32> to vector<1x8x128xf32>
    tpu.vector_store %arg5[%c4_113, %c0_114, %c0_115], %367 {strides = array<i32>} : memref<8x8x128xf32, #tpu.memory_space<vmem>>, vector<1x8x128xf32>,
    %c3_116 = arith.constant 3 : index
    %c0_117 = arith.constant 0 : index
    %c0_118 = arith.constant 0 : index
    %368 = vector.load %arg6[%c3_116, %c0_117, %c0_118] : memref<8x8x128xf32, #tpu.memory_space<vmem>>, vector<1x8x128xf32>
    %369 = vector.shape_cast %368 : vector<1x8x128xf32> to vector<8x128xf32>
    %370 = vector.shape_cast %364 : vector<8x128xf32> to vector<1x8x128xf32>
    tpu.vector_store %arg6[%c3_116, %c0_117, %c0_118], %370 {strides = array<i32>} : memref<8x8x128xf32, #tpu.memory_space<vmem>>, vector<1x8x128xf32>,
    %371 = tpu.concatenate %338, %364 in 0 : vector<8x128xf32>, vector<8x128xf32> -> vector<16x128xf32>
    %c0_119 = arith.constant 0 : index
    %c0_120 = arith.constant 0 : index
    %372 = vector.load %arg2[%c0_119, %c0_120] : memref<128x768xf32, #tpu.memory_space<vmem>>, vector<128x768xf32>
    %cst_121 = arith.constant dense<0.000000e+00> : vector<16x768xf32>
    %373 = tpu.matmul %371, %372, %cst_121 {dimension_numbers = #tpu.dot_dimension_numbers<[1], [0], [0], [1], [0, 0, 1, 1], [], []>} : vector<16x128xf32>, vector<128x768xf32>, vector<16x768xf32> -> vector<16x768xf32>
    %c0_122 = arith.constant 0 : index
    %c0_123 = arith.constant 0 : index
    %374 = vector.load %arg4[%c0_122, %c0_123] : memref<1x768xf32, #tpu.memory_space<vmem>>, vector<1x768xf32>
    %375 = vector.broadcast %374 : vector<1x768xf32> to vector<16x768xf32>
    %376 = arith.addf %373, %375 : vector<16x768xf32>
    %377 = vector.extract_strided_slice %376 {offsets = [0, 0], sizes = [8, 384], strides = [1, 1]} : vector<16x768xf32> to vector<8x384xf32>
    %378 = vector.extract_strided_slice %376 {offsets = [8, 384], sizes = [8, 384], strides = [1, 1]} : vector<16x768xf32> to vector<8x384xf32>
    %c5_124 = arith.constant 5 : index
    %c0_125 = arith.constant 0 : index
    %c0_126 = arith.constant 0 : index
    %379 = vector.load %arg8[%c5_124, %c0_125, %c0_126] : memref<8x8x768xf32, #tpu.memory_space<vmem>>, vector<1x8x768xf32>
    %380 = vector.shape_cast %379 : vector<1x8x768xf32> to vector<8x768xf32>
    %381 = vector.extract_strided_slice %380 {offsets = [0, 0], sizes = [8, 384], strides = [1, 1]} : vector<8x768xf32> to vector<8x384xf32>
    %c2_127 = arith.constant 2 : index
    %c0_128 = arith.constant 0 : index
    %c0_129 = arith.constant 0 : index
    %382 = vector.load %arg8[%c2_127, %c0_128, %c0_129] : memref<8x8x768xf32, #tpu.memory_space<vmem>>, vector<1x8x768xf32>
    %383 = vector.shape_cast %382 : vector<1x8x768xf32> to vector<8x768xf32>
    %384 = vector.extract_strided_slice %383 {offsets = [0, 384], sizes = [8, 384], strides = [1, 1]} : vector<8x768xf32> to vector<8x384xf32>
    %385 = vector.extract_strided_slice %381 {offsets = [0, 0], sizes = [8, 128], strides = [1, 1]} : vector<8x384xf32> to vector<8x128xf32>
    %386 = vector.extract_strided_slice %377 {offsets = [0, 0], sizes = [8, 128], strides = [1, 1]} : vector<8x384xf32> to vector<8x128xf32>
    %387 = arith.addf %385, %386 : vector<8x128xf32>
    %388 = arith.negf %387 : vector<8x128xf32>
    %389 = math.exp %388 : vector<8x128xf32>
    %cst_130 = arith.constant 1.000000e+00 : f32
    %390 = vector.broadcast %cst_130 : f32 to vector<8x128xf32>
    %391 = arith.addf %390, %389 : vector<8x128xf32>
    %392 = arith.divf %390, %391 : vector<8x128xf32>
    %393 = vector.extract_strided_slice %381 {offsets = [0, 128], sizes = [8, 128], strides = [1, 1]} : vector<8x384xf32> to vector<8x128xf32>
    %394 = vector.extract_strided_slice %377 {offsets = [0, 128], sizes = [8, 128], strides = [1, 1]} : vector<8x384xf32> to vector<8x128xf32>
    %395 = arith.addf %393, %394 : vector<8x128xf32>
    %396 = arith.negf %395 : vector<8x128xf32>
    %397 = math.exp %396 : vector<8x128xf32>
    %cst_131 = arith.constant 1.000000e+00 : f32
    %398 = vector.broadcast %cst_131 : f32 to vector<8x128xf32>
    %399 = arith.addf %398, %397 : vector<8x128xf32>
    %400 = arith.divf %398, %399 : vector<8x128xf32>
    %401 = vector.extract_strided_slice %381 {offsets = [0, 256], sizes = [8, 128], strides = [1, 1]} : vector<8x384xf32> to vector<8x128xf32>
    %402 = vector.extract_strided_slice %377 {offsets = [0, 256], sizes = [8, 128], strides = [1, 1]} : vector<8x384xf32> to vector<8x128xf32>
    %403 = arith.mulf %392, %402 : vector<8x128xf32>
    %404 = arith.addf %401, %403 : vector<8x128xf32>
    %405 = math.tanh %404 : vector<8x128xf32>
    %cst_132 = arith.constant 1.000000e+00 : f32
    %406 = vector.broadcast %cst_132 : f32 to vector<8x128xf32>
    %407 = arith.subf %406, %400 : vector<8x128xf32>
    %408 = arith.mulf %407, %405 : vector<8x128xf32>
    %409 = arith.mulf %400, %338 : vector<8x128xf32>
    %410 = arith.addf %408, %409 : vector<8x128xf32>
    %411 = vector.extract_strided_slice %384 {offsets = [0, 0], sizes = [8, 128], strides = [1, 1]} : vector<8x384xf32> to vector<8x128xf32>
    %412 = vector.extract_strided_slice %378 {offsets = [0, 0], sizes = [8, 128], strides = [1, 1]} : vector<8x384xf32> to vector<8x128xf32>
    %413 = arith.addf %411, %412 : vector<8x128xf32>
    %414 = arith.negf %413 : vector<8x128xf32>
    %415 = math.exp %414 : vector<8x128xf32>
    %cst_133 = arith.constant 1.000000e+00 : f32
    %416 = vector.broadcast %cst_133 : f32 to vector<8x128xf32>
    %417 = arith.addf %416, %415 : vector<8x128xf32>
    %418 = arith.divf %416, %417 : vector<8x128xf32>
    %419 = vector.extract_strided_slice %384 {offsets = [0, 128], sizes = [8, 128], strides = [1, 1]} : vector<8x384xf32> to vector<8x128xf32>
    %420 = vector.extract_strided_slice %378 {offsets = [0, 128], sizes = [8, 128], strides = [1, 1]} : vector<8x384xf32> to vector<8x128xf32>
    %421 = arith.addf %419, %420 : vector<8x128xf32>
    %422 = arith.negf %421 : vector<8x128xf32>
    %423 = math.exp %422 : vector<8x128xf32>
    %cst_134 = arith.constant 1.000000e+00 : f32
    %424 = vector.broadcast %cst_134 : f32 to vector<8x128xf32>
    %425 = arith.addf %424, %423 : vector<8x128xf32>
    %426 = arith.divf %424, %425 : vector<8x128xf32>
    %427 = vector.extract_strided_slice %384 {offsets = [0, 256], sizes = [8, 128], strides = [1, 1]} : vector<8x384xf32> to vector<8x128xf32>
    %428 = vector.extract_strided_slice %378 {offsets = [0, 256], sizes = [8, 128], strides = [1, 1]} : vector<8x384xf32> to vector<8x128xf32>
    %429 = arith.mulf %418, %428 : vector<8x128xf32>
    %430 = arith.addf %427, %429 : vector<8x128xf32>
    %431 = math.tanh %430 : vector<8x128xf32>
    %cst_135 = arith.constant 1.000000e+00 : f32
    %432 = vector.broadcast %cst_135 : f32 to vector<8x128xf32>
    %433 = arith.subf %432, %426 : vector<8x128xf32>
    %434 = arith.mulf %433, %431 : vector<8x128xf32>
    %435 = arith.mulf %426, %364 : vector<8x128xf32>
    %436 = arith.addf %434, %435 : vector<8x128xf32>
    %c5_136 = arith.constant 5 : index
    %c0_137 = arith.constant 0 : index
    %c0_138 = arith.constant 0 : index
    %437 = vector.load %arg5[%c5_136, %c0_137, %c0_138] : memref<8x8x128xf32, #tpu.memory_space<vmem>>, vector<1x8x128xf32>
    %438 = vector.shape_cast %437 : vector<1x8x128xf32> to vector<8x128xf32>
    %439 = vector.shape_cast %410 : vector<8x128xf32> to vector<1x8x128xf32>
    tpu.vector_store %arg5[%c5_136, %c0_137, %c0_138], %439 {strides = array<i32>} : memref<8x8x128xf32, #tpu.memory_space<vmem>>, vector<1x8x128xf32>,
    %c2_139 = arith.constant 2 : index
    %c0_140 = arith.constant 0 : index
    %c0_141 = arith.constant 0 : index
    %440 = vector.load %arg6[%c2_139, %c0_140, %c0_141] : memref<8x8x128xf32, #tpu.memory_space<vmem>>, vector<1x8x128xf32>
    %441 = vector.shape_cast %440 : vector<1x8x128xf32> to vector<8x128xf32>
    %442 = vector.shape_cast %436 : vector<8x128xf32> to vector<1x8x128xf32>
    tpu.vector_store %arg6[%c2_139, %c0_140, %c0_141], %442 {strides = array<i32>} : memref<8x8x128xf32, #tpu.memory_space<vmem>>, vector<1x8x128xf32>,
    %443 = tpu.concatenate %410, %436 in 0 : vector<8x128xf32>, vector<8x128xf32> -> vector<16x128xf32>
    %c0_142 = arith.constant 0 : index
    %c0_143 = arith.constant 0 : index
    %444 = vector.load %arg2[%c0_142, %c0_143] : memref<128x768xf32, #tpu.memory_space<vmem>>, vector<128x768xf32>
    %cst_144 = arith.constant dense<0.000000e+00> : vector<16x768xf32>
    %445 = tpu.matmul %443, %444, %cst_144 {dimension_numbers = #tpu.dot_dimension_numbers<[1], [0], [0], [1], [0, 0, 1, 1], [], []>} : vector<16x128xf32>, vector<128x768xf32>, vector<16x768xf32> -> vector<16x768xf32>
    %c0_145 = arith.constant 0 : index
    %c0_146 = arith.constant 0 : index
    %446 = vector.load %arg4[%c0_145, %c0_146] : memref<1x768xf32, #tpu.memory_space<vmem>>, vector<1x768xf32>
    %447 = vector.broadcast %446 : vector<1x768xf32> to vector<16x768xf32>
    %448 = arith.addf %445, %447 : vector<16x768xf32>
    %449 = vector.extract_strided_slice %448 {offsets = [0, 0], sizes = [8, 384], strides = [1, 1]} : vector<16x768xf32> to vector<8x384xf32>
    %450 = vector.extract_strided_slice %448 {offsets = [8, 384], sizes = [8, 384], strides = [1, 1]} : vector<16x768xf32> to vector<8x384xf32>
    %c6_147 = arith.constant 6 : index
    %c0_148 = arith.constant 0 : index
    %c0_149 = arith.constant 0 : index
    %451 = vector.load %arg8[%c6_147, %c0_148, %c0_149] : memref<8x8x768xf32, #tpu.memory_space<vmem>>, vector<1x8x768xf32>
    %452 = vector.shape_cast %451 : vector<1x8x768xf32> to vector<8x768xf32>
    %453 = vector.extract_strided_slice %452 {offsets = [0, 0], sizes = [8, 384], strides = [1, 1]} : vector<8x768xf32> to vector<8x384xf32>
    %c1_150 = arith.constant 1 : index
    %c0_151 = arith.constant 0 : index
    %c0_152 = arith.constant 0 : index
    %454 = vector.load %arg8[%c1_150, %c0_151, %c0_152] : memref<8x8x768xf32, #tpu.memory_space<vmem>>, vector<1x8x768xf32>
    %455 = vector.shape_cast %454 : vector<1x8x768xf32> to vector<8x768xf32>
    %456 = vector.extract_strided_slice %455 {offsets = [0, 384], sizes = [8, 384], strides = [1, 1]} : vector<8x768xf32> to vector<8x384xf32>
    %457 = vector.extract_strided_slice %453 {offsets = [0, 0], sizes = [8, 128], strides = [1, 1]} : vector<8x384xf32> to vector<8x128xf32>
    %458 = vector.extract_strided_slice %449 {offsets = [0, 0], sizes = [8, 128], strides = [1, 1]} : vector<8x384xf32> to vector<8x128xf32>
    %459 = arith.addf %457, %458 : vector<8x128xf32>
    %460 = arith.negf %459 : vector<8x128xf32>
    %461 = math.exp %460 : vector<8x128xf32>
    %cst_153 = arith.constant 1.000000e+00 : f32
    %462 = vector.broadcast %cst_153 : f32 to vector<8x128xf32>
    %463 = arith.addf %462, %461 : vector<8x128xf32>
    %464 = arith.divf %462, %463 : vector<8x128xf32>
    %465 = vector.extract_strided_slice %453 {offsets = [0, 128], sizes = [8, 128], strides = [1, 1]} : vector<8x384xf32> to vector<8x128xf32>
    %466 = vector.extract_strided_slice %449 {offsets = [0, 128], sizes = [8, 128], strides = [1, 1]} : vector<8x384xf32> to vector<8x128xf32>
    %467 = arith.addf %465, %466 : vector<8x128xf32>
    %468 = arith.negf %467 : vector<8x128xf32>
    %469 = math.exp %468 : vector<8x128xf32>
    %cst_154 = arith.constant 1.000000e+00 : f32
    %470 = vector.broadcast %cst_154 : f32 to vector<8x128xf32>
    %471 = arith.addf %470, %469 : vector<8x128xf32>
    %472 = arith.divf %470, %471 : vector<8x128xf32>
    %473 = vector.extract_strided_slice %453 {offsets = [0, 256], sizes = [8, 128], strides = [1, 1]} : vector<8x384xf32> to vector<8x128xf32>
    %474 = vector.extract_strided_slice %449 {offsets = [0, 256], sizes = [8, 128], strides = [1, 1]} : vector<8x384xf32> to vector<8x128xf32>
    %475 = arith.mulf %464, %474 : vector<8x128xf32>
    %476 = arith.addf %473, %475 : vector<8x128xf32>
    %477 = math.tanh %476 : vector<8x128xf32>
    %cst_155 = arith.constant 1.000000e+00 : f32
    %478 = vector.broadcast %cst_155 : f32 to vector<8x128xf32>
    %479 = arith.subf %478, %472 : vector<8x128xf32>
    %480 = arith.mulf %479, %477 : vector<8x128xf32>
    %481 = arith.mulf %472, %410 : vector<8x128xf32>
    %482 = arith.addf %480, %481 : vector<8x128xf32>
    %483 = vector.extract_strided_slice %456 {offsets = [0, 0], sizes = [8, 128], strides = [1, 1]} : vector<8x384xf32> to vector<8x128xf32>
    %484 = vector.extract_strided_slice %450 {offsets = [0, 0], sizes = [8, 128], strides = [1, 1]} : vector<8x384xf32> to vector<8x128xf32>
    %485 = arith.addf %483, %484 : vector<8x128xf32>
    %486 = arith.negf %485 : vector<8x128xf32>
    %487 = math.exp %486 : vector<8x128xf32>
    %cst_156 = arith.constant 1.000000e+00 : f32
    %488 = vector.broadcast %cst_156 : f32 to vector<8x128xf32>
    %489 = arith.addf %488, %487 : vector<8x128xf32>
    %490 = arith.divf %488, %489 : vector<8x128xf32>
    %491 = vector.extract_strided_slice %456 {offsets = [0, 128], sizes = [8, 128], strides = [1, 1]} : vector<8x384xf32> to vector<8x128xf32>
    %492 = vector.extract_strided_slice %450 {offsets = [0, 128], sizes = [8, 128], strides = [1, 1]} : vector<8x384xf32> to vector<8x128xf32>
    %493 = arith.addf %491, %492 : vector<8x128xf32>
    %494 = arith.negf %493 : vector<8x128xf32>
    %495 = math.exp %494 : vector<8x128xf32>
    %cst_157 = arith.constant 1.000000e+00 : f32
    %496 = vector.broadcast %cst_157 : f32 to vector<8x128xf32>
    %497 = arith.addf %496, %495 : vector<8x128xf32>
    %498 = arith.divf %496, %497 : vector<8x128xf32>
    %499 = vector.extract_strided_slice %456 {offsets = [0, 256], sizes = [8, 128], strides = [1, 1]} : vector<8x384xf32> to vector<8x128xf32>
    %500 = vector.extract_strided_slice %450 {offsets = [0, 256], sizes = [8, 128], strides = [1, 1]} : vector<8x384xf32> to vector<8x128xf32>
    %501 = arith.mulf %490, %500 : vector<8x128xf32>
    %502 = arith.addf %499, %501 : vector<8x128xf32>
    %503 = math.tanh %502 : vector<8x128xf32>
    %cst_158 = arith.constant 1.000000e+00 : f32
    %504 = vector.broadcast %cst_158 : f32 to vector<8x128xf32>
    %505 = arith.subf %504, %498 : vector<8x128xf32>
    %506 = arith.mulf %505, %503 : vector<8x128xf32>
    %507 = arith.mulf %498, %436 : vector<8x128xf32>
    %508 = arith.addf %506, %507 : vector<8x128xf32>
    %c6_159 = arith.constant 6 : index
    %c0_160 = arith.constant 0 : index
    %c0_161 = arith.constant 0 : index
    %509 = vector.load %arg5[%c6_159, %c0_160, %c0_161] : memref<8x8x128xf32, #tpu.memory_space<vmem>>, vector<1x8x128xf32>
    %510 = vector.shape_cast %509 : vector<1x8x128xf32> to vector<8x128xf32>
    %511 = vector.shape_cast %482 : vector<8x128xf32> to vector<1x8x128xf32>
    tpu.vector_store %arg5[%c6_159, %c0_160, %c0_161], %511 {strides = array<i32>} : memref<8x8x128xf32, #tpu.memory_space<vmem>>, vector<1x8x128xf32>,
    %c1_162 = arith.constant 1 : index
    %c0_163 = arith.constant 0 : index
    %c0_164 = arith.constant 0 : index
    %512 = vector.load %arg6[%c1_162, %c0_163, %c0_164] : memref<8x8x128xf32, #tpu.memory_space<vmem>>, vector<1x8x128xf32>
    %513 = vector.shape_cast %512 : vector<1x8x128xf32> to vector<8x128xf32>
    %514 = vector.shape_cast %508 : vector<8x128xf32> to vector<1x8x128xf32>
    tpu.vector_store %arg6[%c1_162, %c0_163, %c0_164], %514 {strides = array<i32>} : memref<8x8x128xf32, #tpu.memory_space<vmem>>, vector<1x8x128xf32>,
    %515 = tpu.concatenate %482, %508 in 0 : vector<8x128xf32>, vector<8x128xf32> -> vector<16x128xf32>
    %c0_165 = arith.constant 0 : index
    %c0_166 = arith.constant 0 : index
    %516 = vector.load %arg2[%c0_165, %c0_166] : memref<128x768xf32, #tpu.memory_space<vmem>>, vector<128x768xf32>
    %cst_167 = arith.constant dense<0.000000e+00> : vector<16x768xf32>
    %517 = tpu.matmul %515, %516, %cst_167 {dimension_numbers = #tpu.dot_dimension_numbers<[1], [0], [0], [1], [0, 0, 1, 1], [], []>} : vector<16x128xf32>, vector<128x768xf32>, vector<16x768xf32> -> vector<16x768xf32>
    %c0_168 = arith.constant 0 : index
    %c0_169 = arith.constant 0 : index
    %518 = vector.load %arg4[%c0_168, %c0_169] : memref<1x768xf32, #tpu.memory_space<vmem>>, vector<1x768xf32>
    %519 = vector.broadcast %518 : vector<1x768xf32> to vector<16x768xf32>
    %520 = arith.addf %517, %519 : vector<16x768xf32>
    %521 = vector.extract_strided_slice %520 {offsets = [0, 0], sizes = [8, 384], strides = [1, 1]} : vector<16x768xf32> to vector<8x384xf32>
    %522 = vector.extract_strided_slice %520 {offsets = [8, 384], sizes = [8, 384], strides = [1, 1]} : vector<16x768xf32> to vector<8x384xf32>
    %c7_170 = arith.constant 7 : index
    %c0_171 = arith.constant 0 : index
    %c0_172 = arith.constant 0 : index
    %523 = vector.load %arg8[%c7_170, %c0_171, %c0_172] : memref<8x8x768xf32, #tpu.memory_space<vmem>>, vector<1x8x768xf32>
    %524 = vector.shape_cast %523 : vector<1x8x768xf32> to vector<8x768xf32>
    %525 = vector.extract_strided_slice %524 {offsets = [0, 0], sizes = [8, 384], strides = [1, 1]} : vector<8x768xf32> to vector<8x384xf32>
    %c0_173 = arith.constant 0 : index
    %c0_174 = arith.constant 0 : index
    %c0_175 = arith.constant 0 : index
    %526 = vector.load %arg8[%c0_173, %c0_174, %c0_175] : memref<8x8x768xf32, #tpu.memory_space<vmem>>, vector<1x8x768xf32>
    %527 = vector.shape_cast %526 : vector<1x8x768xf32> to vector<8x768xf32>
    %528 = vector.extract_strided_slice %527 {offsets = [0, 384], sizes = [8, 384], strides = [1, 1]} : vector<8x768xf32> to vector<8x384xf32>
    %529 = vector.extract_strided_slice %525 {offsets = [0, 0], sizes = [8, 128], strides = [1, 1]} : vector<8x384xf32> to vector<8x128xf32>
    %530 = vector.extract_strided_slice %521 {offsets = [0, 0], sizes = [8, 128], strides = [1, 1]} : vector<8x384xf32> to vector<8x128xf32>
    %531 = arith.addf %529, %530 : vector<8x128xf32>
    %532 = arith.negf %531 : vector<8x128xf32>
    %533 = math.exp %532 : vector<8x128xf32>
    %cst_176 = arith.constant 1.000000e+00 : f32
    %534 = vector.broadcast %cst_176 : f32 to vector<8x128xf32>
    %535 = arith.addf %534, %533 : vector<8x128xf32>
    %536 = arith.divf %534, %535 : vector<8x128xf32>
    %537 = vector.extract_strided_slice %525 {offsets = [0, 128], sizes = [8, 128], strides = [1, 1]} : vector<8x384xf32> to vector<8x128xf32>
    %538 = vector.extract_strided_slice %521 {offsets = [0, 128], sizes = [8, 128], strides = [1, 1]} : vector<8x384xf32> to vector<8x128xf32>
    %539 = arith.addf %537, %538 : vector<8x128xf32>
    %540 = arith.negf %539 : vector<8x128xf32>
    %541 = math.exp %540 : vector<8x128xf32>
    %cst_177 = arith.constant 1.000000e+00 : f32
    %542 = vector.broadcast %cst_177 : f32 to vector<8x128xf32>
    %543 = arith.addf %542, %541 : vector<8x128xf32>
    %544 = arith.divf %542, %543 : vector<8x128xf32>
    %545 = vector.extract_strided_slice %525 {offsets = [0, 256], sizes = [8, 128], strides = [1, 1]} : vector<8x384xf32> to vector<8x128xf32>
    %546 = vector.extract_strided_slice %521 {offsets = [0, 256], sizes = [8, 128], strides = [1, 1]} : vector<8x384xf32> to vector<8x128xf32>
    %547 = arith.mulf %536, %546 : vector<8x128xf32>
    %548 = arith.addf %545, %547 : vector<8x128xf32>
    %549 = math.tanh %548 : vector<8x128xf32>
    %cst_178 = arith.constant 1.000000e+00 : f32
    %550 = vector.broadcast %cst_178 : f32 to vector<8x128xf32>
    %551 = arith.subf %550, %544 : vector<8x128xf32>
    %552 = arith.mulf %551, %549 : vector<8x128xf32>
    %553 = arith.mulf %544, %482 : vector<8x128xf32>
    %554 = arith.addf %552, %553 : vector<8x128xf32>
    %555 = vector.extract_strided_slice %528 {offsets = [0, 0], sizes = [8, 128], strides = [1, 1]} : vector<8x384xf32> to vector<8x128xf32>
    %556 = vector.extract_strided_slice %522 {offsets = [0, 0], sizes = [8, 128], strides = [1, 1]} : vector<8x384xf32> to vector<8x128xf32>
    %557 = arith.addf %555, %556 : vector<8x128xf32>
    %558 = arith.negf %557 : vector<8x128xf32>
    %559 = math.exp %558 : vector<8x128xf32>
    %cst_179 = arith.constant 1.000000e+00 : f32
    %560 = vector.broadcast %cst_179 : f32 to vector<8x128xf32>
    %561 = arith.addf %560, %559 : vector<8x128xf32>
    %562 = arith.divf %560, %561 : vector<8x128xf32>
    %563 = vector.extract_strided_slice %528 {offsets = [0, 128], sizes = [8, 128], strides = [1, 1]} : vector<8x384xf32> to vector<8x128xf32>
    %564 = vector.extract_strided_slice %522 {offsets = [0, 128], sizes = [8, 128], strides = [1, 1]} : vector<8x384xf32> to vector<8x128xf32>
    %565 = arith.addf %563, %564 : vector<8x128xf32>
    %566 = arith.negf %565 : vector<8x128xf32>
    %567 = math.exp %566 : vector<8x128xf32>
    %cst_180 = arith.constant 1.000000e+00 : f32
    %568 = vector.broadcast %cst_180 : f32 to vector<8x128xf32>
    %569 = arith.addf %568, %567 : vector<8x128xf32>
    %570 = arith.divf %568, %569 : vector<8x128xf32>
    %571 = vector.extract_strided_slice %528 {offsets = [0, 256], sizes = [8, 128], strides = [1, 1]} : vector<8x384xf32> to vector<8x128xf32>
    %572 = vector.extract_strided_slice %522 {offsets = [0, 256], sizes = [8, 128], strides = [1, 1]} : vector<8x384xf32> to vector<8x128xf32>
    %573 = arith.mulf %562, %572 : vector<8x128xf32>
    %574 = arith.addf %571, %573 : vector<8x128xf32>
    %575 = math.tanh %574 : vector<8x128xf32>
    %cst_181 = arith.constant 1.000000e+00 : f32
    %576 = vector.broadcast %cst_181 : f32 to vector<8x128xf32>
    %577 = arith.subf %576, %570 : vector<8x128xf32>
    %578 = arith.mulf %577, %575 : vector<8x128xf32>
    %579 = arith.mulf %570, %508 : vector<8x128xf32>
    %580 = arith.addf %578, %579 : vector<8x128xf32>
    %c7_182 = arith.constant 7 : index
    %c0_183 = arith.constant 0 : index
    %c0_184 = arith.constant 0 : index
    %581 = vector.load %arg5[%c7_182, %c0_183, %c0_184] : memref<8x8x128xf32, #tpu.memory_space<vmem>>, vector<1x8x128xf32>
    %582 = vector.shape_cast %581 : vector<1x8x128xf32> to vector<8x128xf32>
    %583 = vector.shape_cast %554 : vector<8x128xf32> to vector<1x8x128xf32>
    tpu.vector_store %arg5[%c7_182, %c0_183, %c0_184], %583 {strides = array<i32>} : memref<8x8x128xf32, #tpu.memory_space<vmem>>, vector<1x8x128xf32>,
    %c0_185 = arith.constant 0 : index
    %c0_186 = arith.constant 0 : index
    %c0_187 = arith.constant 0 : index
    %584 = vector.load %arg6[%c0_185, %c0_186, %c0_187] : memref<8x8x128xf32, #tpu.memory_space<vmem>>, vector<1x8x128xf32>
    %585 = vector.shape_cast %584 : vector<1x8x128xf32> to vector<8x128xf32>
    %586 = vector.shape_cast %580 : vector<8x128xf32> to vector<1x8x128xf32>
    tpu.vector_store %arg6[%c0_185, %c0_186, %c0_187], %586 {strides = array<i32>} : memref<8x8x128xf32, #tpu.memory_space<vmem>>, vector<1x8x128xf32>,
    %587 = tpu.concatenate %554, %580 in 1 : vector<8x128xf32>, vector<8x128xf32> -> vector<8x256xf32>
    %c0_188 = arith.constant 0 : index
    %c0_189 = arith.constant 0 : index
    %588 = vector.load %arg7[%c0_188, %c0_189] : memref<8x256xf32, #tpu.memory_space<vmem>>, vector<8x256xf32>
    tpu.vector_store %arg7[%c0_188, %c0_189], %587 {strides = array<i32>} : memref<8x256xf32, #tpu.memory_space<vmem>>, vector<8x256xf32>,
    return
  }
}

module attributes {stable_mosaic.version = 11 : i64} {
  func.func @_decoder_kernel(%arg0: memref<8x128xf32, #tpu.memory_space<vmem>>, %arg1: memref<8x512xf32, #tpu.memory_space<vmem>>, %arg2: memref<32x256xf32, #tpu.memory_space<vmem>>, %arg3: memref<64x256xf32, #tpu.memory_space<vmem>>, %arg4: memref<512x128xf32, #tpu.memory_space<vmem>>, %arg5: memref<1x128xf32, #tpu.memory_space<vmem>>, %arg6: memref<128x384xf32, #tpu.memory_space<vmem>>, %arg7: memref<128x384xf32, #tpu.memory_space<vmem>>, %arg8: memref<1x384xf32, #tpu.memory_space<vmem>>, %arg9: memref<1x384xf32, #tpu.memory_space<vmem>>, %arg10: memref<256x128xf32, #tpu.memory_space<vmem>>, %arg11: memref<256x128xf32, #tpu.memory_space<vmem>>, %arg12: memref<1x128xf32, #tpu.memory_space<vmem>>, %arg13: memref<1x256xf32, #tpu.memory_space<vmem>>, %arg14: memref<1x128xf32, #tpu.memory_space<vmem>>, %arg15: memref<8x128xf32, #tpu.memory_space<vmem>>, %arg16: memref<1x128xf32, #tpu.memory_space<vmem>>, %arg17: memref<8x128xf32, #tpu.memory_space<vmem>>) attributes {dimension_semantics = [], scalar_prefetch = 0 : i64, scratch_operands = 0 : i64, tpu.core_type = #tpu.core_type<tc>} {
    %c0 = arith.constant 0 : index
    %c0_0 = arith.constant 0 : index
    %0 = vector.load %arg0[%c0, %c0_0] : memref<8x128xf32, #tpu.memory_space<vmem>>, vector<8x128xf32>
    %c0_1 = arith.constant 0 : index
    %c0_2 = arith.constant 0 : index
    %1 = vector.load %arg1[%c0_1, %c0_2] : memref<8x512xf32, #tpu.memory_space<vmem>>, vector<8x512xf32>
    %c0_3 = arith.constant 0 : index
    %c0_4 = arith.constant 0 : index
    %2 = vector.load %arg4[%c0_3, %c0_4] : memref<512x128xf32, #tpu.memory_space<vmem>>, vector<512x128xf32>
    %cst = arith.constant dense<0.000000e+00> : vector<8x128xf32>
    %3 = tpu.matmul %1, %2, %cst {dimension_numbers = #tpu.dot_dimension_numbers<[1], [0], [0], [1], [0, 0, 1, 1], [], []>} : vector<8x512xf32>, vector<512x128xf32>, vector<8x128xf32> -> vector<8x128xf32>
    %c0_5 = arith.constant 0 : index
    %c0_6 = arith.constant 0 : index
    %4 = vector.load %arg5[%c0_5, %c0_6] : memref<1x128xf32, #tpu.memory_space<vmem>>, vector<1x128xf32>
    %5 = vector.broadcast %4 : vector<1x128xf32> to vector<8x128xf32>
    %6 = arith.addf %3, %5 : vector<8x128xf32>
    %c0_7 = arith.constant 0 : index
    %c0_8 = arith.constant 0 : index
    %7 = vector.load %arg6[%c0_7, %c0_8] : memref<128x384xf32, #tpu.memory_space<vmem>>, vector<128x384xf32>
    %cst_9 = arith.constant dense<0.000000e+00> : vector<8x384xf32>
    %8 = tpu.matmul %0, %7, %cst_9 {dimension_numbers = #tpu.dot_dimension_numbers<[1], [0], [0], [1], [0, 0, 1, 1], [], []>} : vector<8x128xf32>, vector<128x384xf32>, vector<8x384xf32> -> vector<8x384xf32>
    %c0_10 = arith.constant 0 : index
    %c0_11 = arith.constant 0 : index
    %9 = vector.load %arg8[%c0_10, %c0_11] : memref<1x384xf32, #tpu.memory_space<vmem>>, vector<1x384xf32>
    %10 = vector.broadcast %9 : vector<1x384xf32> to vector<8x384xf32>
    %11 = arith.addf %8, %10 : vector<8x384xf32>
    %c0_12 = arith.constant 0 : index
    %c0_13 = arith.constant 0 : index
    %12 = vector.load %arg7[%c0_12, %c0_13] : memref<128x384xf32, #tpu.memory_space<vmem>>, vector<128x384xf32>
    %cst_14 = arith.constant dense<0.000000e+00> : vector<8x384xf32>
    %13 = tpu.matmul %6, %12, %cst_14 {dimension_numbers = #tpu.dot_dimension_numbers<[1], [0], [0], [1], [0, 0, 1, 1], [], []>} : vector<8x128xf32>, vector<128x384xf32>, vector<8x384xf32> -> vector<8x384xf32>
    %c0_15 = arith.constant 0 : index
    %c0_16 = arith.constant 0 : index
    %14 = vector.load %arg9[%c0_15, %c0_16] : memref<1x384xf32, #tpu.memory_space<vmem>>, vector<1x384xf32>
    %15 = vector.broadcast %14 : vector<1x384xf32> to vector<8x384xf32>
    %16 = arith.addf %13, %15 : vector<8x384xf32>
    %17 = vector.extract_strided_slice %11 {offsets = [0, 0], sizes = [8, 128], strides = [1, 1]} : vector<8x384xf32> to vector<8x128xf32>
    %18 = vector.extract_strided_slice %16 {offsets = [0, 0], sizes = [8, 128], strides = [1, 1]} : vector<8x384xf32> to vector<8x128xf32>
    %19 = arith.addf %17, %18 : vector<8x128xf32>
    %20 = arith.negf %19 : vector<8x128xf32>
    %21 = math.exp %20 : vector<8x128xf32>
    %cst_17 = arith.constant 1.000000e+00 : f32
    %22 = vector.broadcast %cst_17 : f32 to vector<8x128xf32>
    %23 = arith.addf %22, %21 : vector<8x128xf32>
    %24 = arith.divf %22, %23 : vector<8x128xf32>
    %25 = vector.extract_strided_slice %11 {offsets = [0, 128], sizes = [8, 128], strides = [1, 1]} : vector<8x384xf32> to vector<8x128xf32>
    %26 = vector.extract_strided_slice %16 {offsets = [0, 128], sizes = [8, 128], strides = [1, 1]} : vector<8x384xf32> to vector<8x128xf32>
    %27 = arith.addf %25, %26 : vector<8x128xf32>
    %28 = arith.negf %27 : vector<8x128xf32>
    %29 = math.exp %28 : vector<8x128xf32>
    %cst_18 = arith.constant 1.000000e+00 : f32
    %30 = vector.broadcast %cst_18 : f32 to vector<8x128xf32>
    %31 = arith.addf %30, %29 : vector<8x128xf32>
    %32 = arith.divf %30, %31 : vector<8x128xf32>
    %33 = vector.extract_strided_slice %11 {offsets = [0, 256], sizes = [8, 128], strides = [1, 1]} : vector<8x384xf32> to vector<8x128xf32>
    %34 = vector.extract_strided_slice %16 {offsets = [0, 256], sizes = [8, 128], strides = [1, 1]} : vector<8x384xf32> to vector<8x128xf32>
    %35 = arith.mulf %24, %34 : vector<8x128xf32>
    %36 = arith.addf %33, %35 : vector<8x128xf32>
    %37 = math.tanh %36 : vector<8x128xf32>
    %cst_19 = arith.constant 1.000000e+00 : f32
    %38 = vector.broadcast %cst_19 : f32 to vector<8x128xf32>
    %39 = arith.subf %38, %32 : vector<8x128xf32>
    %40 = arith.mulf %39, %37 : vector<8x128xf32>
    %41 = arith.mulf %32, %6 : vector<8x128xf32>
    %42 = arith.addf %40, %41 : vector<8x128xf32>
    %c0_20 = arith.constant 0 : index
    %c0_21 = arith.constant 0 : index
    %43 = vector.load %arg3[%c0_20, %c0_21] : memref<64x256xf32, #tpu.memory_space<vmem>>, vector<64x256xf32>
    %c0_22 = arith.constant 0 : index
    %c0_23 = arith.constant 0 : index
    %44 = vector.load %arg11[%c0_22, %c0_23] : memref<256x128xf32, #tpu.memory_space<vmem>>, vector<256x128xf32>
    %cst_24 = arith.constant dense<0.000000e+00> : vector<64x128xf32>
    %45 = tpu.matmul %43, %44, %cst_24 {dimension_numbers = #tpu.dot_dimension_numbers<[1], [0], [0], [1], [0, 0, 1, 1], [], []>} : vector<64x256xf32>, vector<256x128xf32>, vector<64x128xf32> -> vector<64x128xf32>
    %46 = vector.shape_cast %45 : vector<64x128xf32> to vector<8x8x128xf32>
    %47 = vector.shape_cast %42 : vector<8x128xf32> to vector<8x1x128xf32>
    %48 = vector.broadcast %47 : vector<8x1x128xf32> to vector<8x8x128xf32>
    %49 = arith.mulf %46, %48 : vector<8x8x128xf32>
    %cst_25 = arith.constant dense<0.000000e+00> : vector<8x8xf32>
    %50 = vector.multi_reduction <add>, %49, %cst_25 [2] : vector<8x8x128xf32> to vector<8x8xf32>
    %cst_26 = arith.constant dense<0xFF800000> : vector<8xf32>
    %51 = vector.multi_reduction <maximumf>, %50, %cst_26 [1] : vector<8x8xf32> to vector<8xf32>
    %52 = vector.shape_cast %51 : vector<8xf32> to vector<8x1xf32>
    %53 = vector.broadcast %52 : vector<8x1xf32> to vector<8x8xf32>
    %54 = arith.subf %50, %53 : vector<8x8xf32>
    %55 = math.exp %54 : vector<8x8xf32>
    %cst_27 = arith.constant dense<0.000000e+00> : vector<8xf32>
    %56 = vector.multi_reduction <add>, %55, %cst_27 [1] : vector<8x8xf32> to vector<8xf32>
    %57 = vector.shape_cast %56 : vector<8xf32> to vector<8x1xf32>
    %58 = vector.broadcast %57 : vector<8x1xf32> to vector<8x8xf32>
    %59 = arith.divf %55, %58 : vector<8x8xf32>
    %60 = vector.shape_cast %59 : vector<8x8xf32> to vector<8x8x1xf32>
    %61 = vector.shape_cast %43 : vector<64x256xf32> to vector<8x8x256xf32>
    %62 = vector.broadcast %60 : vector<8x8x1xf32> to vector<8x8x256xf32>
    %63 = arith.mulf %62, %61 : vector<8x8x256xf32>
    %cst_28 = arith.constant dense<0.000000e+00> : vector<8x256xf32>
    %64 = vector.multi_reduction <add>, %63, %cst_28 [1] : vector<8x8x256xf32> to vector<8x256xf32>
    %c0_29 = arith.constant 0 : index
    %c0_30 = arith.constant 0 : index
    %65 = vector.load %arg12[%c0_29, %c0_30] : memref<1x128xf32, #tpu.memory_space<vmem>>, vector<1x128xf32>
    %66 = vector.broadcast %65 : vector<1x128xf32> to vector<8x128xf32>
    %67 = arith.mulf %42, %66 : vector<8x128xf32>
    %cst_31 = arith.constant dense<0.000000e+00> : vector<8xf32>
    %68 = vector.multi_reduction <add>, %67, %cst_31 [1] : vector<8x128xf32> to vector<8xf32>
    %69 = vector.shape_cast %68 : vector<8xf32> to vector<8x1xf32>
    %c0_32 = arith.constant 0 : index
    %c0_33 = arith.constant 0 : index
    %70 = vector.load %arg13[%c0_32, %c0_33] : memref<1x256xf32, #tpu.memory_space<vmem>>, vector<1x256xf32>
    %71 = vector.broadcast %70 : vector<1x256xf32> to vector<8x256xf32>
    %72 = arith.mulf %64, %71 : vector<8x256xf32>
    %cst_34 = arith.constant dense<0.000000e+00> : vector<8xf32>
    %73 = vector.multi_reduction <add>, %72, %cst_34 [1] : vector<8x256xf32> to vector<8xf32>
    %74 = vector.shape_cast %73 : vector<8xf32> to vector<8x1xf32>
    %75 = arith.addf %69, %74 : vector<8x1xf32>
    %c0_35 = arith.constant 0 : index
    %c0_36 = arith.constant 0 : index
    %76 = vector.load %arg14[%c0_35, %c0_36] : memref<1x128xf32, #tpu.memory_space<vmem>>, vector<1x128xf32>
    %77 = vector.broadcast %76 : vector<1x128xf32> to vector<8x128xf32>
    %78 = arith.mulf %0, %77 : vector<8x128xf32>
    %cst_37 = arith.constant dense<0.000000e+00> : vector<8xf32>
    %79 = vector.multi_reduction <add>, %78, %cst_37 [1] : vector<8x128xf32> to vector<8xf32>
    %80 = vector.shape_cast %79 : vector<8xf32> to vector<8x1xf32>
    %81 = arith.addf %75, %80 : vector<8x1xf32>
    %cst_38 = arith.constant 0.000000e+00 : f32
    %82 = vector.broadcast %cst_38 : f32 to vector<8x1xf32>
    %83 = arith.cmpf ogt, %81, %82 : vector<8x1xf32>
    %cst_39 = arith.constant 2.000000e-01 : f32
    %84 = vector.broadcast %cst_39 : f32 to vector<8x1xf32>
    %85 = arith.mulf %84, %81 : vector<8x1xf32>
    %86 = arith.select %83, %81, %85 : vector<8x1xi1>, vector<8x1xf32>
    %cst_40 = arith.constant 1.000000e+00 : f32
    %87 = vector.broadcast %cst_40 : f32 to vector<8x1xf32>
    %88 = arith.subf %87, %86 : vector<8x1xf32>
    %89 = vector.broadcast %88 : vector<8x1xf32> to vector<8x8xf32>
    %90 = arith.mulf %59, %89 : vector<8x8xf32>
    %91 = vector.broadcast %86 : vector<8x1xf32> to vector<8x8xf32>
    %92 = arith.addf %91, %90 : vector<8x8xf32>
    %c0_41 = arith.constant 0 : index
    %c0_42 = arith.constant 0 : index
    %93 = vector.load %arg15[%c0_41, %c0_42] : memref<8x128xf32, #tpu.memory_space<vmem>>, vector<8x128xf32>
    %cst_43 = arith.constant dense<0.000000e+00> : vector<8x128xf32>
    %94 = tpu.matmul %92, %93, %cst_43 {dimension_numbers = #tpu.dot_dimension_numbers<[1], [0], [0], [1], [0, 0, 1, 1], [], []>} : vector<8x8xf32>, vector<8x128xf32>, vector<8x128xf32> -> vector<8x128xf32>
    %c0_44 = arith.constant 0 : index
    %c0_45 = arith.constant 0 : index
    %95 = vector.load %arg16[%c0_44, %c0_45] : memref<1x128xf32, #tpu.memory_space<vmem>>, vector<1x128xf32>
    %96 = vector.broadcast %95 : vector<1x128xf32> to vector<8x128xf32>
    %97 = arith.addf %94, %96 : vector<8x128xf32>
    %c0_46 = arith.constant 0 : index
    %c0_47 = arith.constant 0 : index
    %98 = vector.load %arg17[%c0_46, %c0_47] : memref<8x128xf32, #tpu.memory_space<vmem>>, vector<8x128xf32>
    tpu.vector_store %arg17[%c0_46, %c0_47], %97 {strides = array<i32>} : memref<8x128xf32, #tpu.memory_space<vmem>>, vector<8x128xf32>,
    return
  }
}

</mosaic_0001>

<llo_original>
// kernel: tile.17
$region0: #{tile.17}
  %s0 = inlined_call_operand.vmem [shape: f32[4,2,512], index: 0, kind: input, shape index: {}]
  %s1 = inlined_call_operand.vmem [shape: f32[8,512], index: 1, kind: output, shape index: {}]
  $region1: #{tile.17} parent=0
    #allocation0 [shape = 'u8[65536]{0}', space=vmem, size = 0x10000, scoped, tag = 'scoped mem for input reshape']
    %s3 = sshllo.u32 0, 2
    %s4 = smul.addr 2, 15
    %s5 = scalar_lea.vmem %s0, %s4
    %v6 = vld [vmem:[%s5] sm:%s3]
    %s7 = scalar_lea.vmem [#allocation0], 120
    %8 = vst [vmem:[%s7] sm:%s3] %v6
    %s9 = smul.addr 2, 14
    %s10 = scalar_lea.vmem %s0, %s9
    %v11 = vld [vmem:[%s10] sm:%s3]
    %s12 = scalar_lea.vmem [#allocation0], 112
    %13 = vst [vmem:[%s12] sm:%s3] %v11
    %s14 = smul.addr 2, 13
    %s15 = scalar_lea.vmem %s0, %s14
    %v16 = vld [vmem:[%s15] sm:%s3]
    %s17 = scalar_lea.vmem [#allocation0], 104
    %18 = vst [vmem:[%s17] sm:%s3] %v16
    %s19 = smul.addr 2, 12
    %s20 = scalar_lea.vmem %s0, %s19
    %v21 = vld [vmem:[%s20] sm:%s3]
    %s22 = scalar_lea.vmem [#allocation0], 96
    %23 = vst [vmem:[%s22] sm:%s3] %v21
    %s24 = smul.addr 2, 11
    %s25 = scalar_lea.vmem %s0, %s24
    %v26 = vld [vmem:[%s25] sm:%s3]
    %s27 = scalar_lea.vmem [#allocation0], 88
    %28 = vst [vmem:[%s27] sm:%s3] %v26
    %s29 = smul.addr 2, 10
    %s30 = scalar_lea.vmem %s0, %s29
    %v31 = vld [vmem:[%s30] sm:%s3]
    %s32 = scalar_lea.vmem [#allocation0], 80
    %33 = vst [vmem:[%s32] sm:%s3] %v31
    %s34 = smul.addr 2, 9
    %s35 = scalar_lea.vmem %s0, %s34
    %v36 = vld [vmem:[%s35] sm:%s3]
    %s37 = scalar_lea.vmem [#allocation0], 72
    %38 = vst [vmem:[%s37] sm:%s3] %v36
    %s39 = smul.addr 2, 8
    %s40 = scalar_lea.vmem %s0, %s39
    %v41 = vld [vmem:[%s40] sm:%s3]
    %s42 = scalar_lea.vmem [#allocation0], 64
    %43 = vst [vmem:[%s42] sm:%s3] %v41
    %s44 = smul.addr 2, 7
    %s45 = scalar_lea.vmem %s0, %s44
    %v46 = vld [vmem:[%s45] sm:%s3]
    %s47 = scalar_lea.vmem [#allocation0], 56
    %48 = vst [vmem:[%s47] sm:%s3] %v46
    %s49 = smul.addr 2, 6
    %s50 = scalar_lea.vmem %s0, %s49
    %v51 = vld [vmem:[%s50] sm:%s3]
    %s52 = scalar_lea.vmem [#allocation0], 48
    %53 = vst [vmem:[%s52] sm:%s3] %v51
    %s54 = smul.addr 2, 5
    %s55 = scalar_lea.vmem %s0, %s54
    %v56 = vld [vmem:[%s55] sm:%s3]
    %s57 = scalar_lea.vmem [#allocation0], 40
    %58 = vst [vmem:[%s57] sm:%s3] %v56
    %s59 = smul.addr 2, 4
    %s60 = scalar_lea.vmem %s0, %s59
    %v61 = vld [vmem:[%s60] sm:%s3]
    %s62 = scalar_lea.vmem [#allocation0], 32
    %63 = vst [vmem:[%s62] sm:%s3] %v61
    %s64 = smul.addr 2, 3
    %s65 = scalar_lea.vmem %s0, %s64
    %v66 = vld [vmem:[%s65] sm:%s3]
    %s67 = scalar_lea.vmem [#allocation0], 24
    %68 = vst [vmem:[%s67] sm:%s3] %v66
    %s69 = smul.addr 2, 2
    %s70 = scalar_lea.vmem %s0, %s69
    %v71 = vld [vmem:[%s70] sm:%s3]
    %s72 = scalar_lea.vmem [#allocation0], 16
    %73 = vst [vmem:[%s72] sm:%s3] %v71
    %s74 = scalar_lea.vmem %s0, 2
    %v75 = vld [vmem:[%s74] sm:%s3]
    %s76 = scalar_lea.vmem [#allocation0], 8
    %77 = vst [vmem:[%s76] sm:%s3] %v75
    %v78 = vld [vmem:[%s0] sm:%s3]
    %79 = vst [vmem:[#allocation0] sm:%s3] %v78
    %v80 = vld [vmem:[#allocation0] sm:$0x3]
    %81 = vst [vmem:[%s1] sm:$0x3] %v80
    %s82 = scalar_lea.vmem [#allocation0], 8
    %v83 = vld [vmem:[%s82] sm:$0x3]
    %s84 = scalar_lea.vmem %s1, 8
    %85 = vst [vmem:[%s84] sm:$0x3] %v83
    %s86 = scalar_lea.vmem [#allocation0], 16
    %v87 = vld [vmem:[%s86] sm:$0x3]
    %s88 = scalar_lea.vmem %s1, 16
    %89 = vst [vmem:[%s88] sm:$0x3] %v87
    %s90 = scalar_lea.vmem [#allocation0], 24
    %v91 = vld [vmem:[%s90] sm:$0x3]
    %s92 = scalar_lea.vmem %s1, 24
    %93 = vst [vmem:[%s92] sm:$0x3] %v91
    %s94 = scalar_lea.vmem [#allocation0], 32
    %v95 = vld [vmem:[%s94] sm:$0x3]
    %s96 = scalar_lea.vmem %s1, 2
    %97 = vst [vmem:[%s96] sm:$0x3] %v95
    %s98 = scalar_lea.vmem [#allocation0], 40
    %v99 = vld [vmem:[%s98] sm:$0x3]
    %s100 = scalar_lea.vmem %s1, 10
    %101 = vst [vmem:[%s100] sm:$0x3] %v99
    %s102 = scalar_lea.vmem [#allocation0], 48
    %v103 = vld [vmem:[%s102] sm:$0x3]
    %s104 = scalar_lea.vmem %s1, 18
    %105 = vst [vmem:[%s104] sm:$0x3] %v103
    %s106 = scalar_lea.vmem [#allocation0], 56
    %v107 = vld [vmem:[%s106] sm:$0x3]
    %s108 = scalar_lea.vmem %s1, 26
    %109 = vst [vmem:[%s108] sm:$0x3] %v107
    %s110 = scalar_lea.vmem [#allocation0], 64
    %v111 = vld [vmem:[%s110] sm:$0x3]
    %s112 = scalar_lea.vmem %s1, 4
    %113 = vst [vmem:[%s112] sm:$0x3] %v111
    %s114 = scalar_lea.vmem [#allocation0], 72
    %v115 = vld [vmem:[%s114] sm:$0x3]
    %s116 = scalar_lea.vmem %s1, 12
    %117 = vst [vmem:[%s116] sm:$0x3] %v115
    %s118 = scalar_lea.vmem [#allocation0], 80
    %v119 = vld [vmem:[%s118] sm:$0x3]
    %s120 = scalar_lea.vmem %s1, 20
    %121 = vst [vmem:[%s120] sm:$0x3] %v119
    %s122 = scalar_lea.vmem [#allocation0], 88
    %v123 = vld [vmem:[%s122] sm:$0x3]
    %s124 = scalar_lea.vmem %s1, 28
    %125 = vst [vmem:[%s124] sm:$0x3] %v123
    %s126 = scalar_lea.vmem [#allocation0], 96
    %v127 = vld [vmem:[%s126] sm:$0x3]
    %s128 = scalar_lea.vmem %s1, 6
    %129 = vst [vmem:[%s128] sm:$0x3] %v127
    %s130 = scalar_lea.vmem [#allocation0], 104
    %v131 = vld [vmem:[%s130] sm:$0x3]
    %s132 = scalar_lea.vmem %s1, 14
    %133 = vst [vmem:[%s132] sm:$0x3] %v131
    %s134 = scalar_lea.vmem [#allocation0], 112
    %v135 = vld [vmem:[%s134] sm:$0x3]
    %s136 = scalar_lea.vmem %s1, 22
    %137 = vst [vmem:[%s136] sm:$0x3] %v135
    %s138 = scalar_lea.vmem [#allocation0], 120
    %v139 = vld [vmem:[%s138] sm:$0x3]
    %s140 = scalar_lea.vmem %s1, 30
    %141 = vst [vmem:[%s140] sm:$0x3] %v139

// kernel: tile.21
$region0: #{tile.21}
  %s0 = inlined_call_operand.vmem [shape: f32[4,2,1,4,256], index: 0, kind: input, shape index: {}]
  %s1 = inlined_call_operand.vmem [shape: f32[32,256], index: 1, kind: output, shape index: {}]
  $region1: #{tile.21} parent=0
    #allocation0 [shape = 'u8[65536]{0}', space=vmem, size = 0x10000, scoped, tag = 'scoped mem for input reshape']
    %s3 = sshllo.u32 0, 4
    %s4 = smul.addr 4, 15
    %s5 = scalar_lea.vmem %s0, %s4
    %v6 = vld [vmem:[%s5] sm:%s3]
    %s7 = scalar_lea.vmem [#allocation0], 120
    %8 = vst [vmem:[%s7] sm:%s3] %v6
    %s9 = smul.addr 4, 14
    %s10 = scalar_lea.vmem %s0, %s9
    %v11 = vld [vmem:[%s10] sm:%s3]
    %s12 = scalar_lea.vmem [#allocation0], 112
    %13 = vst [vmem:[%s12] sm:%s3] %v11
    %s14 = smul.addr 4, 13
    %s15 = scalar_lea.vmem %s0, %s14
    %v16 = vld [vmem:[%s15] sm:%s3]
    %s17 = scalar_lea.vmem [#allocation0], 104
    %18 = vst [vmem:[%s17] sm:%s3] %v16
    %s19 = smul.addr 4, 12
    %s20 = scalar_lea.vmem %s0, %s19
    %v21 = vld [vmem:[%s20] sm:%s3]
    %s22 = scalar_lea.vmem [#allocation0], 96
    %23 = vst [vmem:[%s22] sm:%s3] %v21
    %s24 = smul.addr 4, 11
    %s25 = scalar_lea.vmem %s0, %s24
    %v26 = vld [vmem:[%s25] sm:%s3]
    %s27 = scalar_lea.vmem [#allocation0], 88
    %28 = vst [vmem:[%s27] sm:%s3] %v26
    %s29 = smul.addr 4, 10
    %s30 = scalar_lea.vmem %s0, %s29
    %v31 = vld [vmem:[%s30] sm:%s3]
    %s32 = scalar_lea.vmem [#allocation0], 80
    %33 = vst [vmem:[%s32] sm:%s3] %v31
    %s34 = smul.addr 4, 9
    %s35 = scalar_lea.vmem %s0, %s34
    %v36 = vld [vmem:[%s35] sm:%s3]
    %s37 = scalar_lea.vmem [#allocation0], 72
    %38 = vst [vmem:[%s37] sm:%s3] %v36
    %s39 = smul.addr 4, 8
    %s40 = scalar_lea.vmem %s0, %s39
    %v41 = vld [vmem:[%s40] sm:%s3]
    %s42 = scalar_lea.vmem [#allocation0], 64
    %43 = vst [vmem:[%s42] sm:%s3] %v41
    %s44 = smul.addr 4, 7
    %s45 = scalar_lea.vmem %s0, %s44
    %v46 = vld [vmem:[%s45] sm:%s3]
    %s47 = scalar_lea.vmem [#allocation0], 56
    %48 = vst [vmem:[%s47] sm:%s3] %v46
    %s49 = smul.addr 4, 6
    %s50 = scalar_lea.vmem %s0, %s49
    %v51 = vld [vmem:[%s50] sm:%s3]
    %s52 = scalar_lea.vmem [#allocation0], 48
    %53 = vst [vmem:[%s52] sm:%s3] %v51
    %s54 = smul.addr 4, 5
    %s55 = scalar_lea.vmem %s0, %s54
    %v56 = vld [vmem:[%s55] sm:%s3]
    %s57 = scalar_lea.vmem [#allocation0], 40
    %58 = vst [vmem:[%s57] sm:%s3] %v56
    %s59 = smul.addr 4, 4
    %s60 = scalar_lea.vmem %s0, %s59
    %v61 = vld [vmem:[%s60] sm:%s3]
    %s62 = scalar_lea.vmem [#allocation0], 32
    %63 = vst [vmem:[%s62] sm:%s3] %v61
    %s64 = smul.addr 4, 3
    %s65 = scalar_lea.vmem %s0, %s64
    %v66 = vld [vmem:[%s65] sm:%s3]
    %s67 = scalar_lea.vmem [#allocation0], 24
    %68 = vst [vmem:[%s67] sm:%s3] %v66
    %s69 = smul.addr 4, 2
    %s70 = scalar_lea.vmem %s0, %s69
    %v71 = vld [vmem:[%s70] sm:%s3]
    %s72 = scalar_lea.vmem [#allocation0], 16
    %73 = vst [vmem:[%s72] sm:%s3] %v71
    %s74 = scalar_lea.vmem %s0, 4
    %v75 = vld [vmem:[%s74] sm:%s3]
    %s76 = scalar_lea.vmem [#allocation0], 8
    %77 = vst [vmem:[%s76] sm:%s3] %v75
    %v78 = vld [vmem:[%s0] sm:%s3]
    %79 = vst [vmem:[#allocation0] sm:%s3] %v78
    %v80 = vld [vmem:[#allocation0] sm:$0xf]
    %81 = vst [vmem:[%s1] sm:$0xf] %v80
    %s82 = scalar_lea.vmem [#allocation0], 8
    %v83 = vld [vmem:[%s82] sm:$0xf]
    %s84 = scalar_lea.vmem %s1, 8
    %85 = vst [vmem:[%s84] sm:$0xf] %v83
    %s86 = scalar_lea.vmem [#allocation0], 16
    %v87 = vld [vmem:[%s86] sm:$0xf]
    %s88 = scalar_lea.vmem %s1, 4
    %89 = vst [vmem:[%s88] sm:$0xf] %v87
    %s90 = scalar_lea.vmem [#allocation0], 24
    %v91 = vld [vmem:[%s90] sm:$0xf]
    %s92 = scalar_lea.vmem %s1, 12
    %93 = vst [vmem:[%s92] sm:$0xf] %v91
    %s94 = scalar_lea.vmem [#allocation0], 32
    %v95 = vld [vmem:[%s94] sm:$0xf]
    %s96 = scalar_lea.vmem %s1, 16
    %97 = vst [vmem:[%s96] sm:$0xf] %v95
    %s98 = scalar_lea.vmem [#allocation0], 40
    %v99 = vld [vmem:[%s98] sm:$0xf]
    %s100 = scalar_lea.vmem %s1, 24
    %101 = vst [vmem:[%s100] sm:$0xf] %v99
    %s102 = scalar_lea.vmem [#allocation0], 48
    %v103 = vld [vmem:[%s102] sm:$0xf]
    %s104 = scalar_lea.vmem %s1, 20
    %105 = vst [vmem:[%s104] sm:$0xf] %v103
    %s106 = scalar_lea.vmem [#allocation0], 56
    %v107 = vld [vmem:[%s106] sm:$0xf]
    %s108 = scalar_lea.vmem %s1, 28
    %109 = vst [vmem:[%s108] sm:$0xf] %v107
    %s110 = scalar_lea.vmem [#allocation0], 64
    %v111 = vld [vmem:[%s110] sm:$0xf]
    %s112 = scalar_lea.vmem %s1, 32
    %113 = vst [vmem:[%s112] sm:$0xf] %v111
    %s114 = scalar_lea.vmem [#allocation0], 72
    %v115 = vld [vmem:[%s114] sm:$0xf]
    %s116 = scalar_lea.vmem %s1, 40
    %117 = vst [vmem:[%s116] sm:$0xf] %v115
    %s118 = scalar_lea.vmem [#allocation0], 80
    %v119 = vld [vmem:[%s118] sm:$0xf]
    %s120 = scalar_lea.vmem %s1, 36
    %121 = vst [vmem:[%s120] sm:$0xf] %v119
    %s122 = scalar_lea.vmem [#allocation0], 88
    %v123 = vld [vmem:[%s122] sm:$0xf]
    %s124 = scalar_lea.vmem %s1, 44
    %125 = vst [vmem:[%s124] sm:$0xf] %v123
    %s126 = scalar_lea.vmem [#allocation0], 96
    %v127 = vld [vmem:[%s126] sm:$0xf]
    %s128 = scalar_lea.vmem %s1, 48
    %129 = vst [vmem:[%s128] sm:$0xf] %v127
    %s130 = scalar_lea.vmem [#allocation0], 104
    %v131 = vld [vmem:[%s130] sm:$0xf]
    %s132 = scalar_lea.vmem %s1, 56
    %133 = vst [vmem:[%s132] sm:$0xf] %v131
    %s134 = scalar_lea.vmem [#allocation0], 112
    %v135 = vld [vmem:[%s134] sm:$0xf]
    %s136 = scalar_lea.vmem %s1, 52
    %137 = vst [vmem:[%s136] sm:$0xf] %v135
    %s138 = scalar_lea.vmem [#allocation0], 120
    %v139 = vld [vmem:[%s138] sm:$0xf]
    %s140 = scalar_lea.vmem %s1, 60
    %141 = vst [vmem:[%s140] sm:$0xf] %v139

// kernel: net_forward.4
$region0: #{net_forward.4}
  #allocation0 [shape = 'u32[]', space=smem, size = 0x4, offset = 0x4, fixed_abs, tag = 'smem constant byte address 0x4 - core index']
  #allocation1 [shape = 'u32[144,128]{1,0:T(1,128)}', space=vmem, size = 0x12000, scoped, tag = 'internal scratch']
  %s0 = inlined_call_operand.vmem [shape: f32[8,256], index: 0, kind: input, shape index: {}]
  %s1 = inlined_call_operand.vmem [shape: f32[8,8], index: 1, kind: input, shape index: {}]
  %s2 = inlined_call_operand.vmem [shape: f32[256,256], index: 2, kind: input, shape index: {}]
  %s3 = inlined_call_operand.vmem [shape: f32[1,256], index: 3, kind: input, shape index: {}]
  %s4 = inlined_call_operand.vmem [shape: f32[1,256], index: 4, kind: input, shape index: {}]
  %s5 = inlined_call_operand.vmem [shape: f32[1,256], index: 5, kind: input, shape index: {}]
  %s6 = inlined_call_operand.vmem [shape: f32[8,256], index: 6, kind: output, shape index: {}]
  %s7 = sld [smem:[#allocation0]]
  $region34: #{net_forward.4} parent=0
    _
  %s9 = ssub.s32 1, %s7
  %s10 = scalar_select 0, %s9, %s7
  // Predicated region
  $region2: #{net_forward.4} parent=0 // pred_check
    _
  $region3: #{net_forward.4} parent=0 // pred_check_branch
    %12 = sbr.rel (0) target = $region5
  $region4: #{net_forward.4} parent=0 // pred_region
    _
  $region5: #{net_forward.4} parent=0 // pred_fallthru
    _
  // Predicated region
  $region6: #{net_forward.4} parent=0 // pred_check
    _
  $region7: #{net_forward.4} parent=0 // pred_check_branch
    %14 = sbr.rel (0) target = $region9
  $region8: #{net_forward.4} parent=0 // pred_region
    _
  $region9: #{net_forward.4} parent=0 // pred_fallthru
    _
  // Predicated region
  $region10: #{net_forward.4} parent=0 // pred_check
    _
  $region11: #{net_forward.4} parent=0 // pred_check_branch
    %16 = sbr.rel (0) target = $region13
  $region12: #{net_forward.4} parent=0 // pred_region
    _
  $region13: #{net_forward.4} parent=0 // pred_fallthru
    _
  // Predicated region
  $region14: #{net_forward.4} parent=0 // pred_check
    _
  $region15: #{net_forward.4} parent=0 // pred_check_branch
    %18 = sbr.rel (0) target = $region17
  $region16: #{net_forward.4} parent=0 // pred_region
    _
  $region17: #{net_forward.4} parent=0 // pred_fallthru
    _
  // Predicated region
  $region18: #{net_forward.4} parent=0 // pred_check
    _
  $region19: #{net_forward.4} parent=0 // pred_check_branch
    %20 = sbr.rel (0) target = $region21
  $region20: #{net_forward.4} parent=0 // pred_region
    _
  $region21: #{net_forward.4} parent=0 // pred_fallthru
    _
  // Predicated region
  $region22: #{net_forward.4} parent=0 // pred_check
    _
  $region23: #{net_forward.4} parent=0 // pred_check_branch
    %22 = sbr.rel (0) target = $region25
  $region24: #{net_forward.4} parent=0 // pred_region
    _
  $region25: #{net_forward.4} parent=0 // pred_fallthru
    _
  %v23 = vld [vmem:[%s1] sm:$0xff]
  %v24 = vld [vmem:[%s0] sm:$0xff]
  %v25 = vld [vmem:[%s0 + $0x8] sm:$0xff]
  %v26 = vld [vmem:[%s2] sm:$0xff]
  %v27 = vld [vmem:[%s2 + $0x8] sm:$0xff]
  %v28 = vld [vmem:[%s2 + $0x10] sm:$0xff]
  %v29 = vld [vmem:[%s2 + $0x18] sm:$0xff]
  %v30 = vld [vmem:[%s2 + $0x20] sm:$0xff]
  %v31 = vld [vmem:[%s2 + $0x28] sm:$0xff]
  %v32 = vld [vmem:[%s2 + $0x30] sm:$0xff]
  %v33 = vld [vmem:[%s2 + $0x38] sm:$0xff]
  %v34 = vld [vmem:[%s2 + $0x40] sm:$0xff]
  %v35 = vld [vmem:[%s2 + $0x48] sm:$0xff]
  %v36 = vld [vmem:[%s2 + $0x50] sm:$0xff]
  %v37 = vld [vmem:[%s2 + $0x58] sm:$0xff]
  %v38 = vld [vmem:[%s2 + $0x60] sm:$0xff]
  %v39 = vld [vmem:[%s2 + $0x68] sm:$0xff]
  %v40 = vld [vmem:[%s2 + $0x70] sm:$0xff]
  %v41 = vld [vmem:[%s2 + $0x78] sm:$0xff]
  %v42 = vld [vmem:[%s2 + $0x80] sm:$0xff]
  %v43 = vld [vmem:[%s2 + $0x88] sm:$0xff]
  %v44 = vld [vmem:[%s2 + $0x90] sm:$0xff]
  %v45 = vld [vmem:[%s2 + $0x98] sm:$0xff]
  %v46 = vld [vmem:[%s2 + $0xa0] sm:$0xff]
  %v47 = vld [vmem:[%s2 + $0xa8] sm:$0xff]
  %v48 = vld [vmem:[%s2 + $0xb0] sm:$0xff]
  %v49 = vld [vmem:[%s2 + $0xb8] sm:$0xff]
  %v50 = vld [vmem:[%s2 + $0xc0] sm:$0xff]
  %v51 = vld [vmem:[%s2 + $0xc8] sm:$0xff]
  %v52 = vld [vmem:[%s2 + $0xd0] sm:$0xff]
  %v53 = vld [vmem:[%s2 + $0xd8] sm:$0xff]
  %v54 = vld [vmem:[%s2 + $0xe0] sm:$0xff]
  %v55 = vld [vmem:[%s2 + $0xe8] sm:$0xff]
  %v56 = vld [vmem:[%s2 + $0xf0] sm:$0xff]
  %v57 = vld [vmem:[%s2 + $0xf8] sm:$0xff]
  %v58 = vld [vmem:[%s2 + $0x100] sm:$0xff]
  %v59 = vld [vmem:[%s2 + $0x108] sm:$0xff]
  %v60 = vld [vmem:[%s2 + $0x110] sm:$0xff]
  %v61 = vld [vmem:[%s2 + $0x118] sm:$0xff]
  %v62 = vld [vmem:[%s2 + $0x120] sm:$0xff]
  %v63 = vld [vmem:[%s2 + $0x128] sm:$0xff]
  %v64 = vld [vmem:[%s2 + $0x130] sm:$0xff]
  %v65 = vld [vmem:[%s2 + $0x138] sm:$0xff]
  %v66 = vld [vmem:[%s2 + $0x140] sm:$0xff]
  %v67 = vld [vmem:[%s2 + $0x148] sm:$0xff]
  %v68 = vld [vmem:[%s2 + $0x150] sm:$0xff]
  %v69 = vld [vmem:[%s2 + $0x158] sm:$0xff]
  %v70 = vld [vmem:[%s2 + $0x160] sm:$0xff]
  %v71 = vld [vmem:[%s2 + $0x168] sm:$0xff]
  %v72 = vld [vmem:[%s2 + $0x170] sm:$0xff]
  %v73 = vld [vmem:[%s2 + $0x178] sm:$0xff]
  %v74 = vld [vmem:[%s2 + $0x180] sm:$0xff]
  %v75 = vld [vmem:[%s2 + $0x188] sm:$0xff]
  %v76 = vld [vmem:[%s2 + $0x190] sm:$0xff]
  %v77 = vld [vmem:[%s2 + $0x198] sm:$0xff]
  %v78 = vld [vmem:[%s2 + $0x1a0] sm:$0xff]
  %v79 = vld [vmem:[%s2 + $0x1a8] sm:$0xff]
  %v80 = vld [vmem:[%s2 + $0x1b0] sm:$0xff]
  %v81 = vld [vmem:[%s2 + $0x1b8] sm:$0xff]
  %v82 = vld [vmem:[%s2 + $0x1c0] sm:$0xff]
  %v83 = vld [vmem:[%s2 + $0x1c8] sm:$0xff]
  %v84 = vld [vmem:[%s2 + $0x1d0] sm:$0xff]
  %v85 = vld [vmem:[%s2 + $0x1d8] sm:$0xff]
  %v86 = vld [vmem:[%s2 + $0x1e0] sm:$0xff]
  %v87 = vld [vmem:[%s2 + $0x1e8] sm:$0xff]
  %v88 = vld [vmem:[%s2 + $0x1f0] sm:$0xff]
  %v89 = vld [vmem:[%s2 + $0x1f8] sm:$0xff]
  %90 = vmatprep.subr.mxu0 %v27
  %91 = vmatpush1.msra.mxu0 %v26
  %92 = vmatprep.subr.mxu0 %v29
  %93 = vmatpush1.msra.mxu0 %v28
  %94 = vmatprep.subr.mxu0 %v31
  %95 = vmatpush1.msra.mxu0 %v30
  %96 = vmatprep.subr.mxu0 %v33
  %97 = vmatpush1.msra.mxu0 %v32
  %98 = vmatprep.subr.mxu0 %v35
  %99 = vmatpush1.msra.mxu0 %v34
  %100 = vmatprep.subr.mxu0 %v37
  %101 = vmatpush1.msra.mxu0 %v36
  %102 = vmatprep.subr.mxu0 %v39
  %103 = vmatpush1.msra.mxu0 %v38
  %104 = vmatprep.subr.mxu0 %v41
  %105 = vmatpush1.msra.mxu0 %v40
  %106 = vmatprep.subr.mxu0 %v43
  %107 = vmatpush1.msra.mxu0 %v42
  %108 = vmatprep.subr.mxu0 %v45
  %109 = vmatpush1.msra.mxu0 %v44
  %110 = vmatprep.subr.mxu0 %v47
  %111 = vmatpush1.msra.mxu0 %v46
  %112 = vmatprep.subr.mxu0 %v49
  %113 = vmatpush1.msra.mxu0 %v48
  %114 = vmatprep.subr.mxu0 %v51
  %115 = vmatpush1.msra.mxu0 %v50
  %116 = vmatprep.subr.mxu0 %v53
  %117 = vmatpush1.msra.mxu0 %v52
  %118 = vmatprep.subr.mxu0 %v55
  %119 = vmatpush1.msra.mxu0 %v54
  %120 = vmatprep.subr.mxu0 %v57
  %121 = vmatpush1.msra.mxu0 %v56
  %122 = vmatprep.subr.mxu0 %v59
  %123 = vmatpush1.msra.mxu0 %v58
  %124 = vmatprep.subr.mxu0 %v61
  %125 = vmatpush1.msra.mxu0 %v60
  %126 = vmatprep.subr.mxu0 %v63
  %127 = vmatpush1.msra.mxu0 %v62
  %128 = vmatprep.subr.mxu0 %v65
  %129 = vmatpush1.msra.mxu0 %v64
  %130 = vmatprep.subr.mxu0 %v67
  %131 = vmatpush1.msra.mxu0 %v66
  %132 = vmatprep.subr.mxu0 %v69
  %133 = vmatpush1.msra.mxu0 %v68
  %134 = vmatprep.subr.mxu0 %v71
  %135 = vmatpush1.msra.mxu0 %v70
  %136 = vmatprep.subr.mxu0 %v73
  %137 = vmatpush1.msra.mxu0 %v72
  %138 = vmatprep.subr.mxu0 %v75
  %139 = vmatpush1.msra.mxu0 %v74
  %140 = vmatprep.subr.mxu0 %v77
  %141 = vmatpush1.msra.mxu0 %v76
  %142 = vmatprep.subr.mxu0 %v79
  %143 = vmatpush1.msra.mxu0 %v78
  %144 = vmatprep.subr.mxu0 %v81
  %145 = vmatpush1.msra.mxu0 %v80
  %146 = vmatprep.subr.mxu0 %v83
  %147 = vmatpush1.msra.mxu0 %v82
  %148 = vmatprep.subr.mxu0 %v85
  %149 = vmatpush1.msra.mxu0 %v84
  %150 = vmatprep.subr.mxu0 %v87
  %151 = vmatpush1.msra.mxu0 %v86
  %152 = vmatprep.subr.mxu0 %v89
  %153 = vmatpush1.msra.mxu0 %v88
  %154 = vmatprep.mubr.f32.mxu0 %v25
  %155 = vmatmul.mubr.f32.gmra.mrb[0].mxu0 %v24
  %v156 = vpop.f32.mrb[0].mxu0
  %v157 = vadd.f32 0.0, %v156
  %v158 = vpop.f32.mrb[0].mxu0
  %v159 = vadd.f32 0.0, %v158
  %160 = vdwg.mxu0
  %v161 = vld [vmem:[%s4] sm:$0x3]
  %v163 = vlaneseq
  %v164 = vshrl.u32 %v163, 7
  %v165 = vsub.s32 0, %v164
  %v166 = vrot.slane %v161, %v165
  %v167 = vlaneseq
  %v168 = vshrl.u32 %v167, 7
  %v169 = vsub.s32 1, %v168
  %v170 = vrot.slane %v161, %v169
  %v173 = vmul.f32 %v157, %v166
  %v174 = vmul.f32 %v159, %v170
  %v175 = vadd.f32 %v173, %v174
  %176 = vadd.xlane.f32.xlu0 %v175
  %v177 = vpop.xlane.xlu0 %176
  %v178 = vld [vmem:[%s3] sm:$0x3]
  %v180 = vlaneseq
  %v181 = vshrl.u32 %v180, 7
  %v182 = vsub.s32 0, %v181
  %v183 = vrot.slane %v178, %v182
  %v184 = vlaneseq
  %v185 = vshrl.u32 %v184, 7
  %v186 = vsub.s32 1, %v185
  %v187 = vrot.slane %v178, %v186
  %190 = vmatprep.subr.mxu0 %v159
  %191 = vmatpush1.xpose.msra.mxu0 %v157
  %192 = vmatprep.subr.mxu0 0.0
  %193 = vmatpush1.xpose.msra.mxu0 0.0
  %194 = vmatprep.subr.mxu0 0.0
  %195 = vmatpush1.xpose.msra.mxu0 0.0
  %196 = vmatprep.subr.mxu0 0.0
  %197 = vmatpush1.xpose.msra.mxu0 0.0
  %198 = vmatprep.subr.mxu0 0.0
  %199 = vmatpush1.xpose.msra.mxu0 0.0
  %200 = vmatprep.subr.mxu0 0.0
  %201 = vmatpush1.xpose.msra.mxu0 0.0
  %202 = vmatprep.subr.mxu0 0.0
  %203 = vmatpush1.xpose.msra.mxu0 0.0
  %204 = vmatprep.subr.mxu0 0.0
  %205 = vmatpush1.xpose.msra.mxu0 0.0
  %206 = vmatprep.subr.mxu0 0.0
  %207 = vmatpush1.xpose.msra.mxu0 0.0
  %208 = vmatprep.subr.mxu0 0.0
  %209 = vmatpush1.xpose.msra.mxu0 0.0
  %210 = vmatprep.subr.mxu0 0.0
  %211 = vmatpush1.xpose.msra.mxu0 0.0
  %212 = vmatprep.subr.mxu0 0.0
  %213 = vmatpush1.xpose.msra.mxu0 0.0
  %214 = vmatprep.subr.mxu0 0.0
  %215 = vmatpush1.xpose.msra.mxu0 0.0
  %216 = vmatprep.subr.mxu0 0.0
  %217 = vmatpush1.xpose.msra.mxu0 0.0
  %218 = vmatprep.subr.mxu0 0.0
  %219 = vmatpush1.xpose.msra.mxu0 0.0
  %220 = vmatprep.subr.mxu0 0.0
  %221 = vmatpush1.xpose.msra.mxu0 0.0
  %222 = vmatprep.subr.mxu0 0.0
  %223 = vmatpush1.xpose.msra.mxu0 0.0
  %224 = vmatprep.subr.mxu0 0.0
  %225 = vmatpush1.xpose.msra.mxu0 0.0
  %226 = vmatprep.subr.mxu0 0.0
  %227 = vmatpush1.xpose.msra.mxu0 0.0
  %228 = vmatprep.subr.mxu0 0.0
  %229 = vmatpush1.xpose.msra.mxu0 0.0
  %230 = vmatprep.subr.mxu0 0.0
  %231 = vmatpush1.xpose.msra.mxu0 0.0
  %232 = vmatprep.subr.mxu0 0.0
  %233 = vmatpush1.xpose.msra.mxu0 0.0
  %234 = vmatprep.subr.mxu0 0.0
  %235 = vmatpush1.xpose.msra.mxu0 0.0
  %236 = vmatprep.subr.mxu0 0.0
  %237 = vmatpush1.xpose.msra.mxu0 0.0
  %238 = vmatprep.subr.mxu0 0.0
  %239 = vmatpush1.xpose.msra.mxu0 0.0
  %240 = vmatprep.subr.mxu0 0.0
  %241 = vmatpush1.xpose.msra.mxu0 0.0
  %242 = vmatprep.subr.mxu0 0.0
  %243 = vmatpush1.xpose.msra.mxu0 0.0
  %244 = vmatprep.subr.mxu0 0.0
  %245 = vmatpush1.xpose.msra.mxu0 0.0
  %246 = vmatprep.subr.mxu0 0.0
  %247 = vmatpush1.xpose.msra.mxu0 0.0
  %248 = vmatprep.subr.mxu0 0.0
  %249 = vmatpush1.xpose.msra.mxu0 0.0
  %250 = vmatprep.subr.mxu0 0.0
  %251 = vmatpush1.xpose.msra.mxu0 0.0
  %252 = vmatprep.subr.mxu0 0.0
  %253 = vmatpush1.xpose.msra.mxu0 0.0
  %254 = vmatprep.mubr.f32.mxu0 %v187
  %255 = vmatmul.mubr.f32.gmra.mrb[0].mxu0 %v183
  %v256 = vpop.f32.mrb[0].mxu0
  %v257 = vadd.f32 0.0, %v256
  %v258 = vpop.f32.mrb[0].mxu0
  %259 = vdwg.mxu0
  %v260 = vlaneseq
  %v261 = vshrl.u32 %v260, 7
  %v262 = vsub.s32 0, %v261
  %v263 = vrot.slane %v257, %v262
  %v264 = vadd.f32 %v177, %v263
  %vm265 = vcmp.gt.f32.partialorder %v264, 0.0
  %v266 = vmul.f32 %v264, 0.2
  %v267 = vsel %vm265, %v264, %v266
  %vm268 = vcmp.gt.f32.partialorder %v23, 0.0
  %v269 = vsel %vm268, %v267, -1e+30
  %vm270 = vcmask 64512
  %v271 = vsel %vm270, %v269, -inf
  %272 = vmax.xlane.f32.xlu0 %v271
  %v273 = vpop.xlane.xlu0 %272
  %v274 = vsub.f32 %v269, %v273
  %v275 = vmul.f32 %v274, 1.442695
  %v276 = vpow.pop %v275
  %v277 = vmul.f32 %v276, %v23
  %v278 = vsel %vm270, %v277, 0.0
  %279 = vadd.xlane.f32.xlu0 %v278
  %v280 = vpop.xlane.xlu0 %279
  %v281 = vrcp.pop %v280
  %v282 = vmul.f32 %v277, %v281
  %v283 = vld [vmem:[%s5] sm:$0x3]
  %v285 = vlaneseq
  %v286 = vshrl.u32 %v285, 7
  %v287 = vsub.s32 0, %v286
  %v288 = vrot.slane %v283, %v287
  %v289 = vlaneseq
  %v290 = vshrl.u32 %v289, 7
  %v291 = vsub.s32 1, %v290
  %v292 = vrot.slane %v283, %v291
  %v296 = vsel %vm270, %v282, 0
  %298 = vmatprep.subr.mxu0 %v159
  %299 = vmatpush1.msra.mxu0 %v157
  %300 = vmatprep.subr.mxu0 0.0
  %301 = vmatpush1.msra.mxu0 0.0
  %302 = vmatprep.subr.mxu0 0.0
  %303 = vmatpush1.msra.mxu0 0.0
  %304 = vmatprep.subr.mxu0 0.0
  %305 = vmatpush1.msra.mxu0 0.0
  %306 = vmatprep.subr.mxu0 0.0
  %307 = vmatpush1.msra.mxu0 0.0
  %308 = vmatprep.subr.mxu0 0.0
  %309 = vmatpush1.msra.mxu0 0.0
  %310 = vmatprep.subr.mxu0 0.0
  %311 = vmatpush1.msra.mxu0 0.0
  %312 = vmatprep.subr.mxu0 0.0
  %313 = vmatpush1.msra.mxu0 0.0
  %314 = vmatprep.subr.mxu0 0.0
  %315 = vmatpush1.msra.mxu0 0.0
  %316 = vmatprep.subr.mxu0 0.0
  %317 = vmatpush1.msra.mxu0 0.0
  %318 = vmatprep.subr.mxu0 0.0
  %319 = vmatpush1.msra.mxu0 0.0
  %320 = vmatprep.subr.mxu0 0.0
  %321 = vmatpush1.msra.mxu0 0.0
  %322 = vmatprep.subr.mxu0 0.0
  %323 = vmatpush1.msra.mxu0 0.0
  %324 = vmatprep.subr.mxu0 0.0
  %325 = vmatpush1.msra.mxu0 0.0
  %326 = vmatprep.subr.mxu0 0.0
  %327 = vmatpush1.msra.mxu0 0.0
  %328 = vmatprep.subr.mxu0 0.0
  %329 = vmatpush1.msra.mxu0 0.0
  %330 = vmatprep.subr.mxu0 0.0
  %331 = vmatpush1.msra.mxu0 0.0
  %332 = vmatprep.subr.mxu0 0.0
  %333 = vmatpush1.msra.mxu0 0.0
  %334 = vmatprep.subr.mxu0 0.0
  %335 = vmatpush1.msra.mxu0 0.0
  %336 = vmatprep.subr.mxu0 0.0
  %337 = vmatpush1.msra.mxu0 0.0
  %338 = vmatprep.subr.mxu0 0.0
  %339 = vmatpush1.msra.mxu0 0.0
  %340 = vmatprep.subr.mxu0 0.0
  %341 = vmatpush1.msra.mxu0 0.0
  %342 = vmatprep.subr.mxu0 0.0
  %343 = vmatpush1.msra.mxu0 0.0
  %344 = vmatprep.subr.mxu0 0.0
  %345 = vmatpush1.msra.mxu0 0.0
  %346 = vmatprep.subr.mxu0 0.0
  %347 = vmatpush1.msra.mxu0 0.0
  %348 = vmatprep.subr.mxu0 0.0
  %349 = vmatpush1.msra.mxu0 0.0
  %350 = vmatprep.subr.mxu0 0.0
  %351 = vmatpush1.msra.mxu0 0.0
  %352 = vmatprep.subr.mxu0 0.0
  %353 = vmatpush1.msra.mxu0 0.0
  %354 = vmatprep.subr.mxu0 0.0
  %355 = vmatpush1.msra.mxu0 0.0
  %356 = vmatprep.subr.mxu0 0.0
  %357 = vmatpush1.msra.mxu0 0.0
  %358 = vmatprep.subr.mxu0 0.0
  %359 = vmatpush1.msra.mxu0 0.0
  %360 = vmatprep.subr.mxu0 0.0
  %361 = vmatpush1.msra.mxu0 0.0
  %362 = vmatprep.mubr.f32.mxu0 0.0
  %363 = vmatmul.mubr.f32.gmra.mrb[0].mxu0 %v296
  %v364 = vpop.f32.mrb[0].mxu0
  %v365 = vadd.f32 %v288, %v364
  %v366 = vpop.f32.mrb[0].mxu0
  %v367 = vadd.f32 %v292, %v366
  %368 = vdwg.mxu0
  %369 = vmatprep.subr.mxu0 %v27
  %370 = vmatpush1.msra.mxu0 %v26
  %371 = vmatprep.subr.mxu0 %v29
  %372 = vmatpush1.msra.mxu0 %v28
  %373 = vmatprep.subr.mxu0 %v31
  %374 = vmatpush1.msra.mxu0 %v30
  %375 = vmatprep.subr.mxu0 %v33
  %376 = vmatpush1.msra.mxu0 %v32
  %377 = vmatprep.subr.mxu0 %v35
  %378 = vmatpush1.msra.mxu0 %v34
  %379 = vmatprep.subr.mxu0 %v37
  %380 = vmatpush1.msra.mxu0 %v36
  %381 = vmatprep.subr.mxu0 %v39
  %382 = vmatpush1.msra.mxu0 %v38
  %383 = vmatprep.subr.mxu0 %v41
  %384 = vmatpush1.msra.mxu0 %v40
  %385 = vmatprep.subr.mxu0 %v43
  %386 = vmatpush1.msra.mxu0 %v42
  %387 = vmatprep.subr.mxu0 %v45
  %388 = vmatpush1.msra.mxu0 %v44
  %389 = vmatprep.subr.mxu0 %v47
  %390 = vmatpush1.msra.mxu0 %v46
  %391 = vmatprep.subr.mxu0 %v49
  %392 = vmatpush1.msra.mxu0 %v48
  %393 = vmatprep.subr.mxu0 %v51
  %394 = vmatpush1.msra.mxu0 %v50
  %395 = vmatprep.subr.mxu0 %v53
  %396 = vmatpush1.msra.mxu0 %v52
  %397 = vmatprep.subr.mxu0 %v55
  %398 = vmatpush1.msra.mxu0 %v54
  %399 = vmatprep.subr.mxu0 %v57
  %400 = vmatpush1.msra.mxu0 %v56
  %401 = vmatprep.subr.mxu0 %v59
  %402 = vmatpush1.msra.mxu0 %v58
  %403 = vmatprep.subr.mxu0 %v61
  %404 = vmatpush1.msra.mxu0 %v60
  %405 = vmatprep.subr.mxu0 %v63
  %406 = vmatpush1.msra.mxu0 %v62
  %407 = vmatprep.subr.mxu0 %v65
  %408 = vmatpush1.msra.mxu0 %v64
  %409 = vmatprep.subr.mxu0 %v67
  %410 = vmatpush1.msra.mxu0 %v66
  %411 = vmatprep.subr.mxu0 %v69
  %412 = vmatpush1.msra.mxu0 %v68
  %413 = vmatprep.subr.mxu0 %v71
  %414 = vmatpush1.msra.mxu0 %v70
  %415 = vmatprep.subr.mxu0 %v73
  %416 = vmatpush1.msra.mxu0 %v72
  %417 = vmatprep.subr.mxu0 %v75
  %418 = vmatpush1.msra.mxu0 %v74
  %419 = vmatprep.subr.mxu0 %v77
  %420 = vmatpush1.msra.mxu0 %v76
  %421 = vmatprep.subr.mxu0 %v79
  %422 = vmatpush1.msra.mxu0 %v78
  %423 = vmatprep.subr.mxu0 %v81
  %424 = vmatpush1.msra.mxu0 %v80
  %425 = vmatprep.subr.mxu0 %v83
  %426 = vmatpush1.msra.mxu0 %v82
  %427 = vmatprep.subr.mxu0 %v85
  %428 = vmatpush1.msra.mxu0 %v84
  %429 = vmatprep.subr.mxu0 %v87
  %430 = vmatpush1.msra.mxu0 %v86
  %431 = vmatprep.subr.mxu0 %v89
  %432 = vmatpush1.msra.mxu0 %v88
  %433 = vmatprep.mubr.f32.mxu0 %v367
  %434 = vmatmul.mubr.f32.gmra.mrb[0].mxu0 %v365
  %v435 = vpop.f32.mrb[0].mxu0
  %v436 = vadd.f32 0.0, %v435
  %v437 = vpop.f32.mrb[0].mxu0
  %v438 = vadd.f32 0.0, %v437
  %439 = vdwg.mxu0
  %v440 = vmul.f32 %v436, %v166
  %v441 = vmul.f32 %v438, %v170
  %v442 = vadd.f32 %v440, %v441
  %443 = vadd.xlane.f32.xlu0 %v442
  %v444 = vpop.xlane.xlu0 %443
  %445 = vmatprep.subr.mxu0 %v438
  %446 = vmatpush1.xpose.msra.mxu0 %v436
  %447 = vmatprep.subr.mxu0 0.0
  %448 = vmatpush1.xpose.msra.mxu0 0.0
  %449 = vmatprep.subr.mxu0 0.0
  %450 = vmatpush1.xpose.msra.mxu0 0.0
  %451 = vmatprep.subr.mxu0 0.0
  %452 = vmatpush1.xpose.msra.mxu0 0.0
  %453 = vmatprep.subr.mxu0 0.0
  %454 = vmatpush1.xpose.msra.mxu0 0.0
  %455 = vmatprep.subr.mxu0 0.0
  %456 = vmatpush1.xpose.msra.mxu0 0.0
  %457 = vmatprep.subr.mxu0 0.0
  %458 = vmatpush1.xpose.msra.mxu0 0.0
  %459 = vmatprep.subr.mxu0 0.0
  %460 = vmatpush1.xpose.msra.mxu0 0.0
  %461 = vmatprep.subr.mxu0 0.0
  %462 = vmatpush1.xpose.msra.mxu0 0.0
  %463 = vmatprep.subr.mxu0 0.0
  %464 = vmatpush1.xpose.msra.mxu0 0.0
  %465 = vmatprep.subr.mxu0 0.0
  %466 = vmatpush1.xpose.msra.mxu0 0.0
  %467 = vmatprep.subr.mxu0 0.0
  %468 = vmatpush1.xpose.msra.mxu0 0.0
  %469 = vmatprep.subr.mxu0 0.0
  %470 = vmatpush1.xpose.msra.mxu0 0.0
  %471 = vmatprep.subr.mxu0 0.0
  %472 = vmatpush1.xpose.msra.mxu0 0.0
  %473 = vmatprep.subr.mxu0 0.0
  %474 = vmatpush1.xpose.msra.mxu0 0.0
  %475 = vmatprep.subr.mxu0 0.0
  %476 = vmatpush1.xpose.msra.mxu0 0.0
  %477 = vmatprep.subr.mxu0 0.0
  %478 = vmatpush1.xpose.msra.mxu0 0.0
  %479 = vmatprep.subr.mxu0 0.0
  %480 = vmatpush1.xpose.msra.mxu0 0.0
  %481 = vmatprep.subr.mxu0 0.0
  %482 = vmatpush1.xpose.msra.mxu0 0.0
  %483 = vmatprep.subr.mxu0 0.0
  %484 = vmatpush1.xpose.msra.mxu0 0.0
  %485 = vmatprep.subr.mxu0 0.0
  %486 = vmatpush1.xpose.msra.mxu0 0.0
  %487 = vmatprep.subr.mxu0 0.0
  %488 = vmatpush1.xpose.msra.mxu0 0.0
  %489 = vmatprep.subr.mxu0 0.0
  %490 = vmatpush1.xpose.msra.mxu0 0.0
  %491 = vmatprep.subr.mxu0 0.0
  %492 = vmatpush1.xpose.msra.mxu0 0.0
  %493 = vmatprep.subr.mxu0 0.0
  %494 = vmatpush1.xpose.msra.mxu0 0.0
  %495 = vmatprep.subr.mxu0 0.0
  %496 = vmatpush1.xpose.msra.mxu0 0.0
  %497 = vmatprep.subr.mxu0 0.0
  %498 = vmatpush1.xpose.msra.mxu0 0.0
  %499 = vmatprep.subr.mxu0 0.0
  %500 = vmatpush1.xpose.msra.mxu0 0.0
  %501 = vmatprep.subr.mxu0 0.0
  %502 = vmatpush1.xpose.msra.mxu0 0.0
  %503 = vmatprep.subr.mxu0 0.0
  %504 = vmatpush1.xpose.msra.mxu0 0.0
  %505 = vmatprep.subr.mxu0 0.0
  %506 = vmatpush1.xpose.msra.mxu0 0.0
  %507 = vmatprep.subr.mxu0 0.0
  %508 = vmatpush1.xpose.msra.mxu0 0.0
  %509 = vmatprep.mubr.f32.mxu0 %v187
  %510 = vmatmul.mubr.f32.gmra.mrb[0].mxu0 %v183
  %v511 = vpop.f32.mrb[0].mxu0
  %v512 = vadd.f32 0.0, %v511
  %v513 = vpop.f32.mrb[0].mxu0
  %514 = vdwg.mxu0
  %v515 = vlaneseq
  %v516 = vshrl.u32 %v515, 7
  %v517 = vsub.s32 0, %v516
  %v518 = vrot.slane %v512, %v517
  %v519 = vadd.f32 %v444, %v518
  %vm520 = vcmp.gt.f32.partialorder %v519, 0.0
  %v521 = vmul.f32 %v519, 0.2
  %v522 = vsel %vm520, %v519, %v521
  %v523 = vsel %vm268, %v522, -1e+30
  %v524 = vsel %vm270, %v523, -inf
  %525 = vmax.xlane.f32.xlu0 %v524
  %v526 = vpop.xlane.xlu0 %525
  %v527 = vsub.f32 %v523, %v526
  %v528 = vmul.f32 %v527, 1.442695
  %v529 = vpow.pop %v528
  %v530 = vmul.f32 %v529, %v23
  %v531 = vsel %vm270, %v530, 0.0
  %532 = vadd.xlane.f32.xlu0 %v531
  %v533 = vpop.xlane.xlu0 %532
  %v534 = vrcp.pop %v533
  %v535 = vmul.f32 %v530, %v534
  %v537 = vsel %vm270, %v535, 0
  %539 = vmatprep.subr.mxu0 %v438
  %540 = vmatpush1.msra.mxu0 %v436
  %541 = vmatprep.subr.mxu0 0.0
  %542 = vmatpush1.msra.mxu0 0.0
  %543 = vmatprep.subr.mxu0 0.0
  %544 = vmatpush1.msra.mxu0 0.0
  %545 = vmatprep.subr.mxu0 0.0
  %546 = vmatpush1.msra.mxu0 0.0
  %547 = vmatprep.subr.mxu0 0.0
  %548 = vmatpush1.msra.mxu0 0.0
  %549 = vmatprep.subr.mxu0 0.0
  %550 = vmatpush1.msra.mxu0 0.0
  %551 = vmatprep.subr.mxu0 0.0
  %552 = vmatpush1.msra.mxu0 0.0
  %553 = vmatprep.subr.mxu0 0.0
  %554 = vmatpush1.msra.mxu0 0.0
  %555 = vmatprep.subr.mxu0 0.0
  %556 = vmatpush1.msra.mxu0 0.0
  %557 = vmatprep.subr.mxu0 0.0
  %558 = vmatpush1.msra.mxu0 0.0
  %559 = vmatprep.subr.mxu0 0.0
  %560 = vmatpush1.msra.mxu0 0.0
  %561 = vmatprep.subr.mxu0 0.0
  %562 = vmatpush1.msra.mxu0 0.0
  %563 = vmatprep.subr.mxu0 0.0
  %564 = vmatpush1.msra.mxu0 0.0
  %565 = vmatprep.subr.mxu0 0.0
  %566 = vmatpush1.msra.mxu0 0.0
  %567 = vmatprep.subr.mxu0 0.0
  %568 = vmatpush1.msra.mxu0 0.0
  %569 = vmatprep.subr.mxu0 0.0
  %570 = vmatpush1.msra.mxu0 0.0
  %571 = vmatprep.subr.mxu0 0.0
  %572 = vmatpush1.msra.mxu0 0.0
  %573 = vmatprep.subr.mxu0 0.0
  %574 = vmatpush1.msra.mxu0 0.0
  %575 = vmatprep.subr.mxu0 0.0
  %576 = vmatpush1.msra.mxu0 0.0
  %577 = vmatprep.subr.mxu0 0.0
  %578 = vmatpush1.msra.mxu0 0.0
  %579 = vmatprep.subr.mxu0 0.0
  %580 = vmatpush1.msra.mxu0 0.0
  %581 = vmatprep.subr.mxu0 0.0
  %582 = vmatpush1.msra.mxu0 0.0
  %583 = vmatprep.subr.mxu0 0.0
  %584 = vmatpush1.msra.mxu0 0.0
  %585 = vmatprep.subr.mxu0 0.0
  %586 = vmatpush1.msra.mxu0 0.0
  %587 = vmatprep.subr.mxu0 0.0
  %588 = vmatpush1.msra.mxu0 0.0
  %589 = vmatprep.subr.mxu0 0.0
  %590 = vmatpush1.msra.mxu0 0.0
  %591 = vmatprep.subr.mxu0 0.0
  %592 = vmatpush1.msra.mxu0 0.0
  %593 = vmatprep.subr.mxu0 0.0
  %594 = vmatpush1.msra.mxu0 0.0
  %595 = vmatprep.subr.mxu0 0.0
  %596 = vmatpush1.msra.mxu0 0.0
  %597 = vmatprep.subr.mxu0 0.0
  %598 = vmatpush1.msra.mxu0 0.0
  %599 = vmatprep.subr.mxu0 0.0
  %600 = vmatpush1.msra.mxu0 0.0
  %601 = vmatprep.subr.mxu0 0.0
  %602 = vmatpush1.msra.mxu0 0.0
  %603 = vmatprep.mubr.f32.mxu0 0.0
  %604 = vmatmul.mubr.f32.gmra.mrb[0].mxu0 %v537
  %v605 = vpop.f32.mrb[0].mxu0
  %v606 = vadd.f32 %v288, %v605
  %v607 = vpop.f32.mrb[0].mxu0
  %v608 = vadd.f32 %v292, %v607
  %609 = vdwg.mxu0
  %610 = vmatprep.subr.mxu0 %v27
  %611 = vmatpush1.msra.mxu0 %v26
  %612 = vmatprep.subr.mxu0 %v29
  %613 = vmatpush1.msra.mxu0 %v28
  %614 = vmatprep.subr.mxu0 %v31
  %615 = vmatpush1.msra.mxu0 %v30
  %616 = vmatprep.subr.mxu0 %v33
  %617 = vmatpush1.msra.mxu0 %v32
  %618 = vmatprep.subr.mxu0 %v35
  %619 = vmatpush1.msra.mxu0 %v34
  %620 = vmatprep.subr.mxu0 %v37
  %621 = vmatpush1.msra.mxu0 %v36
  %622 = vmatprep.subr.mxu0 %v39
  %623 = vmatpush1.msra.mxu0 %v38
  %624 = vmatprep.subr.mxu0 %v41
  %625 = vmatpush1.msra.mxu0 %v40
  %626 = vmatprep.subr.mxu0 %v43
  %627 = vmatpush1.msra.mxu0 %v42
  %628 = vmatprep.subr.mxu0 %v45
  %629 = vmatpush1.msra.mxu0 %v44
  %630 = vmatprep.subr.mxu0 %v47
  %631 = vmatpush1.msra.mxu0 %v46
  %632 = vmatprep.subr.mxu0 %v49
  %633 = vmatpush1.msra.mxu0 %v48
  %634 = vmatprep.subr.mxu0 %v51
  %635 = vmatpush1.msra.mxu0 %v50
  %636 = vmatprep.subr.mxu0 %v53
  %637 = vmatpush1.msra.mxu0 %v52
  %638 = vmatprep.subr.mxu0 %v55
  %639 = vmatpush1.msra.mxu0 %v54
  %640 = vmatprep.subr.mxu0 %v57
  %641 = vmatpush1.msra.mxu0 %v56
  %642 = vmatprep.subr.mxu0 %v59
  %643 = vmatpush1.msra.mxu0 %v58
  %644 = vmatprep.subr.mxu0 %v61
  %645 = vmatpush1.msra.mxu0 %v60
  %646 = vmatprep.subr.mxu0 %v63
  %647 = vmatpush1.msra.mxu0 %v62
  %648 = vmatprep.subr.mxu0 %v65
  %649 = vmatpush1.msra.mxu0 %v64
  %650 = vmatprep.subr.mxu0 %v67
  %651 = vmatpush1.msra.mxu0 %v66
  %652 = vmatprep.subr.mxu0 %v69
  %653 = vmatpush1.msra.mxu0 %v68
  %654 = vmatprep.subr.mxu0 %v71
  %655 = vmatpush1.msra.mxu0 %v70
  %656 = vmatprep.subr.mxu0 %v73
  %657 = vmatpush1.msra.mxu0 %v72
  %658 = vmatprep.subr.mxu0 %v75
  %659 = vmatpush1.msra.mxu0 %v74
  %660 = vmatprep.subr.mxu0 %v77
  %661 = vmatpush1.msra.mxu0 %v76
  %662 = vmatprep.subr.mxu0 %v79
  %663 = vmatpush1.msra.mxu0 %v78
  %664 = vmatprep.subr.mxu0 %v81
  %665 = vmatpush1.msra.mxu0 %v80
  %666 = vmatprep.subr.mxu0 %v83
  %667 = vmatpush1.msra.mxu0 %v82
  %668 = vmatprep.subr.mxu0 %v85
  %669 = vmatpush1.msra.mxu0 %v84
  %670 = vmatprep.subr.mxu0 %v87
  %671 = vmatpush1.msra.mxu0 %v86
  %672 = vmatprep.subr.mxu0 %v89
  %673 = vmatpush1.msra.mxu0 %v88
  %674 = vmatprep.mubr.f32.mxu0 %v608
  %675 = vmatmul.mubr.f32.gmra.mrb[0].mxu0 %v606
  %v676 = vpop.f32.mrb[0].mxu0
  %v677 = vadd.f32 0.0, %v676
  %v678 = vpop.f32.mrb[0].mxu0
  %v679 = vadd.f32 0.0, %v678
  %680 = vdwg.mxu0
  %v681 = vmul.f32 %v677, %v166
  %v682 = vmul.f32 %v679, %v170
  %v683 = vadd.f32 %v681, %v682
  %684 = vadd.xlane.f32.xlu0 %v683
  %v685 = vpop.xlane.xlu0 %684
  %686 = vmatprep.subr.mxu0 %v679
  %687 = vmatpush1.xpose.msra.mxu0 %v677
  %688 = vmatprep.subr.mxu0 0.0
  %689 = vmatpush1.xpose.msra.mxu0 0.0
  %690 = vmatprep.subr.mxu0 0.0
  %691 = vmatpush1.xpose.msra.mxu0 0.0
  %692 = vmatprep.subr.mxu0 0.0
  %693 = vmatpush1.xpose.msra.mxu0 0.0
  %694 = vmatprep.subr.mxu0 0.0
  %695 = vmatpush1.xpose.msra.mxu0 0.0
  %696 = vmatprep.subr.mxu0 0.0
  %697 = vmatpush1.xpose.msra.mxu0 0.0
  %698 = vmatprep.subr.mxu0 0.0
  %699 = vmatpush1.xpose.msra.mxu0 0.0
  %700 = vmatprep.subr.mxu0 0.0
  %701 = vmatpush1.xpose.msra.mxu0 0.0
  %702 = vmatprep.subr.mxu0 0.0
  %703 = vmatpush1.xpose.msra.mxu0 0.0
  %704 = vmatprep.subr.mxu0 0.0
  %705 = vmatpush1.xpose.msra.mxu0 0.0
  %706 = vmatprep.subr.mxu0 0.0
  %707 = vmatpush1.xpose.msra.mxu0 0.0
  %708 = vmatprep.subr.mxu0 0.0
  %709 = vmatpush1.xpose.msra.mxu0 0.0
  %710 = vmatprep.subr.mxu0 0.0
  %711 = vmatpush1.xpose.msra.mxu0 0.0
  %712 = vmatprep.subr.mxu0 0.0
  %713 = vmatpush1.xpose.msra.mxu0 0.0
  %714 = vmatprep.subr.mxu0 0.0
  %715 = vmatpush1.xpose.msra.mxu0 0.0
  %716 = vmatprep.subr.mxu0 0.0
  %717 = vmatpush1.xpose.msra.mxu0 0.0
  %718 = vmatprep.subr.mxu0 0.0
  %719 = vmatpush1.xpose.msra.mxu0 0.0
  %720 = vmatprep.subr.mxu0 0.0
  %721 = vmatpush1.xpose.msra.mxu0 0.0
  %722 = vmatprep.subr.mxu0 0.0
  %723 = vmatpush1.xpose.msra.mxu0 0.0
  %724 = vmatprep.subr.mxu0 0.0
  %725 = vmatpush1.xpose.msra.mxu0 0.0
  %726 = vmatprep.subr.mxu0 0.0
  %727 = vmatpush1.xpose.msra.mxu0 0.0
  %728 = vmatprep.subr.mxu0 0.0
  %729 = vmatpush1.xpose.msra.mxu0 0.0
  %730 = vmatprep.subr.mxu0 0.0
  %731 = vmatpush1.xpose.msra.mxu0 0.0
  %732 = vmatprep.subr.mxu0 0.0
  %733 = vmatpush1.xpose.msra.mxu0 0.0
  %734 = vmatprep.subr.mxu0 0.0
  %735 = vmatpush1.xpose.msra.mxu0 0.0
  %736 = vmatprep.subr.mxu0 0.0
  %737 = vmatpush1.xpose.msra.mxu0 0.0
  %738 = vmatprep.subr.mxu0 0.0
  %739 = vmatpush1.xpose.msra.mxu0 0.0
  %740 = vmatprep.subr.mxu0 0.0
  %741 = vmatpush1.xpose.msra.mxu0 0.0
  %742 = vmatprep.subr.mxu0 0.0
  %743 = vmatpush1.xpose.msra.mxu0 0.0
  %744 = vmatprep.subr.mxu0 0.0
  %745 = vmatpush1.xpose.msra.mxu0 0.0
  %746 = vmatprep.subr.mxu0 0.0
  %747 = vmatpush1.xpose.msra.mxu0 0.0
  %748 = vmatprep.subr.mxu0 0.0
  %749 = vmatpush1.xpose.msra.mxu0 0.0
  %750 = vmatprep.mubr.f32.mxu0 %v187
  %751 = vmatmul.mubr.f32.gmra.mrb[0].mxu0 %v183
  %v752 = vpop.f32.mrb[0].mxu0
  %v753 = vadd.f32 0.0, %v752
  %v754 = vpop.f32.mrb[0].mxu0
  %755 = vdwg.mxu0
  %v756 = vlaneseq
  %v757 = vshrl.u32 %v756, 7
  %v758 = vsub.s32 0, %v757
  %v759 = vrot.slane %v753, %v758
  %v760 = vadd.f32 %v685, %v759
  %vm761 = vcmp.gt.f32.partialorder %v760, 0.0
  %v762 = vmul.f32 %v760, 0.2
  %v763 = vsel %vm761, %v760, %v762
  %v764 = vsel %vm268, %v763, -1e+30
  %v765 = vsel %vm270, %v764, -inf
  %766 = vmax.xlane.f32.xlu0 %v765
  %v767 = vpop.xlane.xlu0 %766
  %v768 = vsub.f32 %v764, %v767
  %v769 = vmul.f32 %v768, 1.442695
  %v770 = vpow.pop %v769
  %v771 = vmul.f32 %v770, %v23
  %v772 = vsel %vm270, %v771, 0.0
  %773 = vadd.xlane.f32.xlu0 %v772
  %v774 = vpop.xlane.xlu0 %773
  %v775 = vrcp.pop %v774
  %v776 = vmul.f32 %v771, %v775
  %v778 = vsel %vm270, %v776, 0
  %780 = vmatprep.subr.mxu0 %v679
  %781 = vmatpush1.msra.mxu0 %v677
  %782 = vmatprep.subr.mxu0 0.0
  %783 = vmatpush1.msra.mxu0 0.0
  %784 = vmatprep.subr.mxu0 0.0
  %785 = vmatpush1.msra.mxu0 0.0
  %786 = vmatprep.subr.mxu0 0.0
  %787 = vmatpush1.msra.mxu0 0.0
  %788 = vmatprep.subr.mxu0 0.0
  %789 = vmatpush1.msra.mxu0 0.0
  %790 = vmatprep.subr.mxu0 0.0
  %791 = vmatpush1.msra.mxu0 0.0
  %792 = vmatprep.subr.mxu0 0.0
  %793 = vmatpush1.msra.mxu0 0.0
  %794 = vmatprep.subr.mxu0 0.0
  %795 = vmatpush1.msra.mxu0 0.0
  %796 = vmatprep.subr.mxu0 0.0
  %797 = vmatpush1.msra.mxu0 0.0
  %798 = vmatprep.subr.mxu0 0.0
  %799 = vmatpush1.msra.mxu0 0.0
  %800 = vmatprep.subr.mxu0 0.0
  %801 = vmatpush1.msra.mxu0 0.0
  %802 = vmatprep.subr.mxu0 0.0
  %803 = vmatpush1.msra.mxu0 0.0
  %804 = vmatprep.subr.mxu0 0.0
  %805 = vmatpush1.msra.mxu0 0.0
  %806 = vmatprep.subr.mxu0 0.0
  %807 = vmatpush1.msra.mxu0 0.0
  %808 = vmatprep.subr.mxu0 0.0
  %809 = vmatpush1.msra.mxu0 0.0
  %810 = vmatprep.subr.mxu0 0.0
  %811 = vmatpush1.msra.mxu0 0.0
  %812 = vmatprep.subr.mxu0 0.0
  %813 = vmatpush1.msra.mxu0 0.0
  %814 = vmatprep.subr.mxu0 0.0
  %815 = vmatpush1.msra.mxu0 0.0
  %816 = vmatprep.subr.mxu0 0.0
  %817 = vmatpush1.msra.mxu0 0.0
  %818 = vmatprep.subr.mxu0 0.0
  %819 = vmatpush1.msra.mxu0 0.0
  %820 = vmatprep.subr.mxu0 0.0
  %821 = vmatpush1.msra.mxu0 0.0
  %822 = vmatprep.subr.mxu0 0.0
  %823 = vmatpush1.msra.mxu0 0.0
  %824 = vmatprep.subr.mxu0 0.0
  %825 = vmatpush1.msra.mxu0 0.0
  %826 = vmatprep.subr.mxu0 0.0
  %827 = vmatpush1.msra.mxu0 0.0
  %828 = vmatprep.subr.mxu0 0.0
  %829 = vmatpush1.msra.mxu0 0.0
  %830 = vmatprep.subr.mxu0 0.0
  %831 = vmatpush1.msra.mxu0 0.0
  %832 = vmatprep.subr.mxu0 0.0
  %833 = vmatpush1.msra.mxu0 0.0
  %834 = vmatprep.subr.mxu0 0.0
  %835 = vmatpush1.msra.mxu0 0.0
  %836 = vmatprep.subr.mxu0 0.0
  %837 = vmatpush1.msra.mxu0 0.0
  %838 = vmatprep.subr.mxu0 0.0
  %839 = vmatpush1.msra.mxu0 0.0
  %840 = vmatprep.subr.mxu0 0.0
  %841 = vmatpush1.msra.mxu0 0.0
  %842 = vmatprep.subr.mxu0 0.0
  %843 = vmatpush1.msra.mxu0 0.0
  %844 = vmatprep.mubr.f32.mxu0 0.0
  %845 = vmatmul.mubr.f32.gmra.mrb[0].mxu0 %v778
  %v846 = vpop.f32.mrb[0].mxu0
  %v847 = vadd.f32 %v288, %v846
  %v848 = vpop.f32.mrb[0].mxu0
  %v849 = vadd.f32 %v292, %v848
  %850 = vdwg.mxu0
  %851 = vmatprep.subr.mxu0 %v27
  %852 = vmatpush1.msra.mxu0 %v26
  %853 = vmatprep.subr.mxu0 %v29
  %854 = vmatpush1.msra.mxu0 %v28
  %855 = vmatprep.subr.mxu0 %v31
  %856 = vmatpush1.msra.mxu0 %v30
  %857 = vmatprep.subr.mxu0 %v33
  %858 = vmatpush1.msra.mxu0 %v32
  %859 = vmatprep.subr.mxu0 %v35
  %860 = vmatpush1.msra.mxu0 %v34
  %861 = vmatprep.subr.mxu0 %v37
  %862 = vmatpush1.msra.mxu0 %v36
  %863 = vmatprep.subr.mxu0 %v39
  %864 = vmatpush1.msra.mxu0 %v38
  %865 = vmatprep.subr.mxu0 %v41
  %866 = vmatpush1.msra.mxu0 %v40
  %867 = vmatprep.subr.mxu0 %v43
  %868 = vmatpush1.msra.mxu0 %v42
  %869 = vmatprep.subr.mxu0 %v45
  %870 = vmatpush1.msra.mxu0 %v44
  %871 = vmatprep.subr.mxu0 %v47
  %872 = vmatpush1.msra.mxu0 %v46
  %873 = vmatprep.subr.mxu0 %v49
  %874 = vmatpush1.msra.mxu0 %v48
  %875 = vmatprep.subr.mxu0 %v51
  %876 = vmatpush1.msra.mxu0 %v50
  %877 = vmatprep.subr.mxu0 %v53
  %878 = vmatpush1.msra.mxu0 %v52
  %879 = vmatprep.subr.mxu0 %v55
  %880 = vmatpush1.msra.mxu0 %v54
  %881 = vmatprep.subr.mxu0 %v57
  %882 = vmatpush1.msra.mxu0 %v56
  %883 = vmatprep.subr.mxu0 %v59
  %884 = vmatpush1.msra.mxu0 %v58
  %885 = vmatprep.subr.mxu0 %v61
  %886 = vmatpush1.msra.mxu0 %v60
  %887 = vmatprep.subr.mxu0 %v63
  %888 = vmatpush1.msra.mxu0 %v62
  %889 = vmatprep.subr.mxu0 %v65
  %890 = vmatpush1.msra.mxu0 %v64
  %891 = vmatprep.subr.mxu0 %v67
  %892 = vmatpush1.msra.mxu0 %v66
  %893 = vmatprep.subr.mxu0 %v69
  %894 = vmatpush1.msra.mxu0 %v68
  %895 = vmatprep.subr.mxu0 %v71
  %896 = vmatpush1.msra.mxu0 %v70
  %897 = vmatprep.subr.mxu0 %v73
  %898 = vmatpush1.msra.mxu0 %v72
  %899 = vmatprep.subr.mxu0 %v75
  %900 = vmatpush1.msra.mxu0 %v74
  %901 = vmatprep.subr.mxu0 %v77
  %902 = vmatpush1.msra.mxu0 %v76
  %903 = vmatprep.subr.mxu0 %v79
  %904 = vmatpush1.msra.mxu0 %v78
  %905 = vmatprep.subr.mxu0 %v81
  %906 = vmatpush1.msra.mxu0 %v80
  %907 = vmatprep.subr.mxu0 %v83
  %908 = vmatpush1.msra.mxu0 %v82
  %909 = vmatprep.subr.mxu0 %v85
  %910 = vmatpush1.msra.mxu0 %v84
  %911 = vmatprep.subr.mxu0 %v87
  %912 = vmatpush1.msra.mxu0 %v86
  %913 = vmatprep.subr.mxu0 %v89
  %914 = vmatpush1.msra.mxu0 %v88
  %915 = vmatprep.mubr.f32.mxu0 %v849
  %916 = vmatmul.mubr.f32.gmra.mrb[0].mxu0 %v847
  %v917 = vpop.f32.mrb[0].mxu0
  %v918 = vadd.f32 0.0, %v917
  %v919 = vpop.f32.mrb[0].mxu0
  %v920 = vadd.f32 0.0, %v919
  %921 = vdwg.mxu0
  %v922 = vmul.f32 %v918, %v166
  %v923 = vmul.f32 %v920, %v170
  %v924 = vadd.f32 %v922, %v923
  %925 = vadd.xlane.f32.xlu0 %v924
  %v926 = vpop.xlane.xlu0 %925
  %927 = vmatprep.subr.mxu0 %v920
  %928 = vmatpush1.xpose.msra.mxu0 %v918
  %929 = vmatprep.subr.mxu0 0.0
  %930 = vmatpush1.xpose.msra.mxu0 0.0
  %931 = vmatprep.subr.mxu0 0.0
  %932 = vmatpush1.xpose.msra.mxu0 0.0
  %933 = vmatprep.subr.mxu0 0.0
  %934 = vmatpush1.xpose.msra.mxu0 0.0
  %935 = vmatprep.subr.mxu0 0.0
  %936 = vmatpush1.xpose.msra.mxu0 0.0
  %937 = vmatprep.subr.mxu0 0.0
  %938 = vmatpush1.xpose.msra.mxu0 0.0
  %939 = vmatprep.subr.mxu0 0.0
  %940 = vmatpush1.xpose.msra.mxu0 0.0
  %941 = vmatprep.subr.mxu0 0.0
  %942 = vmatpush1.xpose.msra.mxu0 0.0
  %943 = vmatprep.subr.mxu0 0.0
  %944 = vmatpush1.xpose.msra.mxu0 0.0
  %945 = vmatprep.subr.mxu0 0.0
  %946 = vmatpush1.xpose.msra.mxu0 0.0
  %947 = vmatprep.subr.mxu0 0.0
  %948 = vmatpush1.xpose.msra.mxu0 0.0
  %949 = vmatprep.subr.mxu0 0.0
  %950 = vmatpush1.xpose.msra.mxu0 0.0
  %951 = vmatprep.subr.mxu0 0.0
  %952 = vmatpush1.xpose.msra.mxu0 0.0
  %953 = vmatprep.subr.mxu0 0.0
  %954 = vmatpush1.xpose.msra.mxu0 0.0
  %955 = vmatprep.subr.mxu0 0.0
  %956 = vmatpush1.xpose.msra.mxu0 0.0
  %957 = vmatprep.subr.mxu0 0.0
  %958 = vmatpush1.xpose.msra.mxu0 0.0
  %959 = vmatprep.subr.mxu0 0.0
  %960 = vmatpush1.xpose.msra.mxu0 0.0
  %961 = vmatprep.subr.mxu0 0.0
  %962 = vmatpush1.xpose.msra.mxu0 0.0
  %963 = vmatprep.subr.mxu0 0.0
  %964 = vmatpush1.xpose.msra.mxu0 0.0
  %965 = vmatprep.subr.mxu0 0.0
  %966 = vmatpush1.xpose.msra.mxu0 0.0
  %967 = vmatprep.subr.mxu0 0.0
  %968 = vmatpush1.xpose.msra.mxu0 0.0
  %969 = vmatprep.subr.mxu0 0.0
  %970 = vmatpush1.xpose.msra.mxu0 0.0
  %971 = vmatprep.subr.mxu0 0.0
  %972 = vmatpush1.xpose.msra.mxu0 0.0
  %973 = vmatprep.subr.mxu0 0.0
  %974 = vmatpush1.xpose.msra.mxu0 0.0
  %975 = vmatprep.subr.mxu0 0.0
  %976 = vmatpush1.xpose.msra.mxu0 0.0
  %977 = vmatprep.subr.mxu0 0.0
  %978 = vmatpush1.xpose.msra.mxu0 0.0
  %979 = vmatprep.subr.mxu0 0.0
  %980 = vmatpush1.xpose.msra.mxu0 0.0
  %981 = vmatprep.subr.mxu0 0.0
  %982 = vmatpush1.xpose.msra.mxu0 0.0
  %983 = vmatprep.subr.mxu0 0.0
  %984 = vmatpush1.xpose.msra.mxu0 0.0
  %985 = vmatprep.subr.mxu0 0.0
  %986 = vmatpush1.xpose.msra.mxu0 0.0
  %987 = vmatprep.subr.mxu0 0.0
  %988 = vmatpush1.xpose.msra.mxu0 0.0
  %989 = vmatprep.subr.mxu0 0.0
  %990 = vmatpush1.xpose.msra.mxu0 0.0
  %991 = vmatprep.mubr.f32.mxu0 %v187
  %992 = vmatmul.mubr.f32.gmra.mrb[0].mxu0 %v183
  %v993 = vpop.f32.mrb[0].mxu0
  %v994 = vadd.f32 0.0, %v993
  %v995 = vpop.f32.mrb[0].mxu0
  %996 = vdwg.mxu0
  %v997 = vlaneseq
  %v998 = vshrl.u32 %v997, 7
  %v999 = vsub.s32 0, %v998
  %v1000 = vrot.slane %v994, %v999
  %v1001 = vadd.f32 %v926, %v1000
  %vm1002 = vcmp.gt.f32.partialorder %v1001, 0.0
  %v1003 = vmul.f32 %v1001, 0.2
  %v1004 = vsel %vm1002, %v1001, %v1003
  %v1005 = vsel %vm268, %v1004, -1e+30
  %v1006 = vsel %vm270, %v1005, -inf
  %1007 = vmax.xlane.f32.xlu0 %v1006
  %v1008 = vpop.xlane.xlu0 %1007
  %v1009 = vsub.f32 %v1005, %v1008
  %v1010 = vmul.f32 %v1009, 1.442695
  %v1011 = vpow.pop %v1010
  %v1012 = vmul.f32 %v1011, %v23
  %v1013 = vsel %vm270, %v1012, 0.0
  %1014 = vadd.xlane.f32.xlu0 %v1013
  %v1015 = vpop.xlane.xlu0 %1014
  %v1016 = vrcp.pop %v1015
  %v1017 = vmul.f32 %v1012, %v1016
  %v1019 = vsel %vm270, %v1017, 0
  %1021 = vmatprep.subr.mxu0 %v920
  %1022 = vmatpush1.msra.mxu0 %v918
  %1023 = vmatprep.subr.mxu0 0.0
  %1024 = vmatpush1.msra.mxu0 0.0
  %1025 = vmatprep.subr.mxu0 0.0
  %1026 = vmatpush1.msra.mxu0 0.0
  %1027 = vmatprep.subr.mxu0 0.0
  %1028 = vmatpush1.msra.mxu0 0.0
  %1029 = vmatprep.subr.mxu0 0.0
  %1030 = vmatpush1.msra.mxu0 0.0
  %1031 = vmatprep.subr.mxu0 0.0
  %1032 = vmatpush1.msra.mxu0 0.0
  %1033 = vmatprep.subr.mxu0 0.0
  %1034 = vmatpush1.msra.mxu0 0.0
  %1035 = vmatprep.subr.mxu0 0.0
  %1036 = vmatpush1.msra.mxu0 0.0
  %1037 = vmatprep.subr.mxu0 0.0
  %1038 = vmatpush1.msra.mxu0 0.0
  %1039 = vmatprep.subr.mxu0 0.0
  %1040 = vmatpush1.msra.mxu0 0.0
  %1041 = vmatprep.subr.mxu0 0.0
  %1042 = vmatpush1.msra.mxu0 0.0
  %1043 = vmatprep.subr.mxu0 0.0
  %1044 = vmatpush1.msra.mxu0 0.0
  %1045 = vmatprep.subr.mxu0 0.0
  %1046 = vmatpush1.msra.mxu0 0.0
  %1047 = vmatprep.subr.mxu0 0.0
  %1048 = vmatpush1.msra.mxu0 0.0
  %1049 = vmatprep.subr.mxu0 0.0
  %1050 = vmatpush1.msra.mxu0 0.0
  %1051 = vmatprep.subr.mxu0 0.0
  %1052 = vmatpush1.msra.mxu0 0.0
  %1053 = vmatprep.subr.mxu0 0.0
  %1054 = vmatpush1.msra.mxu0 0.0
  %1055 = vmatprep.subr.mxu0 0.0
  %1056 = vmatpush1.msra.mxu0 0.0
  %1057 = vmatprep.subr.mxu0 0.0
  %1058 = vmatpush1.msra.mxu0 0.0
  %1059 = vmatprep.subr.mxu0 0.0
  %1060 = vmatpush1.msra.mxu0 0.0
  %1061 = vmatprep.subr.mxu0 0.0
  %1062 = vmatpush1.msra.mxu0 0.0
  %1063 = vmatprep.subr.mxu0 0.0
  %1064 = vmatpush1.msra.mxu0 0.0
  %1065 = vmatprep.subr.mxu0 0.0
  %1066 = vmatpush1.msra.mxu0 0.0
  %1067 = vmatprep.subr.mxu0 0.0
  %1068 = vmatpush1.msra.mxu0 0.0
  %1069 = vmatprep.subr.mxu0 0.0
  %1070 = vmatpush1.msra.mxu0 0.0
  %1071 = vmatprep.subr.mxu0 0.0
  %1072 = vmatpush1.msra.mxu0 0.0
  %1073 = vmatprep.subr.mxu0 0.0
  %1074 = vmatpush1.msra.mxu0 0.0
  %1075 = vmatprep.subr.mxu0 0.0
  %1076 = vmatpush1.msra.mxu0 0.0
  %1077 = vmatprep.subr.mxu0 0.0
  %1078 = vmatpush1.msra.mxu0 0.0
  %1079 = vmatprep.subr.mxu0 0.0
  %1080 = vmatpush1.msra.mxu0 0.0
  %1081 = vmatprep.subr.mxu0 0.0
  %1082 = vmatpush1.msra.mxu0 0.0
  %1083 = vmatprep.subr.mxu0 0.0
  %1084 = vmatpush1.msra.mxu0 0.0
  %1085 = vmatprep.mubr.f32.mxu0 0.0
  %1086 = vmatmul.mubr.f32.gmra.mrb[0].mxu0 %v1019
  %v1087 = vpop.f32.mrb[0].mxu0
  %v1088 = vadd.f32 %v288, %v1087
  %v1089 = vpop.f32.mrb[0].mxu0
  %v1090 = vadd.f32 %v292, %v1089
  %1091 = vdwg.mxu0
  %1092 = vst [vmem:[%s6] sm:$0xff] %v1088
  %1093 = vst [vmem:[%s6 + $0x8] sm:$0xff] %v1090
  // Predicated region
  $region26: #{net_forward.4} parent=0 // pred_check
    _
  $region27: #{net_forward.4} parent=0 // pred_check_branch
    %1095 = sbr.rel (0) target = $region29
  $region28: #{net_forward.4} parent=0 // pred_region
    _
  $region29: #{net_forward.4} parent=0 // pred_fallthru
    _
  // Predicated region
  $region30: #{net_forward.4} parent=0 // pred_check
    _
  $region31: #{net_forward.4} parent=0 // pred_check_branch
    %1097 = sbr.rel (0) target = $region33
  $region32: #{net_forward.4} parent=0 // pred_region
    _
  $region33: #{net_forward.4} parent=0 // pred_fallthru
    _

// kernel: net_forward.5
$region0: #{net_forward.5}
  #allocation0 [shape = 'u32[]', space=smem, size = 0x4, offset = 0x4, fixed_abs, tag = 'smem constant byte address 0x4 - core index']
  #allocation1 [shape = 'u32[144,128]{1,0:T(1,128)}', space=vmem, size = 0x12000, scoped, tag = 'internal scratch']
  %s0 = inlined_call_operand.vmem [shape: f32[8,128], index: 0, kind: input, shape index: {}]
  %s1 = inlined_call_operand.vmem [shape: f32[8,512], index: 1, kind: input, shape index: {}]
  %s2 = inlined_call_operand.vmem [shape: f32[32,256], index: 2, kind: input, shape index: {}]
  %s3 = inlined_call_operand.vmem [shape: f32[64,256], index: 3, kind: input, shape index: {}]
  %s4 = inlined_call_operand.vmem [shape: f32[512,128], index: 4, kind: input, shape index: {}]
  %s5 = inlined_call_operand.vmem [shape: f32[1,128], index: 5, kind: input, shape index: {}]
  %s6 = inlined_call_operand.vmem [shape: f32[128,384], index: 6, kind: input, shape index: {}]
  %s7 = inlined_call_operand.vmem [shape: f32[128,384], index: 7, kind: input, shape index: {}]
  %s8 = inlined_call_operand.vmem [shape: f32[1,384], index: 8, kind: input, shape index: {}]
  %s9 = inlined_call_operand.vmem [shape: f32[1,384], index: 9, kind: input, shape index: {}]
  %s10 = inlined_call_operand.vmem [shape: f32[256,128], index: 10, kind: input, shape index: {}]
  %s11 = inlined_call_operand.vmem [shape: f32[256,128], index: 11, kind: input, shape index: {}]
  %s12 = inlined_call_operand.vmem [shape: f32[1,128], index: 12, kind: input, shape index: {}]
  %s13 = inlined_call_operand.vmem [shape: f32[1,256], index: 13, kind: input, shape index: {}]
  %s14 = inlined_call_operand.vmem [shape: f32[1,128], index: 14, kind: input, shape index: {}]
  %s15 = inlined_call_operand.vmem [shape: f32[8,128], index: 15, kind: input, shape index: {}]
  %s16 = inlined_call_operand.vmem [shape: f32[1,128], index: 16, kind: input, shape index: {}]
  %s17 = inlined_call_operand.vmem [shape: f32[8,128], index: 17, kind: output, shape index: {}]
  %s18 = sld [smem:[#allocation0]]
  $region78: #{net_forward.5} parent=0
    _
  %s20 = ssub.s32 1, %s18
  %s21 = scalar_select 0, %s20, %s18
  // Predicated region
  $region2: #{net_forward.5} parent=0 // pred_check
    _
  $region3: #{net_forward.5} parent=0 // pred_check_branch
    %23 = sbr.rel (0) target = $region5
  $region4: #{net_forward.5} parent=0 // pred_region
    _
  $region5: #{net_forward.5} parent=0 // pred_fallthru
    _
  // Predicated region
  $region6: #{net_forward.5} parent=0 // pred_check
    _
  $region7: #{net_forward.5} parent=0 // pred_check_branch
    %25 = sbr.rel (0) target = $region9
  $region8: #{net_forward.5} parent=0 // pred_region
    _
  $region9: #{net_forward.5} parent=0 // pred_fallthru
    _
  // Predicated region
  $region10: #{net_forward.5} parent=0 // pred_check
    _
  $region11: #{net_forward.5} parent=0 // pred_check_branch
    %27 = sbr.rel (0) target = $region13
  $region12: #{net_forward.5} parent=0 // pred_region
    _
  $region13: #{net_forward.5} parent=0 // pred_fallthru
    _
  // Predicated region
  $region14: #{net_forward.5} parent=0 // pred_check
    _
  $region15: #{net_forward.5} parent=0 // pred_check_branch
    %29 = sbr.rel (0) target = $region17
  $region16: #{net_forward.5} parent=0 // pred_region
    _
  $region17: #{net_forward.5} parent=0 // pred_fallthru
    _
  // Predicated region
  $region18: #{net_forward.5} parent=0 // pred_check
    _
  $region19: #{net_forward.5} parent=0 // pred_check_branch
    %31 = sbr.rel (0) target = $region21
  $region20: #{net_forward.5} parent=0 // pred_region
    _
  $region21: #{net_forward.5} parent=0 // pred_fallthru
    _
  // Predicated region
  $region22: #{net_forward.5} parent=0 // pred_check
    _
  $region23: #{net_forward.5} parent=0 // pred_check_branch
    %33 = sbr.rel (0) target = $region25
  $region24: #{net_forward.5} parent=0 // pred_region
    _
  $region25: #{net_forward.5} parent=0 // pred_fallthru
    _
  // Predicated region
  $region26: #{net_forward.5} parent=0 // pred_check
    _
  $region27: #{net_forward.5} parent=0 // pred_check_branch
    %35 = sbr.rel (0) target = $region29
  $region28: #{net_forward.5} parent=0 // pred_region
    _
  $region29: #{net_forward.5} parent=0 // pred_fallthru
    _
  // Predicated region
  $region30: #{net_forward.5} parent=0 // pred_check
    _
  $region31: #{net_forward.5} parent=0 // pred_check_branch
    %37 = sbr.rel (0) target = $region33
  $region32: #{net_forward.5} parent=0 // pred_region
    _
  $region33: #{net_forward.5} parent=0 // pred_fallthru
    _
  // Predicated region
  $region34: #{net_forward.5} parent=0 // pred_check
    _
  $region35: #{net_forward.5} parent=0 // pred_check_branch
    %39 = sbr.rel (0) target = $region37
  $region36: #{net_forward.5} parent=0 // pred_region
    _
  $region37: #{net_forward.5} parent=0 // pred_fallthru
    _
  // Predicated region
  $region38: #{net_forward.5} parent=0 // pred_check
    _
  $region39: #{net_forward.5} parent=0 // pred_check_branch
    %41 = sbr.rel (0) target = $region41
  $region40: #{net_forward.5} parent=0 // pred_region
    _
  $region41: #{net_forward.5} parent=0 // pred_fallthru
    _
  // Predicated region
  $region42: #{net_forward.5} parent=0 // pred_check
    _
  $region43: #{net_forward.5} parent=0 // pred_check_branch
    %43 = sbr.rel (0) target = $region45
  $region44: #{net_forward.5} parent=0 // pred_region
    _
  $region45: #{net_forward.5} parent=0 // pred_fallthru
    _
  // Predicated region
  $region46: #{net_forward.5} parent=0 // pred_check
    _
  $region47: #{net_forward.5} parent=0 // pred_check_branch
    %45 = sbr.rel (0) target = $region49
  $region48: #{net_forward.5} parent=0 // pred_region
    _
  $region49: #{net_forward.5} parent=0 // pred_fallthru
    _
  // Predicated region
  $region50: #{net_forward.5} parent=0 // pred_check
    _
  $region51: #{net_forward.5} parent=0 // pred_check_branch
    %47 = sbr.rel (0) target = $region53
  $region52: #{net_forward.5} parent=0 // pred_region
    _
  $region53: #{net_forward.5} parent=0 // pred_fallthru
    _
  // Predicated region
  $region54: #{net_forward.5} parent=0 // pred_check
    _
  $region55: #{net_forward.5} parent=0 // pred_check_branch
    %49 = sbr.rel (0) target = $region57
  $region56: #{net_forward.5} parent=0 // pred_region
    _
  $region57: #{net_forward.5} parent=0 // pred_fallthru
    _
  // Predicated region
  $region58: #{net_forward.5} parent=0 // pred_check
    _
  $region59: #{net_forward.5} parent=0 // pred_check_branch
    %51 = sbr.rel (0) target = $region61
  $region60: #{net_forward.5} parent=0 // pred_region
    _
  $region61: #{net_forward.5} parent=0 // pred_fallthru
    _
  // Predicated region
  $region62: #{net_forward.5} parent=0 // pred_check
    _
  $region63: #{net_forward.5} parent=0 // pred_check_branch
    %53 = sbr.rel (0) target = $region65
  $region64: #{net_forward.5} parent=0 // pred_region
    _
  $region65: #{net_forward.5} parent=0 // pred_fallthru
    _
  // Predicated region
  $region66: #{net_forward.5} parent=0 // pred_check
    _
  $region67: #{net_forward.5} parent=0 // pred_check_branch
    %55 = sbr.rel (0) target = $region69
  $region68: #{net_forward.5} parent=0 // pred_region
    _
  $region69: #{net_forward.5} parent=0 // pred_fallthru
    _
  %v56 = vld [vmem:[%s0] sm:$0xff]
  %v57 = vld [vmem:[%s1] sm:$0xff]
  %v58 = vld [vmem:[%s1 + $0x8] sm:$0xff]
  %v59 = vld [vmem:[%s1 + $0x10] sm:$0xff]
  %v60 = vld [vmem:[%s1 + $0x18] sm:$0xff]
  %v61 = vld [vmem:[%s4] sm:$0xff]
  %v62 = vld [vmem:[%s4 + $0x8] sm:$0xff]
  %v63 = vld [vmem:[%s4 + $0x10] sm:$0xff]
  %v64 = vld [vmem:[%s4 + $0x18] sm:$0xff]
  %v65 = vld [vmem:[%s4 + $0x20] sm:$0xff]
  %v66 = vld [vmem:[%s4 + $0x28] sm:$0xff]
  %v67 = vld [vmem:[%s4 + $0x30] sm:$0xff]
  %v68 = vld [vmem:[%s4 + $0x38] sm:$0xff]
  %v69 = vld [vmem:[%s4 + $0x40] sm:$0xff]
  %v70 = vld [vmem:[%s4 + $0x48] sm:$0xff]
  %v71 = vld [vmem:[%s4 + $0x50] sm:$0xff]
  %v72 = vld [vmem:[%s4 + $0x58] sm:$0xff]
  %v73 = vld [vmem:[%s4 + $0x60] sm:$0xff]
  %v74 = vld [vmem:[%s4 + $0x68] sm:$0xff]
  %v75 = vld [vmem:[%s4 + $0x70] sm:$0xff]
  %v76 = vld [vmem:[%s4 + $0x78] sm:$0xff]
  %v77 = vld [vmem:[%s4 + $0x80] sm:$0xff]
  %v78 = vld [vmem:[%s4 + $0x88] sm:$0xff]
  %v79 = vld [vmem:[%s4 + $0x90] sm:$0xff]
  %v80 = vld [vmem:[%s4 + $0x98] sm:$0xff]
  %v81 = vld [vmem:[%s4 + $0xa0] sm:$0xff]
  %v82 = vld [vmem:[%s4 + $0xa8] sm:$0xff]
  %v83 = vld [vmem:[%s4 + $0xb0] sm:$0xff]
  %v84 = vld [vmem:[%s4 + $0xb8] sm:$0xff]
  %v85 = vld [vmem:[%s4 + $0xc0] sm:$0xff]
  %v86 = vld [vmem:[%s4 + $0xc8] sm:$0xff]
  %v87 = vld [vmem:[%s4 + $0xd0] sm:$0xff]
  %v88 = vld [vmem:[%s4 + $0xd8] sm:$0xff]
  %v89 = vld [vmem:[%s4 + $0xe0] sm:$0xff]
  %v90 = vld [vmem:[%s4 + $0xe8] sm:$0xff]
  %v91 = vld [vmem:[%s4 + $0xf0] sm:$0xff]
  %v92 = vld [vmem:[%s4 + $0xf8] sm:$0xff]
  %v93 = vld [vmem:[%s4 + $0x100] sm:$0xff]
  %v94 = vld [vmem:[%s4 + $0x108] sm:$0xff]
  %v95 = vld [vmem:[%s4 + $0x110] sm:$0xff]
  %v96 = vld [vmem:[%s4 + $0x118] sm:$0xff]
  %v97 = vld [vmem:[%s4 + $0x120] sm:$0xff]
  %v98 = vld [vmem:[%s4 + $0x128] sm:$0xff]
  %v99 = vld [vmem:[%s4 + $0x130] sm:$0xff]
  %v100 = vld [vmem:[%s4 + $0x138] sm:$0xff]
  %v101 = vld [vmem:[%s4 + $0x140] sm:$0xff]
  %v102 = vld [vmem:[%s4 + $0x148] sm:$0xff]
  %v103 = vld [vmem:[%s4 + $0x150] sm:$0xff]
  %v104 = vld [vmem:[%s4 + $0x158] sm:$0xff]
  %v105 = vld [vmem:[%s4 + $0x160] sm:$0xff]
  %v106 = vld [vmem:[%s4 + $0x168] sm:$0xff]
  %v107 = vld [vmem:[%s4 + $0x170] sm:$0xff]
  %v108 = vld [vmem:[%s4 + $0x178] sm:$0xff]
  %v109 = vld [vmem:[%s4 + $0x180] sm:$0xff]
  %v110 = vld [vmem:[%s4 + $0x188] sm:$0xff]
  %v111 = vld [vmem:[%s4 + $0x190] sm:$0xff]
  %v112 = vld [vmem:[%s4 + $0x198] sm:$0xff]
  %v113 = vld [vmem:[%s4 + $0x1a0] sm:$0xff]
  %v114 = vld [vmem:[%s4 + $0x1a8] sm:$0xff]
  %v115 = vld [vmem:[%s4 + $0x1b0] sm:$0xff]
  %v116 = vld [vmem:[%s4 + $0x1b8] sm:$0xff]
  %v117 = vld [vmem:[%s4 + $0x1c0] sm:$0xff]
  %v118 = vld [vmem:[%s4 + $0x1c8] sm:$0xff]
  %v119 = vld [vmem:[%s4 + $0x1d0] sm:$0xff]
  %v120 = vld [vmem:[%s4 + $0x1d8] sm:$0xff]
  %v121 = vld [vmem:[%s4 + $0x1e0] sm:$0xff]
  %v122 = vld [vmem:[%s4 + $0x1e8] sm:$0xff]
  %v123 = vld [vmem:[%s4 + $0x1f0] sm:$0xff]
  %v124 = vld [vmem:[%s4 + $0x1f8] sm:$0xff]
  %v125 = vld [vmem:[%s5] sm:$0x1]
  %v127 = vlaneseq
  %v128 = vshrl.u32 %v127, 7
  %v129 = vsub.s32 0, %v128
  %v130 = vrot.slane %v125, %v129
  %132 = vmatprep.subr.mxu0 0.0
  %133 = vmatpush1.msra.mxu0 %v61
  %134 = vmatprep.subr.mxu0 0.0
  %135 = vmatpush1.msra.mxu0 %v62
  %136 = vmatprep.subr.mxu0 0.0
  %137 = vmatpush1.msra.mxu0 %v63
  %138 = vmatprep.subr.mxu0 0.0
  %139 = vmatpush1.msra.mxu0 %v64
  %140 = vmatprep.subr.mxu0 0.0
  %141 = vmatpush1.msra.mxu0 %v65
  %142 = vmatprep.subr.mxu0 0.0
  %143 = vmatpush1.msra.mxu0 %v66
  %144 = vmatprep.subr.mxu0 0.0
  %145 = vmatpush1.msra.mxu0 %v67
  %146 = vmatprep.subr.mxu0 0.0
  %147 = vmatpush1.msra.mxu0 %v68
  %148 = vmatprep.subr.mxu0 0.0
  %149 = vmatpush1.msra.mxu0 %v69
  %150 = vmatprep.subr.mxu0 0.0
  %151 = vmatpush1.msra.mxu0 %v70
  %152 = vmatprep.subr.mxu0 0.0
  %153 = vmatpush1.msra.mxu0 %v71
  %154 = vmatprep.subr.mxu0 0.0
  %155 = vmatpush1.msra.mxu0 %v72
  %156 = vmatprep.subr.mxu0 0.0
  %157 = vmatpush1.msra.mxu0 %v73
  %158 = vmatprep.subr.mxu0 0.0
  %159 = vmatpush1.msra.mxu0 %v74
  %160 = vmatprep.subr.mxu0 0.0
  %161 = vmatpush1.msra.mxu0 %v75
  %162 = vmatprep.subr.mxu0 0.0
  %163 = vmatpush1.msra.mxu0 %v76
  %164 = vmatprep.subr.mxu0 0.0
  %165 = vmatpush1.msra.mxu0 %v77
  %166 = vmatprep.subr.mxu0 0.0
  %167 = vmatpush1.msra.mxu0 %v78
  %168 = vmatprep.subr.mxu0 0.0
  %169 = vmatpush1.msra.mxu0 %v79
  %170 = vmatprep.subr.mxu0 0.0
  %171 = vmatpush1.msra.mxu0 %v80
  %172 = vmatprep.subr.mxu0 0.0
  %173 = vmatpush1.msra.mxu0 %v81
  %174 = vmatprep.subr.mxu0 0.0
  %175 = vmatpush1.msra.mxu0 %v82
  %176 = vmatprep.subr.mxu0 0.0
  %177 = vmatpush1.msra.mxu0 %v83
  %178 = vmatprep.subr.mxu0 0.0
  %179 = vmatpush1.msra.mxu0 %v84
  %180 = vmatprep.subr.mxu0 0.0
  %181 = vmatpush1.msra.mxu0 %v85
  %182 = vmatprep.subr.mxu0 0.0
  %183 = vmatpush1.msra.mxu0 %v86
  %184 = vmatprep.subr.mxu0 0.0
  %185 = vmatpush1.msra.mxu0 %v87
  %186 = vmatprep.subr.mxu0 0.0
  %187 = vmatpush1.msra.mxu0 %v88
  %188 = vmatprep.subr.mxu0 0.0
  %189 = vmatpush1.msra.mxu0 %v89
  %190 = vmatprep.subr.mxu0 0.0
  %191 = vmatpush1.msra.mxu0 %v90
  %192 = vmatprep.subr.mxu0 0.0
  %193 = vmatpush1.msra.mxu0 %v91
  %194 = vmatprep.subr.mxu0 0.0
  %195 = vmatpush1.msra.mxu0 %v92
  %196 = vmatprep.mubr.f32.mxu0 %v58
  %197 = vmatmul.mubr.f32.gmra.mrb[0].mxu0 %v57
  %v198 = vpop.f32.mrb[0].mxu0
  %v199 = vadd.f32 %v130, %v198
  %v200 = vpop.f32.mrb[0].mxu0
  %201 = vdwg.mxu0
  %202 = vmatprep.subr.mxu0 0.0
  %203 = vmatpush1.msra.mxu0 %v93
  %204 = vmatprep.subr.mxu0 0.0
  %205 = vmatpush1.msra.mxu0 %v94
  %206 = vmatprep.subr.mxu0 0.0
  %207 = vmatpush1.msra.mxu0 %v95
  %208 = vmatprep.subr.mxu0 0.0
  %209 = vmatpush1.msra.mxu0 %v96
  %210 = vmatprep.subr.mxu0 0.0
  %211 = vmatpush1.msra.mxu0 %v97
  %212 = vmatprep.subr.mxu0 0.0
  %213 = vmatpush1.msra.mxu0 %v98
  %214 = vmatprep.subr.mxu0 0.0
  %215 = vmatpush1.msra.mxu0 %v99
  %216 = vmatprep.subr.mxu0 0.0
  %217 = vmatpush1.msra.mxu0 %v100
  %218 = vmatprep.subr.mxu0 0.0
  %219 = vmatpush1.msra.mxu0 %v101
  %220 = vmatprep.subr.mxu0 0.0
  %221 = vmatpush1.msra.mxu0 %v102
  %222 = vmatprep.subr.mxu0 0.0
  %223 = vmatpush1.msra.mxu0 %v103
  %224 = vmatprep.subr.mxu0 0.0
  %225 = vmatpush1.msra.mxu0 %v104
  %226 = vmatprep.subr.mxu0 0.0
  %227 = vmatpush1.msra.mxu0 %v105
  %228 = vmatprep.subr.mxu0 0.0
  %229 = vmatpush1.msra.mxu0 %v106
  %230 = vmatprep.subr.mxu0 0.0
  %231 = vmatpush1.msra.mxu0 %v107
  %232 = vmatprep.subr.mxu0 0.0
  %233 = vmatpush1.msra.mxu0 %v108
  %234 = vmatprep.subr.mxu0 0.0
  %235 = vmatpush1.msra.mxu0 %v109
  %236 = vmatprep.subr.mxu0 0.0
  %237 = vmatpush1.msra.mxu0 %v110
  %238 = vmatprep.subr.mxu0 0.0
  %239 = vmatpush1.msra.mxu0 %v111
  %240 = vmatprep.subr.mxu0 0.0
  %241 = vmatpush1.msra.mxu0 %v112
  %242 = vmatprep.subr.mxu0 0.0
  %243 = vmatpush1.msra.mxu0 %v113
  %244 = vmatprep.subr.mxu0 0.0
  %245 = vmatpush1.msra.mxu0 %v114
  %246 = vmatprep.subr.mxu0 0.0
  %247 = vmatpush1.msra.mxu0 %v115
  %248 = vmatprep.subr.mxu0 0.0
  %249 = vmatpush1.msra.mxu0 %v116
  %250 = vmatprep.subr.mxu0 0.0
  %251 = vmatpush1.msra.mxu0 %v117
  %252 = vmatprep.subr.mxu0 0.0
  %253 = vmatpush1.msra.mxu0 %v118
  %254 = vmatprep.subr.mxu0 0.0
  %255 = vmatpush1.msra.mxu0 %v119
  %256 = vmatprep.subr.mxu0 0.0
  %257 = vmatpush1.msra.mxu0 %v120
  %258 = vmatprep.subr.mxu0 0.0
  %259 = vmatpush1.msra.mxu0 %v121
  %260 = vmatprep.subr.mxu0 0.0
  %261 = vmatpush1.msra.mxu0 %v122
  %262 = vmatprep.subr.mxu0 0.0
  %263 = vmatpush1.msra.mxu0 %v123
  %264 = vmatprep.subr.mxu0 0.0
  %265 = vmatpush1.msra.mxu0 %v124
  %266 = vmatprep.mubr.f32.mxu0 %v60
  %267 = vmatmul.mubr.f32.gmra.mrb[0].mxu0 %v59
  %v268 = vpop.f32.mrb[0].mxu0
  %v269 = vadd.f32 %v199, %v268
  %v270 = vpop.f32.mrb[0].mxu0
  %271 = vdwg.mxu0
  %v272 = vld [vmem:[%s6] sm:$0xff]
  %v273 = vld [vmem:[%s6 + $0x8] sm:$0xff]
  %v274 = vld [vmem:[%s6 + $0x10] sm:$0xff]
  %v275 = vld [vmem:[%s6 + $0x18] sm:$0xff]
  %v276 = vld [vmem:[%s6 + $0x20] sm:$0xff]
  %v277 = vld [vmem:[%s6 + $0x28] sm:$0xff]
  %v278 = vld [vmem:[%s6 + $0x30] sm:$0xff]
  %v279 = vld [vmem:[%s6 + $0x38] sm:$0xff]
  %v280 = vld [vmem:[%s6 + $0x40] sm:$0xff]
  %v281 = vld [vmem:[%s6 + $0x48] sm:$0xff]
  %v282 = vld [vmem:[%s6 + $0x50] sm:$0xff]
  %v283 = vld [vmem:[%s6 + $0x58] sm:$0xff]
  %v284 = vld [vmem:[%s6 + $0x60] sm:$0xff]
  %v285 = vld [vmem:[%s6 + $0x68] sm:$0xff]
  %v286 = vld [vmem:[%s6 + $0x70] sm:$0xff]
  %v287 = vld [vmem:[%s6 + $0x78] sm:$0xff]
  %v288 = vld [vmem:[%s6 + $0x80] sm:$0xff]
  %v289 = vld [vmem:[%s6 + $0x88] sm:$0xff]
  %v290 = vld [vmem:[%s6 + $0x90] sm:$0xff]
  %v291 = vld [vmem:[%s6 + $0x98] sm:$0xff]
  %v292 = vld [vmem:[%s6 + $0xa0] sm:$0xff]
  %v293 = vld [vmem:[%s6 + $0xa8] sm:$0xff]
  %v294 = vld [vmem:[%s6 + $0xb0] sm:$0xff]
  %v295 = vld [vmem:[%s6 + $0xb8] sm:$0xff]
  %v296 = vld [vmem:[%s6 + $0xc0] sm:$0xff]
  %v297 = vld [vmem:[%s6 + $0xc8] sm:$0xff]
  %v298 = vld [vmem:[%s6 + $0xd0] sm:$0xff]
  %v299 = vld [vmem:[%s6 + $0xd8] sm:$0xff]
  %v300 = vld [vmem:[%s6 + $0xe0] sm:$0xff]
  %v301 = vld [vmem:[%s6 + $0xe8] sm:$0xff]
  %v302 = vld [vmem:[%s6 + $0xf0] sm:$0xff]
  %v303 = vld [vmem:[%s6 + $0xf8] sm:$0xff]
  %v304 = vld [vmem:[%s6 + $0x100] sm:$0xff]
  %v305 = vld [vmem:[%s6 + $0x108] sm:$0xff]
  %v306 = vld [vmem:[%s6 + $0x110] sm:$0xff]
  %v307 = vld [vmem:[%s6 + $0x118] sm:$0xff]
  %v308 = vld [vmem:[%s6 + $0x120] sm:$0xff]
  %v309 = vld [vmem:[%s6 + $0x128] sm:$0xff]
  %v310 = vld [vmem:[%s6 + $0x130] sm:$0xff]
  %v311 = vld [vmem:[%s6 + $0x138] sm:$0xff]
  %v312 = vld [vmem:[%s6 + $0x140] sm:$0xff]
  %v313 = vld [vmem:[%s6 + $0x148] sm:$0xff]
  %v314 = vld [vmem:[%s6 + $0x150] sm:$0xff]
  %v315 = vld [vmem:[%s6 + $0x158] sm:$0xff]
  %v316 = vld [vmem:[%s6 + $0x160] sm:$0xff]
  %v317 = vld [vmem:[%s6 + $0x168] sm:$0xff]
  %v318 = vld [vmem:[%s6 + $0x170] sm:$0xff]
  %v319 = vld [vmem:[%s6 + $0x178] sm:$0xff]
  %v320 = vld [vmem:[%s8] sm:$0x7]
  %v322 = vlaneseq
  %v323 = vshrl.u32 %v322, 7
  %v324 = vsub.s32 0, %v323
  %v325 = vrot.slane %v320, %v324
  %v326 = vlaneseq
  %v327 = vshrl.u32 %v326, 7
  %v328 = vsub.s32 1, %v327
  %v329 = vrot.slane %v320, %v328
  %v330 = vlaneseq
  %v331 = vshrl.u32 %v330, 7
  %v332 = vsub.s32 2, %v331
  %v333 = vrot.slane %v320, %v332
  %337 = vmatprep.subr.mxu0 %v273
  %338 = vmatpush1.msra.mxu0 %v272
  %339 = vmatprep.subr.mxu0 %v276
  %340 = vmatpush1.msra.mxu0 %v275
  %341 = vmatprep.subr.mxu0 %v279
  %342 = vmatpush1.msra.mxu0 %v278
  %343 = vmatprep.subr.mxu0 %v282
  %344 = vmatpush1.msra.mxu0 %v281
  %345 = vmatprep.subr.mxu0 %v285
  %346 = vmatpush1.msra.mxu0 %v284
  %347 = vmatprep.subr.mxu0 %v288
  %348 = vmatpush1.msra.mxu0 %v287
  %349 = vmatprep.subr.mxu0 %v291
  %350 = vmatpush1.msra.mxu0 %v290
  %351 = vmatprep.subr.mxu0 %v294
  %352 = vmatpush1.msra.mxu0 %v293
  %353 = vmatprep.subr.mxu0 %v297
  %354 = vmatpush1.msra.mxu0 %v296
  %355 = vmatprep.subr.mxu0 %v300
  %356 = vmatpush1.msra.mxu0 %v299
  %357 = vmatprep.subr.mxu0 %v303
  %358 = vmatpush1.msra.mxu0 %v302
  %359 = vmatprep.subr.mxu0 %v306
  %360 = vmatpush1.msra.mxu0 %v305
  %361 = vmatprep.subr.mxu0 %v309
  %362 = vmatpush1.msra.mxu0 %v308
  %363 = vmatprep.subr.mxu0 %v312
  %364 = vmatpush1.msra.mxu0 %v311
  %365 = vmatprep.subr.mxu0 %v315
  %366 = vmatpush1.msra.mxu0 %v314
  %367 = vmatprep.subr.mxu0 %v318
  %368 = vmatpush1.msra.mxu0 %v317
  %369 = vmatprep.subr.mxu0 0.0
  %370 = vmatpush1.msra.mxu0 0.0
  %371 = vmatprep.subr.mxu0 0.0
  %372 = vmatpush1.msra.mxu0 0.0
  %373 = vmatprep.subr.mxu0 0.0
  %374 = vmatpush1.msra.mxu0 0.0
  %375 = vmatprep.subr.mxu0 0.0
  %376 = vmatpush1.msra.mxu0 0.0
  %377 = vmatprep.subr.mxu0 0.0
  %378 = vmatpush1.msra.mxu0 0.0
  %379 = vmatprep.subr.mxu0 0.0
  %380 = vmatpush1.msra.mxu0 0.0
  %381 = vmatprep.subr.mxu0 0.0
  %382 = vmatpush1.msra.mxu0 0.0
  %383 = vmatprep.subr.mxu0 0.0
  %384 = vmatpush1.msra.mxu0 0.0
  %385 = vmatprep.subr.mxu0 0.0
  %386 = vmatpush1.msra.mxu0 0.0
  %387 = vmatprep.subr.mxu0 0.0
  %388 = vmatpush1.msra.mxu0 0.0
  %389 = vmatprep.subr.mxu0 0.0
  %390 = vmatpush1.msra.mxu0 0.0
  %391 = vmatprep.subr.mxu0 0.0
  %392 = vmatpush1.msra.mxu0 0.0
  %393 = vmatprep.subr.mxu0 0.0
  %394 = vmatpush1.msra.mxu0 0.0
  %395 = vmatprep.subr.mxu0 0.0
  %396 = vmatpush1.msra.mxu0 0.0
  %397 = vmatprep.subr.mxu0 0.0
  %398 = vmatpush1.msra.mxu0 0.0
  %399 = vmatprep.subr.mxu0 0.0
  %400 = vmatpush1.msra.mxu0 0.0
  %401 = vmatprep.mubr.f32.mxu0 0.0
  %402 = vmatmul.mubr.f32.gmra.mrb[0].mxu0 %v56
  %v403 = vpop.f32.mrb[0].mxu0
  %v404 = vadd.f32 %v325, %v403
  %v405 = vpop.f32.mrb[0].mxu0
  %v406 = vadd.f32 %v329, %v405
  %407 = vdwg.mxu0
  %408 = vmatprep.subr.mxu0 0.0
  %409 = vmatpush1.msra.mxu0 %v274
  %410 = vmatprep.subr.mxu0 0.0
  %411 = vmatpush1.msra.mxu0 %v277
  %412 = vmatprep.subr.mxu0 0.0
  %413 = vmatpush1.msra.mxu0 %v280
  %414 = vmatprep.subr.mxu0 0.0
  %415 = vmatpush1.msra.mxu0 %v283
  %416 = vmatprep.subr.mxu0 0.0
  %417 = vmatpush1.msra.mxu0 %v286
  %418 = vmatprep.subr.mxu0 0.0
  %419 = vmatpush1.msra.mxu0 %v289
  %420 = vmatprep.subr.mxu0 0.0
  %421 = vmatpush1.msra.mxu0 %v292
  %422 = vmatprep.subr.mxu0 0.0
  %423 = vmatpush1.msra.mxu0 %v295
  %424 = vmatprep.subr.mxu0 0.0
  %425 = vmatpush1.msra.mxu0 %v298
  %426 = vmatprep.subr.mxu0 0.0
  %427 = vmatpush1.msra.mxu0 %v301
  %428 = vmatprep.subr.mxu0 0.0
  %429 = vmatpush1.msra.mxu0 %v304
  %430 = vmatprep.subr.mxu0 0.0
  %431 = vmatpush1.msra.mxu0 %v307
  %432 = vmatprep.subr.mxu0 0.0
  %433 = vmatpush1.msra.mxu0 %v310
  %434 = vmatprep.subr.mxu0 0.0
  %435 = vmatpush1.msra.mxu0 %v313
  %436 = vmatprep.subr.mxu0 0.0
  %437 = vmatpush1.msra.mxu0 %v316
  %438 = vmatprep.subr.mxu0 0.0
  %439 = vmatpush1.msra.mxu0 %v319
  %440 = vmatprep.subr.mxu0 0.0
  %441 = vmatpush1.msra.mxu0 0.0
  %442 = vmatprep.subr.mxu0 0.0
  %443 = vmatpush1.msra.mxu0 0.0
  %444 = vmatprep.subr.mxu0 0.0
  %445 = vmatpush1.msra.mxu0 0.0
  %446 = vmatprep.subr.mxu0 0.0
  %447 = vmatpush1.msra.mxu0 0.0
  %448 = vmatprep.subr.mxu0 0.0
  %449 = vmatpush1.msra.mxu0 0.0
  %450 = vmatprep.subr.mxu0 0.0
  %451 = vmatpush1.msra.mxu0 0.0
  %452 = vmatprep.subr.mxu0 0.0
  %453 = vmatpush1.msra.mxu0 0.0
  %454 = vmatprep.subr.mxu0 0.0
  %455 = vmatpush1.msra.mxu0 0.0
  %456 = vmatprep.subr.mxu0 0.0
  %457 = vmatpush1.msra.mxu0 0.0
  %458 = vmatprep.subr.mxu0 0.0
  %459 = vmatpush1.msra.mxu0 0.0
  %460 = vmatprep.subr.mxu0 0.0
  %461 = vmatpush1.msra.mxu0 0.0
  %462 = vmatprep.subr.mxu0 0.0
  %463 = vmatpush1.msra.mxu0 0.0
  %464 = vmatprep.subr.mxu0 0.0
  %465 = vmatpush1.msra.mxu0 0.0
  %466 = vmatprep.subr.mxu0 0.0
  %467 = vmatpush1.msra.mxu0 0.0
  %468 = vmatprep.subr.mxu0 0.0
  %469 = vmatpush1.msra.mxu0 0.0
  %470 = vmatprep.subr.mxu0 0.0
  %471 = vmatpush1.msra.mxu0 0.0
  %472 = vmatprep.mubr.f32.mxu0 0.0
  %473 = vmatmul.mubr.f32.gmra.mrb[0].mxu0 %v56
  %v474 = vpop.f32.mrb[0].mxu0
  %v475 = vadd.f32 %v333, %v474
  %v476 = vpop.f32.mrb[0].mxu0
  %477 = vdwg.mxu0
  %v478 = vld [vmem:[%s7] sm:$0xff]
  %v479 = vld [vmem:[%s7 + $0x8] sm:$0xff]
  %v480 = vld [vmem:[%s7 + $0x10] sm:$0xff]
  %v481 = vld [vmem:[%s7 + $0x18] sm:$0xff]
  %v482 = vld [vmem:[%s7 + $0x20] sm:$0xff]
  %v483 = vld [vmem:[%s7 + $0x28] sm:$0xff]
  %v484 = vld [vmem:[%s7 + $0x30] sm:$0xff]
  %v485 = vld [vmem:[%s7 + $0x38] sm:$0xff]
  %v486 = vld [vmem:[%s7 + $0x40] sm:$0xff]
  %v487 = vld [vmem:[%s7 + $0x48] sm:$0xff]
  %v488 = vld [vmem:[%s7 + $0x50] sm:$0xff]
  %v489 = vld [vmem:[%s7 + $0x58] sm:$0xff]
  %v490 = vld [vmem:[%s7 + $0x60] sm:$0xff]
  %v491 = vld [vmem:[%s7 + $0x68] sm:$0xff]
  %v492 = vld [vmem:[%s7 + $0x70] sm:$0xff]
  %v493 = vld [vmem:[%s7 + $0x78] sm:$0xff]
  %v494 = vld [vmem:[%s7 + $0x80] sm:$0xff]
  %v495 = vld [vmem:[%s7 + $0x88] sm:$0xff]
  %v496 = vld [vmem:[%s7 + $0x90] sm:$0xff]
  %v497 = vld [vmem:[%s7 + $0x98] sm:$0xff]
  %v498 = vld [vmem:[%s7 + $0xa0] sm:$0xff]
  %v499 = vld [vmem:[%s7 + $0xa8] sm:$0xff]
  %v500 = vld [vmem:[%s7 + $0xb0] sm:$0xff]
  %v501 = vld [vmem:[%s7 + $0xb8] sm:$0xff]
  %v502 = vld [vmem:[%s7 + $0xc0] sm:$0xff]
  %v503 = vld [vmem:[%s7 + $0xc8] sm:$0xff]
  %v504 = vld [vmem:[%s7 + $0xd0] sm:$0xff]
  %v505 = vld [vmem:[%s7 + $0xd8] sm:$0xff]
  %v506 = vld [vmem:[%s7 + $0xe0] sm:$0xff]
  %v507 = vld [vmem:[%s7 + $0xe8] sm:$0xff]
  %v508 = vld [vmem:[%s7 + $0xf0] sm:$0xff]
  %v509 = vld [vmem:[%s7 + $0xf8] sm:$0xff]
  %v510 = vld [vmem:[%s7 + $0x100] sm:$0xff]
  %v511 = vld [vmem:[%s7 + $0x108] sm:$0xff]
  %v512 = vld [vmem:[%s7 + $0x110] sm:$0xff]
  %v513 = vld [vmem:[%s7 + $0x118] sm:$0xff]
  %v514 = vld [vmem:[%s7 + $0x120] sm:$0xff]
  %v515 = vld [vmem:[%s7 + $0x128] sm:$0xff]
  %v516 = vld [vmem:[%s7 + $0x130] sm:$0xff]
  %v517 = vld [vmem:[%s7 + $0x138] sm:$0xff]
  %v518 = vld [vmem:[%s7 + $0x140] sm:$0xff]
  %v519 = vld [vmem:[%s7 + $0x148] sm:$0xff]
  %v520 = vld [vmem:[%s7 + $0x150] sm:$0xff]
  %v521 = vld [vmem:[%s7 + $0x158] sm:$0xff]
  %v522 = vld [vmem:[%s7 + $0x160] sm:$0xff]
  %v523 = vld [vmem:[%s7 + $0x168] sm:$0xff]
  %v524 = vld [vmem:[%s7 + $0x170] sm:$0xff]
  %v525 = vld [vmem:[%s7 + $0x178] sm:$0xff]
  %v526 = vld [vmem:[%s9] sm:$0x7]
  %v528 = vlaneseq
  %v529 = vshrl.u32 %v528, 7
  %v530 = vsub.s32 0, %v529
  %v531 = vrot.slane %v526, %v530
  %v532 = vlaneseq
  %v533 = vshrl.u32 %v532, 7
  %v534 = vsub.s32 1, %v533
  %v535 = vrot.slane %v526, %v534
  %v536 = vlaneseq
  %v537 = vshrl.u32 %v536, 7
  %v538 = vsub.s32 2, %v537
  %v539 = vrot.slane %v526, %v538
  %543 = vmatprep.subr.mxu0 %v479
  %544 = vmatpush1.msra.mxu0 %v478
  %545 = vmatprep.subr.mxu0 %v482
  %546 = vmatpush1.msra.mxu0 %v481
  %547 = vmatprep.subr.mxu0 %v485
  %548 = vmatpush1.msra.mxu0 %v484
  %549 = vmatprep.subr.mxu0 %v488
  %550 = vmatpush1.msra.mxu0 %v487
  %551 = vmatprep.subr.mxu0 %v491
  %552 = vmatpush1.msra.mxu0 %v490
  %553 = vmatprep.subr.mxu0 %v494
  %554 = vmatpush1.msra.mxu0 %v493
  %555 = vmatprep.subr.mxu0 %v497
  %556 = vmatpush1.msra.mxu0 %v496
  %557 = vmatprep.subr.mxu0 %v500
  %558 = vmatpush1.msra.mxu0 %v499
  %559 = vmatprep.subr.mxu0 %v503
  %560 = vmatpush1.msra.mxu0 %v502
  %561 = vmatprep.subr.mxu0 %v506
  %562 = vmatpush1.msra.mxu0 %v505
  %563 = vmatprep.subr.mxu0 %v509
  %564 = vmatpush1.msra.mxu0 %v508
  %565 = vmatprep.subr.mxu0 %v512
  %566 = vmatpush1.msra.mxu0 %v511
  %567 = vmatprep.subr.mxu0 %v515
  %568 = vmatpush1.msra.mxu0 %v514
  %569 = vmatprep.subr.mxu0 %v518
  %570 = vmatpush1.msra.mxu0 %v517
  %571 = vmatprep.subr.mxu0 %v521
  %572 = vmatpush1.msra.mxu0 %v520
  %573 = vmatprep.subr.mxu0 %v524
  %574 = vmatpush1.msra.mxu0 %v523
  %575 = vmatprep.subr.mxu0 0.0
  %576 = vmatpush1.msra.mxu0 0.0
  %577 = vmatprep.subr.mxu0 0.0
  %578 = vmatpush1.msra.mxu0 0.0
  %579 = vmatprep.subr.mxu0 0.0
  %580 = vmatpush1.msra.mxu0 0.0
  %581 = vmatprep.subr.mxu0 0.0
  %582 = vmatpush1.msra.mxu0 0.0
  %583 = vmatprep.subr.mxu0 0.0
  %584 = vmatpush1.msra.mxu0 0.0
  %585 = vmatprep.subr.mxu0 0.0
  %586 = vmatpush1.msra.mxu0 0.0
  %587 = vmatprep.subr.mxu0 0.0
  %588 = vmatpush1.msra.mxu0 0.0
  %589 = vmatprep.subr.mxu0 0.0
  %590 = vmatpush1.msra.mxu0 0.0
  %591 = vmatprep.subr.mxu0 0.0
  %592 = vmatpush1.msra.mxu0 0.0
  %593 = vmatprep.subr.mxu0 0.0
  %594 = vmatpush1.msra.mxu0 0.0
  %595 = vmatprep.subr.mxu0 0.0
  %596 = vmatpush1.msra.mxu0 0.0
  %597 = vmatprep.subr.mxu0 0.0
  %598 = vmatpush1.msra.mxu0 0.0
  %599 = vmatprep.subr.mxu0 0.0
  %600 = vmatpush1.msra.mxu0 0.0
  %601 = vmatprep.subr.mxu0 0.0
  %602 = vmatpush1.msra.mxu0 0.0
  %603 = vmatprep.subr.mxu0 0.0
  %604 = vmatpush1.msra.mxu0 0.0
  %605 = vmatprep.subr.mxu0 0.0
  %606 = vmatpush1.msra.mxu0 0.0
  %607 = vmatprep.mubr.f32.mxu0 0.0
  %608 = vmatmul.mubr.f32.gmra.mrb[0].mxu0 %v269
  %v609 = vpop.f32.mrb[0].mxu0
  %v610 = vadd.f32 %v531, %v609
  %v611 = vpop.f32.mrb[0].mxu0
  %v612 = vadd.f32 %v535, %v611
  %613 = vdwg.mxu0
  %614 = vmatprep.subr.mxu0 0.0
  %615 = vmatpush1.msra.mxu0 %v480
  %616 = vmatprep.subr.mxu0 0.0
  %617 = vmatpush1.msra.mxu0 %v483
  %618 = vmatprep.subr.mxu0 0.0
  %619 = vmatpush1.msra.mxu0 %v486
  %620 = vmatprep.subr.mxu0 0.0
  %621 = vmatpush1.msra.mxu0 %v489
  %622 = vmatprep.subr.mxu0 0.0
  %623 = vmatpush1.msra.mxu0 %v492
  %624 = vmatprep.subr.mxu0 0.0
  %625 = vmatpush1.msra.mxu0 %v495
  %626 = vmatprep.subr.mxu0 0.0
  %627 = vmatpush1.msra.mxu0 %v498
  %628 = vmatprep.subr.mxu0 0.0
  %629 = vmatpush1.msra.mxu0 %v501
  %630 = vmatprep.subr.mxu0 0.0
  %631 = vmatpush1.msra.mxu0 %v504
  %632 = vmatprep.subr.mxu0 0.0
  %633 = vmatpush1.msra.mxu0 %v507
  %634 = vmatprep.subr.mxu0 0.0
  %635 = vmatpush1.msra.mxu0 %v510
  %636 = vmatprep.subr.mxu0 0.0
  %637 = vmatpush1.msra.mxu0 %v513
  %638 = vmatprep.subr.mxu0 0.0
  %639 = vmatpush1.msra.mxu0 %v516
  %640 = vmatprep.subr.mxu0 0.0
  %641 = vmatpush1.msra.mxu0 %v519
  %642 = vmatprep.subr.mxu0 0.0
  %643 = vmatpush1.msra.mxu0 %v522
  %644 = vmatprep.subr.mxu0 0.0
  %645 = vmatpush1.msra.mxu0 %v525
  %646 = vmatprep.subr.mxu0 0.0
  %647 = vmatpush1.msra.mxu0 0.0
  %648 = vmatprep.subr.mxu0 0.0
  %649 = vmatpush1.msra.mxu0 0.0
  %650 = vmatprep.subr.mxu0 0.0
  %651 = vmatpush1.msra.mxu0 0.0
  %652 = vmatprep.subr.mxu0 0.0
  %653 = vmatpush1.msra.mxu0 0.0
  %654 = vmatprep.subr.mxu0 0.0
  %655 = vmatpush1.msra.mxu0 0.0
  %656 = vmatprep.subr.mxu0 0.0
  %657 = vmatpush1.msra.mxu0 0.0
  %658 = vmatprep.subr.mxu0 0.0
  %659 = vmatpush1.msra.mxu0 0.0
  %660 = vmatprep.subr.mxu0 0.0
  %661 = vmatpush1.msra.mxu0 0.0
  %662 = vmatprep.subr.mxu0 0.0
  %663 = vmatpush1.msra.mxu0 0.0
  %664 = vmatprep.subr.mxu0 0.0
  %665 = vmatpush1.msra.mxu0 0.0
  %666 = vmatprep.subr.mxu0 0.0
  %667 = vmatpush1.msra.mxu0 0.0
  %668 = vmatprep.subr.mxu0 0.0
  %669 = vmatpush1.msra.mxu0 0.0
  %670 = vmatprep.subr.mxu0 0.0
  %671 = vmatpush1.msra.mxu0 0.0
  %672 = vmatprep.subr.mxu0 0.0
  %673 = vmatpush1.msra.mxu0 0.0
  %674 = vmatprep.subr.mxu0 0.0
  %675 = vmatpush1.msra.mxu0 0.0
  %676 = vmatprep.subr.mxu0 0.0
  %677 = vmatpush1.msra.mxu0 0.0
  %678 = vmatprep.mubr.f32.mxu0 0.0
  %679 = vmatmul.mubr.f32.gmra.mrb[0].mxu0 %v269
  %v680 = vpop.f32.mrb[0].mxu0
  %v681 = vadd.f32 %v539, %v680
  %v682 = vpop.f32.mrb[0].mxu0
  %683 = vdwg.mxu0
  %v684 = vadd.f32 %v404, %v610
  %v685 = vxor.u32 %v684, 2147483648
  %v686 = vmul.f32 %v685, 1.442695
  %v687 = vpow.pop %v686
  %v688 = vadd.f32 %v687, 1.0
  %v689 = vrcp.pop %v688
  %v690 = vmul.f32 1.0, %v689
  %v691 = vadd.f32 %v406, %v612
  %v692 = vxor.u32 %v691, 2147483648
  %v693 = vmul.f32 %v692, 1.442695
  %v694 = vpow.pop %v693
  %v695 = vadd.f32 %v694, 1.0
  %v696 = vrcp.pop %v695
  %v697 = vmul.f32 1.0, %v696
  %v698 = vmul.f32 %v690, %v681
  %v699 = vadd.f32 %v475, %v698
  %v700 = vtanh.pop %v699
  %v701 = vsub.f32 1.0, %v697
  %v702 = vmul.f32 %v701, %v700
  %v703 = vmul.f32 %v697, %v269
  %v704 = vadd.f32 %v702, %v703
  %v705 = vld [vmem:[%s3] sm:$0xff]
  %v706 = vld [vmem:[%s3 + $0x8] sm:$0xff]
  %v707 = vld [vmem:[%s3 + $0x10] sm:$0xff]
  %v708 = vld [vmem:[%s3 + $0x18] sm:$0xff]
  %v709 = vld [vmem:[%s3 + $0x20] sm:$0xff]
  %v710 = vld [vmem:[%s3 + $0x28] sm:$0xff]
  %v711 = vld [vmem:[%s3 + $0x30] sm:$0xff]
  %v712 = vld [vmem:[%s3 + $0x38] sm:$0xff]
  %v713 = vld [vmem:[%s3 + $0x40] sm:$0xff]
  %v714 = vld [vmem:[%s3 + $0x48] sm:$0xff]
  %v715 = vld [vmem:[%s3 + $0x50] sm:$0xff]
  %v716 = vld [vmem:[%s3 + $0x58] sm:$0xff]
  %v717 = vld [vmem:[%s3 + $0x60] sm:$0xff]
  %v718 = vld [vmem:[%s3 + $0x68] sm:$0xff]
  %v719 = vld [vmem:[%s3 + $0x70] sm:$0xff]
  %v720 = vld [vmem:[%s3 + $0x78] sm:$0xff]
  %v721 = vld [vmem:[%s11] sm:$0xff]
  %v722 = vld [vmem:[%s11 + $0x8] sm:$0xff]
  %v723 = vld [vmem:[%s11 + $0x10] sm:$0xff]
  %v724 = vld [vmem:[%s11 + $0x18] sm:$0xff]
  %v725 = vld [vmem:[%s11 + $0x20] sm:$0xff]
  %v726 = vld [vmem:[%s11 + $0x28] sm:$0xff]
  %v727 = vld [vmem:[%s11 + $0x30] sm:$0xff]
  %v728 = vld [vmem:[%s11 + $0x38] sm:$0xff]
  %v729 = vld [vmem:[%s11 + $0x40] sm:$0xff]
  %v730 = vld [vmem:[%s11 + $0x48] sm:$0xff]
  %v731 = vld [vmem:[%s11 + $0x50] sm:$0xff]
  %v732 = vld [vmem:[%s11 + $0x58] sm:$0xff]
  %v733 = vld [vmem:[%s11 + $0x60] sm:$0xff]
  %v734 = vld [vmem:[%s11 + $0x68] sm:$0xff]
  %v735 = vld [vmem:[%s11 + $0x70] sm:$0xff]
  %v736 = vld [vmem:[%s11 + $0x78] sm:$0xff]
  %v737 = vld [vmem:[%s11 + $0x80] sm:$0xff]
  %v738 = vld [vmem:[%s11 + $0x88] sm:$0xff]
  %v739 = vld [vmem:[%s11 + $0x90] sm:$0xff]
  %v740 = vld [vmem:[%s11 + $0x98] sm:$0xff]
  %v741 = vld [vmem:[%s11 + $0xa0] sm:$0xff]
  %v742 = vld [vmem:[%s11 + $0xa8] sm:$0xff]
  %v743 = vld [vmem:[%s11 + $0xb0] sm:$0xff]
  %v744 = vld [vmem:[%s11 + $0xb8] sm:$0xff]
  %v745 = vld [vmem:[%s11 + $0xc0] sm:$0xff]
  %v746 = vld [vmem:[%s11 + $0xc8] sm:$0xff]
  %v747 = vld [vmem:[%s11 + $0xd0] sm:$0xff]
  %v748 = vld [vmem:[%s11 + $0xd8] sm:$0xff]
  %v749 = vld [vmem:[%s11 + $0xe0] sm:$0xff]
  %v750 = vld [vmem:[%s11 + $0xe8] sm:$0xff]
  %v751 = vld [vmem:[%s11 + $0xf0] sm:$0xff]
  %v752 = vld [vmem:[%s11 + $0xf8] sm:$0xff]
  %753 = vmatprep.subr.mxu0 0.0
  %754 = vmatpush1.msra.mxu0 %v721
  %755 = vmatprep.subr.mxu0 0.0
  %756 = vmatpush1.msra.mxu0 %v722
  %757 = vmatprep.subr.mxu0 0.0
  %758 = vmatpush1.msra.mxu0 %v723
  %759 = vmatprep.subr.mxu0 0.0
  %760 = vmatpush1.msra.mxu0 %v724
  %761 = vmatprep.subr.mxu0 0.0
  %762 = vmatpush1.msra.mxu0 %v725
  %763 = vmatprep.subr.mxu0 0.0
  %764 = vmatpush1.msra.mxu0 %v726
  %765 = vmatprep.subr.mxu0 0.0
  %766 = vmatpush1.msra.mxu0 %v727
  %767 = vmatprep.subr.mxu0 0.0
  %768 = vmatpush1.msra.mxu0 %v728
  %769 = vmatprep.subr.mxu0 0.0
  %770 = vmatpush1.msra.mxu0 %v729
  %771 = vmatprep.subr.mxu0 0.0
  %772 = vmatpush1.msra.mxu0 %v730
  %773 = vmatprep.subr.mxu0 0.0
  %774 = vmatpush1.msra.mxu0 %v731
  %775 = vmatprep.subr.mxu0 0.0
  %776 = vmatpush1.msra.mxu0 %v732
  %777 = vmatprep.subr.mxu0 0.0
  %778 = vmatpush1.msra.mxu0 %v733
  %779 = vmatprep.subr.mxu0 0.0
  %780 = vmatpush1.msra.mxu0 %v734
  %781 = vmatprep.subr.mxu0 0.0
  %782 = vmatpush1.msra.mxu0 %v735
  %783 = vmatprep.subr.mxu0 0.0
  %784 = vmatpush1.msra.mxu0 %v736
  %785 = vmatprep.subr.mxu0 0.0
  %786 = vmatpush1.msra.mxu0 %v737
  %787 = vmatprep.subr.mxu0 0.0
  %788 = vmatpush1.msra.mxu0 %v738
  %789 = vmatprep.subr.mxu0 0.0
  %790 = vmatpush1.msra.mxu0 %v739
  %791 = vmatprep.subr.mxu0 0.0
  %792 = vmatpush1.msra.mxu0 %v740
  %793 = vmatprep.subr.mxu0 0.0
  %794 = vmatpush1.msra.mxu0 %v741
  %795 = vmatprep.subr.mxu0 0.0
  %796 = vmatpush1.msra.mxu0 %v742
  %797 = vmatprep.subr.mxu0 0.0
  %798 = vmatpush1.msra.mxu0 %v743
  %799 = vmatprep.subr.mxu0 0.0
  %800 = vmatpush1.msra.mxu0 %v744
  %801 = vmatprep.subr.mxu0 0.0
  %802 = vmatpush1.msra.mxu0 %v745
  %803 = vmatprep.subr.mxu0 0.0
  %804 = vmatpush1.msra.mxu0 %v746
  %805 = vmatprep.subr.mxu0 0.0
  %806 = vmatpush1.msra.mxu0 %v747
  %807 = vmatprep.subr.mxu0 0.0
  %808 = vmatpush1.msra.mxu0 %v748
  %809 = vmatprep.subr.mxu0 0.0
  %810 = vmatpush1.msra.mxu0 %v749
  %811 = vmatprep.subr.mxu0 0.0
  %812 = vmatpush1.msra.mxu0 %v750
  %813 = vmatprep.subr.mxu0 0.0
  %814 = vmatpush1.msra.mxu0 %v751
  %815 = vmatprep.subr.mxu0 0.0
  %816 = vmatpush1.msra.mxu0 %v752
  %817 = vmatprep.mubr.f32.mxu0 %v706
  %818 = vmatmul.mubr.f32.gmra.mrb[0].mxu0 %v705
  %v819 = vpop.f32.mrb[0].mxu0
  %v820 = vadd.f32 0.0, %v819
  %v821 = vpop.f32.mrb[0].mxu0
  %822 = vmatprep.mubr.f32.mxu0 %v708
  %823 = vmatmul.mubr.f32.gmra.mrb[0].mxu0 %v707
  %v824 = vpop.f32.mrb[0].mxu0
  %v825 = vadd.f32 0.0, %v824
  %v826 = vpop.f32.mrb[0].mxu0
  %827 = vmatprep.mubr.f32.mxu0 %v710
  %828 = vmatmul.mubr.f32.gmra.mrb[0].mxu0 %v709
  %v829 = vpop.f32.mrb[0].mxu0
  %v830 = vadd.f32 0.0, %v829
  %v831 = vpop.f32.mrb[0].mxu0
  %832 = vmatprep.mubr.f32.mxu0 %v712
  %833 = vmatmul.mubr.f32.gmra.mrb[0].mxu0 %v711
  %v834 = vpop.f32.mrb[0].mxu0
  %v835 = vadd.f32 0.0, %v834
  %v836 = vpop.f32.mrb[0].mxu0
  %837 = vmatprep.mubr.f32.mxu0 %v714
  %838 = vmatmul.mubr.f32.gmra.mrb[0].mxu0 %v713
  %v839 = vpop.f32.mrb[0].mxu0
  %v840 = vadd.f32 0.0, %v839
  %v841 = vpop.f32.mrb[0].mxu0
  %842 = vmatprep.mubr.f32.mxu0 %v716
  %843 = vmatmul.mubr.f32.gmra.mrb[0].mxu0 %v715
  %v844 = vpop.f32.mrb[0].mxu0
  %v845 = vadd.f32 0.0, %v844
  %v846 = vpop.f32.mrb[0].mxu0
  %847 = vmatprep.mubr.f32.mxu0 %v718
  %848 = vmatmul.mubr.f32.gmra.mrb[0].mxu0 %v717
  %v849 = vpop.f32.mrb[0].mxu0
  %v850 = vadd.f32 0.0, %v849
  %v851 = vpop.f32.mrb[0].mxu0
  %852 = vmatprep.mubr.f32.mxu0 %v720
  %853 = vmatmul.mubr.f32.gmra.mrb[0].mxu0 %v719
  %v854 = vpop.f32.mrb[0].mxu0
  %v855 = vadd.f32 0.0, %v854
  %v856 = vpop.f32.mrb[0].mxu0
  %857 = vdwg.mxu0
  %v859 = vcombine.high %v704, %v704
  %v861 = vunpack.c.l.s4 1966171168
  %v862 = vunpack.c.0.s8 %v861
  %v863 = vlaneseq
  %v864 = vshrl.u32 %v863, 7
  %v865 = vsub.s32 %v862, %v864
  %v866 = vrot.slane %v704, %v865
  %v868 = vunpack.c.l.s4 1966171168
  %v869 = vunpack.c.0.s8 %v868
  %v870 = vlaneseq
  %v871 = vshrl.u32 %v870, 7
  %v872 = vsub.s32 %v869, %v871
  %v873 = vrot.slane %v859, %v872
  %v874 = vcombine.high %v866, %v866
  %v875 = vcombine.high %v873, %v873
  %v877 = vunpack.c.l.s4 1966171168
  %v878 = vunpack.c.0.s8 %v877
  %v879 = vlaneseq
  %v880 = vshrl.u32 %v879, 7
  %v881 = vsub.s32 %v878, %v880
  %v882 = vrot.slane %v866, %v881
  %v884 = vunpack.c.l.s4 1966171168
  %v885 = vunpack.c.0.s8 %v884
  %v886 = vlaneseq
  %v887 = vshrl.u32 %v886, 7
  %v888 = vsub.s32 %v885, %v887
  %v889 = vrot.slane %v873, %v888
  %v891 = vunpack.c.l.s4 1966171168
  %v892 = vunpack.c.0.s8 %v891
  %v893 = vlaneseq
  %v894 = vshrl.u32 %v893, 7
  %v895 = vsub.s32 %v892, %v894
  %v896 = vrot.slane %v874, %v895
  %v898 = vunpack.c.l.s4 1966171168
  %v899 = vunpack.c.0.s8 %v898
  %v900 = vlaneseq
  %v901 = vshrl.u32 %v900, 7
  %v902 = vsub.s32 %v899, %v901
  %v903 = vrot.slane %v875, %v902
  %v904 = vcombine.high %v882, %v882
  %v905 = vcombine.high %v889, %v889
  %v906 = vcombine.high %v896, %v896
  %v907 = vcombine.high %v903, %v903
  %v908 = vlaneseq
  %v909 = vshrl.u32 %v908, 7
  %v910 = vsub.s32 0, %v909
  %v911 = vrot.slane %v882, %v910
  %v912 = vlaneseq
  %v913 = vshrl.u32 %v912, 7
  %v914 = vsub.s32 0, %v913
  %v915 = vrot.slane %v896, %v914
  %v916 = vlaneseq
  %v917 = vshrl.u32 %v916, 7
  %v918 = vsub.s32 0, %v917
  %v919 = vrot.slane %v904, %v918
  %v920 = vlaneseq
  %v921 = vshrl.u32 %v920, 7
  %v922 = vsub.s32 0, %v921
  %v923 = vrot.slane %v906, %v922
  %v924 = vlaneseq
  %v925 = vshrl.u32 %v924, 7
  %v926 = vsub.s32 0, %v925
  %v927 = vrot.slane %v889, %v926
  %v928 = vlaneseq
  %v929 = vshrl.u32 %v928, 7
  %v930 = vsub.s32 0, %v929
  %v931 = vrot.slane %v903, %v930
  %v932 = vlaneseq
  %v933 = vshrl.u32 %v932, 7
  %v934 = vsub.s32 0, %v933
  %v935 = vrot.slane %v905, %v934
  %v936 = vlaneseq
  %v937 = vshrl.u32 %v936, 7
  %v938 = vsub.s32 0, %v937
  %v939 = vrot.slane %v907, %v938
  %v948 = vmul.f32 %v820, %v911
  %v949 = vmul.f32 %v825, %v915
  %v950 = vmul.f32 %v830, %v919
  %v951 = vmul.f32 %v835, %v923
  %v952 = vmul.f32 %v840, %v927
  %v953 = vmul.f32 %v845, %v931
  %v954 = vmul.f32 %v850, %v935
  %v955 = vmul.f32 %v855, %v939
  %956 = vadd.xlane.f32.xlu0 %v948
  %v957 = vpop.xlane.xlu0 %956
  %958 = vadd.xlane.f32.xlu0 %v949
  %v959 = vpop.xlane.xlu0 %958
  %960 = vadd.xlane.f32.xlu0 %v950
  %v961 = vpop.xlane.xlu0 %960
  %962 = vadd.xlane.f32.xlu0 %v951
  %v963 = vpop.xlane.xlu0 %962
  %964 = vadd.xlane.f32.xlu0 %v952
  %v965 = vpop.xlane.xlu0 %964
  %966 = vadd.xlane.f32.xlu0 %v953
  %v967 = vpop.xlane.xlu0 %966
  %968 = vadd.xlane.f32.xlu0 %v954
  %v969 = vpop.xlane.xlu0 %968
  %970 = vadd.xlane.f32.xlu0 %v955
  %v971 = vpop.xlane.xlu0 %970
  %v980 = vlaneseq
  %v981 = vand.u32 %v980, 127
  %v982 = vlaneseq
  %v983 = vshrl.u32 %v982, 7
  %v984 = vsub.s32 %v981, %v983
  %v985 = vrot.slane %v957, %v984
  %v986 = vlaneseq
  %v987 = vshrl.u32 %v986, 7
  %v988 = vsub.s32 %v981, %v987
  %v989 = vrot.slane %v959, %v988
  %v990 = vlaneseq
  %v991 = vshrl.u32 %v990, 7
  %v992 = vsub.s32 %v981, %v991
  %v993 = vrot.slane %v961, %v992
  %v994 = vlaneseq
  %v995 = vshrl.u32 %v994, 7
  %v996 = vsub.s32 %v981, %v995
  %v997 = vrot.slane %v963, %v996
  %v998 = vlaneseq
  %v999 = vshrl.u32 %v998, 7
  %v1000 = vsub.s32 %v981, %v999
  %v1001 = vrot.slane %v965, %v1000
  %v1002 = vlaneseq
  %v1003 = vshrl.u32 %v1002, 7
  %v1004 = vsub.s32 %v981, %v1003
  %v1005 = vrot.slane %v967, %v1004
  %v1006 = vlaneseq
  %v1007 = vshrl.u32 %v1006, 7
  %v1008 = vsub.s32 %v981, %v1007
  %v1009 = vrot.slane %v969, %v1008
  %v1010 = vlaneseq
  %v1011 = vshrl.u32 %v1010, 7
  %v1012 = vsub.s32 %v981, %v1011
  %v1013 = vrot.slane %v971, %v1012
  %vm1014 = vcmask 1041409
  %v1015 = vsel %vm1014, %v989, %v985
  %vm1016 = vcmask 1042434
  %v1017 = vsel %vm1016, %v993, %v1015
  %vm1018 = vcmask 1043459
  %v1019 = vsel %vm1018, %v997, %v1017
  %vm1020 = vcmask 1044484
  %v1021 = vsel %vm1020, %v1001, %v1019
  %vm1022 = vcmask 1045509
  %v1023 = vsel %vm1022, %v1005, %v1021
  %vm1024 = vcmask 1046534
  %v1025 = vsel %vm1024, %v1009, %v1023
  %vm1026 = vcmask 1047559
  %v1027 = vsel %vm1026, %v1013, %v1025
  %vm1029 = vcmask 64512
  %v1030 = vsel %vm1029, %v1027, -inf
  %1031 = vmax.xlane.f32.xlu0 %v1030
  %v1032 = vpop.xlane.xlu0 %1031
  %v1034 = vlaneseq
  %v1035 = vshrl.u32 %v1034, 7
  %v1036 = vsub.s32 0, %v1035
  %v1037 = vrot.slane %v1032, %v1036
  %v1038 = vlaneseq
  %v1039 = vshrl.u32 %v1038, 7
  %v1040 = vsub.s32 1, %v1039
  %v1041 = vrot.slane %v1032, %v1040
  %v1042 = vlaneseq
  %v1043 = vshrl.u32 %v1042, 7
  %v1044 = vsub.s32 2, %v1043
  %v1045 = vrot.slane %v1032, %v1044
  %v1046 = vlaneseq
  %v1047 = vshrl.u32 %v1046, 7
  %v1048 = vsub.s32 3, %v1047
  %v1049 = vrot.slane %v1032, %v1048
  %v1050 = vlaneseq
  %v1051 = vshrl.u32 %v1050, 7
  %v1052 = vsub.s32 4, %v1051
  %v1053 = vrot.slane %v1032, %v1052
  %v1054 = vlaneseq
  %v1055 = vshrl.u32 %v1054, 7
  %v1056 = vsub.s32 5, %v1055
  %v1057 = vrot.slane %v1032, %v1056
  %v1058 = vlaneseq
  %v1059 = vshrl.u32 %v1058, 7
  %v1060 = vsub.s32 6, %v1059
  %v1061 = vrot.slane %v1032, %v1060
  %v1062 = vlaneseq
  %v1063 = vshrl.u32 %v1062, 7
  %v1064 = vsub.s32 7, %v1063
  %v1065 = vrot.slane %v1032, %v1064
  %v1074 = vsub.f32 %v957, %v1037
  %v1075 = vsub.f32 %v959, %v1041
  %v1076 = vsub.f32 %v961, %v1045
  %v1077 = vsub.f32 %v963, %v1049
  %v1078 = vsub.f32 %v965, %v1053
  %v1079 = vsub.f32 %v967, %v1057
  %v1080 = vsub.f32 %v969, %v1061
  %v1081 = vsub.f32 %v971, %v1065
  %v1082 = vmul.f32 %v1074, 1.442695
  %v1083 = vpow.pop %v1082
  %v1084 = vmul.f32 %v1075, 1.442695
  %v1085 = vpow.pop %v1084
  %v1086 = vmul.f32 %v1076, 1.442695
  %v1087 = vpow.pop %v1086
  %v1088 = vmul.f32 %v1077, 1.442695
  %v1089 = vpow.pop %v1088
  %v1090 = vmul.f32 %v1078, 1.442695
  %v1091 = vpow.pop %v1090
  %v1092 = vmul.f32 %v1079, 1.442695
  %v1093 = vpow.pop %v1092
  %v1094 = vmul.f32 %v1080, 1.442695
  %v1095 = vpow.pop %v1094
  %v1096 = vmul.f32 %v1081, 1.442695
  %v1097 = vpow.pop %v1096
  %1106 = vset.pattern.permute.xlu0 0
  %1107 = vperm.xlu0 %1106, %v1083
  %v1108 = vpop.permute.xlu0 %1107
  %1109 = vset.pattern.permute.xlu0 0
  %1110 = vperm.xlu0 %1109, %v1085
  %v1111 = vpop.permute.xlu0 %1110
  %1112 = vset.pattern.permute.xlu0 0
  %1113 = vperm.xlu0 %1112, %v1087
  %v1114 = vpop.permute.xlu0 %1113
  %1115 = vset.pattern.permute.xlu0 0
  %1116 = vperm.xlu0 %1115, %v1089
  %v1117 = vpop.permute.xlu0 %1116
  %1118 = vset.pattern.permute.xlu0 0
  %1119 = vperm.xlu0 %1118, %v1091
  %v1120 = vpop.permute.xlu0 %1119
  %1121 = vset.pattern.permute.xlu0 0
  %1122 = vperm.xlu0 %1121, %v1093
  %v1123 = vpop.permute.xlu0 %1122
  %1124 = vset.pattern.permute.xlu0 0
  %1125 = vperm.xlu0 %1124, %v1095
  %v1126 = vpop.permute.xlu0 %1125
  %1127 = vset.pattern.permute.xlu0 0
  %1128 = vperm.xlu0 %1127, %v1097
  %v1129 = vpop.permute.xlu0 %1128
  %v1130 = vlaneseq
  %v1131 = vshrl.u32 %v1130, 7
  %v1132 = vsub.s32 %v981, %v1131
  %v1133 = vrot.slane %v1108, %v1132
  %v1134 = vlaneseq
  %v1135 = vshrl.u32 %v1134, 7
  %v1136 = vsub.s32 %v981, %v1135
  %v1137 = vrot.slane %v1111, %v1136
  %v1138 = vlaneseq
  %v1139 = vshrl.u32 %v1138, 7
  %v1140 = vsub.s32 %v981, %v1139
  %v1141 = vrot.slane %v1114, %v1140
  %v1142 = vlaneseq
  %v1143 = vshrl.u32 %v1142, 7
  %v1144 = vsub.s32 %v981, %v1143
  %v1145 = vrot.slane %v1117, %v1144
  %v1146 = vlaneseq
  %v1147 = vshrl.u32 %v1146, 7
  %v1148 = vsub.s32 %v981, %v1147
  %v1149 = vrot.slane %v1120, %v1148
  %v1150 = vlaneseq
  %v1151 = vshrl.u32 %v1150, 7
  %v1152 = vsub.s32 %v981, %v1151
  %v1153 = vrot.slane %v1123, %v1152
  %v1154 = vlaneseq
  %v1155 = vshrl.u32 %v1154, 7
  %v1156 = vsub.s32 %v981, %v1155
  %v1157 = vrot.slane %v1126, %v1156
  %v1158 = vlaneseq
  %v1159 = vshrl.u32 %v1158, 7
  %v1160 = vsub.s32 %v981, %v1159
  %v1161 = vrot.slane %v1129, %v1160
  %v1162 = vsel %vm1014, %v1137, %v1133
  %v1163 = vsel %vm1016, %v1141, %v1162
  %v1164 = vsel %vm1018, %v1145, %v1163
  %v1165 = vsel %vm1020, %v1149, %v1164
  %v1166 = vsel %vm1022, %v1153, %v1165
  %v1167 = vsel %vm1024, %v1157, %v1166
  %v1168 = vsel %vm1026, %v1161, %v1167
  %v1170 = vsel %vm1029, %v1168, 0.0
  %1171 = vadd.xlane.f32.xlu0 %v1170
  %v1172 = vpop.xlane.xlu0 %1171
  %v1174 = vlaneseq
  %v1175 = vshrl.u32 %v1174, 7
  %v1176 = vsub.s32 0, %v1175
  %v1177 = vrot.slane %v1172, %v1176
  %v1178 = vlaneseq
  %v1179 = vshrl.u32 %v1178, 7
  %v1180 = vsub.s32 1, %v1179
  %v1181 = vrot.slane %v1172, %v1180
  %v1182 = vlaneseq
  %v1183 = vshrl.u32 %v1182, 7
  %v1184 = vsub.s32 2, %v1183
  %v1185 = vrot.slane %v1172, %v1184
  %v1186 = vlaneseq
  %v1187 = vshrl.u32 %v1186, 7
  %v1188 = vsub.s32 3, %v1187
  %v1189 = vrot.slane %v1172, %v1188
  %v1190 = vlaneseq
  %v1191 = vshrl.u32 %v1190, 7
  %v1192 = vsub.s32 4, %v1191
  %v1193 = vrot.slane %v1172, %v1192
  %v1194 = vlaneseq
  %v1195 = vshrl.u32 %v1194, 7
  %v1196 = vsub.s32 5, %v1195
  %v1197 = vrot.slane %v1172, %v1196
  %v1198 = vlaneseq
  %v1199 = vshrl.u32 %v1198, 7
  %v1200 = vsub.s32 6, %v1199
  %v1201 = vrot.slane %v1172, %v1200
  %v1202 = vlaneseq
  %v1203 = vshrl.u32 %v1202, 7
  %v1204 = vsub.s32 7, %v1203
  %v1205 = vrot.slane %v1172, %v1204
  %v1214 = vrcp.pop %v1177
  %v1215 = vmul.f32 %v1083, %v1214
  %v1216 = vrcp.pop %v1181
  %v1217 = vmul.f32 %v1085, %v1216
  %v1218 = vrcp.pop %v1185
  %v1219 = vmul.f32 %v1087, %v1218
  %v1220 = vrcp.pop %v1189
  %v1221 = vmul.f32 %v1089, %v1220
  %v1222 = vrcp.pop %v1193
  %v1223 = vmul.f32 %v1091, %v1222
  %v1224 = vrcp.pop %v1197
  %v1225 = vmul.f32 %v1093, %v1224
  %v1226 = vrcp.pop %v1201
  %v1227 = vmul.f32 %v1095, %v1226
  %v1228 = vrcp.pop %v1205
  %v1229 = vmul.f32 %v1097, %v1228
  %1231 = vset.pattern.permute.xlu0 0
  %1232 = vperm.xlu0 %1231, %v1215
  %v1233 = vpop.permute.xlu0 %1232
  %1236 = vset.pattern.permute.xlu0 0
  %1237 = vperm.xlu0 %1236, %v1217
  %v1238 = vpop.permute.xlu0 %1237
  %1241 = vset.pattern.permute.xlu0 0
  %1242 = vperm.xlu0 %1241, %v1219
  %v1243 = vpop.permute.xlu0 %1242
  %1246 = vset.pattern.permute.xlu0 0
  %1247 = vperm.xlu0 %1246, %v1221
  %v1248 = vpop.permute.xlu0 %1247
  %1251 = vset.pattern.permute.xlu0 0
  %1252 = vperm.xlu0 %1251, %v1223
  %v1253 = vpop.permute.xlu0 %1252
  %1256 = vset.pattern.permute.xlu0 0
  %1257 = vperm.xlu0 %1256, %v1225
  %v1258 = vpop.permute.xlu0 %1257
  %1261 = vset.pattern.permute.xlu0 0
  %1262 = vperm.xlu0 %1261, %v1227
  %v1263 = vpop.permute.xlu0 %1262
  %1266 = vset.pattern.permute.xlu0 0
  %1267 = vperm.xlu0 %1266, %v1229
  %v1268 = vpop.permute.xlu0 %1267
  %v1270 = vmul.f32 %v1233, %v705
  %v1271 = vmul.f32 %v1233, %v706
  %v1272 = vmul.f32 %v1238, %v707
  %v1273 = vmul.f32 %v1238, %v708
  %v1274 = vmul.f32 %v1243, %v709
  %v1275 = vmul.f32 %v1243, %v710
  %v1276 = vmul.f32 %v1248, %v711
  %v1277 = vmul.f32 %v1248, %v712
  %v1278 = vmul.f32 %v1253, %v713
  %v1279 = vmul.f32 %v1253, %v714
  %v1280 = vmul.f32 %v1258, %v715
  %v1281 = vmul.f32 %v1258, %v716
  %v1282 = vmul.f32 %v1263, %v717
  %v1283 = vmul.f32 %v1263, %v718
  %v1284 = vmul.f32 %v1268, %v719
  %v1285 = vmul.f32 %v1268, %v720
  %v1286 = vrot.slane %v1270, 4
  %v1287 = vadd.f32 %v1270, %v1286
  %v1288 = vrot.slane %v1287, 2
  %v1289 = vadd.f32 %v1287, %v1288
  %v1290 = vrot.slane %v1289, 1
  %v1291 = vadd.f32 %v1289, %v1290
  %v1292 = vrot.slane %v1271, 4
  %v1293 = vadd.f32 %v1271, %v1292
  %v1294 = vrot.slane %v1293, 2
  %v1295 = vadd.f32 %v1293, %v1294
  %v1296 = vrot.slane %v1295, 1
  %v1297 = vadd.f32 %v1295, %v1296
  %v1298 = vrot.slane %v1272, 4
  %v1299 = vadd.f32 %v1272, %v1298
  %v1300 = vrot.slane %v1299, 2
  %v1301 = vadd.f32 %v1299, %v1300
  %v1302 = vrot.slane %v1301, 1
  %v1303 = vadd.f32 %v1301, %v1302
  %v1304 = vrot.slane %v1273, 4
  %v1305 = vadd.f32 %v1273, %v1304
  %v1306 = vrot.slane %v1305, 2
  %v1307 = vadd.f32 %v1305, %v1306
  %v1308 = vrot.slane %v1307, 1
  %v1309 = vadd.f32 %v1307, %v1308
  %v1310 = vrot.slane %v1274, 4
  %v1311 = vadd.f32 %v1274, %v1310
  %v1312 = vrot.slane %v1311, 2
  %v1313 = vadd.f32 %v1311, %v1312
  %v1314 = vrot.slane %v1313, 1
  %v1315 = vadd.f32 %v1313, %v1314
  %v1316 = vrot.slane %v1275, 4
  %v1317 = vadd.f32 %v1275, %v1316
  %v1318 = vrot.slane %v1317, 2
  %v1319 = vadd.f32 %v1317, %v1318
  %v1320 = vrot.slane %v1319, 1
  %v1321 = vadd.f32 %v1319, %v1320
  %v1322 = vrot.slane %v1276, 4
  %v1323 = vadd.f32 %v1276, %v1322
  %v1324 = vrot.slane %v1323, 2
  %v1325 = vadd.f32 %v1323, %v1324
  %v1326 = vrot.slane %v1325, 1
  %v1327 = vadd.f32 %v1325, %v1326
  %v1328 = vrot.slane %v1277, 4
  %v1329 = vadd.f32 %v1277, %v1328
  %v1330 = vrot.slane %v1329, 2
  %v1331 = vadd.f32 %v1329, %v1330
  %v1332 = vrot.slane %v1331, 1
  %v1333 = vadd.f32 %v1331, %v1332
  %v1334 = vrot.slane %v1278, 4
  %v1335 = vadd.f32 %v1278, %v1334
  %v1336 = vrot.slane %v1335, 2
  %v1337 = vadd.f32 %v1335, %v1336
  %v1338 = vrot.slane %v1337, 1
  %v1339 = vadd.f32 %v1337, %v1338
  %v1340 = vrot.slane %v1279, 4
  %v1341 = vadd.f32 %v1279, %v1340
  %v1342 = vrot.slane %v1341, 2
  %v1343 = vadd.f32 %v1341, %v1342
  %v1344 = vrot.slane %v1343, 1
  %v1345 = vadd.f32 %v1343, %v1344
  %v1346 = vrot.slane %v1280, 4
  %v1347 = vadd.f32 %v1280, %v1346
  %v1348 = vrot.slane %v1347, 2
  %v1349 = vadd.f32 %v1347, %v1348
  %v1350 = vrot.slane %v1349, 1
  %v1351 = vadd.f32 %v1349, %v1350
  %v1352 = vrot.slane %v1281, 4
  %v1353 = vadd.f32 %v1281, %v1352
  %v1354 = vrot.slane %v1353, 2
  %v1355 = vadd.f32 %v1353, %v1354
  %v1356 = vrot.slane %v1355, 1
  %v1357 = vadd.f32 %v1355, %v1356
  %v1358 = vrot.slane %v1282, 4
  %v1359 = vadd.f32 %v1282, %v1358
  %v1360 = vrot.slane %v1359, 2
  %v1361 = vadd.f32 %v1359, %v1360
  %v1362 = vrot.slane %v1361, 1
  %v1363 = vadd.f32 %v1361, %v1362
  %v1364 = vrot.slane %v1283, 4
  %v1365 = vadd.f32 %v1283, %v1364
  %v1366 = vrot.slane %v1365, 2
  %v1367 = vadd.f32 %v1365, %v1366
  %v1368 = vrot.slane %v1367, 1
  %v1369 = vadd.f32 %v1367, %v1368
  %v1370 = vrot.slane %v1284, 4
  %v1371 = vadd.f32 %v1284, %v1370
  %v1372 = vrot.slane %v1371, 2
  %v1373 = vadd.f32 %v1371, %v1372
  %v1374 = vrot.slane %v1373, 1
  %v1375 = vadd.f32 %v1373, %v1374
  %v1376 = vrot.slane %v1285, 4
  %v1377 = vadd.f32 %v1285, %v1376
  %v1378 = vrot.slane %v1377, 2
  %v1379 = vadd.f32 %v1377, %v1378
  %v1380 = vrot.slane %v1379, 1
  %v1381 = vadd.f32 %v1379, %v1380
  %v1382 = vld [vmem:[%s12] sm:$0x1]
  %v1384 = vlaneseq
  %v1385 = vshrl.u32 %v1384, 7
  %v1386 = vsub.s32 0, %v1385
  %v1387 = vrot.slane %v1382, %v1386
  %v1389 = vmul.f32 %v704, %v1387
  %1390 = vadd.xlane.f32.xlu0 %v1389
  %v1391 = vpop.xlane.xlu0 %1390
  %v1392 = vld [vmem:[%s13] sm:$0x3]
  %v1394 = vlaneseq
  %v1395 = vshrl.u32 %v1394, 7
  %v1396 = vsub.s32 0, %v1395
  %v1397 = vrot.slane %v1392, %v1396
  %v1398 = vlaneseq
  %v1399 = vshrl.u32 %v1398, 7
  %v1400 = vsub.s32 1, %v1399
  %v1401 = vrot.slane %v1392, %v1400
  %v1404 = vmul.f32 %v1291, %v1397
  %v1405 = vmul.f32 %v1297, %v1401
  %v1406 = vmul.f32 %v1303, %v1397
  %v1407 = vmul.f32 %v1309, %v1401
  %v1408 = vmul.f32 %v1315, %v1397
  %v1409 = vmul.f32 %v1321, %v1401
  %v1410 = vmul.f32 %v1327, %v1397
  %v1411 = vmul.f32 %v1333, %v1401
  %v1412 = vmul.f32 %v1339, %v1397
  %v1413 = vmul.f32 %v1345, %v1401
  %v1414 = vmul.f32 %v1351, %v1397
  %v1415 = vmul.f32 %v1357, %v1401
  %v1416 = vmul.f32 %v1363, %v1397
  %v1417 = vmul.f32 %v1369, %v1401
  %v1418 = vmul.f32 %v1375, %v1397
  %v1419 = vmul.f32 %v1381, %v1401
  %v1436 = vrot.slane %v1406, 7
  %v1437 = vsel %vm1014, %v1436, %v1404
  %v1438 = vrot.slane %v1408, 6
  %v1439 = vsel %vm1016, %v1438, %v1437
  %v1440 = vrot.slane %v1410, 5
  %v1441 = vsel %vm1018, %v1440, %v1439
  %v1442 = vrot.slane %v1412, 4
  %v1443 = vsel %vm1020, %v1442, %v1441
  %v1444 = vrot.slane %v1414, 3
  %v1445 = vsel %vm1022, %v1444, %v1443
  %v1446 = vrot.slane %v1416, 2
  %v1447 = vsel %vm1024, %v1446, %v1445
  %v1448 = vrot.slane %v1418, 1
  %v1449 = vsel %vm1026, %v1448, %v1447
  %v1450 = vrot.slane %v1407, 7
  %v1451 = vsel %vm1014, %v1450, %v1405
  %v1452 = vrot.slane %v1409, 6
  %v1453 = vsel %vm1016, %v1452, %v1451
  %v1454 = vrot.slane %v1411, 5
  %v1455 = vsel %vm1018, %v1454, %v1453
  %v1456 = vrot.slane %v1413, 4
  %v1457 = vsel %vm1020, %v1456, %v1455
  %v1458 = vrot.slane %v1415, 3
  %v1459 = vsel %vm1022, %v1458, %v1457
  %v1460 = vrot.slane %v1417, 2
  %v1461 = vsel %vm1024, %v1460, %v1459
  %v1462 = vrot.slane %v1419, 1
  %v1463 = vsel %vm1026, %v1462, %v1461
  %v1466 = vadd.f32 %v1449, %v1463
  %1467 = vadd.xlane.f32.xlu0 %v1466
  %v1468 = vpop.xlane.xlu0 %1467
  %v1469 = vadd.f32 %v1391, %v1468
  %v1470 = vld [vmem:[%s14] sm:$0x1]
  %v1472 = vlaneseq
  %v1473 = vshrl.u32 %v1472, 7
  %v1474 = vsub.s32 0, %v1473
  %v1475 = vrot.slane %v1470, %v1474
  %v1477 = vmul.f32 %v56, %v1475
  %1478 = vadd.xlane.f32.xlu0 %v1477
  %v1479 = vpop.xlane.xlu0 %1478
  %v1480 = vadd.f32 %v1469, %v1479
  %vm1481 = vcmp.gt.f32.partialorder %v1480, 0.0
  %v1482 = vmul.f32 %v1480, 0.2
  %v1483 = vsel %vm1481, %v1480, %v1482
  %v1484 = vsub.f32 1.0, %v1483
  %v1486 = vlaneseq
  %v1487 = vshrl.u32 %v1486, 7
  %v1488 = vsub.s32 0, %v1487
  %v1489 = vrot.slane %v1484, %v1488
  %v1490 = vlaneseq
  %v1491 = vshrl.u32 %v1490, 7
  %v1492 = vsub.s32 1, %v1491
  %v1493 = vrot.slane %v1484, %v1492
  %v1494 = vlaneseq
  %v1495 = vshrl.u32 %v1494, 7
  %v1496 = vsub.s32 2, %v1495
  %v1497 = vrot.slane %v1484, %v1496
  %v1498 = vlaneseq
  %v1499 = vshrl.u32 %v1498, 7
  %v1500 = vsub.s32 3, %v1499
  %v1501 = vrot.slane %v1484, %v1500
  %v1502 = vlaneseq
  %v1503 = vshrl.u32 %v1502, 7
  %v1504 = vsub.s32 4, %v1503
  %v1505 = vrot.slane %v1484, %v1504
  %v1506 = vlaneseq
  %v1507 = vshrl.u32 %v1506, 7
  %v1508 = vsub.s32 5, %v1507
  %v1509 = vrot.slane %v1484, %v1508
  %v1510 = vlaneseq
  %v1511 = vshrl.u32 %v1510, 7
  %v1512 = vsub.s32 6, %v1511
  %v1513 = vrot.slane %v1484, %v1512
  %v1514 = vlaneseq
  %v1515 = vshrl.u32 %v1514, 7
  %v1516 = vsub.s32 7, %v1515
  %v1517 = vrot.slane %v1484, %v1516
  %v1526 = vmul.f32 %v1215, %v1489
  %v1527 = vmul.f32 %v1217, %v1493
  %v1528 = vmul.f32 %v1219, %v1497
  %v1529 = vmul.f32 %v1221, %v1501
  %v1530 = vmul.f32 %v1223, %v1505
  %v1531 = vmul.f32 %v1225, %v1509
  %v1532 = vmul.f32 %v1227, %v1513
  %v1533 = vmul.f32 %v1229, %v1517
  %1542 = vset.pattern.permute.xlu0 0
  %1543 = vperm.xlu0 %1542, %v1526
  %v1544 = vpop.permute.xlu0 %1543
  %1545 = vset.pattern.permute.xlu0 0
  %1546 = vperm.xlu0 %1545, %v1527
  %v1547 = vpop.permute.xlu0 %1546
  %1548 = vset.pattern.permute.xlu0 0
  %1549 = vperm.xlu0 %1548, %v1528
  %v1550 = vpop.permute.xlu0 %1549
  %1551 = vset.pattern.permute.xlu0 0
  %1552 = vperm.xlu0 %1551, %v1529
  %v1553 = vpop.permute.xlu0 %1552
  %1554 = vset.pattern.permute.xlu0 0
  %1555 = vperm.xlu0 %1554, %v1530
  %v1556 = vpop.permute.xlu0 %1555
  %1557 = vset.pattern.permute.xlu0 0
  %1558 = vperm.xlu0 %1557, %v1531
  %v1559 = vpop.permute.xlu0 %1558
  %1560 = vset.pattern.permute.xlu0 0
  %1561 = vperm.xlu0 %1560, %v1532
  %v1562 = vpop.permute.xlu0 %1561
  %1563 = vset.pattern.permute.xlu0 0
  %1564 = vperm.xlu0 %1563, %v1533
  %v1565 = vpop.permute.xlu0 %1564
  %v1566 = vlaneseq
  %v1567 = vshrl.u32 %v1566, 7
  %v1568 = vsub.s32 %v981, %v1567
  %v1569 = vrot.slane %v1544, %v1568
  %v1570 = vlaneseq
  %v1571 = vshrl.u32 %v1570, 7
  %v1572 = vsub.s32 %v981, %v1571
  %v1573 = vrot.slane %v1547, %v1572
  %v1574 = vlaneseq
  %v1575 = vshrl.u32 %v1574, 7
  %v1576 = vsub.s32 %v981, %v1575
  %v1577 = vrot.slane %v1550, %v1576
  %v1578 = vlaneseq
  %v1579 = vshrl.u32 %v1578, 7
  %v1580 = vsub.s32 %v981, %v1579
  %v1581 = vrot.slane %v1553, %v1580
  %v1582 = vlaneseq
  %v1583 = vshrl.u32 %v1582, 7
  %v1584 = vsub.s32 %v981, %v1583
  %v1585 = vrot.slane %v1556, %v1584
  %v1586 = vlaneseq
  %v1587 = vshrl.u32 %v1586, 7
  %v1588 = vsub.s32 %v981, %v1587
  %v1589 = vrot.slane %v1559, %v1588
  %v1590 = vlaneseq
  %v1591 = vshrl.u32 %v1590, 7
  %v1592 = vsub.s32 %v981, %v1591
  %v1593 = vrot.slane %v1562, %v1592
  %v1594 = vlaneseq
  %v1595 = vshrl.u32 %v1594, 7
  %v1596 = vsub.s32 %v981, %v1595
  %v1597 = vrot.slane %v1565, %v1596
  %v1598 = vsel %vm1014, %v1573, %v1569
  %v1599 = vsel %vm1016, %v1577, %v1598
  %v1600 = vsel %vm1018, %v1581, %v1599
  %v1601 = vsel %vm1020, %v1585, %v1600
  %v1602 = vsel %vm1022, %v1589, %v1601
  %v1603 = vsel %vm1024, %v1593, %v1602
  %v1604 = vsel %vm1026, %v1597, %v1603
  %v1606 = vadd.f32 %v1483, %v1604
  %v1607 = vld [vmem:[%s15] sm:$0xff]
  %v1608 = vld [vmem:[%s16] sm:$0x1]
  %v1610 = vlaneseq
  %v1611 = vshrl.u32 %v1610, 7
  %v1612 = vsub.s32 0, %v1611
  %v1613 = vrot.slane %v1608, %v1612
  %v1616 = vsel %vm1029, %v1606, 0
  %1618 = vmatprep.subr.mxu0 0.0
  %1619 = vmatpush1.msra.mxu0 %v1607
  %1620 = vmatprep.subr.mxu0 0.0
  %1621 = vmatpush1.msra.mxu0 0.0
  %1622 = vmatprep.subr.mxu0 0.0
  %1623 = vmatpush1.msra.mxu0 0.0
  %1624 = vmatprep.subr.mxu0 0.0
  %1625 = vmatpush1.msra.mxu0 0.0
  %1626 = vmatprep.subr.mxu0 0.0
  %1627 = vmatpush1.msra.mxu0 0.0
  %1628 = vmatprep.subr.mxu0 0.0
  %1629 = vmatpush1.msra.mxu0 0.0
  %1630 = vmatprep.subr.mxu0 0.0
  %1631 = vmatpush1.msra.mxu0 0.0
  %1632 = vmatprep.subr.mxu0 0.0
  %1633 = vmatpush1.msra.mxu0 0.0
  %1634 = vmatprep.subr.mxu0 0.0
  %1635 = vmatpush1.msra.mxu0 0.0
  %1636 = vmatprep.subr.mxu0 0.0
  %1637 = vmatpush1.msra.mxu0 0.0
  %1638 = vmatprep.subr.mxu0 0.0
  %1639 = vmatpush1.msra.mxu0 0.0
  %1640 = vmatprep.subr.mxu0 0.0
  %1641 = vmatpush1.msra.mxu0 0.0
  %1642 = vmatprep.subr.mxu0 0.0
  %1643 = vmatpush1.msra.mxu0 0.0
  %1644 = vmatprep.subr.mxu0 0.0
  %1645 = vmatpush1.msra.mxu0 0.0
  %1646 = vmatprep.subr.mxu0 0.0
  %1647 = vmatpush1.msra.mxu0 0.0
  %1648 = vmatprep.subr.mxu0 0.0
  %1649 = vmatpush1.msra.mxu0 0.0
  %1650 = vmatprep.subr.mxu0 0.0
  %1651 = vmatpush1.msra.mxu0 0.0
  %1652 = vmatprep.subr.mxu0 0.0
  %1653 = vmatpush1.msra.mxu0 0.0
  %1654 = vmatprep.subr.mxu0 0.0
  %1655 = vmatpush1.msra.mxu0 0.0
  %1656 = vmatprep.subr.mxu0 0.0
  %1657 = vmatpush1.msra.mxu0 0.0
  %1658 = vmatprep.subr.mxu0 0.0
  %1659 = vmatpush1.msra.mxu0 0.0
  %1660 = vmatprep.subr.mxu0 0.0
  %1661 = vmatpush1.msra.mxu0 0.0
  %1662 = vmatprep.subr.mxu0 0.0
  %1663 = vmatpush1.msra.mxu0 0.0
  %1664 = vmatprep.subr.mxu0 0.0
  %1665 = vmatpush1.msra.mxu0 0.0
  %1666 = vmatprep.subr.mxu0 0.0
  %1667 = vmatpush1.msra.mxu0 0.0
  %1668 = vmatprep.subr.mxu0 0.0
  %1669 = vmatpush1.msra.mxu0 0.0
  %1670 = vmatprep.subr.mxu0 0.0
  %1671 = vmatpush1.msra.mxu0 0.0
  %1672 = vmatprep.subr.mxu0 0.0
  %1673 = vmatpush1.msra.mxu0 0.0
  %1674 = vmatprep.subr.mxu0 0.0
  %1675 = vmatpush1.msra.mxu0 0.0
  %1676 = vmatprep.subr.mxu0 0.0
  %1677 = vmatpush1.msra.mxu0 0.0
  %1678 = vmatprep.subr.mxu0 0.0
  %1679 = vmatpush1.msra.mxu0 0.0
  %1680 = vmatprep.subr.mxu0 0.0
  %1681 = vmatpush1.msra.mxu0 0.0
  %1682 = vmatprep.mubr.f32.mxu0 0.0
  %1683 = vmatmul.mubr.f32.gmra.mrb[0].mxu0 %v1616
  %v1684 = vpop.f32.mrb[0].mxu0
  %v1685 = vadd.f32 %v1613, %v1684
  %v1686 = vpop.f32.mrb[0].mxu0
  %1687 = vdwg.mxu0
  %1688 = vst [vmem:[%s17] sm:$0xff] %v1685
  // Predicated region
  $region70: #{net_forward.5} parent=0 // pred_check
    _
  $region71: #{net_forward.5} parent=0 // pred_check_branch
    %1690 = sbr.rel (0) target = $region73
  $region72: #{net_forward.5} parent=0 // pred_region
    _
  $region73: #{net_forward.5} parent=0 // pred_fallthru
    _
  // Predicated region
  $region74: #{net_forward.5} parent=0 // pred_check
    _
  $region75: #{net_forward.5} parent=0 // pred_check_branch
    %1692 = sbr.rel (0) target = $region77
  $region76: #{net_forward.5} parent=0 // pred_region
    _
  $region77: #{net_forward.5} parent=0 // pred_fallthru
    _

// kernel: net_forward.3
$region0: #{net_forward.3}
  #allocation0 [shape = 'u32[]', space=smem, size = 0x4, offset = 0x4, fixed_abs, tag = 'smem constant byte address 0x4 - core index']
  #allocation1 [shape = 'u32[144,128]{1,0:T(1,128)}', space=vmem, size = 0x12000, scoped, tag = 'internal scratch']
  #allocation2 [shape = 'f32[8,8,768]{2,1,0:T(8,128)}', space=vmem, size = 0x30000, scoped, tag = 'scratch operand']
  %s0 = inlined_call_operand.vmem [shape: f32[8,8,128], index: 0, kind: input, shape index: {}]
  %s1 = inlined_call_operand.vmem [shape: f32[128,768], index: 1, kind: input, shape index: {}]
  %s2 = inlined_call_operand.vmem [shape: f32[128,768], index: 2, kind: input, shape index: {}]
  %s3 = inlined_call_operand.vmem [shape: f32[1,768], index: 3, kind: input, shape index: {}]
  %s4 = inlined_call_operand.vmem [shape: f32[1,768], index: 4, kind: input, shape index: {}]
  %s5 = inlined_call_operand.vmem [shape: f32[8,8,128], index: 5, kind: output, shape index: {0}]
  %s6 = inlined_call_operand.vmem [shape: f32[8,8,128], index: 6, kind: output, shape index: {1}]
  %s7 = inlined_call_operand.vmem [shape: f32[8,256], index: 7, kind: output, shape index: {2}]
  %8 = xla_tuple %s5, %s6, %s7
  %s9 = sld [smem:[#allocation0]]
  $region46: #{net_forward.3} parent=0
    _
  %s11 = ssub.s32 1, %s9
  %s12 = scalar_select 0, %s11, %s9
  // Predicated region
  $region2: #{net_forward.3} parent=0 // pred_check
    _
  $region3: #{net_forward.3} parent=0 // pred_check_branch
    %14 = sbr.rel (0) target = $region5
  $region4: #{net_forward.3} parent=0 // pred_region
    _
  $region5: #{net_forward.3} parent=0 // pred_fallthru
    _
  // Predicated region
  $region6: #{net_forward.3} parent=0 // pred_check
    _
  $region7: #{net_forward.3} parent=0 // pred_check_branch
    %16 = sbr.rel (0) target = $region9
  $region8: #{net_forward.3} parent=0 // pred_region
    _
  $region9: #{net_forward.3} parent=0 // pred_fallthru
    _
  // Predicated region
  $region10: #{net_forward.3} parent=0 // pred_check
    _
  $region11: #{net_forward.3} parent=0 // pred_check_branch
    %18 = sbr.rel (0) target = $region13
  $region12: #{net_forward.3} parent=0 // pred_region
    _
  $region13: #{net_forward.3} parent=0 // pred_fallthru
    _
  // Predicated region
  $region14: #{net_forward.3} parent=0 // pred_check
    _
  $region15: #{net_forward.3} parent=0 // pred_check_branch
    %20 = sbr.rel (0) target = $region17
  $region16: #{net_forward.3} parent=0 // pred_region
    _
  $region17: #{net_forward.3} parent=0 // pred_fallthru
    _
  // Predicated region
  $region18: #{net_forward.3} parent=0 // pred_check
    _
  $region19: #{net_forward.3} parent=0 // pred_check_branch
    %22 = sbr.rel (0) target = $region21
  $region20: #{net_forward.3} parent=0 // pred_region
    _
  $region21: #{net_forward.3} parent=0 // pred_fallthru
    _
  %v23 = vld [vmem:[%s0] sm:$0xff]
  %v24 = vld [vmem:[%s0 + $0x8] sm:$0xff]
  %v25 = vld [vmem:[%s0 + $0x10] sm:$0xff]
  %v26 = vld [vmem:[%s0 + $0x18] sm:$0xff]
  %v27 = vld [vmem:[%s0 + $0x20] sm:$0xff]
  %v28 = vld [vmem:[%s0 + $0x28] sm:$0xff]
  %v29 = vld [vmem:[%s0 + $0x30] sm:$0xff]
  %v30 = vld [vmem:[%s0 + $0x38] sm:$0xff]
  %v31 = vld [vmem:[%s1] sm:$0xff]
  %v32 = vld [vmem:[%s1 + $0x8] sm:$0xff]
  %v33 = vld [vmem:[%s1 + $0x10] sm:$0xff]
  %v34 = vld [vmem:[%s1 + $0x18] sm:$0xff]
  %v35 = vld [vmem:[%s1 + $0x20] sm:$0xff]
  %v36 = vld [vmem:[%s1 + $0x28] sm:$0xff]
  %v37 = vld [vmem:[%s1 + $0x30] sm:$0xff]
  %v38 = vld [vmem:[%s1 + $0x38] sm:$0xff]
  %v39 = vld [vmem:[%s1 + $0x40] sm:$0xff]
  %v40 = vld [vmem:[%s1 + $0x48] sm:$0xff]
  %v41 = vld [vmem:[%s1 + $0x50] sm:$0xff]
  %v42 = vld [vmem:[%s1 + $0x58] sm:$0xff]
  %v43 = vld [vmem:[%s1 + $0x60] sm:$0xff]
  %v44 = vld [vmem:[%s1 + $0x68] sm:$0xff]
  %v45 = vld [vmem:[%s1 + $0x70] sm:$0xff]
  %v46 = vld [vmem:[%s1 + $0x78] sm:$0xff]
  %v47 = vld [vmem:[%s1 + $0x80] sm:$0xff]
  %v48 = vld [vmem:[%s1 + $0x88] sm:$0xff]
  %v49 = vld [vmem:[%s1 + $0x90] sm:$0xff]
  %v50 = vld [vmem:[%s1 + $0x98] sm:$0xff]
  %v51 = vld [vmem:[%s1 + $0xa0] sm:$0xff]
  %v52 = vld [vmem:[%s1 + $0xa8] sm:$0xff]
  %v53 = vld [vmem:[%s1 + $0xb0] sm:$0xff]
  %v54 = vld [vmem:[%s1 + $0xb8] sm:$0xff]
  %v55 = vld [vmem:[%s1 + $0xc0] sm:$0xff]
  %v56 = vld [vmem:[%s1 + $0xc8] sm:$0xff]
  %v57 = vld [vmem:[%s1 + $0xd0] sm:$0xff]
  %v58 = vld [vmem:[%s1 + $0xd8] sm:$0xff]
  %v59 = vld [vmem:[%s1 + $0xe0] sm:$0xff]
  %v60 = vld [vmem:[%s1 + $0xe8] sm:$0xff]
  %v61 = vld [vmem:[%s1 + $0xf0] sm:$0xff]
  %v62 = vld [vmem:[%s1 + $0xf8] sm:$0xff]
  %v63 = vld [vmem:[%s1 + $0x100] sm:$0xff]
  %v64 = vld [vmem:[%s1 + $0x108] sm:$0xff]
  %v65 = vld [vmem:[%s1 + $0x110] sm:$0xff]
  %v66 = vld [vmem:[%s1 + $0x118] sm:$0xff]
  %v67 = vld [vmem:[%s1 + $0x120] sm:$0xff]
  %v68 = vld [vmem:[%s1 + $0x128] sm:$0xff]
  %v69 = vld [vmem:[%s1 + $0x130] sm:$0xff]
  %v70 = vld [vmem:[%s1 + $0x138] sm:$0xff]
  %v71 = vld [vmem:[%s1 + $0x140] sm:$0xff]
  %v72 = vld [vmem:[%s1 + $0x148] sm:$0xff]
  %v73 = vld [vmem:[%s1 + $0x150] sm:$0xff]
  %v74 = vld [vmem:[%s1 + $0x158] sm:$0xff]
  %v75 = vld [vmem:[%s1 + $0x160] sm:$0xff]
  %v76 = vld [vmem:[%s1 + $0x168] sm:$0xff]
  %v77 = vld [vmem:[%s1 + $0x170] sm:$0xff]
  %v78 = vld [vmem:[%s1 + $0x178] sm:$0xff]
  %v79 = vld [vmem:[%s1 + $0x180] sm:$0xff]
  %v80 = vld [vmem:[%s1 + $0x188] sm:$0xff]
  %v81 = vld [vmem:[%s1 + $0x190] sm:$0xff]
  %v82 = vld [vmem:[%s1 + $0x198] sm:$0xff]
  %v83 = vld [vmem:[%s1 + $0x1a0] sm:$0xff]
  %v84 = vld [vmem:[%s1 + $0x1a8] sm:$0xff]
  %v85 = vld [vmem:[%s1 + $0x1b0] sm:$0xff]
  %v86 = vld [vmem:[%s1 + $0x1b8] sm:$0xff]
  %v87 = vld [vmem:[%s1 + $0x1c0] sm:$0xff]
  %v88 = vld [vmem:[%s1 + $0x1c8] sm:$0xff]
  %v89 = vld [vmem:[%s1 + $0x1d0] sm:$0xff]
  %v90 = vld [vmem:[%s1 + $0x1d8] sm:$0xff]
  %v91 = vld [vmem:[%s1 + $0x1e0] sm:$0xff]
  %v92 = vld [vmem:[%s1 + $0x1e8] sm:$0xff]
  %v93 = vld [vmem:[%s1 + $0x1f0] sm:$0xff]
  %v94 = vld [vmem:[%s1 + $0x1f8] sm:$0xff]
  %v95 = vld [vmem:[%s1 + $0x200] sm:$0xff]
  %v96 = vld [vmem:[%s1 + $0x208] sm:$0xff]
  %v97 = vld [vmem:[%s1 + $0x210] sm:$0xff]
  %v98 = vld [vmem:[%s1 + $0x218] sm:$0xff]
  %v99 = vld [vmem:[%s1 + $0x220] sm:$0xff]
  %v100 = vld [vmem:[%s1 + $0x228] sm:$0xff]
  %v101 = vld [vmem:[%s1 + $0x230] sm:$0xff]
  %v102 = vld [vmem:[%s1 + $0x238] sm:$0xff]
  %v103 = vld [vmem:[%s1 + $0x240] sm:$0xff]
  %v104 = vld [vmem:[%s1 + $0x248] sm:$0xff]
  %v105 = vld [vmem:[%s1 + $0x250] sm:$0xff]
  %v106 = vld [vmem:[%s1 + $0x258] sm:$0xff]
  %v107 = vld [vmem:[%s1 + $0x260] sm:$0xff]
  %v108 = vld [vmem:[%s1 + $0x268] sm:$0xff]
  %v109 = vld [vmem:[%s1 + $0x270] sm:$0xff]
  %v110 = vld [vmem:[%s1 + $0x278] sm:$0xff]
  %v111 = vld [vmem:[%s1 + $0x280] sm:$0xff]
  %v112 = vld [vmem:[%s1 + $0x288] sm:$0xff]
  %v113 = vld [vmem:[%s1 + $0x290] sm:$0xff]
  %v114 = vld [vmem:[%s1 + $0x298] sm:$0xff]
  %v115 = vld [vmem:[%s1 + $0x2a0] sm:$0xff]
  %v116 = vld [vmem:[%s1 + $0x2a8] sm:$0xff]
  %v117 = vld [vmem:[%s1 + $0x2b0] sm:$0xff]
  %v118 = vld [vmem:[%s1 + $0x2b8] sm:$0xff]
  %v119 = vld [vmem:[%s1 + $0x2c0] sm:$0xff]
  %v120 = vld [vmem:[%s1 + $0x2c8] sm:$0xff]
  %v121 = vld [vmem:[%s1 + $0x2d0] sm:$0xff]
  %v122 = vld [vmem:[%s1 + $0x2d8] sm:$0xff]
  %v123 = vld [vmem:[%s1 + $0x2e0] sm:$0xff]
  %v124 = vld [vmem:[%s1 + $0x2e8] sm:$0xff]
  %v125 = vld [vmem:[%s1 + $0x2f0] sm:$0xff]
  %v126 = vld [vmem:[%s1 + $0x2f8] sm:$0xff]
  %v127 = vld [vmem:[%s3] sm:$0x3f]
  %v129 = vlaneseq
  %v130 = vshrl.u32 %v129, 7
  %v131 = vsub.s32 0, %v130
  %v132 = vrot.slane %v127, %v131
  %v133 = vlaneseq
  %v134 = vshrl.u32 %v133, 7
  %v135 = vsub.s32 1, %v134
  %v136 = vrot.slane %v127, %v135
  %v137 = vlaneseq
  %v138 = vshrl.u32 %v137, 7
  %v139 = vsub.s32 2, %v138
  %v140 = vrot.slane %v127, %v139
  %v141 = vlaneseq
  %v142 = vshrl.u32 %v141, 7
  %v143 = vsub.s32 3, %v142
  %v144 = vrot.slane %v127, %v143
  %v145 = vlaneseq
  %v146 = vshrl.u32 %v145, 7
  %v147 = vsub.s32 4, %v146
  %v148 = vrot.slane %v127, %v147
  %v149 = vlaneseq
  %v150 = vshrl.u32 %v149, 7
  %v151 = vsub.s32 5, %v150
  %v152 = vrot.slane %v127, %v151
  %159 = vmatprep.subr.mxu0 %v32
  %160 = vmatpush1.msra.mxu0 %v31
  %161 = vmatprep.subr.mxu0 %v38
  %162 = vmatpush1.msra.mxu0 %v37
  %163 = vmatprep.subr.mxu0 %v44
  %164 = vmatpush1.msra.mxu0 %v43
  %165 = vmatprep.subr.mxu0 %v50
  %166 = vmatpush1.msra.mxu0 %v49
  %167 = vmatprep.subr.mxu0 %v56
  %168 = vmatpush1.msra.mxu0 %v55
  %169 = vmatprep.subr.mxu0 %v62
  %170 = vmatpush1.msra.mxu0 %v61
  %171 = vmatprep.subr.mxu0 %v68
  %172 = vmatpush1.msra.mxu0 %v67
  %173 = vmatprep.subr.mxu0 %v74
  %174 = vmatpush1.msra.mxu0 %v73
  %175 = vmatprep.subr.mxu0 %v80
  %176 = vmatpush1.msra.mxu0 %v79
  %177 = vmatprep.subr.mxu0 %v86
  %178 = vmatpush1.msra.mxu0 %v85
  %179 = vmatprep.subr.mxu0 %v92
  %180 = vmatpush1.msra.mxu0 %v91
  %181 = vmatprep.subr.mxu0 %v98
  %182 = vmatpush1.msra.mxu0 %v97
  %183 = vmatprep.subr.mxu0 %v104
  %184 = vmatpush1.msra.mxu0 %v103
  %185 = vmatprep.subr.mxu0 %v110
  %186 = vmatpush1.msra.mxu0 %v109
  %187 = vmatprep.subr.mxu0 %v116
  %188 = vmatpush1.msra.mxu0 %v115
  %189 = vmatprep.subr.mxu0 %v122
  %190 = vmatpush1.msra.mxu0 %v121
  %191 = vmatprep.subr.mxu0 0.0
  %192 = vmatpush1.msra.mxu0 0.0
  %193 = vmatprep.subr.mxu0 0.0
  %194 = vmatpush1.msra.mxu0 0.0
  %195 = vmatprep.subr.mxu0 0.0
  %196 = vmatpush1.msra.mxu0 0.0
  %197 = vmatprep.subr.mxu0 0.0
  %198 = vmatpush1.msra.mxu0 0.0
  %199 = vmatprep.subr.mxu0 0.0
  %200 = vmatpush1.msra.mxu0 0.0
  %201 = vmatprep.subr.mxu0 0.0
  %202 = vmatpush1.msra.mxu0 0.0
  %203 = vmatprep.subr.mxu0 0.0
  %204 = vmatpush1.msra.mxu0 0.0
  %205 = vmatprep.subr.mxu0 0.0
  %206 = vmatpush1.msra.mxu0 0.0
  %207 = vmatprep.subr.mxu0 0.0
  %208 = vmatpush1.msra.mxu0 0.0
  %209 = vmatprep.subr.mxu0 0.0
  %210 = vmatpush1.msra.mxu0 0.0
  %211 = vmatprep.subr.mxu0 0.0
  %212 = vmatpush1.msra.mxu0 0.0
  %213 = vmatprep.subr.mxu0 0.0
  %214 = vmatpush1.msra.mxu0 0.0
  %215 = vmatprep.subr.mxu0 0.0
  %216 = vmatpush1.msra.mxu0 0.0
  %217 = vmatprep.subr.mxu0 0.0
  %218 = vmatpush1.msra.mxu0 0.0
  %219 = vmatprep.subr.mxu0 0.0
  %220 = vmatpush1.msra.mxu0 0.0
  %221 = vmatprep.subr.mxu0 0.0
  %222 = vmatpush1.msra.mxu0 0.0
  %223 = vmatprep.mubr.f32.mxu0 0.0
  %224 = vmatmul.mubr.f32.gmra.mrb[0].mxu0 %v23
  %v225 = vpop.f32.mrb[0].mxu0
  %v226 = vadd.f32 %v132, %v225
  %v227 = vpop.f32.mrb[0].mxu0
  %v228 = vadd.f32 %v136, %v227
  %229 = vmatprep.mubr.f32.mxu0 0.0
  %230 = vmatmul.mubr.f32.gmra.mrb[0].mxu0 %v24
  %v231 = vpop.f32.mrb[0].mxu0
  %v232 = vadd.f32 %v132, %v231
  %v233 = vpop.f32.mrb[0].mxu0
  %v234 = vadd.f32 %v136, %v233
  %235 = vmatprep.mubr.f32.mxu0 0.0
  %236 = vmatmul.mubr.f32.gmra.mrb[0].mxu0 %v25
  %v237 = vpop.f32.mrb[0].mxu0
  %v238 = vadd.f32 %v132, %v237
  %v239 = vpop.f32.mrb[0].mxu0
  %v240 = vadd.f32 %v136, %v239
  %241 = vmatprep.mubr.f32.mxu0 0.0
  %242 = vmatmul.mubr.f32.gmra.mrb[0].mxu0 %v26
  %v243 = vpop.f32.mrb[0].mxu0
  %v244 = vadd.f32 %v132, %v243
  %v245 = vpop.f32.mrb[0].mxu0
  %v246 = vadd.f32 %v136, %v245
  %247 = vmatprep.mubr.f32.mxu0 0.0
  %248 = vmatmul.mubr.f32.gmra.mrb[0].mxu0 %v27
  %v249 = vpop.f32.mrb[0].mxu0
  %v250 = vadd.f32 %v132, %v249
  %v251 = vpop.f32.mrb[0].mxu0
  %v252 = vadd.f32 %v136, %v251
  %253 = vmatprep.mubr.f32.mxu0 0.0
  %254 = vmatmul.mubr.f32.gmra.mrb[0].mxu0 %v28
  %v255 = vpop.f32.mrb[0].mxu0
  %v256 = vadd.f32 %v132, %v255
  %v257 = vpop.f32.mrb[0].mxu0
  %v258 = vadd.f32 %v136, %v257
  %259 = vmatprep.mubr.f32.mxu0 0.0
  %260 = vmatmul.mubr.f32.gmra.mrb[0].mxu0 %v29
  %v261 = vpop.f32.mrb[0].mxu0
  %v262 = vadd.f32 %v132, %v261
  %v263 = vpop.f32.mrb[0].mxu0
  %v264 = vadd.f32 %v136, %v263
  %265 = vmatprep.mubr.f32.mxu0 0.0
  %266 = vmatmul.mubr.f32.gmra.mrb[0].mxu0 %v30
  %v267 = vpop.f32.mrb[0].mxu0
  %v268 = vadd.f32 %v132, %v267
  %v269 = vpop.f32.mrb[0].mxu0
  %v270 = vadd.f32 %v136, %v269
  %271 = vdwg.mxu0
  %272 = vmatprep.subr.mxu0 %v34
  %273 = vmatpush1.msra.mxu0 %v33
  %274 = vmatprep.subr.mxu0 %v40
  %275 = vmatpush1.msra.mxu0 %v39
  %276 = vmatprep.subr.mxu0 %v46
  %277 = vmatpush1.msra.mxu0 %v45
  %278 = vmatprep.subr.mxu0 %v52
  %279 = vmatpush1.msra.mxu0 %v51
  %280 = vmatprep.subr.mxu0 %v58
  %281 = vmatpush1.msra.mxu0 %v57
  %282 = vmatprep.subr.mxu0 %v64
  %283 = vmatpush1.msra.mxu0 %v63
  %284 = vmatprep.subr.mxu0 %v70
  %285 = vmatpush1.msra.mxu0 %v69
  %286 = vmatprep.subr.mxu0 %v76
  %287 = vmatpush1.msra.mxu0 %v75
  %288 = vmatprep.subr.mxu0 %v82
  %289 = vmatpush1.msra.mxu0 %v81
  %290 = vmatprep.subr.mxu0 %v88
  %291 = vmatpush1.msra.mxu0 %v87
  %292 = vmatprep.subr.mxu0 %v94
  %293 = vmatpush1.msra.mxu0 %v93
  %294 = vmatprep.subr.mxu0 %v100
  %295 = vmatpush1.msra.mxu0 %v99
  %296 = vmatprep.subr.mxu0 %v106
  %297 = vmatpush1.msra.mxu0 %v105
  %298 = vmatprep.subr.mxu0 %v112
  %299 = vmatpush1.msra.mxu0 %v111
  %300 = vmatprep.subr.mxu0 %v118
  %301 = vmatpush1.msra.mxu0 %v117
  %302 = vmatprep.subr.mxu0 %v124
  %303 = vmatpush1.msra.mxu0 %v123
  %304 = vmatprep.subr.mxu0 0.0
  %305 = vmatpush1.msra.mxu0 0.0
  %306 = vmatprep.subr.mxu0 0.0
  %307 = vmatpush1.msra.mxu0 0.0
  %308 = vmatprep.subr.mxu0 0.0
  %309 = vmatpush1.msra.mxu0 0.0
  %310 = vmatprep.subr.mxu0 0.0
  %311 = vmatpush1.msra.mxu0 0.0
  %312 = vmatprep.subr.mxu0 0.0
  %313 = vmatpush1.msra.mxu0 0.0
  %314 = vmatprep.subr.mxu0 0.0
  %315 = vmatpush1.msra.mxu0 0.0
  %316 = vmatprep.subr.mxu0 0.0
  %317 = vmatpush1.msra.mxu0 0.0
  %318 = vmatprep.subr.mxu0 0.0
  %319 = vmatpush1.msra.mxu0 0.0
  %320 = vmatprep.subr.mxu0 0.0
  %321 = vmatpush1.msra.mxu0 0.0
  %322 = vmatprep.subr.mxu0 0.0
  %323 = vmatpush1.msra.mxu0 0.0
  %324 = vmatprep.subr.mxu0 0.0
  %325 = vmatpush1.msra.mxu0 0.0
  %326 = vmatprep.subr.mxu0 0.0
  %327 = vmatpush1.msra.mxu0 0.0
  %328 = vmatprep.subr.mxu0 0.0
  %329 = vmatpush1.msra.mxu0 0.0
  %330 = vmatprep.subr.mxu0 0.0
  %331 = vmatpush1.msra.mxu0 0.0
  %332 = vmatprep.subr.mxu0 0.0
  %333 = vmatpush1.msra.mxu0 0.0
  %334 = vmatprep.subr.mxu0 0.0
  %335 = vmatpush1.msra.mxu0 0.0
  %336 = vmatprep.mubr.f32.mxu0 0.0
  %337 = vmatmul.mubr.f32.gmra.mrb[0].mxu0 %v23
  %v338 = vpop.f32.mrb[0].mxu0
  %v339 = vadd.f32 %v140, %v338
  %v340 = vpop.f32.mrb[0].mxu0
  %v341 = vadd.f32 %v144, %v340
  %342 = vmatprep.mubr.f32.mxu0 0.0
  %343 = vmatmul.mubr.f32.gmra.mrb[0].mxu0 %v24
  %v344 = vpop.f32.mrb[0].mxu0
  %v345 = vadd.f32 %v140, %v344
  %v346 = vpop.f32.mrb[0].mxu0
  %v347 = vadd.f32 %v144, %v346
  %348 = vmatprep.mubr.f32.mxu0 0.0
  %349 = vmatmul.mubr.f32.gmra.mrb[0].mxu0 %v25
  %v350 = vpop.f32.mrb[0].mxu0
  %v351 = vadd.f32 %v140, %v350
  %v352 = vpop.f32.mrb[0].mxu0
  %v353 = vadd.f32 %v144, %v352
  %354 = vmatprep.mubr.f32.mxu0 0.0
  %355 = vmatmul.mubr.f32.gmra.mrb[0].mxu0 %v26
  %v356 = vpop.f32.mrb[0].mxu0
  %v357 = vadd.f32 %v140, %v356
  %v358 = vpop.f32.mrb[0].mxu0
  %v359 = vadd.f32 %v144, %v358
  %360 = vmatprep.mubr.f32.mxu0 0.0
  %361 = vmatmul.mubr.f32.gmra.mrb[0].mxu0 %v27
  %v362 = vpop.f32.mrb[0].mxu0
  %v363 = vadd.f32 %v140, %v362
  %v364 = vpop.f32.mrb[0].mxu0
  %v365 = vadd.f32 %v144, %v364
  %366 = vmatprep.mubr.f32.mxu0 0.0
  %367 = vmatmul.mubr.f32.gmra.mrb[0].mxu0 %v28
  %v368 = vpop.f32.mrb[0].mxu0
  %v369 = vadd.f32 %v140, %v368
  %v370 = vpop.f32.mrb[0].mxu0
  %v371 = vadd.f32 %v144, %v370
  %372 = vmatprep.mubr.f32.mxu0 0.0
  %373 = vmatmul.mubr.f32.gmra.mrb[0].mxu0 %v29
  %v374 = vpop.f32.mrb[0].mxu0
  %v375 = vadd.f32 %v140, %v374
  %v376 = vpop.f32.mrb[0].mxu0
  %v377 = vadd.f32 %v144, %v376
  %378 = vmatprep.mubr.f32.mxu0 0.0
  %379 = vmatmul.mubr.f32.gmra.mrb[0].mxu0 %v30
  %v380 = vpop.f32.mrb[0].mxu0
  %v381 = vadd.f32 %v140, %v380
  %v382 = vpop.f32.mrb[0].mxu0
  %v383 = vadd.f32 %v144, %v382
  %384 = vdwg.mxu0
  %385 = vmatprep.subr.mxu0 %v36
  %386 = vmatpush1.msra.mxu0 %v35
  %387 = vmatprep.subr.mxu0 %v42
  %388 = vmatpush1.msra.mxu0 %v41
  %389 = vmatprep.subr.mxu0 %v48
  %390 = vmatpush1.msra.mxu0 %v47
  %391 = vmatprep.subr.mxu0 %v54
  %392 = vmatpush1.msra.mxu0 %v53
  %393 = vmatprep.subr.mxu0 %v60
  %394 = vmatpush1.msra.mxu0 %v59
  %395 = vmatprep.subr.mxu0 %v66
  %396 = vmatpush1.msra.mxu0 %v65
  %397 = vmatprep.subr.mxu0 %v72
  %398 = vmatpush1.msra.mxu0 %v71
  %399 = vmatprep.subr.mxu0 %v78
  %400 = vmatpush1.msra.mxu0 %v77
  %401 = vmatprep.subr.mxu0 %v84
  %402 = vmatpush1.msra.mxu0 %v83
  %403 = vmatprep.subr.mxu0 %v90
  %404 = vmatpush1.msra.mxu0 %v89
  %405 = vmatprep.subr.mxu0 %v96
  %406 = vmatpush1.msra.mxu0 %v95
  %407 = vmatprep.subr.mxu0 %v102
  %408 = vmatpush1.msra.mxu0 %v101
  %409 = vmatprep.subr.mxu0 %v108
  %410 = vmatpush1.msra.mxu0 %v107
  %411 = vmatprep.subr.mxu0 %v114
  %412 = vmatpush1.msra.mxu0 %v113
  %413 = vmatprep.subr.mxu0 %v120
  %414 = vmatpush1.msra.mxu0 %v119
  %415 = vmatprep.subr.mxu0 %v126
  %416 = vmatpush1.msra.mxu0 %v125
  %417 = vmatprep.subr.mxu0 0.0
  %418 = vmatpush1.msra.mxu0 0.0
  %419 = vmatprep.subr.mxu0 0.0
  %420 = vmatpush1.msra.mxu0 0.0
  %421 = vmatprep.subr.mxu0 0.0
  %422 = vmatpush1.msra.mxu0 0.0
  %423 = vmatprep.subr.mxu0 0.0
  %424 = vmatpush1.msra.mxu0 0.0
  %425 = vmatprep.subr.mxu0 0.0
  %426 = vmatpush1.msra.mxu0 0.0
  %427 = vmatprep.subr.mxu0 0.0
  %428 = vmatpush1.msra.mxu0 0.0
  %429 = vmatprep.subr.mxu0 0.0
  %430 = vmatpush1.msra.mxu0 0.0
  %431 = vmatprep.subr.mxu0 0.0
  %432 = vmatpush1.msra.mxu0 0.0
  %433 = vmatprep.subr.mxu0 0.0
  %434 = vmatpush1.msra.mxu0 0.0
  %435 = vmatprep.subr.mxu0 0.0
  %436 = vmatpush1.msra.mxu0 0.0
  %437 = vmatprep.subr.mxu0 0.0
  %438 = vmatpush1.msra.mxu0 0.0
  %439 = vmatprep.subr.mxu0 0.0
  %440 = vmatpush1.msra.mxu0 0.0
  %441 = vmatprep.subr.mxu0 0.0
  %442 = vmatpush1.msra.mxu0 0.0
  %443 = vmatprep.subr.mxu0 0.0
  %444 = vmatpush1.msra.mxu0 0.0
  %445 = vmatprep.subr.mxu0 0.0
  %446 = vmatpush1.msra.mxu0 0.0
  %447 = vmatprep.subr.mxu0 0.0
  %448 = vmatpush1.msra.mxu0 0.0
  %449 = vmatprep.mubr.f32.mxu0 0.0
  %450 = vmatmul.mubr.f32.gmra.mrb[0].mxu0 %v23
  %v451 = vpop.f32.mrb[0].mxu0
  %v452 = vadd.f32 %v148, %v451
  %v453 = vpop.f32.mrb[0].mxu0
  %v454 = vadd.f32 %v152, %v453
  %455 = vmatprep.mubr.f32.mxu0 0.0
  %456 = vmatmul.mubr.f32.gmra.mrb[0].mxu0 %v24
  %v457 = vpop.f32.mrb[0].mxu0
  %v458 = vadd.f32 %v148, %v457
  %v459 = vpop.f32.mrb[0].mxu0
  %v460 = vadd.f32 %v152, %v459
  %461 = vmatprep.mubr.f32.mxu0 0.0
  %462 = vmatmul.mubr.f32.gmra.mrb[0].mxu0 %v25
  %v463 = vpop.f32.mrb[0].mxu0
  %v464 = vadd.f32 %v148, %v463
  %v465 = vpop.f32.mrb[0].mxu0
  %v466 = vadd.f32 %v152, %v465
  %467 = vmatprep.mubr.f32.mxu0 0.0
  %468 = vmatmul.mubr.f32.gmra.mrb[0].mxu0 %v26
  %v469 = vpop.f32.mrb[0].mxu0
  %v470 = vadd.f32 %v148, %v469
  %v471 = vpop.f32.mrb[0].mxu0
  %v472 = vadd.f32 %v152, %v471
  %473 = vmatprep.mubr.f32.mxu0 0.0
  %474 = vmatmul.mubr.f32.gmra.mrb[0].mxu0 %v27
  %v475 = vpop.f32.mrb[0].mxu0
  %v476 = vadd.f32 %v148, %v475
  %v477 = vpop.f32.mrb[0].mxu0
  %v478 = vadd.f32 %v152, %v477
  %479 = vmatprep.mubr.f32.mxu0 0.0
  %480 = vmatmul.mubr.f32.gmra.mrb[0].mxu0 %v28
  %v481 = vpop.f32.mrb[0].mxu0
  %v482 = vadd.f32 %v148, %v481
  %v483 = vpop.f32.mrb[0].mxu0
  %v484 = vadd.f32 %v152, %v483
  %485 = vmatprep.mubr.f32.mxu0 0.0
  %486 = vmatmul.mubr.f32.gmra.mrb[0].mxu0 %v29
  %v487 = vpop.f32.mrb[0].mxu0
  %v488 = vadd.f32 %v148, %v487
  %v489 = vpop.f32.mrb[0].mxu0
  %v490 = vadd.f32 %v152, %v489
  %491 = vmatprep.mubr.f32.mxu0 0.0
  %492 = vmatmul.mubr.f32.gmra.mrb[0].mxu0 %v30
  %v493 = vpop.f32.mrb[0].mxu0
  %v494 = vadd.f32 %v148, %v493
  %v495 = vpop.f32.mrb[0].mxu0
  %v496 = vadd.f32 %v152, %v495
  %497 = vdwg.mxu0
  %498 = vst [vmem:[#allocation2] sm:$0xff] %v226
  %499 = vst [vmem:[#allocation2 + $0x8] sm:$0xff] %v228
  %500 = vst [vmem:[#allocation2 + $0x10] sm:$0xff] %v339
  %501 = vst [vmem:[#allocation2 + $0x18] sm:$0xff] %v341
  %502 = vst [vmem:[#allocation2 + $0x20] sm:$0xff] %v452
  %503 = vst [vmem:[#allocation2 + $0x28] sm:$0xff] %v454
  %504 = vst [vmem:[#allocation2 + $0x30] sm:$0xff] %v232
  %505 = vst [vmem:[#allocation2 + $0x38] sm:$0xff] %v234
  %506 = vst [vmem:[#allocation2 + $0x40] sm:$0xff] %v345
  %507 = vst [vmem:[#allocation2 + $0x48] sm:$0xff] %v347
  %508 = vst [vmem:[#allocation2 + $0x50] sm:$0xff] %v458
  %509 = vst [vmem:[#allocation2 + $0x58] sm:$0xff] %v460
  %510 = vst [vmem:[#allocation2 + $0x60] sm:$0xff] %v238
  %511 = vst [vmem:[#allocation2 + $0x68] sm:$0xff] %v240
  %512 = vst [vmem:[#allocation2 + $0x70] sm:$0xff] %v351
  %513 = vst [vmem:[#allocation2 + $0x78] sm:$0xff] %v353
  %514 = vst [vmem:[#allocation2 + $0x80] sm:$0xff] %v464
  %515 = vst [vmem:[#allocation2 + $0x88] sm:$0xff] %v466
  %516 = vst [vmem:[#allocation2 + $0x90] sm:$0xff] %v244
  %517 = vst [vmem:[#allocation2 + $0x98] sm:$0xff] %v246
  %518 = vst [vmem:[#allocation2 + $0xa0] sm:$0xff] %v357
  %519 = vst [vmem:[#allocation2 + $0xa8] sm:$0xff] %v359
  %520 = vst [vmem:[#allocation2 + $0xb0] sm:$0xff] %v470
  %521 = vst [vmem:[#allocation2 + $0xb8] sm:$0xff] %v472
  %522 = vst [vmem:[#allocation2 + $0xc0] sm:$0xff] %v250
  %523 = vst [vmem:[#allocation2 + $0xc8] sm:$0xff] %v252
  %524 = vst [vmem:[#allocation2 + $0xd0] sm:$0xff] %v363
  %525 = vst [vmem:[#allocation2 + $0xd8] sm:$0xff] %v365
  %526 = vst [vmem:[#allocation2 + $0xe0] sm:$0xff] %v476
  %527 = vst [vmem:[#allocation2 + $0xe8] sm:$0xff] %v478
  %528 = vst [vmem:[#allocation2 + $0xf0] sm:$0xff] %v256
  %529 = vst [vmem:[#allocation2 + $0xf8] sm:$0xff] %v258
  %530 = vst [vmem:[#allocation2 + $0x100] sm:$0xff] %v369
  %531 = vst [vmem:[#allocation2 + $0x108] sm:$0xff] %v371
  %532 = vst [vmem:[#allocation2 + $0x110] sm:$0xff] %v482
  %533 = vst [vmem:[#allocation2 + $0x118] sm:$0xff] %v484
  %534 = vst [vmem:[#allocation2 + $0x120] sm:$0xff] %v262
  %535 = vst [vmem:[#allocation2 + $0x128] sm:$0xff] %v264
  %536 = vst [vmem:[#allocation2 + $0x130] sm:$0xff] %v375
  %537 = vst [vmem:[#allocation2 + $0x138] sm:$0xff] %v377
  %538 = vst [vmem:[#allocation2 + $0x140] sm:$0xff] %v488
  %539 = vst [vmem:[#allocation2 + $0x148] sm:$0xff] %v490
  %540 = vst [vmem:[#allocation2 + $0x150] sm:$0xff] %v268
  %541 = vst [vmem:[#allocation2 + $0x158] sm:$0xff] %v270
  %542 = vst [vmem:[#allocation2 + $0x160] sm:$0xff] %v381
  %543 = vst [vmem:[#allocation2 + $0x168] sm:$0xff] %v383
  %544 = vst [vmem:[#allocation2 + $0x170] sm:$0xff] %v494
  %545 = vst [vmem:[#allocation2 + $0x178] sm:$0xff] %v496
  %v546 = vld [vmem:[%s2] sm:$0xff]
  %v547 = vld [vmem:[%s2 + $0x8] sm:$0xff]
  %v548 = vld [vmem:[%s2 + $0x10] sm:$0xff]
  %v549 = vld [vmem:[%s2 + $0x18] sm:$0xff]
  %v550 = vld [vmem:[%s2 + $0x20] sm:$0xff]
  %v551 = vld [vmem:[%s2 + $0x28] sm:$0xff]
  %v552 = vld [vmem:[%s2 + $0x30] sm:$0xff]
  %v553 = vld [vmem:[%s2 + $0x38] sm:$0xff]
  %v554 = vld [vmem:[%s2 + $0x40] sm:$0xff]
  %v555 = vld [vmem:[%s2 + $0x48] sm:$0xff]
  %v556 = vld [vmem:[%s2 + $0x50] sm:$0xff]
  %v557 = vld [vmem:[%s2 + $0x58] sm:$0xff]
  %v558 = vld [vmem:[%s2 + $0x60] sm:$0xff]
  %v559 = vld [vmem:[%s2 + $0x68] sm:$0xff]
  %v560 = vld [vmem:[%s2 + $0x70] sm:$0xff]
  %v561 = vld [vmem:[%s2 + $0x78] sm:$0xff]
  %v562 = vld [vmem:[%s2 + $0x80] sm:$0xff]
  %v563 = vld [vmem:[%s2 + $0x88] sm:$0xff]
  %v564 = vld [vmem:[%s2 + $0x90] sm:$0xff]
  %v565 = vld [vmem:[%s2 + $0x98] sm:$0xff]
  %v566 = vld [vmem:[%s2 + $0xa0] sm:$0xff]
  %v567 = vld [vmem:[%s2 + $0xa8] sm:$0xff]
  %v568 = vld [vmem:[%s2 + $0xb0] sm:$0xff]
  %v569 = vld [vmem:[%s2 + $0xb8] sm:$0xff]
  %v570 = vld [vmem:[%s2 + $0xc0] sm:$0xff]
  %v571 = vld [vmem:[%s2 + $0xc8] sm:$0xff]
  %v572 = vld [vmem:[%s2 + $0xd0] sm:$0xff]
  %v573 = vld [vmem:[%s2 + $0xd8] sm:$0xff]
  %v574 = vld [vmem:[%s2 + $0xe0] sm:$0xff]
  %v575 = vld [vmem:[%s2 + $0xe8] sm:$0xff]
  %v576 = vld [vmem:[%s2 + $0xf0] sm:$0xff]
  %v577 = vld [vmem:[%s2 + $0xf8] sm:$0xff]
  %v578 = vld [vmem:[%s2 + $0x100] sm:$0xff]
  %v579 = vld [vmem:[%s2 + $0x108] sm:$0xff]
  %v580 = vld [vmem:[%s2 + $0x110] sm:$0xff]
  %v581 = vld [vmem:[%s2 + $0x118] sm:$0xff]
  %v582 = vld [vmem:[%s2 + $0x120] sm:$0xff]
  %v583 = vld [vmem:[%s2 + $0x128] sm:$0xff]
  %v584 = vld [vmem:[%s2 + $0x130] sm:$0xff]
  %v585 = vld [vmem:[%s2 + $0x138] sm:$0xff]
  %v586 = vld [vmem:[%s2 + $0x140] sm:$0xff]
  %v587 = vld [vmem:[%s2 + $0x148] sm:$0xff]
  %v588 = vld [vmem:[%s2 + $0x150] sm:$0xff]
  %v589 = vld [vmem:[%s2 + $0x158] sm:$0xff]
  %v590 = vld [vmem:[%s2 + $0x160] sm:$0xff]
  %v591 = vld [vmem:[%s2 + $0x168] sm:$0xff]
  %v592 = vld [vmem:[%s2 + $0x170] sm:$0xff]
  %v593 = vld [vmem:[%s2 + $0x178] sm:$0xff]
  %v594 = vld [vmem:[%s2 + $0x180] sm:$0xff]
  %v595 = vld [vmem:[%s2 + $0x188] sm:$0xff]
  %v596 = vld [vmem:[%s2 + $0x190] sm:$0xff]
  %v597 = vld [vmem:[%s2 + $0x198] sm:$0xff]
  %v598 = vld [vmem:[%s2 + $0x1a0] sm:$0xff]
  %v599 = vld [vmem:[%s2 + $0x1a8] sm:$0xff]
  %v600 = vld [vmem:[%s2 + $0x1b0] sm:$0xff]
  %v601 = vld [vmem:[%s2 + $0x1b8] sm:$0xff]
  %v602 = vld [vmem:[%s2 + $0x1c0] sm:$0xff]
  %v603 = vld [vmem:[%s2 + $0x1c8] sm:$0xff]
  %v604 = vld [vmem:[%s2 + $0x1d0] sm:$0xff]
  %v605 = vld [vmem:[%s2 + $0x1d8] sm:$0xff]
  %v606 = vld [vmem:[%s2 + $0x1e0] sm:$0xff]
  %v607 = vld [vmem:[%s2 + $0x1e8] sm:$0xff]
  %v608 = vld [vmem:[%s2 + $0x1f0] sm:$0xff]
  %v609 = vld [vmem:[%s2 + $0x1f8] sm:$0xff]
  %v610 = vld [vmem:[%s2 + $0x200] sm:$0xff]
  %v611 = vld [vmem:[%s2 + $0x208] sm:$0xff]
  %v612 = vld [vmem:[%s2 + $0x210] sm:$0xff]
  %v613 = vld [vmem:[%s2 + $0x218] sm:$0xff]
  %v614 = vld [vmem:[%s2 + $0x220] sm:$0xff]
  %v615 = vld [vmem:[%s2 + $0x228] sm:$0xff]
  %v616 = vld [vmem:[%s2 + $0x230] sm:$0xff]
  %v617 = vld [vmem:[%s2 + $0x238] sm:$0xff]
  %v618 = vld [vmem:[%s2 + $0x240] sm:$0xff]
  %v619 = vld [vmem:[%s2 + $0x248] sm:$0xff]
  %v620 = vld [vmem:[%s2 + $0x250] sm:$0xff]
  %v621 = vld [vmem:[%s2 + $0x258] sm:$0xff]
  %v622 = vld [vmem:[%s2 + $0x260] sm:$0xff]
  %v623 = vld [vmem:[%s2 + $0x268] sm:$0xff]
  %v624 = vld [vmem:[%s2 + $0x270] sm:$0xff]
  %v625 = vld [vmem:[%s2 + $0x278] sm:$0xff]
  %v626 = vld [vmem:[%s2 + $0x280] sm:$0xff]
  %v627 = vld [vmem:[%s2 + $0x288] sm:$0xff]
  %v628 = vld [vmem:[%s2 + $0x290] sm:$0xff]
  %v629 = vld [vmem:[%s2 + $0x298] sm:$0xff]
  %v630 = vld [vmem:[%s2 + $0x2a0] sm:$0xff]
  %v631 = vld [vmem:[%s2 + $0x2a8] sm:$0xff]
  %v632 = vld [vmem:[%s2 + $0x2b0] sm:$0xff]
  %v633 = vld [vmem:[%s2 + $0x2b8] sm:$0xff]
  %v634 = vld [vmem:[%s2 + $0x2c0] sm:$0xff]
  %v635 = vld [vmem:[%s2 + $0x2c8] sm:$0xff]
  %v636 = vld [vmem:[%s2 + $0x2d0] sm:$0xff]
  %v637 = vld [vmem:[%s2 + $0x2d8] sm:$0xff]
  %v638 = vld [vmem:[%s2 + $0x2e0] sm:$0xff]
  %v639 = vld [vmem:[%s2 + $0x2e8] sm:$0xff]
  %v640 = vld [vmem:[%s2 + $0x2f0] sm:$0xff]
  %v641 = vld [vmem:[%s2 + $0x2f8] sm:$0xff]
  %v642 = vld [vmem:[%s4] sm:$0x3f]
  %v644 = vlaneseq
  %v645 = vshrl.u32 %v644, 7
  %v646 = vsub.s32 0, %v645
  %v647 = vrot.slane %v642, %v646
  %v648 = vlaneseq
  %v649 = vshrl.u32 %v648, 7
  %v650 = vsub.s32 1, %v649
  %v651 = vrot.slane %v642, %v650
  %v652 = vlaneseq
  %v653 = vshrl.u32 %v652, 7
  %v654 = vsub.s32 2, %v653
  %v655 = vrot.slane %v642, %v654
  %v656 = vlaneseq
  %v657 = vshrl.u32 %v656, 7
  %v658 = vsub.s32 3, %v657
  %v659 = vrot.slane %v642, %v658
  %v660 = vlaneseq
  %v661 = vshrl.u32 %v660, 7
  %v662 = vsub.s32 4, %v661
  %v663 = vrot.slane %v642, %v662
  %v664 = vlaneseq
  %v665 = vshrl.u32 %v664, 7
  %v666 = vsub.s32 5, %v665
  %v667 = vrot.slane %v642, %v666
  %674 = vmatprep.subr.mxu0 %v547
  %675 = vmatpush1.msra.mxu0 %v546
  %676 = vmatprep.subr.mxu0 %v553
  %677 = vmatpush1.msra.mxu0 %v552
  %678 = vmatprep.subr.mxu0 %v559
  %679 = vmatpush1.msra.mxu0 %v558
  %680 = vmatprep.subr.mxu0 %v565
  %681 = vmatpush1.msra.mxu0 %v564
  %682 = vmatprep.subr.mxu0 %v571
  %683 = vmatpush1.msra.mxu0 %v570
  %684 = vmatprep.subr.mxu0 %v577
  %685 = vmatpush1.msra.mxu0 %v576
  %686 = vmatprep.subr.mxu0 %v583
  %687 = vmatpush1.msra.mxu0 %v582
  %688 = vmatprep.subr.mxu0 %v589
  %689 = vmatpush1.msra.mxu0 %v588
  %690 = vmatprep.subr.mxu0 %v595
  %691 = vmatpush1.msra.mxu0 %v594
  %692 = vmatprep.subr.mxu0 %v601
  %693 = vmatpush1.msra.mxu0 %v600
  %694 = vmatprep.subr.mxu0 %v607
  %695 = vmatpush1.msra.mxu0 %v606
  %696 = vmatprep.subr.mxu0 %v613
  %697 = vmatpush1.msra.mxu0 %v612
  %698 = vmatprep.subr.mxu0 %v619
  %699 = vmatpush1.msra.mxu0 %v618
  %700 = vmatprep.subr.mxu0 %v625
  %701 = vmatpush1.msra.mxu0 %v624
  %702 = vmatprep.subr.mxu0 %v631
  %703 = vmatpush1.msra.mxu0 %v630
  %704 = vmatprep.subr.mxu0 %v637
  %705 = vmatpush1.msra.mxu0 %v636
  %706 = vmatprep.subr.mxu0 0.0
  %707 = vmatpush1.msra.mxu0 0.0
  %708 = vmatprep.subr.mxu0 0.0
  %709 = vmatpush1.msra.mxu0 0.0
  %710 = vmatprep.subr.mxu0 0.0
  %711 = vmatpush1.msra.mxu0 0.0
  %712 = vmatprep.subr.mxu0 0.0
  %713 = vmatpush1.msra.mxu0 0.0
  %714 = vmatprep.subr.mxu0 0.0
  %715 = vmatpush1.msra.mxu0 0.0
  %716 = vmatprep.subr.mxu0 0.0
  %717 = vmatpush1.msra.mxu0 0.0
  %718 = vmatprep.subr.mxu0 0.0
  %719 = vmatpush1.msra.mxu0 0.0
  %720 = vmatprep.subr.mxu0 0.0
  %721 = vmatpush1.msra.mxu0 0.0
  %722 = vmatprep.subr.mxu0 0.0
  %723 = vmatpush1.msra.mxu0 0.0
  %724 = vmatprep.subr.mxu0 0.0
  %725 = vmatpush1.msra.mxu0 0.0
  %726 = vmatprep.subr.mxu0 0.0
  %727 = vmatpush1.msra.mxu0 0.0
  %728 = vmatprep.subr.mxu0 0.0
  %729 = vmatpush1.msra.mxu0 0.0
  %730 = vmatprep.subr.mxu0 0.0
  %731 = vmatpush1.msra.mxu0 0.0
  %732 = vmatprep.subr.mxu0 0.0
  %733 = vmatpush1.msra.mxu0 0.0
  %734 = vmatprep.subr.mxu0 0.0
  %735 = vmatpush1.msra.mxu0 0.0
  %736 = vmatprep.subr.mxu0 0.0
  %737 = vmatpush1.msra.mxu0 0.0
  %738 = vmatprep.mubr.f32.mxu0 0.0
  %739 = vmatmul.mubr.f32.gmra.mrb[0].mxu0 0.0
  %v740 = vpop.f32.mrb[0].mxu0
  %v741 = vadd.f32 %v647, %v740
  %v742 = vpop.f32.mrb[0].mxu0
  %v743 = vadd.f32 %v651, %v742
  %744 = vmatprep.mubr.f32.mxu0 0.0
  %745 = vmatmul.mubr.f32.gmra.mrb[0].mxu0 0.0
  %v746 = vpop.f32.mrb[0].mxu0
  %v747 = vpop.f32.mrb[0].mxu0
  %748 = vdwg.mxu0
  %749 = vmatprep.subr.mxu0 %v549
  %750 = vmatpush1.msra.mxu0 %v548
  %751 = vmatprep.subr.mxu0 %v555
  %752 = vmatpush1.msra.mxu0 %v554
  %753 = vmatprep.subr.mxu0 %v561
  %754 = vmatpush1.msra.mxu0 %v560
  %755 = vmatprep.subr.mxu0 %v567
  %756 = vmatpush1.msra.mxu0 %v566
  %757 = vmatprep.subr.mxu0 %v573
  %758 = vmatpush1.msra.mxu0 %v572
  %759 = vmatprep.subr.mxu0 %v579
  %760 = vmatpush1.msra.mxu0 %v578
  %761 = vmatprep.subr.mxu0 %v585
  %762 = vmatpush1.msra.mxu0 %v584
  %763 = vmatprep.subr.mxu0 %v591
  %764 = vmatpush1.msra.mxu0 %v590
  %765 = vmatprep.subr.mxu0 %v597
  %766 = vmatpush1.msra.mxu0 %v596
  %767 = vmatprep.subr.mxu0 %v603
  %768 = vmatpush1.msra.mxu0 %v602
  %769 = vmatprep.subr.mxu0 %v609
  %770 = vmatpush1.msra.mxu0 %v608
  %771 = vmatprep.subr.mxu0 %v615
  %772 = vmatpush1.msra.mxu0 %v614
  %773 = vmatprep.subr.mxu0 %v621
  %774 = vmatpush1.msra.mxu0 %v620
  %775 = vmatprep.subr.mxu0 %v627
  %776 = vmatpush1.msra.mxu0 %v626
  %777 = vmatprep.subr.mxu0 %v633
  %778 = vmatpush1.msra.mxu0 %v632
  %779 = vmatprep.subr.mxu0 %v639
  %780 = vmatpush1.msra.mxu0 %v638
  %781 = vmatprep.subr.mxu0 0.0
  %782 = vmatpush1.msra.mxu0 0.0
  %783 = vmatprep.subr.mxu0 0.0
  %784 = vmatpush1.msra.mxu0 0.0
  %785 = vmatprep.subr.mxu0 0.0
  %786 = vmatpush1.msra.mxu0 0.0
  %787 = vmatprep.subr.mxu0 0.0
  %788 = vmatpush1.msra.mxu0 0.0
  %789 = vmatprep.subr.mxu0 0.0
  %790 = vmatpush1.msra.mxu0 0.0
  %791 = vmatprep.subr.mxu0 0.0
  %792 = vmatpush1.msra.mxu0 0.0
  %793 = vmatprep.subr.mxu0 0.0
  %794 = vmatpush1.msra.mxu0 0.0
  %795 = vmatprep.subr.mxu0 0.0
  %796 = vmatpush1.msra.mxu0 0.0
  %797 = vmatprep.subr.mxu0 0.0
  %798 = vmatpush1.msra.mxu0 0.0
  %799 = vmatprep.subr.mxu0 0.0
  %800 = vmatpush1.msra.mxu0 0.0
  %801 = vmatprep.subr.mxu0 0.0
  %802 = vmatpush1.msra.mxu0 0.0
  %803 = vmatprep.subr.mxu0 0.0
  %804 = vmatpush1.msra.mxu0 0.0
  %805 = vmatprep.subr.mxu0 0.0
  %806 = vmatpush1.msra.mxu0 0.0
  %807 = vmatprep.subr.mxu0 0.0
  %808 = vmatpush1.msra.mxu0 0.0
  %809 = vmatprep.subr.mxu0 0.0
  %810 = vmatpush1.msra.mxu0 0.0
  %811 = vmatprep.subr.mxu0 0.0
  %812 = vmatpush1.msra.mxu0 0.0
  %813 = vmatprep.mubr.f32.mxu0 0.0
  %814 = vmatmul.mubr.f32.gmra.mrb[0].mxu0 0.0
  %v815 = vpop.f32.mrb[0].mxu0
  %v816 = vadd.f32 %v655, %v815
  %v817 = vpop.f32.mrb[0].mxu0
  %818 = vmatprep.mubr.f32.mxu0 0.0
  %819 = vmatmul.mubr.f32.gmra.mrb[0].mxu0 0.0
  %v820 = vpop.f32.mrb[0].mxu0
  %v821 = vpop.f32.mrb[0].mxu0
  %v822 = vadd.f32 %v659, %v821
  %823 = vdwg.mxu0
  %824 = vmatprep.subr.mxu0 %v551
  %825 = vmatpush1.msra.mxu0 %v550
  %826 = vmatprep.subr.mxu0 %v557
  %827 = vmatpush1.msra.mxu0 %v556
  %828 = vmatprep.subr.mxu0 %v563
  %829 = vmatpush1.msra.mxu0 %v562
  %830 = vmatprep.subr.mxu0 %v569
  %831 = vmatpush1.msra.mxu0 %v568
  %832 = vmatprep.subr.mxu0 %v575
  %833 = vmatpush1.msra.mxu0 %v574
  %834 = vmatprep.subr.mxu0 %v581
  %835 = vmatpush1.msra.mxu0 %v580
  %836 = vmatprep.subr.mxu0 %v587
  %837 = vmatpush1.msra.mxu0 %v586
  %838 = vmatprep.subr.mxu0 %v593
  %839 = vmatpush1.msra.mxu0 %v592
  %840 = vmatprep.subr.mxu0 %v599
  %841 = vmatpush1.msra.mxu0 %v598
  %842 = vmatprep.subr.mxu0 %v605
  %843 = vmatpush1.msra.mxu0 %v604
  %844 = vmatprep.subr.mxu0 %v611
  %845 = vmatpush1.msra.mxu0 %v610
  %846 = vmatprep.subr.mxu0 %v617
  %847 = vmatpush1.msra.mxu0 %v616
  %848 = vmatprep.subr.mxu0 %v623
  %849 = vmatpush1.msra.mxu0 %v622
  %850 = vmatprep.subr.mxu0 %v629
  %851 = vmatpush1.msra.mxu0 %v628
  %852 = vmatprep.subr.mxu0 %v635
  %853 = vmatpush1.msra.mxu0 %v634
  %854 = vmatprep.subr.mxu0 %v641
  %855 = vmatpush1.msra.mxu0 %v640
  %856 = vmatprep.subr.mxu0 0.0
  %857 = vmatpush1.msra.mxu0 0.0
  %858 = vmatprep.subr.mxu0 0.0
  %859 = vmatpush1.msra.mxu0 0.0
  %860 = vmatprep.subr.mxu0 0.0
  %861 = vmatpush1.msra.mxu0 0.0
  %862 = vmatprep.subr.mxu0 0.0
  %863 = vmatpush1.msra.mxu0 0.0
  %864 = vmatprep.subr.mxu0 0.0
  %865 = vmatpush1.msra.mxu0 0.0
  %866 = vmatprep.subr.mxu0 0.0
  %867 = vmatpush1.msra.mxu0 0.0
  %868 = vmatprep.subr.mxu0 0.0
  %869 = vmatpush1.msra.mxu0 0.0
  %870 = vmatprep.subr.mxu0 0.0
  %871 = vmatpush1.msra.mxu0 0.0
  %872 = vmatprep.subr.mxu0 0.0
  %873 = vmatpush1.msra.mxu0 0.0
  %874 = vmatprep.subr.mxu0 0.0
  %875 = vmatpush1.msra.mxu0 0.0
  %876 = vmatprep.subr.mxu0 0.0
  %877 = vmatpush1.msra.mxu0 0.0
  %878 = vmatprep.subr.mxu0 0.0
  %879 = vmatpush1.msra.mxu0 0.0
  %880 = vmatprep.subr.mxu0 0.0
  %881 = vmatpush1.msra.mxu0 0.0
  %882 = vmatprep.subr.mxu0 0.0
  %883 = vmatpush1.msra.mxu0 0.0
  %884 = vmatprep.subr.mxu0 0.0
  %885 = vmatpush1.msra.mxu0 0.0
  %886 = vmatprep.subr.mxu0 0.0
  %887 = vmatpush1.msra.mxu0 0.0
  %888 = vmatprep.mubr.f32.mxu0 0.0
  %889 = vmatmul.mubr.f32.gmra.mrb[0].mxu0 0.0
  %v890 = vpop.f32.mrb[0].mxu0
  %v891 = vpop.f32.mrb[0].mxu0
  %892 = vmatprep.mubr.f32.mxu0 0.0
  %893 = vmatmul.mubr.f32.gmra.mrb[0].mxu0 0.0
  %v894 = vpop.f32.mrb[0].mxu0
  %v895 = vadd.f32 %v663, %v894
  %v896 = vpop.f32.mrb[0].mxu0
  %v897 = vadd.f32 %v667, %v896
  %898 = vdwg.mxu0
  %v899 = vld [vmem:[#allocation2] sm:$0xff]
  %v900 = vld [vmem:[#allocation2 + $0x8] sm:$0xff]
  %v901 = vld [vmem:[#allocation2 + $0x10] sm:$0xff]
  %s902 = scalar_lea.vmem [#allocation2], 336
  %v903 = vld [vmem:[%s902 + $0x18] sm:$0xff]
  %v904 = vld [vmem:[%s902 + $0x20] sm:$0xff]
  %v905 = vld [vmem:[%s902 + $0x28] sm:$0xff]
  %v906 = vadd.f32 %v899, %v741
  %v907 = vxor.u32 %v906, 2147483648
  %v908 = vmul.f32 %v907, 1.442695
  %v909 = vpow.pop %v908
  %v910 = vadd.f32 %v909, 1.0
  %v911 = vrcp.pop %v910
  %v912 = vmul.f32 1.0, %v911
  %v913 = vadd.f32 %v900, %v743
  %v914 = vxor.u32 %v913, 2147483648
  %v915 = vmul.f32 %v914, 1.442695
  %v916 = vpow.pop %v915
  %v917 = vadd.f32 %v916, 1.0
  %v918 = vrcp.pop %v917
  %v919 = vmul.f32 1.0, %v918
  %v920 = vmul.f32 %v912, %v816
  %v921 = vadd.f32 %v901, %v920
  %v922 = vtanh.pop %v921
  %v923 = vsub.f32 1.0, %v919
  %v924 = vmul.f32 %v923, %v922
  %v925 = vmul.f32 %v919, 0.0
  %v926 = vadd.f32 %v924, %v925
  %v927 = vadd.f32 %v903, %v822
  %v928 = vxor.u32 %v927, 2147483648
  %v929 = vmul.f32 %v928, 1.442695
  %v930 = vpow.pop %v929
  %v931 = vadd.f32 %v930, 1.0
  %v932 = vrcp.pop %v931
  %v933 = vmul.f32 1.0, %v932
  %v934 = vadd.f32 %v904, %v895
  %v935 = vxor.u32 %v934, 2147483648
  %v936 = vmul.f32 %v935, 1.442695
  %v937 = vpow.pop %v936
  %v938 = vadd.f32 %v937, 1.0
  %v939 = vrcp.pop %v938
  %v940 = vmul.f32 1.0, %v939
  %v941 = vmul.f32 %v933, %v897
  %v942 = vadd.f32 %v905, %v941
  %v943 = vtanh.pop %v942
  %v944 = vsub.f32 1.0, %v940
  %v945 = vmul.f32 %v944, %v943
  %v946 = vmul.f32 %v940, 0.0
  %v947 = vadd.f32 %v945, %v946
  %948 = vst [vmem:[%s5] sm:$0xff] %v926
  %s949 = scalar_lea.vmem %s6, 56
  %950 = vst [vmem:[%s949] sm:$0xff] %v947
  %v951 = vld [vmem:[%s2] sm:$0xff]
  %v952 = vld [vmem:[%s2 + $0x8] sm:$0xff]
  %v953 = vld [vmem:[%s2 + $0x10] sm:$0xff]
  %v954 = vld [vmem:[%s2 + $0x18] sm:$0xff]
  %v955 = vld [vmem:[%s2 + $0x20] sm:$0xff]
  %v956 = vld [vmem:[%s2 + $0x28] sm:$0xff]
  %v957 = vld [vmem:[%s2 + $0x30] sm:$0xff]
  %v958 = vld [vmem:[%s2 + $0x38] sm:$0xff]
  %v959 = vld [vmem:[%s2 + $0x40] sm:$0xff]
  %v960 = vld [vmem:[%s2 + $0x48] sm:$0xff]
  %v961 = vld [vmem:[%s2 + $0x50] sm:$0xff]
  %v962 = vld [vmem:[%s2 + $0x58] sm:$0xff]
  %v963 = vld [vmem:[%s2 + $0x60] sm:$0xff]
  %v964 = vld [vmem:[%s2 + $0x68] sm:$0xff]
  %v965 = vld [vmem:[%s2 + $0x70] sm:$0xff]
  %v966 = vld [vmem:[%s2 + $0x78] sm:$0xff]
  %v967 = vld [vmem:[%s2 + $0x80] sm:$0xff]
  %v968 = vld [vmem:[%s2 + $0x88] sm:$0xff]
  %v969 = vld [vmem:[%s2 + $0x90] sm:$0xff]
  %v970 = vld [vmem:[%s2 + $0x98] sm:$0xff]
  %v971 = vld [vmem:[%s2 + $0xa0] sm:$0xff]
  %v972 = vld [vmem:[%s2 + $0xa8] sm:$0xff]
  %v973 = vld [vmem:[%s2 + $0xb0] sm:$0xff]
  %v974 = vld [vmem:[%s2 + $0xb8] sm:$0xff]
  %v975 = vld [vmem:[%s2 + $0xc0] sm:$0xff]
  %v976 = vld [vmem:[%s2 + $0xc8] sm:$0xff]
  %v977 = vld [vmem:[%s2 + $0xd0] sm:$0xff]
  %v978 = vld [vmem:[%s2 + $0xd8] sm:$0xff]
  %v979 = vld [vmem:[%s2 + $0xe0] sm:$0xff]
  %v980 = vld [vmem:[%s2 + $0xe8] sm:$0xff]
  %v981 = vld [vmem:[%s2 + $0xf0] sm:$0xff]
  %v982 = vld [vmem:[%s2 + $0xf8] sm:$0xff]
  %v983 = vld [vmem:[%s2 + $0x100] sm:$0xff]
  %v984 = vld [vmem:[%s2 + $0x108] sm:$0xff]
  %v985 = vld [vmem:[%s2 + $0x110] sm:$0xff]
  %v986 = vld [vmem:[%s2 + $0x118] sm:$0xff]
  %v987 = vld [vmem:[%s2 + $0x120] sm:$0xff]
  %v988 = vld [vmem:[%s2 + $0x128] sm:$0xff]
  %v989 = vld [vmem:[%s2 + $0x130] sm:$0xff]
  %v990 = vld [vmem:[%s2 + $0x138] sm:$0xff]
  %v991 = vld [vmem:[%s2 + $0x140] sm:$0xff]
  %v992 = vld [vmem:[%s2 + $0x148] sm:$0xff]
  %v993 = vld [vmem:[%s2 + $0x150] sm:$0xff]
  %v994 = vld [vmem:[%s2 + $0x158] sm:$0xff]
  %v995 = vld [vmem:[%s2 + $0x160] sm:$0xff]
  %v996 = vld [vmem:[%s2 + $0x168] sm:$0xff]
  %v997 = vld [vmem:[%s2 + $0x170] sm:$0xff]
  %v998 = vld [vmem:[%s2 + $0x178] sm:$0xff]
  %v999 = vld [vmem:[%s2 + $0x180] sm:$0xff]
  %v1000 = vld [vmem:[%s2 + $0x188] sm:$0xff]
  %v1001 = vld [vmem:[%s2 + $0x190] sm:$0xff]
  %v1002 = vld [vmem:[%s2 + $0x198] sm:$0xff]
  %v1003 = vld [vmem:[%s2 + $0x1a0] sm:$0xff]
  %v1004 = vld [vmem:[%s2 + $0x1a8] sm:$0xff]
  %v1005 = vld [vmem:[%s2 + $0x1b0] sm:$0xff]
  %v1006 = vld [vmem:[%s2 + $0x1b8] sm:$0xff]
  %v1007 = vld [vmem:[%s2 + $0x1c0] sm:$0xff]
  %v1008 = vld [vmem:[%s2 + $0x1c8] sm:$0xff]
  %v1009 = vld [vmem:[%s2 + $0x1d0] sm:$0xff]
  %v1010 = vld [vmem:[%s2 + $0x1d8] sm:$0xff]
  %v1011 = vld [vmem:[%s2 + $0x1e0] sm:$0xff]
  %v1012 = vld [vmem:[%s2 + $0x1e8] sm:$0xff]
  %v1013 = vld [vmem:[%s2 + $0x1f0] sm:$0xff]
  %v1014 = vld [vmem:[%s2 + $0x1f8] sm:$0xff]
  %v1015 = vld [vmem:[%s2 + $0x200] sm:$0xff]
  %v1016 = vld [vmem:[%s2 + $0x208] sm:$0xff]
  %v1017 = vld [vmem:[%s2 + $0x210] sm:$0xff]
  %v1018 = vld [vmem:[%s2 + $0x218] sm:$0xff]
  %v1019 = vld [vmem:[%s2 + $0x220] sm:$0xff]
  %v1020 = vld [vmem:[%s2 + $0x228] sm:$0xff]
  %v1021 = vld [vmem:[%s2 + $0x230] sm:$0xff]
  %v1022 = vld [vmem:[%s2 + $0x238] sm:$0xff]
  %v1023 = vld [vmem:[%s2 + $0x240] sm:$0xff]
  %v1024 = vld [vmem:[%s2 + $0x248] sm:$0xff]
  %v1025 = vld [vmem:[%s2 + $0x250] sm:$0xff]
  %v1026 = vld [vmem:[%s2 + $0x258] sm:$0xff]
  %v1027 = vld [vmem:[%s2 + $0x260] sm:$0xff]
  %v1028 = vld [vmem:[%s2 + $0x268] sm:$0xff]
  %v1029 = vld [vmem:[%s2 + $0x270] sm:$0xff]
  %v1030 = vld [vmem:[%s2 + $0x278] sm:$0xff]
  %v1031 = vld [vmem:[%s2 + $0x280] sm:$0xff]
  %v1032 = vld [vmem:[%s2 + $0x288] sm:$0xff]
  %v1033 = vld [vmem:[%s2 + $0x290] sm:$0xff]
  %v1034 = vld [vmem:[%s2 + $0x298] sm:$0xff]
  %v1035 = vld [vmem:[%s2 + $0x2a0] sm:$0xff]
  %v1036 = vld [vmem:[%s2 + $0x2a8] sm:$0xff]
  %v1037 = vld [vmem:[%s2 + $0x2b0] sm:$0xff]
  %v1038 = vld [vmem:[%s2 + $0x2b8] sm:$0xff]
  %v1039 = vld [vmem:[%s2 + $0x2c0] sm:$0xff]
  %v1040 = vld [vmem:[%s2 + $0x2c8] sm:$0xff]
  %v1041 = vld [vmem:[%s2 + $0x2d0] sm:$0xff]
  %v1042 = vld [vmem:[%s2 + $0x2d8] sm:$0xff]
  %v1043 = vld [vmem:[%s2 + $0x2e0] sm:$0xff]
  %v1044 = vld [vmem:[%s2 + $0x2e8] sm:$0xff]
  %v1045 = vld [vmem:[%s2 + $0x2f0] sm:$0xff]
  %v1046 = vld [vmem:[%s2 + $0x2f8] sm:$0xff]
  %v1047 = vld [vmem:[%s4] sm:$0x3f]
  %v1049 = vlaneseq
  %v1050 = vshrl.u32 %v1049, 7
  %v1051 = vsub.s32 0, %v1050
  %v1052 = vrot.slane %v1047, %v1051
  %v1053 = vlaneseq
  %v1054 = vshrl.u32 %v1053, 7
  %v1055 = vsub.s32 1, %v1054
  %v1056 = vrot.slane %v1047, %v1055
  %v1057 = vlaneseq
  %v1058 = vshrl.u32 %v1057, 7
  %v1059 = vsub.s32 2, %v1058
  %v1060 = vrot.slane %v1047, %v1059
  %v1061 = vlaneseq
  %v1062 = vshrl.u32 %v1061, 7
  %v1063 = vsub.s32 3, %v1062
  %v1064 = vrot.slane %v1047, %v1063
  %v1065 = vlaneseq
  %v1066 = vshrl.u32 %v1065, 7
  %v1067 = vsub.s32 4, %v1066
  %v1068 = vrot.slane %v1047, %v1067
  %v1069 = vlaneseq
  %v1070 = vshrl.u32 %v1069, 7
  %v1071 = vsub.s32 5, %v1070
  %v1072 = vrot.slane %v1047, %v1071
  %1079 = vmatprep.subr.mxu0 %v952
  %1080 = vmatpush1.msra.mxu0 %v951
  %1081 = vmatprep.subr.mxu0 %v958
  %1082 = vmatpush1.msra.mxu0 %v957
  %1083 = vmatprep.subr.mxu0 %v964
  %1084 = vmatpush1.msra.mxu0 %v963
  %1085 = vmatprep.subr.mxu0 %v970
  %1086 = vmatpush1.msra.mxu0 %v969
  %1087 = vmatprep.subr.mxu0 %v976
  %1088 = vmatpush1.msra.mxu0 %v975
  %1089 = vmatprep.subr.mxu0 %v982
  %1090 = vmatpush1.msra.mxu0 %v981
  %1091 = vmatprep.subr.mxu0 %v988
  %1092 = vmatpush1.msra.mxu0 %v987
  %1093 = vmatprep.subr.mxu0 %v994
  %1094 = vmatpush1.msra.mxu0 %v993
  %1095 = vmatprep.subr.mxu0 %v1000
  %1096 = vmatpush1.msra.mxu0 %v999
  %1097 = vmatprep.subr.mxu0 %v1006
  %1098 = vmatpush1.msra.mxu0 %v1005
  %1099 = vmatprep.subr.mxu0 %v1012
  %1100 = vmatpush1.msra.mxu0 %v1011
  %1101 = vmatprep.subr.mxu0 %v1018
  %1102 = vmatpush1.msra.mxu0 %v1017
  %1103 = vmatprep.subr.mxu0 %v1024
  %1104 = vmatpush1.msra.mxu0 %v1023
  %1105 = vmatprep.subr.mxu0 %v1030
  %1106 = vmatpush1.msra.mxu0 %v1029
  %1107 = vmatprep.subr.mxu0 %v1036
  %1108 = vmatpush1.msra.mxu0 %v1035
  %1109 = vmatprep.subr.mxu0 %v1042
  %1110 = vmatpush1.msra.mxu0 %v1041
  %1111 = vmatprep.subr.mxu0 0.0
  %1112 = vmatpush1.msra.mxu0 0.0
  %1113 = vmatprep.subr.mxu0 0.0
  %1114 = vmatpush1.msra.mxu0 0.0
  %1115 = vmatprep.subr.mxu0 0.0
  %1116 = vmatpush1.msra.mxu0 0.0
  %1117 = vmatprep.subr.mxu0 0.0
  %1118 = vmatpush1.msra.mxu0 0.0
  %1119 = vmatprep.subr.mxu0 0.0
  %1120 = vmatpush1.msra.mxu0 0.0
  %1121 = vmatprep.subr.mxu0 0.0
  %1122 = vmatpush1.msra.mxu0 0.0
  %1123 = vmatprep.subr.mxu0 0.0
  %1124 = vmatpush1.msra.mxu0 0.0
  %1125 = vmatprep.subr.mxu0 0.0
  %1126 = vmatpush1.msra.mxu0 0.0
  %1127 = vmatprep.subr.mxu0 0.0
  %1128 = vmatpush1.msra.mxu0 0.0
  %1129 = vmatprep.subr.mxu0 0.0
  %1130 = vmatpush1.msra.mxu0 0.0
  %1131 = vmatprep.subr.mxu0 0.0
  %1132 = vmatpush1.msra.mxu0 0.0
  %1133 = vmatprep.subr.mxu0 0.0
  %1134 = vmatpush1.msra.mxu0 0.0
  %1135 = vmatprep.subr.mxu0 0.0
  %1136 = vmatpush1.msra.mxu0 0.0
  %1137 = vmatprep.subr.mxu0 0.0
  %1138 = vmatpush1.msra.mxu0 0.0
  %1139 = vmatprep.subr.mxu0 0.0
  %1140 = vmatpush1.msra.mxu0 0.0
  %1141 = vmatprep.subr.mxu0 0.0
  %1142 = vmatpush1.msra.mxu0 0.0
  %1143 = vmatprep.mubr.f32.mxu0 0.0
  %1144 = vmatmul.mubr.f32.gmra.mrb[0].mxu0 %v926
  %v1145 = vpop.f32.mrb[0].mxu0
  %v1146 = vadd.f32 %v1052, %v1145
  %v1147 = vpop.f32.mrb[0].mxu0
  %v1148 = vadd.f32 %v1056, %v1147
  %1149 = vmatprep.mubr.f32.mxu0 0.0
  %1150 = vmatmul.mubr.f32.gmra.mrb[0].mxu0 %v947
  %v1151 = vpop.f32.mrb[0].mxu0
  %v1152 = vpop.f32.mrb[0].mxu0
  %1153 = vdwg.mxu0
  %1154 = vmatprep.subr.mxu0 %v954
  %1155 = vmatpush1.msra.mxu0 %v953
  %1156 = vmatprep.subr.mxu0 %v960
  %1157 = vmatpush1.msra.mxu0 %v959
  %1158 = vmatprep.subr.mxu0 %v966
  %1159 = vmatpush1.msra.mxu0 %v965
  %1160 = vmatprep.subr.mxu0 %v972
  %1161 = vmatpush1.msra.mxu0 %v971
  %1162 = vmatprep.subr.mxu0 %v978
  %1163 = vmatpush1.msra.mxu0 %v977
  %1164 = vmatprep.subr.mxu0 %v984
  %1165 = vmatpush1.msra.mxu0 %v983
  %1166 = vmatprep.subr.mxu0 %v990
  %1167 = vmatpush1.msra.mxu0 %v989
  %1168 = vmatprep.subr.mxu0 %v996
  %1169 = vmatpush1.msra.mxu0 %v995
  %1170 = vmatprep.subr.mxu0 %v1002
  %1171 = vmatpush1.msra.mxu0 %v1001
  %1172 = vmatprep.subr.mxu0 %v1008
  %1173 = vmatpush1.msra.mxu0 %v1007
  %1174 = vmatprep.subr.mxu0 %v1014
  %1175 = vmatpush1.msra.mxu0 %v1013
  %1176 = vmatprep.subr.mxu0 %v1020
  %1177 = vmatpush1.msra.mxu0 %v1019
  %1178 = vmatprep.subr.mxu0 %v1026
  %1179 = vmatpush1.msra.mxu0 %v1025
  %1180 = vmatprep.subr.mxu0 %v1032
  %1181 = vmatpush1.msra.mxu0 %v1031
  %1182 = vmatprep.subr.mxu0 %v1038
  %1183 = vmatpush1.msra.mxu0 %v1037
  %1184 = vmatprep.subr.mxu0 %v1044
  %1185 = vmatpush1.msra.mxu0 %v1043
  %1186 = vmatprep.subr.mxu0 0.0
  %1187 = vmatpush1.msra.mxu0 0.0
  %1188 = vmatprep.subr.mxu0 0.0
  %1189 = vmatpush1.msra.mxu0 0.0
  %1190 = vmatprep.subr.mxu0 0.0
  %1191 = vmatpush1.msra.mxu0 0.0
  %1192 = vmatprep.subr.mxu0 0.0
  %1193 = vmatpush1.msra.mxu0 0.0
  %1194 = vmatprep.subr.mxu0 0.0
  %1195 = vmatpush1.msra.mxu0 0.0
  %1196 = vmatprep.subr.mxu0 0.0
  %1197 = vmatpush1.msra.mxu0 0.0
  %1198 = vmatprep.subr.mxu0 0.0
  %1199 = vmatpush1.msra.mxu0 0.0
  %1200 = vmatprep.subr.mxu0 0.0
  %1201 = vmatpush1.msra.mxu0 0.0
  %1202 = vmatprep.subr.mxu0 0.0
  %1203 = vmatpush1.msra.mxu0 0.0
  %1204 = vmatprep.subr.mxu0 0.0
  %1205 = vmatpush1.msra.mxu0 0.0
  %1206 = vmatprep.subr.mxu0 0.0
  %1207 = vmatpush1.msra.mxu0 0.0
  %1208 = vmatprep.subr.mxu0 0.0
  %1209 = vmatpush1.msra.mxu0 0.0
  %1210 = vmatprep.subr.mxu0 0.0
  %1211 = vmatpush1.msra.mxu0 0.0
  %1212 = vmatprep.subr.mxu0 0.0
  %1213 = vmatpush1.msra.mxu0 0.0
  %1214 = vmatprep.subr.mxu0 0.0
  %1215 = vmatpush1.msra.mxu0 0.0
  %1216 = vmatprep.subr.mxu0 0.0
  %1217 = vmatpush1.msra.mxu0 0.0
  %1218 = vmatprep.mubr.f32.mxu0 0.0
  %1219 = vmatmul.mubr.f32.gmra.mrb[0].mxu0 %v926
  %v1220 = vpop.f32.mrb[0].mxu0
  %v1221 = vadd.f32 %v1060, %v1220
  %v1222 = vpop.f32.mrb[0].mxu0
  %1223 = vmatprep.mubr.f32.mxu0 0.0
  %1224 = vmatmul.mubr.f32.gmra.mrb[0].mxu0 %v947
  %v1225 = vpop.f32.mrb[0].mxu0
  %v1226 = vpop.f32.mrb[0].mxu0
  %v1227 = vadd.f32 %v1064, %v1226
  %1228 = vdwg.mxu0
  %1229 = vmatprep.subr.mxu0 %v956
  %1230 = vmatpush1.msra.mxu0 %v955
  %1231 = vmatprep.subr.mxu0 %v962
  %1232 = vmatpush1.msra.mxu0 %v961
  %1233 = vmatprep.subr.mxu0 %v968
  %1234 = vmatpush1.msra.mxu0 %v967
  %1235 = vmatprep.subr.mxu0 %v974
  %1236 = vmatpush1.msra.mxu0 %v973
  %1237 = vmatprep.subr.mxu0 %v980
  %1238 = vmatpush1.msra.mxu0 %v979
  %1239 = vmatprep.subr.mxu0 %v986
  %1240 = vmatpush1.msra.mxu0 %v985
  %1241 = vmatprep.subr.mxu0 %v992
  %1242 = vmatpush1.msra.mxu0 %v991
  %1243 = vmatprep.subr.mxu0 %v998
  %1244 = vmatpush1.msra.mxu0 %v997
  %1245 = vmatprep.subr.mxu0 %v1004
  %1246 = vmatpush1.msra.mxu0 %v1003
  %1247 = vmatprep.subr.mxu0 %v1010
  %1248 = vmatpush1.msra.mxu0 %v1009
  %1249 = vmatprep.subr.mxu0 %v1016
  %1250 = vmatpush1.msra.mxu0 %v1015
  %1251 = vmatprep.subr.mxu0 %v1022
  %1252 = vmatpush1.msra.mxu0 %v1021
  %1253 = vmatprep.subr.mxu0 %v1028
  %1254 = vmatpush1.msra.mxu0 %v1027
  %1255 = vmatprep.subr.mxu0 %v1034
  %1256 = vmatpush1.msra.mxu0 %v1033
  %1257 = vmatprep.subr.mxu0 %v1040
  %1258 = vmatpush1.msra.mxu0 %v1039
  %1259 = vmatprep.subr.mxu0 %v1046
  %1260 = vmatpush1.msra.mxu0 %v1045
  %1261 = vmatprep.subr.mxu0 0.0
  %1262 = vmatpush1.msra.mxu0 0.0
  %1263 = vmatprep.subr.mxu0 0.0
  %1264 = vmatpush1.msra.mxu0 0.0
  %1265 = vmatprep.subr.mxu0 0.0
  %1266 = vmatpush1.msra.mxu0 0.0
  %1267 = vmatprep.subr.mxu0 0.0
  %1268 = vmatpush1.msra.mxu0 0.0
  %1269 = vmatprep.subr.mxu0 0.0
  %1270 = vmatpush1.msra.mxu0 0.0
  %1271 = vmatprep.subr.mxu0 0.0
  %1272 = vmatpush1.msra.mxu0 0.0
  %1273 = vmatprep.subr.mxu0 0.0
  %1274 = vmatpush1.msra.mxu0 0.0
  %1275 = vmatprep.subr.mxu0 0.0
  %1276 = vmatpush1.msra.mxu0 0.0
  %1277 = vmatprep.subr.mxu0 0.0
  %1278 = vmatpush1.msra.mxu0 0.0
  %1279 = vmatprep.subr.mxu0 0.0
  %1280 = vmatpush1.msra.mxu0 0.0
  %1281 = vmatprep.subr.mxu0 0.0
  %1282 = vmatpush1.msra.mxu0 0.0
  %1283 = vmatprep.subr.mxu0 0.0
  %1284 = vmatpush1.msra.mxu0 0.0
  %1285 = vmatprep.subr.mxu0 0.0
  %1286 = vmatpush1.msra.mxu0 0.0
  %1287 = vmatprep.subr.mxu0 0.0
  %1288 = vmatpush1.msra.mxu0 0.0
  %1289 = vmatprep.subr.mxu0 0.0
  %1290 = vmatpush1.msra.mxu0 0.0
  %1291 = vmatprep.subr.mxu0 0.0
  %1292 = vmatpush1.msra.mxu0 0.0
  %1293 = vmatprep.mubr.f32.mxu0 0.0
  %1294 = vmatmul.mubr.f32.gmra.mrb[0].mxu0 %v926
  %v1295 = vpop.f32.mrb[0].mxu0
  %v1296 = vpop.f32.mrb[0].mxu0
  %1297 = vmatprep.mubr.f32.mxu0 0.0
  %1298 = vmatmul.mubr.f32.gmra.mrb[0].mxu0 %v947
  %v1299 = vpop.f32.mrb[0].mxu0
  %v1300 = vadd.f32 %v1068, %v1299
  %v1301 = vpop.f32.mrb[0].mxu0
  %v1302 = vadd.f32 %v1072, %v1301
  %1303 = vdwg.mxu0
  %s1304 = scalar_lea.vmem [#allocation2], 48
  %v1305 = vld [vmem:[%s1304] sm:$0xff]
  %v1306 = vld [vmem:[%s1304 + $0x8] sm:$0xff]
  %v1307 = vld [vmem:[%s1304 + $0x10] sm:$0xff]
  %s1308 = scalar_lea.vmem [#allocation2], 288
  %v1309 = vld [vmem:[%s1308 + $0x18] sm:$0xff]
  %v1310 = vld [vmem:[%s1308 + $0x20] sm:$0xff]
  %v1311 = vld [vmem:[%s1308 + $0x28] sm:$0xff]
  %v1312 = vadd.f32 %v1305, %v1146
  %v1313 = vxor.u32 %v1312, 2147483648
  %v1314 = vmul.f32 %v1313, 1.442695
  %v1315 = vpow.pop %v1314
  %v1316 = vadd.f32 %v1315, 1.0
  %v1317 = vrcp.pop %v1316
  %v1318 = vmul.f32 1.0, %v1317
  %v1319 = vadd.f32 %v1306, %v1148
  %v1320 = vxor.u32 %v1319, 2147483648
  %v1321 = vmul.f32 %v1320, 1.442695
  %v1322 = vpow.pop %v1321
  %v1323 = vadd.f32 %v1322, 1.0
  %v1324 = vrcp.pop %v1323
  %v1325 = vmul.f32 1.0, %v1324
  %v1326 = vmul.f32 %v1318, %v1221
  %v1327 = vadd.f32 %v1307, %v1326
  %v1328 = vtanh.pop %v1327
  %v1329 = vsub.f32 1.0, %v1325
  %v1330 = vmul.f32 %v1329, %v1328
  %v1331 = vmul.f32 %v1325, %v926
  %v1332 = vadd.f32 %v1330, %v1331
  %v1333 = vadd.f32 %v1309, %v1227
  %v1334 = vxor.u32 %v1333, 2147483648
  %v1335 = vmul.f32 %v1334, 1.442695
  %v1336 = vpow.pop %v1335
  %v1337 = vadd.f32 %v1336, 1.0
  %v1338 = vrcp.pop %v1337
  %v1339 = vmul.f32 1.0, %v1338
  %v1340 = vadd.f32 %v1310, %v1300
  %v1341 = vxor.u32 %v1340, 2147483648
  %v1342 = vmul.f32 %v1341, 1.442695
  %v1343 = vpow.pop %v1342
  %v1344 = vadd.f32 %v1343, 1.0
  %v1345 = vrcp.pop %v1344
  %v1346 = vmul.f32 1.0, %v1345
  %v1347 = vmul.f32 %v1339, %v1302
  %v1348 = vadd.f32 %v1311, %v1347
  %v1349 = vtanh.pop %v1348
  %v1350 = vsub.f32 1.0, %v1346
  %v1351 = vmul.f32 %v1350, %v1349
  %v1352 = vmul.f32 %v1346, %v947
  %v1353 = vadd.f32 %v1351, %v1352
  %s1354 = scalar_lea.vmem %s5, 8
  %1355 = vst [vmem:[%s1354] sm:$0xff] %v1332
  %s1356 = scalar_lea.vmem %s6, 48
  %1357 = vst [vmem:[%s1356] sm:$0xff] %v1353
  %v1358 = vld [vmem:[%s2] sm:$0xff]
  %v1359 = vld [vmem:[%s2 + $0x8] sm:$0xff]
  %v1360 = vld [vmem:[%s2 + $0x10] sm:$0xff]
  %v1361 = vld [vmem:[%s2 + $0x18] sm:$0xff]
  %v1362 = vld [vmem:[%s2 + $0x20] sm:$0xff]
  %v1363 = vld [vmem:[%s2 + $0x28] sm:$0xff]
  %v1364 = vld [vmem:[%s2 + $0x30] sm:$0xff]
  %v1365 = vld [vmem:[%s2 + $0x38] sm:$0xff]
  %v1366 = vld [vmem:[%s2 + $0x40] sm:$0xff]
  %v1367 = vld [vmem:[%s2 + $0x48] sm:$0xff]
  %v1368 = vld [vmem:[%s2 + $0x50] sm:$0xff]
  %v1369 = vld [vmem:[%s2 + $0x58] sm:$0xff]
  %v1370 = vld [vmem:[%s2 + $0x60] sm:$0xff]
  %v1371 = vld [vmem:[%s2 + $0x68] sm:$0xff]
  %v1372 = vld [vmem:[%s2 + $0x70] sm:$0xff]
  %v1373 = vld [vmem:[%s2 + $0x78] sm:$0xff]
  %v1374 = vld [vmem:[%s2 + $0x80] sm:$0xff]
  %v1375 = vld [vmem:[%s2 + $0x88] sm:$0xff]
  %v1376 = vld [vmem:[%s2 + $0x90] sm:$0xff]
  %v1377 = vld [vmem:[%s2 + $0x98] sm:$0xff]
  %v1378 = vld [vmem:[%s2 + $0xa0] sm:$0xff]
  %v1379 = vld [vmem:[%s2 + $0xa8] sm:$0xff]
  %v1380 = vld [vmem:[%s2 + $0xb0] sm:$0xff]
  %v1381 = vld [vmem:[%s2 + $0xb8] sm:$0xff]
  %v1382 = vld [vmem:[%s2 + $0xc0] sm:$0xff]
  %v1383 = vld [vmem:[%s2 + $0xc8] sm:$0xff]
  %v1384 = vld [vmem:[%s2 + $0xd0] sm:$0xff]
  %v1385 = vld [vmem:[%s2 + $0xd8] sm:$0xff]
  %v1386 = vld [vmem:[%s2 + $0xe0] sm:$0xff]
  %v1387 = vld [vmem:[%s2 + $0xe8] sm:$0xff]
  %v1388 = vld [vmem:[%s2 + $0xf0] sm:$0xff]
  %v1389 = vld [vmem:[%s2 + $0xf8] sm:$0xff]
  %v1390 = vld [vmem:[%s2 + $0x100] sm:$0xff]
  %v1391 = vld [vmem:[%s2 + $0x108] sm:$0xff]
  %v1392 = vld [vmem:[%s2 + $0x110] sm:$0xff]
  %v1393 = vld [vmem:[%s2 + $0x118] sm:$0xff]
  %v1394 = vld [vmem:[%s2 + $0x120] sm:$0xff]
  %v1395 = vld [vmem:[%s2 + $0x128] sm:$0xff]
  %v1396 = vld [vmem:[%s2 + $0x130] sm:$0xff]
  %v1397 = vld [vmem:[%s2 + $0x138] sm:$0xff]
  %v1398 = vld [vmem:[%s2 + $0x140] sm:$0xff]
  %v1399 = vld [vmem:[%s2 + $0x148] sm:$0xff]
  %v1400 = vld [vmem:[%s2 + $0x150] sm:$0xff]
  %v1401 = vld [vmem:[%s2 + $0x158] sm:$0xff]
  %v1402 = vld [vmem:[%s2 + $0x160] sm:$0xff]
  %v1403 = vld [vmem:[%s2 + $0x168] sm:$0xff]
  %v1404 = vld [vmem:[%s2 + $0x170] sm:$0xff]
  %v1405 = vld [vmem:[%s2 + $0x178] sm:$0xff]
  %v1406 = vld [vmem:[%s2 + $0x180] sm:$0xff]
  %v1407 = vld [vmem:[%s2 + $0x188] sm:$0xff]
  %v1408 = vld [vmem:[%s2 + $0x190] sm:$0xff]
  %v1409 = vld [vmem:[%s2 + $0x198] sm:$0xff]
  %v1410 = vld [vmem:[%s2 + $0x1a0] sm:$0xff]
  %v1411 = vld [vmem:[%s2 + $0x1a8] sm:$0xff]
  %v1412 = vld [vmem:[%s2 + $0x1b0] sm:$0xff]
  %v1413 = vld [vmem:[%s2 + $0x1b8] sm:$0xff]
  %v1414 = vld [vmem:[%s2 + $0x1c0] sm:$0xff]
  %v1415 = vld [vmem:[%s2 + $0x1c8] sm:$0xff]
  %v1416 = vld [vmem:[%s2 + $0x1d0] sm:$0xff]
  %v1417 = vld [vmem:[%s2 + $0x1d8] sm:$0xff]
  %v1418 = vld [vmem:[%s2 + $0x1e0] sm:$0xff]
  %v1419 = vld [vmem:[%s2 + $0x1e8] sm:$0xff]
  %v1420 = vld [vmem:[%s2 + $0x1f0] sm:$0xff]
  %v1421 = vld [vmem:[%s2 + $0x1f8] sm:$0xff]
  %v1422 = vld [vmem:[%s2 + $0x200] sm:$0xff]
  %v1423 = vld [vmem:[%s2 + $0x208] sm:$0xff]
  %v1424 = vld [vmem:[%s2 + $0x210] sm:$0xff]
  %v1425 = vld [vmem:[%s2 + $0x218] sm:$0xff]
  %v1426 = vld [vmem:[%s2 + $0x220] sm:$0xff]
  %v1427 = vld [vmem:[%s2 + $0x228] sm:$0xff]
  %v1428 = vld [vmem:[%s2 + $0x230] sm:$0xff]
  %v1429 = vld [vmem:[%s2 + $0x238] sm:$0xff]
  %v1430 = vld [vmem:[%s2 + $0x240] sm:$0xff]
  %v1431 = vld [vmem:[%s2 + $0x248] sm:$0xff]
  %v1432 = vld [vmem:[%s2 + $0x250] sm:$0xff]
  %v1433 = vld [vmem:[%s2 + $0x258] sm:$0xff]
  %v1434 = vld [vmem:[%s2 + $0x260] sm:$0xff]
  %v1435 = vld [vmem:[%s2 + $0x268] sm:$0xff]
  %v1436 = vld [vmem:[%s2 + $0x270] sm:$0xff]
  %v1437 = vld [vmem:[%s2 + $0x278] sm:$0xff]
  %v1438 = vld [vmem:[%s2 + $0x280] sm:$0xff]
  %v1439 = vld [vmem:[%s2 + $0x288] sm:$0xff]
  %v1440 = vld [vmem:[%s2 + $0x290] sm:$0xff]
  %v1441 = vld [vmem:[%s2 + $0x298] sm:$0xff]
  %v1442 = vld [vmem:[%s2 + $0x2a0] sm:$0xff]
  %v1443 = vld [vmem:[%s2 + $0x2a8] sm:$0xff]
  %v1444 = vld [vmem:[%s2 + $0x2b0] sm:$0xff]
  %v1445 = vld [vmem:[%s2 + $0x2b8] sm:$0xff]
  %v1446 = vld [vmem:[%s2 + $0x2c0] sm:$0xff]
  %v1447 = vld [vmem:[%s2 + $0x2c8] sm:$0xff]
  %v1448 = vld [vmem:[%s2 + $0x2d0] sm:$0xff]
  %v1449 = vld [vmem:[%s2 + $0x2d8] sm:$0xff]
  %v1450 = vld [vmem:[%s2 + $0x2e0] sm:$0xff]
  %v1451 = vld [vmem:[%s2 + $0x2e8] sm:$0xff]
  %v1452 = vld [vmem:[%s2 + $0x2f0] sm:$0xff]
  %v1453 = vld [vmem:[%s2 + $0x2f8] sm:$0xff]
  %v1454 = vld [vmem:[%s4] sm:$0x3f]
  %v1456 = vlaneseq
  %v1457 = vshrl.u32 %v1456, 7
  %v1458 = vsub.s32 0, %v1457
  %v1459 = vrot.slane %v1454, %v1458
  %v1460 = vlaneseq
  %v1461 = vshrl.u32 %v1460, 7
  %v1462 = vsub.s32 1, %v1461
  %v1463 = vrot.slane %v1454, %v1462
  %v1464 = vlaneseq
  %v1465 = vshrl.u32 %v1464, 7
  %v1466 = vsub.s32 2, %v1465
  %v1467 = vrot.slane %v1454, %v1466
  %v1468 = vlaneseq
  %v1469 = vshrl.u32 %v1468, 7
  %v1470 = vsub.s32 3, %v1469
  %v1471 = vrot.slane %v1454, %v1470
  %v1472 = vlaneseq
  %v1473 = vshrl.u32 %v1472, 7
  %v1474 = vsub.s32 4, %v1473
  %v1475 = vrot.slane %v1454, %v1474
  %v1476 = vlaneseq
  %v1477 = vshrl.u32 %v1476, 7
  %v1478 = vsub.s32 5, %v1477
  %v1479 = vrot.slane %v1454, %v1478
  %1486 = vmatprep.subr.mxu0 %v1359
  %1487 = vmatpush1.msra.mxu0 %v1358
  %1488 = vmatprep.subr.mxu0 %v1365
  %1489 = vmatpush1.msra.mxu0 %v1364
  %1490 = vmatprep.subr.mxu0 %v1371
  %1491 = vmatpush1.msra.mxu0 %v1370
  %1492 = vmatprep.subr.mxu0 %v1377
  %1493 = vmatpush1.msra.mxu0 %v1376
  %1494 = vmatprep.subr.mxu0 %v1383
  %1495 = vmatpush1.msra.mxu0 %v1382
  %1496 = vmatprep.subr.mxu0 %v1389
  %1497 = vmatpush1.msra.mxu0 %v1388
  %1498 = vmatprep.subr.mxu0 %v1395
  %1499 = vmatpush1.msra.mxu0 %v1394
  %1500 = vmatprep.subr.mxu0 %v1401
  %1501 = vmatpush1.msra.mxu0 %v1400
  %1502 = vmatprep.subr.mxu0 %v1407
  %1503 = vmatpush1.msra.mxu0 %v1406
  %1504 = vmatprep.subr.mxu0 %v1413
  %1505 = vmatpush1.msra.mxu0 %v1412
  %1506 = vmatprep.subr.mxu0 %v1419
  %1507 = vmatpush1.msra.mxu0 %v1418
  %1508 = vmatprep.subr.mxu0 %v1425
  %1509 = vmatpush1.msra.mxu0 %v1424
  %1510 = vmatprep.subr.mxu0 %v1431
  %1511 = vmatpush1.msra.mxu0 %v1430
  %1512 = vmatprep.subr.mxu0 %v1437
  %1513 = vmatpush1.msra.mxu0 %v1436
  %1514 = vmatprep.subr.mxu0 %v1443
  %1515 = vmatpush1.msra.mxu0 %v1442
  %1516 = vmatprep.subr.mxu0 %v1449
  %1517 = vmatpush1.msra.mxu0 %v1448
  %1518 = vmatprep.subr.mxu0 0.0
  %1519 = vmatpush1.msra.mxu0 0.0
  %1520 = vmatprep.subr.mxu0 0.0
  %1521 = vmatpush1.msra.mxu0 0.0
  %1522 = vmatprep.subr.mxu0 0.0
  %1523 = vmatpush1.msra.mxu0 0.0
  %1524 = vmatprep.subr.mxu0 0.0
  %1525 = vmatpush1.msra.mxu0 0.0
  %1526 = vmatprep.subr.mxu0 0.0
  %1527 = vmatpush1.msra.mxu0 0.0
  %1528 = vmatprep.subr.mxu0 0.0
  %1529 = vmatpush1.msra.mxu0 0.0
  %1530 = vmatprep.subr.mxu0 0.0
  %1531 = vmatpush1.msra.mxu0 0.0
  %1532 = vmatprep.subr.mxu0 0.0
  %1533 = vmatpush1.msra.mxu0 0.0
  %1534 = vmatprep.subr.mxu0 0.0
  %1535 = vmatpush1.msra.mxu0 0.0
  %1536 = vmatprep.subr.mxu0 0.0
  %1537 = vmatpush1.msra.mxu0 0.0
  %1538 = vmatprep.subr.mxu0 0.0
  %1539 = vmatpush1.msra.mxu0 0.0
  %1540 = vmatprep.subr.mxu0 0.0
  %1541 = vmatpush1.msra.mxu0 0.0
  %1542 = vmatprep.subr.mxu0 0.0
  %1543 = vmatpush1.msra.mxu0 0.0
  %1544 = vmatprep.subr.mxu0 0.0
  %1545 = vmatpush1.msra.mxu0 0.0
  %1546 = vmatprep.subr.mxu0 0.0
  %1547 = vmatpush1.msra.mxu0 0.0
  %1548 = vmatprep.subr.mxu0 0.0
  %1549 = vmatpush1.msra.mxu0 0.0
  %1550 = vmatprep.mubr.f32.mxu0 0.0
  %1551 = vmatmul.mubr.f32.gmra.mrb[0].mxu0 %v1332
  %v1552 = vpop.f32.mrb[0].mxu0
  %v1553 = vadd.f32 %v1459, %v1552
  %v1554 = vpop.f32.mrb[0].mxu0
  %v1555 = vadd.f32 %v1463, %v1554
  %1556 = vmatprep.mubr.f32.mxu0 0.0
  %1557 = vmatmul.mubr.f32.gmra.mrb[0].mxu0 %v1353
  %v1558 = vpop.f32.mrb[0].mxu0
  %v1559 = vpop.f32.mrb[0].mxu0
  %1560 = vdwg.mxu0
  %1561 = vmatprep.subr.mxu0 %v1361
  %1562 = vmatpush1.msra.mxu0 %v1360
  %1563 = vmatprep.subr.mxu0 %v1367
  %1564 = vmatpush1.msra.mxu0 %v1366
  %1565 = vmatprep.subr.mxu0 %v1373
  %1566 = vmatpush1.msra.mxu0 %v1372
  %1567 = vmatprep.subr.mxu0 %v1379
  %1568 = vmatpush1.msra.mxu0 %v1378
  %1569 = vmatprep.subr.mxu0 %v1385
  %1570 = vmatpush1.msra.mxu0 %v1384
  %1571 = vmatprep.subr.mxu0 %v1391
  %1572 = vmatpush1.msra.mxu0 %v1390
  %1573 = vmatprep.subr.mxu0 %v1397
  %1574 = vmatpush1.msra.mxu0 %v1396
  %1575 = vmatprep.subr.mxu0 %v1403
  %1576 = vmatpush1.msra.mxu0 %v1402
  %1577 = vmatprep.subr.mxu0 %v1409
  %1578 = vmatpush1.msra.mxu0 %v1408
  %1579 = vmatprep.subr.mxu0 %v1415
  %1580 = vmatpush1.msra.mxu0 %v1414
  %1581 = vmatprep.subr.mxu0 %v1421
  %1582 = vmatpush1.msra.mxu0 %v1420
  %1583 = vmatprep.subr.mxu0 %v1427
  %1584 = vmatpush1.msra.mxu0 %v1426
  %1585 = vmatprep.subr.mxu0 %v1433
  %1586 = vmatpush1.msra.mxu0 %v1432
  %1587 = vmatprep.subr.mxu0 %v1439
  %1588 = vmatpush1.msra.mxu0 %v1438
  %1589 = vmatprep.subr.mxu0 %v1445
  %1590 = vmatpush1.msra.mxu0 %v1444
  %1591 = vmatprep.subr.mxu0 %v1451
  %1592 = vmatpush1.msra.mxu0 %v1450
  %1593 = vmatprep.subr.mxu0 0.0
  %1594 = vmatpush1.msra.mxu0 0.0
  %1595 = vmatprep.subr.mxu0 0.0
  %1596 = vmatpush1.msra.mxu0 0.0
  %1597 = vmatprep.subr.mxu0 0.0
  %1598 = vmatpush1.msra.mxu0 0.0
  %1599 = vmatprep.subr.mxu0 0.0
  %1600 = vmatpush1.msra.mxu0 0.0
  %1601 = vmatprep.subr.mxu0 0.0
  %1602 = vmatpush1.msra.mxu0 0.0
  %1603 = vmatprep.subr.mxu0 0.0
  %1604 = vmatpush1.msra.mxu0 0.0
  %1605 = vmatprep.subr.mxu0 0.0
  %1606 = vmatpush1.msra.mxu0 0.0
  %1607 = vmatprep.subr.mxu0 0.0
  %1608 = vmatpush1.msra.mxu0 0.0
  %1609 = vmatprep.subr.mxu0 0.0
  %1610 = vmatpush1.msra.mxu0 0.0
  %1611 = vmatprep.subr.mxu0 0.0
  %1612 = vmatpush1.msra.mxu0 0.0
  %1613 = vmatprep.subr.mxu0 0.0
  %1614 = vmatpush1.msra.mxu0 0.0
  %1615 = vmatprep.subr.mxu0 0.0
  %1616 = vmatpush1.msra.mxu0 0.0
  %1617 = vmatprep.subr.mxu0 0.0
  %1618 = vmatpush1.msra.mxu0 0.0
  %1619 = vmatprep.subr.mxu0 0.0
  %1620 = vmatpush1.msra.mxu0 0.0
  %1621 = vmatprep.subr.mxu0 0.0
  %1622 = vmatpush1.msra.mxu0 0.0
  %1623 = vmatprep.subr.mxu0 0.0
  %1624 = vmatpush1.msra.mxu0 0.0
  %1625 = vmatprep.mubr.f32.mxu0 0.0
  %1626 = vmatmul.mubr.f32.gmra.mrb[0].mxu0 %v1332
  %v1627 = vpop.f32.mrb[0].mxu0
  %v1628 = vadd.f32 %v1467, %v1627
  %v1629 = vpop.f32.mrb[0].mxu0
  %1630 = vmatprep.mubr.f32.mxu0 0.0
  %1631 = vmatmul.mubr.f32.gmra.mrb[0].mxu0 %v1353
  %v1632 = vpop.f32.mrb[0].mxu0
  %v1633 = vpop.f32.mrb[0].mxu0
  %v1634 = vadd.f32 %v1471, %v1633
  %1635 = vdwg.mxu0
  %1636 = vmatprep.subr.mxu0 %v1363
  %1637 = vmatpush1.msra.mxu0 %v1362
  %1638 = vmatprep.subr.mxu0 %v1369
  %1639 = vmatpush1.msra.mxu0 %v1368
  %1640 = vmatprep.subr.mxu0 %v1375
  %1641 = vmatpush1.msra.mxu0 %v1374
  %1642 = vmatprep.subr.mxu0 %v1381
  %1643 = vmatpush1.msra.mxu0 %v1380
  %1644 = vmatprep.subr.mxu0 %v1387
  %1645 = vmatpush1.msra.mxu0 %v1386
  %1646 = vmatprep.subr.mxu0 %v1393
  %1647 = vmatpush1.msra.mxu0 %v1392
  %1648 = vmatprep.subr.mxu0 %v1399
  %1649 = vmatpush1.msra.mxu0 %v1398
  %1650 = vmatprep.subr.mxu0 %v1405
  %1651 = vmatpush1.msra.mxu0 %v1404
  %1652 = vmatprep.subr.mxu0 %v1411
  %1653 = vmatpush1.msra.mxu0 %v1410
  %1654 = vmatprep.subr.mxu0 %v1417
  %1655 = vmatpush1.msra.mxu0 %v1416
  %1656 = vmatprep.subr.mxu0 %v1423
  %1657 = vmatpush1.msra.mxu0 %v1422
  %1658 = vmatprep.subr.mxu0 %v1429
  %1659 = vmatpush1.msra.mxu0 %v1428
  %1660 = vmatprep.subr.mxu0 %v1435
  %1661 = vmatpush1.msra.mxu0 %v1434
  %1662 = vmatprep.subr.mxu0 %v1441
  %1663 = vmatpush1.msra.mxu0 %v1440
  %1664 = vmatprep.subr.mxu0 %v1447
  %1665 = vmatpush1.msra.mxu0 %v1446
  %1666 = vmatprep.subr.mxu0 %v1453
  %1667 = vmatpush1.msra.mxu0 %v1452
  %1668 = vmatprep.subr.mxu0 0.0
  %1669 = vmatpush1.msra.mxu0 0.0
  %1670 = vmatprep.subr.mxu0 0.0
  %1671 = vmatpush1.msra.mxu0 0.0
  %1672 = vmatprep.subr.mxu0 0.0
  %1673 = vmatpush1.msra.mxu0 0.0
  %1674 = vmatprep.subr.mxu0 0.0
  %1675 = vmatpush1.msra.mxu0 0.0
  %1676 = vmatprep.subr.mxu0 0.0
  %1677 = vmatpush1.msra.mxu0 0.0
  %1678 = vmatprep.subr.mxu0 0.0
  %1679 = vmatpush1.msra.mxu0 0.0
  %1680 = vmatprep.subr.mxu0 0.0
  %1681 = vmatpush1.msra.mxu0 0.0
  %1682 = vmatprep.subr.mxu0 0.0
  %1683 = vmatpush1.msra.mxu0 0.0
  %1684 = vmatprep.subr.mxu0 0.0
  %1685 = vmatpush1.msra.mxu0 0.0
  %1686 = vmatprep.subr.mxu0 0.0
  %1687 = vmatpush1.msra.mxu0 0.0
  %1688 = vmatprep.subr.mxu0 0.0
  %1689 = vmatpush1.msra.mxu0 0.0
  %1690 = vmatprep.subr.mxu0 0.0
  %1691 = vmatpush1.msra.mxu0 0.0
  %1692 = vmatprep.subr.mxu0 0.0
  %1693 = vmatpush1.msra.mxu0 0.0
  %1694 = vmatprep.subr.mxu0 0.0
  %1695 = vmatpush1.msra.mxu0 0.0
  %1696 = vmatprep.subr.mxu0 0.0
  %1697 = vmatpush1.msra.mxu0 0.0
  %1698 = vmatprep.subr.mxu0 0.0
  %1699 = vmatpush1.msra.mxu0 0.0
  %1700 = vmatprep.mubr.f32.mxu0 0.0
  %1701 = vmatmul.mubr.f32.gmra.mrb[0].mxu0 %v1332
  %v1702 = vpop.f32.mrb[0].mxu0
  %v1703 = vpop.f32.mrb[0].mxu0
  %1704 = vmatprep.mubr.f32.mxu0 0.0
  %1705 = vmatmul.mubr.f32.gmra.mrb[0].mxu0 %v1353
  %v1706 = vpop.f32.mrb[0].mxu0
  %v1707 = vadd.f32 %v1475, %v1706
  %v1708 = vpop.f32.mrb[0].mxu0
  %v1709 = vadd.f32 %v1479, %v1708
  %1710 = vdwg.mxu0
  %s1711 = scalar_lea.vmem [#allocation2], 96
  %v1712 = vld [vmem:[%s1711] sm:$0xff]
  %v1713 = vld [vmem:[%s1711 + $0x8] sm:$0xff]
  %v1714 = vld [vmem:[%s1711 + $0x10] sm:$0xff]
  %s1715 = scalar_lea.vmem [#allocation2], 240
  %v1716 = vld [vmem:[%s1715 + $0x18] sm:$0xff]
  %v1717 = vld [vmem:[%s1715 + $0x20] sm:$0xff]
  %v1718 = vld [vmem:[%s1715 + $0x28] sm:$0xff]
  %v1719 = vadd.f32 %v1712, %v1553
  %v1720 = vxor.u32 %v1719, 2147483648
  %v1721 = vmul.f32 %v1720, 1.442695
  %v1722 = vpow.pop %v1721
  %v1723 = vadd.f32 %v1722, 1.0
  %v1724 = vrcp.pop %v1723
  %v1725 = vmul.f32 1.0, %v1724
  %v1726 = vadd.f32 %v1713, %v1555
  %v1727 = vxor.u32 %v1726, 2147483648
  %v1728 = vmul.f32 %v1727, 1.442695
  %v1729 = vpow.pop %v1728
  %v1730 = vadd.f32 %v1729, 1.0
  %v1731 = vrcp.pop %v1730
  %v1732 = vmul.f32 1.0, %v1731
  %v1733 = vmul.f32 %v1725, %v1628
  %v1734 = vadd.f32 %v1714, %v1733
  %v1735 = vtanh.pop %v1734
  %v1736 = vsub.f32 1.0, %v1732
  %v1737 = vmul.f32 %v1736, %v1735
  %v1738 = vmul.f32 %v1732, %v1332
  %v1739 = vadd.f32 %v1737, %v1738
  %v1740 = vadd.f32 %v1716, %v1634
  %v1741 = vxor.u32 %v1740, 2147483648
  %v1742 = vmul.f32 %v1741, 1.442695
  %v1743 = vpow.pop %v1742
  %v1744 = vadd.f32 %v1743, 1.0
  %v1745 = vrcp.pop %v1744
  %v1746 = vmul.f32 1.0, %v1745
  %v1747 = vadd.f32 %v1717, %v1707
  %v1748 = vxor.u32 %v1747, 2147483648
  %v1749 = vmul.f32 %v1748, 1.442695
  %v1750 = vpow.pop %v1749
  %v1751 = vadd.f32 %v1750, 1.0
  %v1752 = vrcp.pop %v1751
  %v1753 = vmul.f32 1.0, %v1752
  %v1754 = vmul.f32 %v1746, %v1709
  %v1755 = vadd.f32 %v1718, %v1754
  %v1756 = vtanh.pop %v1755
  %v1757 = vsub.f32 1.0, %v1753
  %v1758 = vmul.f32 %v1757, %v1756
  %v1759 = vmul.f32 %v1753, %v1353
  %v1760 = vadd.f32 %v1758, %v1759
  %s1761 = scalar_lea.vmem %s5, 16
  %1762 = vst [vmem:[%s1761] sm:$0xff] %v1739
  %s1763 = scalar_lea.vmem %s6, 40
  %1764 = vst [vmem:[%s1763] sm:$0xff] %v1760
  %v1765 = vld [vmem:[%s2] sm:$0xff]
  %v1766 = vld [vmem:[%s2 + $0x8] sm:$0xff]
  %v1767 = vld [vmem:[%s2 + $0x10] sm:$0xff]
  %v1768 = vld [vmem:[%s2 + $0x18] sm:$0xff]
  %v1769 = vld [vmem:[%s2 + $0x20] sm:$0xff]
  %v1770 = vld [vmem:[%s2 + $0x28] sm:$0xff]
  %v1771 = vld [vmem:[%s2 + $0x30] sm:$0xff]
  %v1772 = vld [vmem:[%s2 + $0x38] sm:$0xff]
  %v1773 = vld [vmem:[%s2 + $0x40] sm:$0xff]
  %v1774 = vld [vmem:[%s2 + $0x48] sm:$0xff]
  %v1775 = vld [vmem:[%s2 + $0x50] sm:$0xff]
  %v1776 = vld [vmem:[%s2 + $0x58] sm:$0xff]
  %v1777 = vld [vmem:[%s2 + $0x60] sm:$0xff]
  %v1778 = vld [vmem:[%s2 + $0x68] sm:$0xff]
  %v1779 = vld [vmem:[%s2 + $0x70] sm:$0xff]
  %v1780 = vld [vmem:[%s2 + $0x78] sm:$0xff]
  %v1781 = vld [vmem:[%s2 + $0x80] sm:$0xff]
  %v1782 = vld [vmem:[%s2 + $0x88] sm:$0xff]
  %v1783 = vld [vmem:[%s2 + $0x90] sm:$0xff]
  %v1784 = vld [vmem:[%s2 + $0x98] sm:$0xff]
  %v1785 = vld [vmem:[%s2 + $0xa0] sm:$0xff]
  %v1786 = vld [vmem:[%s2 + $0xa8] sm:$0xff]
  %v1787 = vld [vmem:[%s2 + $0xb0] sm:$0xff]
  %v1788 = vld [vmem:[%s2 + $0xb8] sm:$0xff]
  %v1789 = vld [vmem:[%s2 + $0xc0] sm:$0xff]
  %v1790 = vld [vmem:[%s2 + $0xc8] sm:$0xff]
  %v1791 = vld [vmem:[%s2 + $0xd0] sm:$0xff]
  %v1792 = vld [vmem:[%s2 + $0xd8] sm:$0xff]
  %v1793 = vld [vmem:[%s2 + $0xe0] sm:$0xff]
  %v1794 = vld [vmem:[%s2 + $0xe8] sm:$0xff]
  %v1795 = vld [vmem:[%s2 + $0xf0] sm:$0xff]
  %v1796 = vld [vmem:[%s2 + $0xf8] sm:$0xff]
  %v1797 = vld [vmem:[%s2 + $0x100] sm:$0xff]
  %v1798 = vld [vmem:[%s2 + $0x108] sm:$0xff]
  %v1799 = vld [vmem:[%s2 + $0x110] sm:$0xff]
  %v1800 = vld [vmem:[%s2 + $0x118] sm:$0xff]
  %v1801 = vld [vmem:[%s2 + $0x120] sm:$0xff]
  %v1802 = vld [vmem:[%s2 + $0x128] sm:$0xff]
  %v1803 = vld [vmem:[%s2 + $0x130] sm:$0xff]
  %v1804 = vld [vmem:[%s2 + $0x138] sm:$0xff]
  %v1805 = vld [vmem:[%s2 + $0x140] sm:$0xff]
  %v1806 = vld [vmem:[%s2 + $0x148] sm:$0xff]
  %v1807 = vld [vmem:[%s2 + $0x150] sm:$0xff]
  %v1808 = vld [vmem:[%s2 + $0x158] sm:$0xff]
  %v1809 = vld [vmem:[%s2 + $0x160] sm:$0xff]
  %v1810 = vld [vmem:[%s2 + $0x168] sm:$0xff]
  %v1811 = vld [vmem:[%s2 + $0x170] sm:$0xff]
  %v1812 = vld [vmem:[%s2 + $0x178] sm:$0xff]
  %v1813 = vld [vmem:[%s2 + $0x180] sm:$0xff]
  %v1814 = vld [vmem:[%s2 + $0x188] sm:$0xff]
  %v1815 = vld [vmem:[%s2 + $0x190] sm:$0xff]
  %v1816 = vld [vmem:[%s2 + $0x198] sm:$0xff]
  %v1817 = vld [vmem:[%s2 + $0x1a0] sm:$0xff]
  %v1818 = vld [vmem:[%s2 + $0x1a8] sm:$0xff]
  %v1819 = vld [vmem:[%s2 + $0x1b0] sm:$0xff]
  %v1820 = vld [vmem:[%s2 + $0x1b8] sm:$0xff]
  %v1821 = vld [vmem:[%s2 + $0x1c0] sm:$0xff]
  %v1822 = vld [vmem:[%s2 + $0x1c8] sm:$0xff]
  %v1823 = vld [vmem:[%s2 + $0x1d0] sm:$0xff]
  %v1824 = vld [vmem:[%s2 + $0x1d8] sm:$0xff]
  %v1825 = vld [vmem:[%s2 + $0x1e0] sm:$0xff]
  %v1826 = vld [vmem:[%s2 + $0x1e8] sm:$0xff]
  %v1827 = vld [vmem:[%s2 + $0x1f0] sm:$0xff]
  %v1828 = vld [vmem:[%s2 + $0x1f8] sm:$0xff]
  %v1829 = vld [vmem:[%s2 + $0x200] sm:$0xff]
  %v1830 = vld [vmem:[%s2 + $0x208] sm:$0xff]
  %v1831 = vld [vmem:[%s2 + $0x210] sm:$0xff]
  %v1832 = vld [vmem:[%s2 + $0x218] sm:$0xff]
  %v1833 = vld [vmem:[%s2 + $0x220] sm:$0xff]
  %v1834 = vld [vmem:[%s2 + $0x228] sm:$0xff]
  %v1835 = vld [vmem:[%s2 + $0x230] sm:$0xff]
  %v1836 = vld [vmem:[%s2 + $0x238] sm:$0xff]
  %v1837 = vld [vmem:[%s2 + $0x240] sm:$0xff]
  %v1838 = vld [vmem:[%s2 + $0x248] sm:$0xff]
  %v1839 = vld [vmem:[%s2 + $0x250] sm:$0xff]
  %v1840 = vld [vmem:[%s2 + $0x258] sm:$0xff]
  %v1841 = vld [vmem:[%s2 + $0x260] sm:$0xff]
  %v1842 = vld [vmem:[%s2 + $0x268] sm:$0xff]
  %v1843 = vld [vmem:[%s2 + $0x270] sm:$0xff]
  %v1844 = vld [vmem:[%s2 + $0x278] sm:$0xff]
  %v1845 = vld [vmem:[%s2 + $0x280] sm:$0xff]
  %v1846 = vld [vmem:[%s2 + $0x288] sm:$0xff]
  %v1847 = vld [vmem:[%s2 + $0x290] sm:$0xff]
  %v1848 = vld [vmem:[%s2 + $0x298] sm:$0xff]
  %v1849 = vld [vmem:[%s2 + $0x2a0] sm:$0xff]
  %v1850 = vld [vmem:[%s2 + $0x2a8] sm:$0xff]
  %v1851 = vld [vmem:[%s2 + $0x2b0] sm:$0xff]
  %v1852 = vld [vmem:[%s2 + $0x2b8] sm:$0xff]
  %v1853 = vld [vmem:[%s2 + $0x2c0] sm:$0xff]
  %v1854 = vld [vmem:[%s2 + $0x2c8] sm:$0xff]
  %v1855 = vld [vmem:[%s2 + $0x2d0] sm:$0xff]
  %v1856 = vld [vmem:[%s2 + $0x2d8] sm:$0xff]
  %v1857 = vld [vmem:[%s2 + $0x2e0] sm:$0xff]
  %v1858 = vld [vmem:[%s2 + $0x2e8] sm:$0xff]
  %v1859 = vld [vmem:[%s2 + $0x2f0] sm:$0xff]
  %v1860 = vld [vmem:[%s2 + $0x2f8] sm:$0xff]
  %v1861 = vld [vmem:[%s4] sm:$0x3f]
  %v1863 = vlaneseq
  %v1864 = vshrl.u32 %v1863, 7
  %v1865 = vsub.s32 0, %v1864
  %v1866 = vrot.slane %v1861, %v1865
  %v1867 = vlaneseq
  %v1868 = vshrl.u32 %v1867, 7
  %v1869 = vsub.s32 1, %v1868
  %v1870 = vrot.slane %v1861, %v1869
  %v1871 = vlaneseq
  %v1872 = vshrl.u32 %v1871, 7
  %v1873 = vsub.s32 2, %v1872
  %v1874 = vrot.slane %v1861, %v1873
  %v1875 = vlaneseq
  %v1876 = vshrl.u32 %v1875, 7
  %v1877 = vsub.s32 3, %v1876
  %v1878 = vrot.slane %v1861, %v1877
  %v1879 = vlaneseq
  %v1880 = vshrl.u32 %v1879, 7
  %v1881 = vsub.s32 4, %v1880
  %v1882 = vrot.slane %v1861, %v1881
  %v1883 = vlaneseq
  %v1884 = vshrl.u32 %v1883, 7
  %v1885 = vsub.s32 5, %v1884
  %v1886 = vrot.slane %v1861, %v1885
  %1893 = vmatprep.subr.mxu0 %v1766
  %1894 = vmatpush1.msra.mxu0 %v1765
  %1895 = vmatprep.subr.mxu0 %v1772
  %1896 = vmatpush1.msra.mxu0 %v1771
  %1897 = vmatprep.subr.mxu0 %v1778
  %1898 = vmatpush1.msra.mxu0 %v1777
  %1899 = vmatprep.subr.mxu0 %v1784
  %1900 = vmatpush1.msra.mxu0 %v1783
  %1901 = vmatprep.subr.mxu0 %v1790
  %1902 = vmatpush1.msra.mxu0 %v1789
  %1903 = vmatprep.subr.mxu0 %v1796
  %1904 = vmatpush1.msra.mxu0 %v1795
  %1905 = vmatprep.subr.mxu0 %v1802
  %1906 = vmatpush1.msra.mxu0 %v1801
  %1907 = vmatprep.subr.mxu0 %v1808
  %1908 = vmatpush1.msra.mxu0 %v1807
  %1909 = vmatprep.subr.mxu0 %v1814
  %1910 = vmatpush1.msra.mxu0 %v1813
  %1911 = vmatprep.subr.mxu0 %v1820
  %1912 = vmatpush1.msra.mxu0 %v1819
  %1913 = vmatprep.subr.mxu0 %v1826
  %1914 = vmatpush1.msra.mxu0 %v1825
  %1915 = vmatprep.subr.mxu0 %v1832
  %1916 = vmatpush1.msra.mxu0 %v1831
  %1917 = vmatprep.subr.mxu0 %v1838
  %1918 = vmatpush1.msra.mxu0 %v1837
  %1919 = vmatprep.subr.mxu0 %v1844
  %1920 = vmatpush1.msra.mxu0 %v1843
  %1921 = vmatprep.subr.mxu0 %v1850
  %1922 = vmatpush1.msra.mxu0 %v1849
  %1923 = vmatprep.subr.mxu0 %v1856
  %1924 = vmatpush1.msra.mxu0 %v1855
  %1925 = vmatprep.subr.mxu0 0.0
  %1926 = vmatpush1.msra.mxu0 0.0
  %1927 = vmatprep.subr.mxu0 0.0
  %1928 = vmatpush1.msra.mxu0 0.0
  %1929 = vmatprep.subr.mxu0 0.0
  %1930 = vmatpush1.msra.mxu0 0.0
  %1931 = vmatprep.subr.mxu0 0.0
  %1932 = vmatpush1.msra.mxu0 0.0
  %1933 = vmatprep.subr.mxu0 0.0
  %1934 = vmatpush1.msra.mxu0 0.0
  %1935 = vmatprep.subr.mxu0 0.0
  %1936 = vmatpush1.msra.mxu0 0.0
  %1937 = vmatprep.subr.mxu0 0.0
  %1938 = vmatpush1.msra.mxu0 0.0
  %1939 = vmatprep.subr.mxu0 0.0
  %1940 = vmatpush1.msra.mxu0 0.0
  %1941 = vmatprep.subr.mxu0 0.0
  %1942 = vmatpush1.msra.mxu0 0.0
  %1943 = vmatprep.subr.mxu0 0.0
  %1944 = vmatpush1.msra.mxu0 0.0
  %1945 = vmatprep.subr.mxu0 0.0
  %1946 = vmatpush1.msra.mxu0 0.0
  %1947 = vmatprep.subr.mxu0 0.0
  %1948 = vmatpush1.msra.mxu0 0.0
  %1949 = vmatprep.subr.mxu0 0.0
  %1950 = vmatpush1.msra.mxu0 0.0
  %1951 = vmatprep.subr.mxu0 0.0
  %1952 = vmatpush1.msra.mxu0 0.0
  %1953 = vmatprep.subr.mxu0 0.0
  %1954 = vmatpush1.msra.mxu0 0.0
  %1955 = vmatprep.subr.mxu0 0.0
  %1956 = vmatpush1.msra.mxu0 0.0
  %1957 = vmatprep.mubr.f32.mxu0 0.0
  %1958 = vmatmul.mubr.f32.gmra.mrb[0].mxu0 %v1739
  %v1959 = vpop.f32.mrb[0].mxu0
  %v1960 = vadd.f32 %v1866, %v1959
  %v1961 = vpop.f32.mrb[0].mxu0
  %v1962 = vadd.f32 %v1870, %v1961
  %1963 = vmatprep.mubr.f32.mxu0 0.0
  %1964 = vmatmul.mubr.f32.gmra.mrb[0].mxu0 %v1760
  %v1965 = vpop.f32.mrb[0].mxu0
  %v1966 = vpop.f32.mrb[0].mxu0
  %1967 = vdwg.mxu0
  %1968 = vmatprep.subr.mxu0 %v1768
  %1969 = vmatpush1.msra.mxu0 %v1767
  %1970 = vmatprep.subr.mxu0 %v1774
  %1971 = vmatpush1.msra.mxu0 %v1773
  %1972 = vmatprep.subr.mxu0 %v1780
  %1973 = vmatpush1.msra.mxu0 %v1779
  %1974 = vmatprep.subr.mxu0 %v1786
  %1975 = vmatpush1.msra.mxu0 %v1785
  %1976 = vmatprep.subr.mxu0 %v1792
  %1977 = vmatpush1.msra.mxu0 %v1791
  %1978 = vmatprep.subr.mxu0 %v1798
  %1979 = vmatpush1.msra.mxu0 %v1797
  %1980 = vmatprep.subr.mxu0 %v1804
  %1981 = vmatpush1.msra.mxu0 %v1803
  %1982 = vmatprep.subr.mxu0 %v1810
  %1983 = vmatpush1.msra.mxu0 %v1809
  %1984 = vmatprep.subr.mxu0 %v1816
  %1985 = vmatpush1.msra.mxu0 %v1815
  %1986 = vmatprep.subr.mxu0 %v1822
  %1987 = vmatpush1.msra.mxu0 %v1821
  %1988 = vmatprep.subr.mxu0 %v1828
  %1989 = vmatpush1.msra.mxu0 %v1827
  %1990 = vmatprep.subr.mxu0 %v1834
  %1991 = vmatpush1.msra.mxu0 %v1833
  %1992 = vmatprep.subr.mxu0 %v1840
  %1993 = vmatpush1.msra.mxu0 %v1839
  %1994 = vmatprep.subr.mxu0 %v1846
  %1995 = vmatpush1.msra.mxu0 %v1845
  %1996 = vmatprep.subr.mxu0 %v1852
  %1997 = vmatpush1.msra.mxu0 %v1851
  %1998 = vmatprep.subr.mxu0 %v1858
  %1999 = vmatpush1.msra.mxu0 %v1857
  %2000 = vmatprep.subr.mxu0 0.0
  %2001 = vmatpush1.msra.mxu0 0.0
  %2002 = vmatprep.subr.mxu0 0.0
  %2003 = vmatpush1.msra.mxu0 0.0
  %2004 = vmatprep.subr.mxu0 0.0
  %2005 = vmatpush1.msra.mxu0 0.0
  %2006 = vmatprep.subr.mxu0 0.0
  %2007 = vmatpush1.msra.mxu0 0.0
  %2008 = vmatprep.subr.mxu0 0.0
  %2009 = vmatpush1.msra.mxu0 0.0
  %2010 = vmatprep.subr.mxu0 0.0
  %2011 = vmatpush1.msra.mxu0 0.0
  %2012 = vmatprep.subr.mxu0 0.0
  %2013 = vmatpush1.msra.mxu0 0.0
  %2014 = vmatprep.subr.mxu0 0.0
  %2015 = vmatpush1.msra.mxu0 0.0
  %2016 = vmatprep.subr.mxu0 0.0
  %2017 = vmatpush1.msra.mxu0 0.0
  %2018 = vmatprep.subr.mxu0 0.0
  %2019 = vmatpush1.msra.mxu0 0.0
  %2020 = vmatprep.subr.mxu0 0.0
  %2021 = vmatpush1.msra.mxu0 0.0
  %2022 = vmatprep.subr.mxu0 0.0
  %2023 = vmatpush1.msra.mxu0 0.0
  %2024 = vmatprep.subr.mxu0 0.0
  %2025 = vmatpush1.msra.mxu0 0.0
  %2026 = vmatprep.subr.mxu0 0.0
  %2027 = vmatpush1.msra.mxu0 0.0
  %2028 = vmatprep.subr.mxu0 0.0
  %2029 = vmatpush1.msra.mxu0 0.0
  %2030 = vmatprep.subr.mxu0 0.0
  %2031 = vmatpush1.msra.mxu0 0.0
  %2032 = vmatprep.mubr.f32.mxu0 0.0
  %2033 = vmatmul.mubr.f32.gmra.mrb[0].mxu0 %v1739
  %v2034 = vpop.f32.mrb[0].mxu0
  %v2035 = vadd.f32 %v1874, %v2034
  %v2036 = vpop.f32.mrb[0].mxu0
  %2037 = vmatprep.mubr.f32.mxu0 0.0
  %2038 = vmatmul.mubr.f32.gmra.mrb[0].mxu0 %v1760
  %v2039 = vpop.f32.mrb[0].mxu0
  %v2040 = vpop.f32.mrb[0].mxu0
  %v2041 = vadd.f32 %v1878, %v2040
  %2042 = vdwg.mxu0
  %2043 = vmatprep.subr.mxu0 %v1770
  %2044 = vmatpush1.msra.mxu0 %v1769
  %2045 = vmatprep.subr.mxu0 %v1776
  %2046 = vmatpush1.msra.mxu0 %v1775
  %2047 = vmatprep.subr.mxu0 %v1782
  %2048 = vmatpush1.msra.mxu0 %v1781
  %2049 = vmatprep.subr.mxu0 %v1788
  %2050 = vmatpush1.msra.mxu0 %v1787
  %2051 = vmatprep.subr.mxu0 %v1794
  %2052 = vmatpush1.msra.mxu0 %v1793
  %2053 = vmatprep.subr.mxu0 %v1800
  %2054 = vmatpush1.msra.mxu0 %v1799
  %2055 = vmatprep.subr.mxu0 %v1806
  %2056 = vmatpush1.msra.mxu0 %v1805
  %2057 = vmatprep.subr.mxu0 %v1812
  %2058 = vmatpush1.msra.mxu0 %v1811
  %2059 = vmatprep.subr.mxu0 %v1818
  %2060 = vmatpush1.msra.mxu0 %v1817
  %2061 = vmatprep.subr.mxu0 %v1824
  %2062 = vmatpush1.msra.mxu0 %v1823
  %2063 = vmatprep.subr.mxu0 %v1830
  %2064 = vmatpush1.msra.mxu0 %v1829
  %2065 = vmatprep.subr.mxu0 %v1836
  %2066 = vmatpush1.msra.mxu0 %v1835
  %2067 = vmatprep.subr.mxu0 %v1842
  %2068 = vmatpush1.msra.mxu0 %v1841
  %2069 = vmatprep.subr.mxu0 %v1848
  %2070 = vmatpush1.msra.mxu0 %v1847
  %2071 = vmatprep.subr.mxu0 %v1854
  %2072 = vmatpush1.msra.mxu0 %v1853
  %2073 = vmatprep.subr.mxu0 %v1860
  %2074 = vmatpush1.msra.mxu0 %v1859
  %2075 = vmatprep.subr.mxu0 0.0
  %2076 = vmatpush1.msra.mxu0 0.0
  %2077 = vmatprep.subr.mxu0 0.0
  %2078 = vmatpush1.msra.mxu0 0.0
  %2079 = vmatprep.subr.mxu0 0.0
  %2080 = vmatpush1.msra.mxu0 0.0
  %2081 = vmatprep.subr.mxu0 0.0
  %2082 = vmatpush1.msra.mxu0 0.0
  %2083 = vmatprep.subr.mxu0 0.0
  %2084 = vmatpush1.msra.mxu0 0.0
  %2085 = vmatprep.subr.mxu0 0.0
  %2086 = vmatpush1.msra.mxu0 0.0
  %2087 = vmatprep.subr.mxu0 0.0
  %2088 = vmatpush1.msra.mxu0 0.0
  %2089 = vmatprep.subr.mxu0 0.0
  %2090 = vmatpush1.msra.mxu0 0.0
  %2091 = vmatprep.subr.mxu0 0.0
  %2092 = vmatpush1.msra.mxu0 0.0
  %2093 = vmatprep.subr.mxu0 0.0
  %2094 = vmatpush1.msra.mxu0 0.0
  %2095 = vmatprep.subr.mxu0 0.0
  %2096 = vmatpush1.msra.mxu0 0.0
  %2097 = vmatprep.subr.mxu0 0.0
  %2098 = vmatpush1.msra.mxu0 0.0
  %2099 = vmatprep.subr.mxu0 0.0
  %2100 = vmatpush1.msra.mxu0 0.0
  %2101 = vmatprep.subr.mxu0 0.0
  %2102 = vmatpush1.msra.mxu0 0.0
  %2103 = vmatprep.subr.mxu0 0.0
  %2104 = vmatpush1.msra.mxu0 0.0
  %2105 = vmatprep.subr.mxu0 0.0
  %2106 = vmatpush1.msra.mxu0 0.0
  %2107 = vmatprep.mubr.f32.mxu0 0.0
  %2108 = vmatmul.mubr.f32.gmra.mrb[0].mxu0 %v1739
  %v2109 = vpop.f32.mrb[0].mxu0
  %v2110 = vpop.f32.mrb[0].mxu0
  %2111 = vmatprep.mubr.f32.mxu0 0.0
  %2112 = vmatmul.mubr.f32.gmra.mrb[0].mxu0 %v1760
  %v2113 = vpop.f32.mrb[0].mxu0
  %v2114 = vadd.f32 %v1882, %v2113
  %v2115 = vpop.f32.mrb[0].mxu0
  %v2116 = vadd.f32 %v1886, %v2115
  %2117 = vdwg.mxu0
  %s2118 = scalar_lea.vmem [#allocation2], 144
  %v2119 = vld [vmem:[%s2118] sm:$0xff]
  %v2120 = vld [vmem:[%s2118 + $0x8] sm:$0xff]
  %v2121 = vld [vmem:[%s2118 + $0x10] sm:$0xff]
  %s2122 = scalar_lea.vmem [#allocation2], 192
  %v2123 = vld [vmem:[%s2122 + $0x18] sm:$0xff]
  %v2124 = vld [vmem:[%s2122 + $0x20] sm:$0xff]
  %v2125 = vld [vmem:[%s2122 + $0x28] sm:$0xff]
  %v2126 = vadd.f32 %v2119, %v1960
  %v2127 = vxor.u32 %v2126, 2147483648
  %v2128 = vmul.f32 %v2127, 1.442695
  %v2129 = vpow.pop %v2128
  %v2130 = vadd.f32 %v2129, 1.0
  %v2131 = vrcp.pop %v2130
  %v2132 = vmul.f32 1.0, %v2131
  %v2133 = vadd.f32 %v2120, %v1962
  %v2134 = vxor.u32 %v2133, 2147483648
  %v2135 = vmul.f32 %v2134, 1.442695
  %v2136 = vpow.pop %v2135
  %v2137 = vadd.f32 %v2136, 1.0
  %v2138 = vrcp.pop %v2137
  %v2139 = vmul.f32 1.0, %v2138
  %v2140 = vmul.f32 %v2132, %v2035
  %v2141 = vadd.f32 %v2121, %v2140
  %v2142 = vtanh.pop %v2141
  %v2143 = vsub.f32 1.0, %v2139
  %v2144 = vmul.f32 %v2143, %v2142
  %v2145 = vmul.f32 %v2139, %v1739
  %v2146 = vadd.f32 %v2144, %v2145
  %v2147 = vadd.f32 %v2123, %v2041
  %v2148 = vxor.u32 %v2147, 2147483648
  %v2149 = vmul.f32 %v2148, 1.442695
  %v2150 = vpow.pop %v2149
  %v2151 = vadd.f32 %v2150, 1.0
  %v2152 = vrcp.pop %v2151
  %v2153 = vmul.f32 1.0, %v2152
  %v2154 = vadd.f32 %v2124, %v2114
  %v2155 = vxor.u32 %v2154, 2147483648
  %v2156 = vmul.f32 %v2155, 1.442695
  %v2157 = vpow.pop %v2156
  %v2158 = vadd.f32 %v2157, 1.0
  %v2159 = vrcp.pop %v2158
  %v2160 = vmul.f32 1.0, %v2159
  %v2161 = vmul.f32 %v2153, %v2116
  %v2162 = vadd.f32 %v2125, %v2161
  %v2163 = vtanh.pop %v2162
  %v2164 = vsub.f32 1.0, %v2160
  %v2165 = vmul.f32 %v2164, %v2163
  %v2166 = vmul.f32 %v2160, %v1760
  %v2167 = vadd.f32 %v2165, %v2166
  %s2168 = scalar_lea.vmem %s5, 24
  %2169 = vst [vmem:[%s2168] sm:$0xff] %v2146
  %s2170 = scalar_lea.vmem %s6, 32
  %2171 = vst [vmem:[%s2170] sm:$0xff] %v2167
  %v2172 = vld [vmem:[%s2] sm:$0xff]
  %v2173 = vld [vmem:[%s2 + $0x8] sm:$0xff]
  %v2174 = vld [vmem:[%s2 + $0x10] sm:$0xff]
  %v2175 = vld [vmem:[%s2 + $0x18] sm:$0xff]
  %v2176 = vld [vmem:[%s2 + $0x20] sm:$0xff]
  %v2177 = vld [vmem:[%s2 + $0x28] sm:$0xff]
  %v2178 = vld [vmem:[%s2 + $0x30] sm:$0xff]
  %v2179 = vld [vmem:[%s2 + $0x38] sm:$0xff]
  %v2180 = vld [vmem:[%s2 + $0x40] sm:$0xff]
  %v2181 = vld [vmem:[%s2 + $0x48] sm:$0xff]
  %v2182 = vld [vmem:[%s2 + $0x50] sm:$0xff]
  %v2183 = vld [vmem:[%s2 + $0x58] sm:$0xff]
  %v2184 = vld [vmem:[%s2 + $0x60] sm:$0xff]
  %v2185 = vld [vmem:[%s2 + $0x68] sm:$0xff]
  %v2186 = vld [vmem:[%s2 + $0x70] sm:$0xff]
  %v2187 = vld [vmem:[%s2 + $0x78] sm:$0xff]
  %v2188 = vld [vmem:[%s2 + $0x80] sm:$0xff]
  %v2189 = vld [vmem:[%s2 + $0x88] sm:$0xff]
  %v2190 = vld [vmem:[%s2 + $0x90] sm:$0xff]
  %v2191 = vld [vmem:[%s2 + $0x98] sm:$0xff]
  %v2192 = vld [vmem:[%s2 + $0xa0] sm:$0xff]
  %v2193 = vld [vmem:[%s2 + $0xa8] sm:$0xff]
  %v2194 = vld [vmem:[%s2 + $0xb0] sm:$0xff]
  %v2195 = vld [vmem:[%s2 + $0xb8] sm:$0xff]
  %v2196 = vld [vmem:[%s2 + $0xc0] sm:$0xff]
  %v2197 = vld [vmem:[%s2 + $0xc8] sm:$0xff]
  %v2198 = vld [vmem:[%s2 + $0xd0] sm:$0xff]
  %v2199 = vld [vmem:[%s2 + $0xd8] sm:$0xff]
  %v2200 = vld [vmem:[%s2 + $0xe0] sm:$0xff]
  %v2201 = vld [vmem:[%s2 + $0xe8] sm:$0xff]
  %v2202 = vld [vmem:[%s2 + $0xf0] sm:$0xff]
  %v2203 = vld [vmem:[%s2 + $0xf8] sm:$0xff]
  %v2204 = vld [vmem:[%s2 + $0x100] sm:$0xff]
  %v2205 = vld [vmem:[%s2 + $0x108] sm:$0xff]
  %v2206 = vld [vmem:[%s2 + $0x110] sm:$0xff]
  %v2207 = vld [vmem:[%s2 + $0x118] sm:$0xff]
  %v2208 = vld [vmem:[%s2 + $0x120] sm:$0xff]
  %v2209 = vld [vmem:[%s2 + $0x128] sm:$0xff]
  %v2210 = vld [vmem:[%s2 + $0x130] sm:$0xff]
  %v2211 = vld [vmem:[%s2 + $0x138] sm:$0xff]
  %v2212 = vld [vmem:[%s2 + $0x140] sm:$0xff]
  %v2213 = vld [vmem:[%s2 + $0x148] sm:$0xff]
  %v2214 = vld [vmem:[%s2 + $0x150] sm:$0xff]
  %v2215 = vld [vmem:[%s2 + $0x158] sm:$0xff]
  %v2216 = vld [vmem:[%s2 + $0x160] sm:$0xff]
  %v2217 = vld [vmem:[%s2 + $0x168] sm:$0xff]
  %v2218 = vld [vmem:[%s2 + $0x170] sm:$0xff]
  %v2219 = vld [vmem:[%s2 + $0x178] sm:$0xff]
  %v2220 = vld [vmem:[%s2 + $0x180] sm:$0xff]
  %v2221 = vld [vmem:[%s2 + $0x188] sm:$0xff]
  %v2222 = vld [vmem:[%s2 + $0x190] sm:$0xff]
  %v2223 = vld [vmem:[%s2 + $0x198] sm:$0xff]
  %v2224 = vld [vmem:[%s2 + $0x1a0] sm:$0xff]
  %v2225 = vld [vmem:[%s2 + $0x1a8] sm:$0xff]
  %v2226 = vld [vmem:[%s2 + $0x1b0] sm:$0xff]
  %v2227 = vld [vmem:[%s2 + $0x1b8] sm:$0xff]
  %v2228 = vld [vmem:[%s2 + $0x1c0] sm:$0xff]
  %v2229 = vld [vmem:[%s2 + $0x1c8] sm:$0xff]
  %v2230 = vld [vmem:[%s2 + $0x1d0] sm:$0xff]
  %v2231 = vld [vmem:[%s2 + $0x1d8] sm:$0xff]
  %v2232 = vld [vmem:[%s2 + $0x1e0] sm:$0xff]
  %v2233 = vld [vmem:[%s2 + $0x1e8] sm:$0xff]
  %v2234 = vld [vmem:[%s2 + $0x1f0] sm:$0xff]
  %v2235 = vld [vmem:[%s2 + $0x1f8] sm:$0xff]
  %v2236 = vld [vmem:[%s2 + $0x200] sm:$0xff]
  %v2237 = vld [vmem:[%s2 + $0x208] sm:$0xff]
  %v2238 = vld [vmem:[%s2 + $0x210] sm:$0xff]
  %v2239 = vld [vmem:[%s2 + $0x218] sm:$0xff]
  %v2240 = vld [vmem:[%s2 + $0x220] sm:$0xff]
  %v2241 = vld [vmem:[%s2 + $0x228] sm:$0xff]
  %v2242 = vld [vmem:[%s2 + $0x230] sm:$0xff]
  %v2243 = vld [vmem:[%s2 + $0x238] sm:$0xff]
  %v2244 = vld [vmem:[%s2 + $0x240] sm:$0xff]
  %v2245 = vld [vmem:[%s2 + $0x248] sm:$0xff]
  %v2246 = vld [vmem:[%s2 + $0x250] sm:$0xff]
  %v2247 = vld [vmem:[%s2 + $0x258] sm:$0xff]
  %v2248 = vld [vmem:[%s2 + $0x260] sm:$0xff]
  %v2249 = vld [vmem:[%s2 + $0x268] sm:$0xff]
  %v2250 = vld [vmem:[%s2 + $0x270] sm:$0xff]
  %v2251 = vld [vmem:[%s2 + $0x278] sm:$0xff]
  %v2252 = vld [vmem:[%s2 + $0x280] sm:$0xff]
  %v2253 = vld [vmem:[%s2 + $0x288] sm:$0xff]
  %v2254 = vld [vmem:[%s2 + $0x290] sm:$0xff]
  %v2255 = vld [vmem:[%s2 + $0x298] sm:$0xff]
  %v2256 = vld [vmem:[%s2 + $0x2a0] sm:$0xff]
  %v2257 = vld [vmem:[%s2 + $0x2a8] sm:$0xff]
  %v2258 = vld [vmem:[%s2 + $0x2b0] sm:$0xff]
  %v2259 = vld [vmem:[%s2 + $0x2b8] sm:$0xff]
  %v2260 = vld [vmem:[%s2 + $0x2c0] sm:$0xff]
  %v2261 = vld [vmem:[%s2 + $0x2c8] sm:$0xff]
  %v2262 = vld [vmem:[%s2 + $0x2d0] sm:$0xff]
  %v2263 = vld [vmem:[%s2 + $0x2d8] sm:$0xff]
  %v2264 = vld [vmem:[%s2 + $0x2e0] sm:$0xff]
  %v2265 = vld [vmem:[%s2 + $0x2e8] sm:$0xff]
  %v2266 = vld [vmem:[%s2 + $0x2f0] sm:$0xff]
  %v2267 = vld [vmem:[%s2 + $0x2f8] sm:$0xff]
  %v2268 = vld [vmem:[%s4] sm:$0x3f]
  %v2270 = vlaneseq
  %v2271 = vshrl.u32 %v2270, 7
  %v2272 = vsub.s32 0, %v2271
  %v2273 = vrot.slane %v2268, %v2272
  %v2274 = vlaneseq
  %v2275 = vshrl.u32 %v2274, 7
  %v2276 = vsub.s32 1, %v2275
  %v2277 = vrot.slane %v2268, %v2276
  %v2278 = vlaneseq
  %v2279 = vshrl.u32 %v2278, 7
  %v2280 = vsub.s32 2, %v2279
  %v2281 = vrot.slane %v2268, %v2280
  %v2282 = vlaneseq
  %v2283 = vshrl.u32 %v2282, 7
  %v2284 = vsub.s32 3, %v2283
  %v2285 = vrot.slane %v2268, %v2284
  %v2286 = vlaneseq
  %v2287 = vshrl.u32 %v2286, 7
  %v2288 = vsub.s32 4, %v2287
  %v2289 = vrot.slane %v2268, %v2288
  %v2290 = vlaneseq
  %v2291 = vshrl.u32 %v2290, 7
  %v2292 = vsub.s32 5, %v2291
  %v2293 = vrot.slane %v2268, %v2292
  %2300 = vmatprep.subr.mxu0 %v2173
  %2301 = vmatpush1.msra.mxu0 %v2172
  %2302 = vmatprep.subr.mxu0 %v2179
  %2303 = vmatpush1.msra.mxu0 %v2178
  %2304 = vmatprep.subr.mxu0 %v2185
  %2305 = vmatpush1.msra.mxu0 %v2184
  %2306 = vmatprep.subr.mxu0 %v2191
  %2307 = vmatpush1.msra.mxu0 %v2190
  %2308 = vmatprep.subr.mxu0 %v2197
  %2309 = vmatpush1.msra.mxu0 %v2196
  %2310 = vmatprep.subr.mxu0 %v2203
  %2311 = vmatpush1.msra.mxu0 %v2202
  %2312 = vmatprep.subr.mxu0 %v2209
  %2313 = vmatpush1.msra.mxu0 %v2208
  %2314 = vmatprep.subr.mxu0 %v2215
  %2315 = vmatpush1.msra.mxu0 %v2214
  %2316 = vmatprep.subr.mxu0 %v2221
  %2317 = vmatpush1.msra.mxu0 %v2220
  %2318 = vmatprep.subr.mxu0 %v2227
  %2319 = vmatpush1.msra.mxu0 %v2226
  %2320 = vmatprep.subr.mxu0 %v2233
  %2321 = vmatpush1.msra.mxu0 %v2232
  %2322 = vmatprep.subr.mxu0 %v2239
  %2323 = vmatpush1.msra.mxu0 %v2238
  %2324 = vmatprep.subr.mxu0 %v2245
  %2325 = vmatpush1.msra.mxu0 %v2244
  %2326 = vmatprep.subr.mxu0 %v2251
  %2327 = vmatpush1.msra.mxu0 %v2250
  %2328 = vmatprep.subr.mxu0 %v2257
  %2329 = vmatpush1.msra.mxu0 %v2256
  %2330 = vmatprep.subr.mxu0 %v2263
  %2331 = vmatpush1.msra.mxu0 %v2262
  %2332 = vmatprep.subr.mxu0 0.0
  %2333 = vmatpush1.msra.mxu0 0.0
  %2334 = vmatprep.subr.mxu0 0.0
  %2335 = vmatpush1.msra.mxu0 0.0
  %2336 = vmatprep.subr.mxu0 0.0
  %2337 = vmatpush1.msra.mxu0 0.0
  %2338 = vmatprep.subr.mxu0 0.0
  %2339 = vmatpush1.msra.mxu0 0.0
  %2340 = vmatprep.subr.mxu0 0.0
  %2341 = vmatpush1.msra.mxu0 0.0
  %2342 = vmatprep.subr.mxu0 0.0
  %2343 = vmatpush1.msra.mxu0 0.0
  %2344 = vmatprep.subr.mxu0 0.0
  %2345 = vmatpush1.msra.mxu0 0.0
  %2346 = vmatprep.subr.mxu0 0.0
  %2347 = vmatpush1.msra.mxu0 0.0
  %2348 = vmatprep.subr.mxu0 0.0
  %2349 = vmatpush1.msra.mxu0 0.0
  %2350 = vmatprep.subr.mxu0 0.0
  %2351 = vmatpush1.msra.mxu0 0.0
  %2352 = vmatprep.subr.mxu0 0.0
  %2353 = vmatpush1.msra.mxu0 0.0
  %2354 = vmatprep.subr.mxu0 0.0
  %2355 = vmatpush1.msra.mxu0 0.0
  %2356 = vmatprep.subr.mxu0 0.0
  %2357 = vmatpush1.msra.mxu0 0.0
  %2358 = vmatprep.subr.mxu0 0.0
  %2359 = vmatpush1.msra.mxu0 0.0
  %2360 = vmatprep.subr.mxu0 0.0
  %2361 = vmatpush1.msra.mxu0 0.0
  %2362 = vmatprep.subr.mxu0 0.0
  %2363 = vmatpush1.msra.mxu0 0.0
  %2364 = vmatprep.mubr.f32.mxu0 0.0
  %2365 = vmatmul.mubr.f32.gmra.mrb[0].mxu0 %v2146
  %v2366 = vpop.f32.mrb[0].mxu0
  %v2367 = vadd.f32 %v2273, %v2366
  %v2368 = vpop.f32.mrb[0].mxu0
  %v2369 = vadd.f32 %v2277, %v2368
  %2370 = vmatprep.mubr.f32.mxu0 0.0
  %2371 = vmatmul.mubr.f32.gmra.mrb[0].mxu0 %v2167
  %v2372 = vpop.f32.mrb[0].mxu0
  %v2373 = vpop.f32.mrb[0].mxu0
  %2374 = vdwg.mxu0
  %2375 = vmatprep.subr.mxu0 %v2175
  %2376 = vmatpush1.msra.mxu0 %v2174
  %2377 = vmatprep.subr.mxu0 %v2181
  %2378 = vmatpush1.msra.mxu0 %v2180
  %2379 = vmatprep.subr.mxu0 %v2187
  %2380 = vmatpush1.msra.mxu0 %v2186
  %2381 = vmatprep.subr.mxu0 %v2193
  %2382 = vmatpush1.msra.mxu0 %v2192
  %2383 = vmatprep.subr.mxu0 %v2199
  %2384 = vmatpush1.msra.mxu0 %v2198
  %2385 = vmatprep.subr.mxu0 %v2205
  %2386 = vmatpush1.msra.mxu0 %v2204
  %2387 = vmatprep.subr.mxu0 %v2211
  %2388 = vmatpush1.msra.mxu0 %v2210
  %2389 = vmatprep.subr.mxu0 %v2217
  %2390 = vmatpush1.msra.mxu0 %v2216
  %2391 = vmatprep.subr.mxu0 %v2223
  %2392 = vmatpush1.msra.mxu0 %v2222
  %2393 = vmatprep.subr.mxu0 %v2229
  %2394 = vmatpush1.msra.mxu0 %v2228
  %2395 = vmatprep.subr.mxu0 %v2235
  %2396 = vmatpush1.msra.mxu0 %v2234
  %2397 = vmatprep.subr.mxu0 %v2241
  %2398 = vmatpush1.msra.mxu0 %v2240
  %2399 = vmatprep.subr.mxu0 %v2247
  %2400 = vmatpush1.msra.mxu0 %v2246
  %2401 = vmatprep.subr.mxu0 %v2253
  %2402 = vmatpush1.msra.mxu0 %v2252
  %2403 = vmatprep.subr.mxu0 %v2259
  %2404 = vmatpush1.msra.mxu0 %v2258
  %2405 = vmatprep.subr.mxu0 %v2265
  %2406 = vmatpush1.msra.mxu0 %v2264
  %2407 = vmatprep.subr.mxu0 0.0
  %2408 = vmatpush1.msra.mxu0 0.0
  %2409 = vmatprep.subr.mxu0 0.0
  %2410 = vmatpush1.msra.mxu0 0.0
  %2411 = vmatprep.subr.mxu0 0.0
  %2412 = vmatpush1.msra.mxu0 0.0
  %2413 = vmatprep.subr.mxu0 0.0
  %2414 = vmatpush1.msra.mxu0 0.0
  %2415 = vmatprep.subr.mxu0 0.0
  %2416 = vmatpush1.msra.mxu0 0.0
  %2417 = vmatprep.subr.mxu0 0.0
  %2418 = vmatpush1.msra.mxu0 0.0
  %2419 = vmatprep.subr.mxu0 0.0
  %2420 = vmatpush1.msra.mxu0 0.0
  %2421 = vmatprep.subr.mxu0 0.0
  %2422 = vmatpush1.msra.mxu0 0.0
  %2423 = vmatprep.subr.mxu0 0.0
  %2424 = vmatpush1.msra.mxu0 0.0
  %2425 = vmatprep.subr.mxu0 0.0
  %2426 = vmatpush1.msra.mxu0 0.0
  %2427 = vmatprep.subr.mxu0 0.0
  %2428 = vmatpush1.msra.mxu0 0.0
  %2429 = vmatprep.subr.mxu0 0.0
  %2430 = vmatpush1.msra.mxu0 0.0
  %2431 = vmatprep.subr.mxu0 0.0
  %2432 = vmatpush1.msra.mxu0 0.0
  %2433 = vmatprep.subr.mxu0 0.0
  %2434 = vmatpush1.msra.mxu0 0.0
  %2435 = vmatprep.subr.mxu0 0.0
  %2436 = vmatpush1.msra.mxu0 0.0
  %2437 = vmatprep.subr.mxu0 0.0
  %2438 = vmatpush1.msra.mxu0 0.0
  %2439 = vmatprep.mubr.f32.mxu0 0.0
  %2440 = vmatmul.mubr.f32.gmra.mrb[0].mxu0 %v2146
  %v2441 = vpop.f32.mrb[0].mxu0
  %v2442 = vadd.f32 %v2281, %v2441
  %v2443 = vpop.f32.mrb[0].mxu0
  %2444 = vmatprep.mubr.f32.mxu0 0.0
  %2445 = vmatmul.mubr.f32.gmra.mrb[0].mxu0 %v2167
  %v2446 = vpop.f32.mrb[0].mxu0
  %v2447 = vpop.f32.mrb[0].mxu0
  %v2448 = vadd.f32 %v2285, %v2447
  %2449 = vdwg.mxu0
  %2450 = vmatprep.subr.mxu0 %v2177
  %2451 = vmatpush1.msra.mxu0 %v2176
  %2452 = vmatprep.subr.mxu0 %v2183
  %2453 = vmatpush1.msra.mxu0 %v2182
  %2454 = vmatprep.subr.mxu0 %v2189
  %2455 = vmatpush1.msra.mxu0 %v2188
  %2456 = vmatprep.subr.mxu0 %v2195
  %2457 = vmatpush1.msra.mxu0 %v2194
  %2458 = vmatprep.subr.mxu0 %v2201
  %2459 = vmatpush1.msra.mxu0 %v2200
  %2460 = vmatprep.subr.mxu0 %v2207
  %2461 = vmatpush1.msra.mxu0 %v2206
  %2462 = vmatprep.subr.mxu0 %v2213
  %2463 = vmatpush1.msra.mxu0 %v2212
  %2464 = vmatprep.subr.mxu0 %v2219
  %2465 = vmatpush1.msra.mxu0 %v2218
  %2466 = vmatprep.subr.mxu0 %v2225
  %2467 = vmatpush1.msra.mxu0 %v2224
  %2468 = vmatprep.subr.mxu0 %v2231
  %2469 = vmatpush1.msra.mxu0 %v2230
  %2470 = vmatprep.subr.mxu0 %v2237
  %2471 = vmatpush1.msra.mxu0 %v2236
  %2472 = vmatprep.subr.mxu0 %v2243
  %2473 = vmatpush1.msra.mxu0 %v2242
  %2474 = vmatprep.subr.mxu0 %v2249
  %2475 = vmatpush1.msra.mxu0 %v2248
  %2476 = vmatprep.subr.mxu0 %v2255
  %2477 = vmatpush1.msra.mxu0 %v2254
  %2478 = vmatprep.subr.mxu0 %v2261
  %2479 = vmatpush1.msra.mxu0 %v2260
  %2480 = vmatprep.subr.mxu0 %v2267
  %2481 = vmatpush1.msra.mxu0 %v2266
  %2482 = vmatprep.subr.mxu0 0.0
  %2483 = vmatpush1.msra.mxu0 0.0
  %2484 = vmatprep.subr.mxu0 0.0
  %2485 = vmatpush1.msra.mxu0 0.0
  %2486 = vmatprep.subr.mxu0 0.0
  %2487 = vmatpush1.msra.mxu0 0.0
  %2488 = vmatprep.subr.mxu0 0.0
  %2489 = vmatpush1.msra.mxu0 0.0
  %2490 = vmatprep.subr.mxu0 0.0
  %2491 = vmatpush1.msra.mxu0 0.0
  %2492 = vmatprep.subr.mxu0 0.0
  %2493 = vmatpush1.msra.mxu0 0.0
  %2494 = vmatprep.subr.mxu0 0.0
  %2495 = vmatpush1.msra.mxu0 0.0
  %2496 = vmatprep.subr.mxu0 0.0
  %2497 = vmatpush1.msra.mxu0 0.0
  %2498 = vmatprep.subr.mxu0 0.0
  %2499 = vmatpush1.msra.mxu0 0.0
  %2500 = vmatprep.subr.mxu0 0.0
  %2501 = vmatpush1.msra.mxu0 0.0
  %2502 = vmatprep.subr.mxu0 0.0
  %2503 = vmatpush1.msra.mxu0 0.0
  %2504 = vmatprep.subr.mxu0 0.0
  %2505 = vmatpush1.msra.mxu0 0.0
  %2506 = vmatprep.subr.mxu0 0.0
  %2507 = vmatpush1.msra.mxu0 0.0
  %2508 = vmatprep.subr.mxu0 0.0
  %2509 = vmatpush1.msra.mxu0 0.0
  %2510 = vmatprep.subr.mxu0 0.0
  %2511 = vmatpush1.msra.mxu0 0.0
  %2512 = vmatprep.subr.mxu0 0.0
  %2513 = vmatpush1.msra.mxu0 0.0
  %2514 = vmatprep.mubr.f32.mxu0 0.0
  %2515 = vmatmul.mubr.f32.gmra.mrb[0].mxu0 %v2146
  %v2516 = vpop.f32.mrb[0].mxu0
  %v2517 = vpop.f32.mrb[0].mxu0
  %2518 = vmatprep.mubr.f32.mxu0 0.0
  %2519 = vmatmul.mubr.f32.gmra.mrb[0].mxu0 %v2167
  %v2520 = vpop.f32.mrb[0].mxu0
  %v2521 = vadd.f32 %v2289, %v2520
  %v2522 = vpop.f32.mrb[0].mxu0
  %v2523 = vadd.f32 %v2293, %v2522
  %2524 = vdwg.mxu0
  %v2525 = vld [vmem:[%s2122] sm:$0xff]
  %v2526 = vld [vmem:[%s2122 + $0x8] sm:$0xff]
  %v2527 = vld [vmem:[%s2122 + $0x10] sm:$0xff]
  %v2528 = vld [vmem:[%s2118 + $0x18] sm:$0xff]
  %v2529 = vld [vmem:[%s2118 + $0x20] sm:$0xff]
  %v2530 = vld [vmem:[%s2118 + $0x28] sm:$0xff]
  %v2531 = vadd.f32 %v2525, %v2367
  %v2532 = vxor.u32 %v2531, 2147483648
  %v2533 = vmul.f32 %v2532, 1.442695
  %v2534 = vpow.pop %v2533
  %v2535 = vadd.f32 %v2534, 1.0
  %v2536 = vrcp.pop %v2535
  %v2537 = vmul.f32 1.0, %v2536
  %v2538 = vadd.f32 %v2526, %v2369
  %v2539 = vxor.u32 %v2538, 2147483648
  %v2540 = vmul.f32 %v2539, 1.442695
  %v2541 = vpow.pop %v2540
  %v2542 = vadd.f32 %v2541, 1.0
  %v2543 = vrcp.pop %v2542
  %v2544 = vmul.f32 1.0, %v2543
  %v2545 = vmul.f32 %v2537, %v2442
  %v2546 = vadd.f32 %v2527, %v2545
  %v2547 = vtanh.pop %v2546
  %v2548 = vsub.f32 1.0, %v2544
  %v2549 = vmul.f32 %v2548, %v2547
  %v2550 = vmul.f32 %v2544, %v2146
  %v2551 = vadd.f32 %v2549, %v2550
  %v2552 = vadd.f32 %v2528, %v2448
  %v2553 = vxor.u32 %v2552, 2147483648
  %v2554 = vmul.f32 %v2553, 1.442695
  %v2555 = vpow.pop %v2554
  %v2556 = vadd.f32 %v2555, 1.0
  %v2557 = vrcp.pop %v2556
  %v2558 = vmul.f32 1.0, %v2557
  %v2559 = vadd.f32 %v2529, %v2521
  %v2560 = vxor.u32 %v2559, 2147483648
  %v2561 = vmul.f32 %v2560, 1.442695
  %v2562 = vpow.pop %v2561
  %v2563 = vadd.f32 %v2562, 1.0
  %v2564 = vrcp.pop %v2563
  %v2565 = vmul.f32 1.0, %v2564
  %v2566 = vmul.f32 %v2558, %v2523
  %v2567 = vadd.f32 %v2530, %v2566
  %v2568 = vtanh.pop %v2567
  %v2569 = vsub.f32 1.0, %v2565
  %v2570 = vmul.f32 %v2569, %v2568
  %v2571 = vmul.f32 %v2565, %v2167
  %v2572 = vadd.f32 %v2570, %v2571
  %s2573 = scalar_lea.vmem %s5, 32
  %2574 = vst [vmem:[%s2573] sm:$0xff] %v2551
  %s2575 = scalar_lea.vmem %s6, 24
  %2576 = vst [vmem:[%s2575] sm:$0xff] %v2572
  %v2577 = vld [vmem:[%s2] sm:$0xff]
  %v2578 = vld [vmem:[%s2 + $0x8] sm:$0xff]
  %v2579 = vld [vmem:[%s2 + $0x10] sm:$0xff]
  %v2580 = vld [vmem:[%s2 + $0x18] sm:$0xff]
  %v2581 = vld [vmem:[%s2 + $0x20] sm:$0xff]
  %v2582 = vld [vmem:[%s2 + $0x28] sm:$0xff]
  %v2583 = vld [vmem:[%s2 + $0x30] sm:$0xff]
  %v2584 = vld [vmem:[%s2 + $0x38] sm:$0xff]
  %v2585 = vld [vmem:[%s2 + $0x40] sm:$0xff]
  %v2586 = vld [vmem:[%s2 + $0x48] sm:$0xff]
  %v2587 = vld [vmem:[%s2 + $0x50] sm:$0xff]
  %v2588 = vld [vmem:[%s2 + $0x58] sm:$0xff]
  %v2589 = vld [vmem:[%s2 + $0x60] sm:$0xff]
  %v2590 = vld [vmem:[%s2 + $0x68] sm:$0xff]
  %v2591 = vld [vmem:[%s2 + $0x70] sm:$0xff]
  %v2592 = vld [vmem:[%s2 + $0x78] sm:$0xff]
  %v2593 = vld [vmem:[%s2 + $0x80] sm:$0xff]
  %v2594 = vld [vmem:[%s2 + $0x88] sm:$0xff]
  %v2595 = vld [vmem:[%s2 + $0x90] sm:$0xff]
  %v2596 = vld [vmem:[%s2 + $0x98] sm:$0xff]
  %v2597 = vld [vmem:[%s2 + $0xa0] sm:$0xff]
  %v2598 = vld [vmem:[%s2 + $0xa8] sm:$0xff]
  %v2599 = vld [vmem:[%s2 + $0xb0] sm:$0xff]
  %v2600 = vld [vmem:[%s2 + $0xb8] sm:$0xff]
  %v2601 = vld [vmem:[%s2 + $0xc0] sm:$0xff]
  %v2602 = vld [vmem:[%s2 + $0xc8] sm:$0xff]
  %v2603 = vld [vmem:[%s2 + $0xd0] sm:$0xff]
  %v2604 = vld [vmem:[%s2 + $0xd8] sm:$0xff]
  %v2605 = vld [vmem:[%s2 + $0xe0] sm:$0xff]
  %v2606 = vld [vmem:[%s2 + $0xe8] sm:$0xff]
  %v2607 = vld [vmem:[%s2 + $0xf0] sm:$0xff]
  %v2608 = vld [vmem:[%s2 + $0xf8] sm:$0xff]
  %v2609 = vld [vmem:[%s2 + $0x100] sm:$0xff]
  %v2610 = vld [vmem:[%s2 + $0x108] sm:$0xff]
  %v2611 = vld [vmem:[%s2 + $0x110] sm:$0xff]
  %v2612 = vld [vmem:[%s2 + $0x118] sm:$0xff]
  %v2613 = vld [vmem:[%s2 + $0x120] sm:$0xff]
  %v2614 = vld [vmem:[%s2 + $0x128] sm:$0xff]
  %v2615 = vld [vmem:[%s2 + $0x130] sm:$0xff]
  %v2616 = vld [vmem:[%s2 + $0x138] sm:$0xff]
  %v2617 = vld [vmem:[%s2 + $0x140] sm:$0xff]
  %v2618 = vld [vmem:[%s2 + $0x148] sm:$0xff]
  %v2619 = vld [vmem:[%s2 + $0x150] sm:$0xff]
  %v2620 = vld [vmem:[%s2 + $0x158] sm:$0xff]
  %v2621 = vld [vmem:[%s2 + $0x160] sm:$0xff]
  %v2622 = vld [vmem:[%s2 + $0x168] sm:$0xff]
  %v2623 = vld [vmem:[%s2 + $0x170] sm:$0xff]
  %v2624 = vld [vmem:[%s2 + $0x178] sm:$0xff]
  %v2625 = vld [vmem:[%s2 + $0x180] sm:$0xff]
  %v2626 = vld [vmem:[%s2 + $0x188] sm:$0xff]
  %v2627 = vld [vmem:[%s2 + $0x190] sm:$0xff]
  %v2628 = vld [vmem:[%s2 + $0x198] sm:$0xff]
  %v2629 = vld [vmem:[%s2 + $0x1a0] sm:$0xff]
  %v2630 = vld [vmem:[%s2 + $0x1a8] sm:$0xff]
  %v2631 = vld [vmem:[%s2 + $0x1b0] sm:$0xff]
  %v2632 = vld [vmem:[%s2 + $0x1b8] sm:$0xff]
  %v2633 = vld [vmem:[%s2 + $0x1c0] sm:$0xff]
  %v2634 = vld [vmem:[%s2 + $0x1c8] sm:$0xff]
  %v2635 = vld [vmem:[%s2 + $0x1d0] sm:$0xff]
  %v2636 = vld [vmem:[%s2 + $0x1d8] sm:$0xff]
  %v2637 = vld [vmem:[%s2 + $0x1e0] sm:$0xff]
  %v2638 = vld [vmem:[%s2 + $0x1e8] sm:$0xff]
  %v2639 = vld [vmem:[%s2 + $0x1f0] sm:$0xff]
  %v2640 = vld [vmem:[%s2 + $0x1f8] sm:$0xff]
  %v2641 = vld [vmem:[%s2 + $0x200] sm:$0xff]
  %v2642 = vld [vmem:[%s2 + $0x208] sm:$0xff]
  %v2643 = vld [vmem:[%s2 + $0x210] sm:$0xff]
  %v2644 = vld [vmem:[%s2 + $0x218] sm:$0xff]
  %v2645 = vld [vmem:[%s2 + $0x220] sm:$0xff]
  %v2646 = vld [vmem:[%s2 + $0x228] sm:$0xff]
  %v2647 = vld [vmem:[%s2 + $0x230] sm:$0xff]
  %v2648 = vld [vmem:[%s2 + $0x238] sm:$0xff]
  %v2649 = vld [vmem:[%s2 + $0x240] sm:$0xff]
  %v2650 = vld [vmem:[%s2 + $0x248] sm:$0xff]
  %v2651 = vld [vmem:[%s2 + $0x250] sm:$0xff]
  %v2652 = vld [vmem:[%s2 + $0x258] sm:$0xff]
  %v2653 = vld [vmem:[%s2 + $0x260] sm:$0xff]
  %v2654 = vld [vmem:[%s2 + $0x268] sm:$0xff]
  %v2655 = vld [vmem:[%s2 + $0x270] sm:$0xff]
  %v2656 = vld [vmem:[%s2 + $0x278] sm:$0xff]
  %v2657 = vld [vmem:[%s2 + $0x280] sm:$0xff]
  %v2658 = vld [vmem:[%s2 + $0x288] sm:$0xff]
  %v2659 = vld [vmem:[%s2 + $0x290] sm:$0xff]
  %v2660 = vld [vmem:[%s2 + $0x298] sm:$0xff]
  %v2661 = vld [vmem:[%s2 + $0x2a0] sm:$0xff]
  %v2662 = vld [vmem:[%s2 + $0x2a8] sm:$0xff]
  %v2663 = vld [vmem:[%s2 + $0x2b0] sm:$0xff]
  %v2664 = vld [vmem:[%s2 + $0x2b8] sm:$0xff]
  %v2665 = vld [vmem:[%s2 + $0x2c0] sm:$0xff]
  %v2666 = vld [vmem:[%s2 + $0x2c8] sm:$0xff]
  %v2667 = vld [vmem:[%s2 + $0x2d0] sm:$0xff]
  %v2668 = vld [vmem:[%s2 + $0x2d8] sm:$0xff]
  %v2669 = vld [vmem:[%s2 + $0x2e0] sm:$0xff]
  %v2670 = vld [vmem:[%s2 + $0x2e8] sm:$0xff]
  %v2671 = vld [vmem:[%s2 + $0x2f0] sm:$0xff]
  %v2672 = vld [vmem:[%s2 + $0x2f8] sm:$0xff]
  %v2673 = vld [vmem:[%s4] sm:$0x3f]
  %v2675 = vlaneseq
  %v2676 = vshrl.u32 %v2675, 7
  %v2677 = vsub.s32 0, %v2676
  %v2678 = vrot.slane %v2673, %v2677
  %v2679 = vlaneseq
  %v2680 = vshrl.u32 %v2679, 7
  %v2681 = vsub.s32 1, %v2680
  %v2682 = vrot.slane %v2673, %v2681
  %v2683 = vlaneseq
  %v2684 = vshrl.u32 %v2683, 7
  %v2685 = vsub.s32 2, %v2684
  %v2686 = vrot.slane %v2673, %v2685
  %v2687 = vlaneseq
  %v2688 = vshrl.u32 %v2687, 7
  %v2689 = vsub.s32 3, %v2688
  %v2690 = vrot.slane %v2673, %v2689
  %v2691 = vlaneseq
  %v2692 = vshrl.u32 %v2691, 7
  %v2693 = vsub.s32 4, %v2692
  %v2694 = vrot.slane %v2673, %v2693
  %v2695 = vlaneseq
  %v2696 = vshrl.u32 %v2695, 7
  %v2697 = vsub.s32 5, %v2696
  %v2698 = vrot.slane %v2673, %v2697
  %2705 = vmatprep.subr.mxu0 %v2578
  %2706 = vmatpush1.msra.mxu0 %v2577
  %2707 = vmatprep.subr.mxu0 %v2584
  %2708 = vmatpush1.msra.mxu0 %v2583
  %2709 = vmatprep.subr.mxu0 %v2590
  %2710 = vmatpush1.msra.mxu0 %v2589
  %2711 = vmatprep.subr.mxu0 %v2596
  %2712 = vmatpush1.msra.mxu0 %v2595
  %2713 = vmatprep.subr.mxu0 %v2602
  %2714 = vmatpush1.msra.mxu0 %v2601
  %2715 = vmatprep.subr.mxu0 %v2608
  %2716 = vmatpush1.msra.mxu0 %v2607
  %2717 = vmatprep.subr.mxu0 %v2614
  %2718 = vmatpush1.msra.mxu0 %v2613
  %2719 = vmatprep.subr.mxu0 %v2620
  %2720 = vmatpush1.msra.mxu0 %v2619
  %2721 = vmatprep.subr.mxu0 %v2626
  %2722 = vmatpush1.msra.mxu0 %v2625
  %2723 = vmatprep.subr.mxu0 %v2632
  %2724 = vmatpush1.msra.mxu0 %v2631
  %2725 = vmatprep.subr.mxu0 %v2638
  %2726 = vmatpush1.msra.mxu0 %v2637
  %2727 = vmatprep.subr.mxu0 %v2644
  %2728 = vmatpush1.msra.mxu0 %v2643
  %2729 = vmatprep.subr.mxu0 %v2650
  %2730 = vmatpush1.msra.mxu0 %v2649
  %2731 = vmatprep.subr.mxu0 %v2656
  %2732 = vmatpush1.msra.mxu0 %v2655
  %2733 = vmatprep.subr.mxu0 %v2662
  %2734 = vmatpush1.msra.mxu0 %v2661
  %2735 = vmatprep.subr.mxu0 %v2668
  %2736 = vmatpush1.msra.mxu0 %v2667
  %2737 = vmatprep.subr.mxu0 0.0
  %2738 = vmatpush1.msra.mxu0 0.0
  %2739 = vmatprep.subr.mxu0 0.0
  %2740 = vmatpush1.msra.mxu0 0.0
  %2741 = vmatprep.subr.mxu0 0.0
  %2742 = vmatpush1.msra.mxu0 0.0
  %2743 = vmatprep.subr.mxu0 0.0
  %2744 = vmatpush1.msra.mxu0 0.0
  %2745 = vmatprep.subr.mxu0 0.0
  %2746 = vmatpush1.msra.mxu0 0.0
  %2747 = vmatprep.subr.mxu0 0.0
  %2748 = vmatpush1.msra.mxu0 0.0
  %2749 = vmatprep.subr.mxu0 0.0
  %2750 = vmatpush1.msra.mxu0 0.0
  %2751 = vmatprep.subr.mxu0 0.0
  %2752 = vmatpush1.msra.mxu0 0.0
  %2753 = vmatprep.subr.mxu0 0.0
  %2754 = vmatpush1.msra.mxu0 0.0
  %2755 = vmatprep.subr.mxu0 0.0
  %2756 = vmatpush1.msra.mxu0 0.0
  %2757 = vmatprep.subr.mxu0 0.0
  %2758 = vmatpush1.msra.mxu0 0.0
  %2759 = vmatprep.subr.mxu0 0.0
  %2760 = vmatpush1.msra.mxu0 0.0
  %2761 = vmatprep.subr.mxu0 0.0
  %2762 = vmatpush1.msra.mxu0 0.0
  %2763 = vmatprep.subr.mxu0 0.0
  %2764 = vmatpush1.msra.mxu0 0.0
  %2765 = vmatprep.subr.mxu0 0.0
  %2766 = vmatpush1.msra.mxu0 0.0
  %2767 = vmatprep.subr.mxu0 0.0
  %2768 = vmatpush1.msra.mxu0 0.0
  %2769 = vmatprep.mubr.f32.mxu0 0.0
  %2770 = vmatmul.mubr.f32.gmra.mrb[0].mxu0 %v2551
  %v2771 = vpop.f32.mrb[0].mxu0
  %v2772 = vadd.f32 %v2678, %v2771
  %v2773 = vpop.f32.mrb[0].mxu0
  %v2774 = vadd.f32 %v2682, %v2773
  %2775 = vmatprep.mubr.f32.mxu0 0.0
  %2776 = vmatmul.mubr.f32.gmra.mrb[0].mxu0 %v2572
  %v2777 = vpop.f32.mrb[0].mxu0
  %v2778 = vpop.f32.mrb[0].mxu0
  %2779 = vdwg.mxu0
  %2780 = vmatprep.subr.mxu0 %v2580
  %2781 = vmatpush1.msra.mxu0 %v2579
  %2782 = vmatprep.subr.mxu0 %v2586
  %2783 = vmatpush1.msra.mxu0 %v2585
  %2784 = vmatprep.subr.mxu0 %v2592
  %2785 = vmatpush1.msra.mxu0 %v2591
  %2786 = vmatprep.subr.mxu0 %v2598
  %2787 = vmatpush1.msra.mxu0 %v2597
  %2788 = vmatprep.subr.mxu0 %v2604
  %2789 = vmatpush1.msra.mxu0 %v2603
  %2790 = vmatprep.subr.mxu0 %v2610
  %2791 = vmatpush1.msra.mxu0 %v2609
  %2792 = vmatprep.subr.mxu0 %v2616
  %2793 = vmatpush1.msra.mxu0 %v2615
  %2794 = vmatprep.subr.mxu0 %v2622
  %2795 = vmatpush1.msra.mxu0 %v2621
  %2796 = vmatprep.subr.mxu0 %v2628
  %2797 = vmatpush1.msra.mxu0 %v2627
  %2798 = vmatprep.subr.mxu0 %v2634
  %2799 = vmatpush1.msra.mxu0 %v2633
  %2800 = vmatprep.subr.mxu0 %v2640
  %2801 = vmatpush1.msra.mxu0 %v2639
  %2802 = vmatprep.subr.mxu0 %v2646
  %2803 = vmatpush1.msra.mxu0 %v2645
  %2804 = vmatprep.subr.mxu0 %v2652
  %2805 = vmatpush1.msra.mxu0 %v2651
  %2806 = vmatprep.subr.mxu0 %v2658
  %2807 = vmatpush1.msra.mxu0 %v2657
  %2808 = vmatprep.subr.mxu0 %v2664
  %2809 = vmatpush1.msra.mxu0 %v2663
  %2810 = vmatprep.subr.mxu0 %v2670
  %2811 = vmatpush1.msra.mxu0 %v2669
  %2812 = vmatprep.subr.mxu0 0.0
  %2813 = vmatpush1.msra.mxu0 0.0
  %2814 = vmatprep.subr.mxu0 0.0
  %2815 = vmatpush1.msra.mxu0 0.0
  %2816 = vmatprep.subr.mxu0 0.0
  %2817 = vmatpush1.msra.mxu0 0.0
  %2818 = vmatprep.subr.mxu0 0.0
  %2819 = vmatpush1.msra.mxu0 0.0
  %2820 = vmatprep.subr.mxu0 0.0
  %2821 = vmatpush1.msra.mxu0 0.0
  %2822 = vmatprep.subr.mxu0 0.0
  %2823 = vmatpush1.msra.mxu0 0.0
  %2824 = vmatprep.subr.mxu0 0.0
  %2825 = vmatpush1.msra.mxu0 0.0
  %2826 = vmatprep.subr.mxu0 0.0
  %2827 = vmatpush1.msra.mxu0 0.0
  %2828 = vmatprep.subr.mxu0 0.0
  %2829 = vmatpush1.msra.mxu0 0.0
  %2830 = vmatprep.subr.mxu0 0.0
  %2831 = vmatpush1.msra.mxu0 0.0
  %2832 = vmatprep.subr.mxu0 0.0
  %2833 = vmatpush1.msra.mxu0 0.0
  %2834 = vmatprep.subr.mxu0 0.0
  %2835 = vmatpush1.msra.mxu0 0.0
  %2836 = vmatprep.subr.mxu0 0.0
  %2837 = vmatpush1.msra.mxu0 0.0
  %2838 = vmatprep.subr.mxu0 0.0
  %2839 = vmatpush1.msra.mxu0 0.0
  %2840 = vmatprep.subr.mxu0 0.0
  %2841 = vmatpush1.msra.mxu0 0.0
  %2842 = vmatprep.subr.mxu0 0.0
  %2843 = vmatpush1.msra.mxu0 0.0
  %2844 = vmatprep.mubr.f32.mxu0 0.0
  %2845 = vmatmul.mubr.f32.gmra.mrb[0].mxu0 %v2551
  %v2846 = vpop.f32.mrb[0].mxu0
  %v2847 = vadd.f32 %v2686, %v2846
  %v2848 = vpop.f32.mrb[0].mxu0
  %2849 = vmatprep.mubr.f32.mxu0 0.0
  %2850 = vmatmul.mubr.f32.gmra.mrb[0].mxu0 %v2572
  %v2851 = vpop.f32.mrb[0].mxu0
  %v2852 = vpop.f32.mrb[0].mxu0
  %v2853 = vadd.f32 %v2690, %v2852
  %2854 = vdwg.mxu0
  %2855 = vmatprep.subr.mxu0 %v2582
  %2856 = vmatpush1.msra.mxu0 %v2581
  %2857 = vmatprep.subr.mxu0 %v2588
  %2858 = vmatpush1.msra.mxu0 %v2587
  %2859 = vmatprep.subr.mxu0 %v2594
  %2860 = vmatpush1.msra.mxu0 %v2593
  %2861 = vmatprep.subr.mxu0 %v2600
  %2862 = vmatpush1.msra.mxu0 %v2599
  %2863 = vmatprep.subr.mxu0 %v2606
  %2864 = vmatpush1.msra.mxu0 %v2605
  %2865 = vmatprep.subr.mxu0 %v2612
  %2866 = vmatpush1.msra.mxu0 %v2611
  %2867 = vmatprep.subr.mxu0 %v2618
  %2868 = vmatpush1.msra.mxu0 %v2617
  %2869 = vmatprep.subr.mxu0 %v2624
  %2870 = vmatpush1.msra.mxu0 %v2623
  %2871 = vmatprep.subr.mxu0 %v2630
  %2872 = vmatpush1.msra.mxu0 %v2629
  %2873 = vmatprep.subr.mxu0 %v2636
  %2874 = vmatpush1.msra.mxu0 %v2635
  %2875 = vmatprep.subr.mxu0 %v2642
  %2876 = vmatpush1.msra.mxu0 %v2641
  %2877 = vmatprep.subr.mxu0 %v2648
  %2878 = vmatpush1.msra.mxu0 %v2647
  %2879 = vmatprep.subr.mxu0 %v2654
  %2880 = vmatpush1.msra.mxu0 %v2653
  %2881 = vmatprep.subr.mxu0 %v2660
  %2882 = vmatpush1.msra.mxu0 %v2659
  %2883 = vmatprep.subr.mxu0 %v2666
  %2884 = vmatpush1.msra.mxu0 %v2665
  %2885 = vmatprep.subr.mxu0 %v2672
  %2886 = vmatpush1.msra.mxu0 %v2671
  %2887 = vmatprep.subr.mxu0 0.0
  %2888 = vmatpush1.msra.mxu0 0.0
  %2889 = vmatprep.subr.mxu0 0.0
  %2890 = vmatpush1.msra.mxu0 0.0
  %2891 = vmatprep.subr.mxu0 0.0
  %2892 = vmatpush1.msra.mxu0 0.0
  %2893 = vmatprep.subr.mxu0 0.0
  %2894 = vmatpush1.msra.mxu0 0.0
  %2895 = vmatprep.subr.mxu0 0.0
  %2896 = vmatpush1.msra.mxu0 0.0
  %2897 = vmatprep.subr.mxu0 0.0
  %2898 = vmatpush1.msra.mxu0 0.0
  %2899 = vmatprep.subr.mxu0 0.0
  %2900 = vmatpush1.msra.mxu0 0.0
  %2901 = vmatprep.subr.mxu0 0.0
  %2902 = vmatpush1.msra.mxu0 0.0
  %2903 = vmatprep.subr.mxu0 0.0
  %2904 = vmatpush1.msra.mxu0 0.0
  %2905 = vmatprep.subr.mxu0 0.0
  %2906 = vmatpush1.msra.mxu0 0.0
  %2907 = vmatprep.subr.mxu0 0.0
  %2908 = vmatpush1.msra.mxu0 0.0
  %2909 = vmatprep.subr.mxu0 0.0
  %2910 = vmatpush1.msra.mxu0 0.0
  %2911 = vmatprep.subr.mxu0 0.0
  %2912 = vmatpush1.msra.mxu0 0.0
  %2913 = vmatprep.subr.mxu0 0.0
  %2914 = vmatpush1.msra.mxu0 0.0
  %2915 = vmatprep.subr.mxu0 0.0
  %2916 = vmatpush1.msra.mxu0 0.0
  %2917 = vmatprep.subr.mxu0 0.0
  %2918 = vmatpush1.msra.mxu0 0.0
  %2919 = vmatprep.mubr.f32.mxu0 0.0
  %2920 = vmatmul.mubr.f32.gmra.mrb[0].mxu0 %v2551
  %v2921 = vpop.f32.mrb[0].mxu0
  %v2922 = vpop.f32.mrb[0].mxu0
  %2923 = vmatprep.mubr.f32.mxu0 0.0
  %2924 = vmatmul.mubr.f32.gmra.mrb[0].mxu0 %v2572
  %v2925 = vpop.f32.mrb[0].mxu0
  %v2926 = vadd.f32 %v2694, %v2925
  %v2927 = vpop.f32.mrb[0].mxu0
  %v2928 = vadd.f32 %v2698, %v2927
  %2929 = vdwg.mxu0
  %v2930 = vld [vmem:[%s1715] sm:$0xff]
  %v2931 = vld [vmem:[%s1715 + $0x8] sm:$0xff]
  %v2932 = vld [vmem:[%s1715 + $0x10] sm:$0xff]
  %v2933 = vld [vmem:[%s1711 + $0x18] sm:$0xff]
  %v2934 = vld [vmem:[%s1711 + $0x20] sm:$0xff]
  %v2935 = vld [vmem:[%s1711 + $0x28] sm:$0xff]
  %v2936 = vadd.f32 %v2930, %v2772
  %v2937 = vxor.u32 %v2936, 2147483648
  %v2938 = vmul.f32 %v2937, 1.442695
  %v2939 = vpow.pop %v2938
  %v2940 = vadd.f32 %v2939, 1.0
  %v2941 = vrcp.pop %v2940
  %v2942 = vmul.f32 1.0, %v2941
  %v2943 = vadd.f32 %v2931, %v2774
  %v2944 = vxor.u32 %v2943, 2147483648
  %v2945 = vmul.f32 %v2944, 1.442695
  %v2946 = vpow.pop %v2945
  %v2947 = vadd.f32 %v2946, 1.0
  %v2948 = vrcp.pop %v2947
  %v2949 = vmul.f32 1.0, %v2948
  %v2950 = vmul.f32 %v2942, %v2847
  %v2951 = vadd.f32 %v2932, %v2950
  %v2952 = vtanh.pop %v2951
  %v2953 = vsub.f32 1.0, %v2949
  %v2954 = vmul.f32 %v2953, %v2952
  %v2955 = vmul.f32 %v2949, %v2551
  %v2956 = vadd.f32 %v2954, %v2955
  %v2957 = vadd.f32 %v2933, %v2853
  %v2958 = vxor.u32 %v2957, 2147483648
  %v2959 = vmul.f32 %v2958, 1.442695
  %v2960 = vpow.pop %v2959
  %v2961 = vadd.f32 %v2960, 1.0
  %v2962 = vrcp.pop %v2961
  %v2963 = vmul.f32 1.0, %v2962
  %v2964 = vadd.f32 %v2934, %v2926
  %v2965 = vxor.u32 %v2964, 2147483648
  %v2966 = vmul.f32 %v2965, 1.442695
  %v2967 = vpow.pop %v2966
  %v2968 = vadd.f32 %v2967, 1.0
  %v2969 = vrcp.pop %v2968
  %v2970 = vmul.f32 1.0, %v2969
  %v2971 = vmul.f32 %v2963, %v2928
  %v2972 = vadd.f32 %v2935, %v2971
  %v2973 = vtanh.pop %v2972
  %v2974 = vsub.f32 1.0, %v2970
  %v2975 = vmul.f32 %v2974, %v2973
  %v2976 = vmul.f32 %v2970, %v2572
  %v2977 = vadd.f32 %v2975, %v2976
  %s2978 = scalar_lea.vmem %s5, 40
  %2979 = vst [vmem:[%s2978] sm:$0xff] %v2956
  %s2980 = scalar_lea.vmem %s6, 16
  %2981 = vst [vmem:[%s2980] sm:$0xff] %v2977
  %v2982 = vld [vmem:[%s2] sm:$0xff]
  %v2983 = vld [vmem:[%s2 + $0x8] sm:$0xff]
  %v2984 = vld [vmem:[%s2 + $0x10] sm:$0xff]
  %v2985 = vld [vmem:[%s2 + $0x18] sm:$0xff]
  %v2986 = vld [vmem:[%s2 + $0x20] sm:$0xff]
  %v2987 = vld [vmem:[%s2 + $0x28] sm:$0xff]
  %v2988 = vld [vmem:[%s2 + $0x30] sm:$0xff]
  %v2989 = vld [vmem:[%s2 + $0x38] sm:$0xff]
  %v2990 = vld [vmem:[%s2 + $0x40] sm:$0xff]
  %v2991 = vld [vmem:[%s2 + $0x48] sm:$0xff]
  %v2992 = vld [vmem:[%s2 + $0x50] sm:$0xff]
  %v2993 = vld [vmem:[%s2 + $0x58] sm:$0xff]
  %v2994 = vld [vmem:[%s2 + $0x60] sm:$0xff]
  %v2995 = vld [vmem:[%s2 + $0x68] sm:$0xff]
  %v2996 = vld [vmem:[%s2 + $0x70] sm:$0xff]
  %v2997 = vld [vmem:[%s2 + $0x78] sm:$0xff]
  %v2998 = vld [vmem:[%s2 + $0x80] sm:$0xff]
  %v2999 = vld [vmem:[%s2 + $0x88] sm:$0xff]
  %v3000 = vld [vmem:[%s2 + $0x90] sm:$0xff]
  %v3001 = vld [vmem:[%s2 + $0x98] sm:$0xff]
  %v3002 = vld [vmem:[%s2 + $0xa0] sm:$0xff]
  %v3003 = vld [vmem:[%s2 + $0xa8] sm:$0xff]
  %v3004 = vld [vmem:[%s2 + $0xb0] sm:$0xff]
  %v3005 = vld [vmem:[%s2 + $0xb8] sm:$0xff]
  %v3006 = vld [vmem:[%s2 + $0xc0] sm:$0xff]
  %v3007 = vld [vmem:[%s2 + $0xc8] sm:$0xff]
  %v3008 = vld [vmem:[%s2 + $0xd0] sm:$0xff]
  %v3009 = vld [vmem:[%s2 + $0xd8] sm:$0xff]
  %v3010 = vld [vmem:[%s2 + $0xe0] sm:$0xff]
  %v3011 = vld [vmem:[%s2 + $0xe8] sm:$0xff]
  %v3012 = vld [vmem:[%s2 + $0xf0] sm:$0xff]
  %v3013 = vld [vmem:[%s2 + $0xf8] sm:$0xff]
  %v3014 = vld [vmem:[%s2 + $0x100] sm:$0xff]
  %v3015 = vld [vmem:[%s2 + $0x108] sm:$0xff]
  %v3016 = vld [vmem:[%s2 + $0x110] sm:$0xff]
  %v3017 = vld [vmem:[%s2 + $0x118] sm:$0xff]
  %v3018 = vld [vmem:[%s2 + $0x120] sm:$0xff]
  %v3019 = vld [vmem:[%s2 + $0x128] sm:$0xff]
  %v3020 = vld [vmem:[%s2 + $0x130] sm:$0xff]
  %v3021 = vld [vmem:[%s2 + $0x138] sm:$0xff]
  %v3022 = vld [vmem:[%s2 + $0x140] sm:$0xff]
  %v3023 = vld [vmem:[%s2 + $0x148] sm:$0xff]
  %v3024 = vld [vmem:[%s2 + $0x150] sm:$0xff]
  %v3025 = vld [vmem:[%s2 + $0x158] sm:$0xff]
  %v3026 = vld [vmem:[%s2 + $0x160] sm:$0xff]
  %v3027 = vld [vmem:[%s2 + $0x168] sm:$0xff]
  %v3028 = vld [vmem:[%s2 + $0x170] sm:$0xff]
  %v3029 = vld [vmem:[%s2 + $0x178] sm:$0xff]
  %v3030 = vld [vmem:[%s2 + $0x180] sm:$0xff]
  %v3031 = vld [vmem:[%s2 + $0x188] sm:$0xff]
  %v3032 = vld [vmem:[%s2 + $0x190] sm:$0xff]
  %v3033 = vld [vmem:[%s2 + $0x198] sm:$0xff]
  %v3034 = vld [vmem:[%s2 + $0x1a0] sm:$0xff]
  %v3035 = vld [vmem:[%s2 + $0x1a8] sm:$0xff]
  %v3036 = vld [vmem:[%s2 + $0x1b0] sm:$0xff]
  %v3037 = vld [vmem:[%s2 + $0x1b8] sm:$0xff]
  %v3038 = vld [vmem:[%s2 + $0x1c0] sm:$0xff]
  %v3039 = vld [vmem:[%s2 + $0x1c8] sm:$0xff]
  %v3040 = vld [vmem:[%s2 + $0x1d0] sm:$0xff]
  %v3041 = vld [vmem:[%s2 + $0x1d8] sm:$0xff]
  %v3042 = vld [vmem:[%s2 + $0x1e0] sm:$0xff]
  %v3043 = vld [vmem:[%s2 + $0x1e8] sm:$0xff]
  %v3044 = vld [vmem:[%s2 + $0x1f0] sm:$0xff]
  %v3045 = vld [vmem:[%s2 + $0x1f8] sm:$0xff]
  %v3046 = vld [vmem:[%s2 + $0x200] sm:$0xff]
  %v3047 = vld [vmem:[%s2 + $0x208] sm:$0xff]
  %v3048 = vld [vmem:[%s2 + $0x210] sm:$0xff]
  %v3049 = vld [vmem:[%s2 + $0x218] sm:$0xff]
  %v3050 = vld [vmem:[%s2 + $0x220] sm:$0xff]
  %v3051 = vld [vmem:[%s2 + $0x228] sm:$0xff]
  %v3052 = vld [vmem:[%s2 + $0x230] sm:$0xff]
  %v3053 = vld [vmem:[%s2 + $0x238] sm:$0xff]
  %v3054 = vld [vmem:[%s2 + $0x240] sm:$0xff]
  %v3055 = vld [vmem:[%s2 + $0x248] sm:$0xff]
  %v3056 = vld [vmem:[%s2 + $0x250] sm:$0xff]
  %v3057 = vld [vmem:[%s2 + $0x258] sm:$0xff]
  %v3058 = vld [vmem:[%s2 + $0x260] sm:$0xff]
  %v3059 = vld [vmem:[%s2 + $0x268] sm:$0xff]
  %v3060 = vld [vmem:[%s2 + $0x270] sm:$0xff]
  %v3061 = vld [vmem:[%s2 + $0x278] sm:$0xff]
  %v3062 = vld [vmem:[%s2 + $0x280] sm:$0xff]
  %v3063 = vld [vmem:[%s2 + $0x288] sm:$0xff]
  %v3064 = vld [vmem:[%s2 + $0x290] sm:$0xff]
  %v3065 = vld [vmem:[%s2 + $0x298] sm:$0xff]
  %v3066 = vld [vmem:[%s2 + $0x2a0] sm:$0xff]
  %v3067 = vld [vmem:[%s2 + $0x2a8] sm:$0xff]
  %v3068 = vld [vmem:[%s2 + $0x2b0] sm:$0xff]
  %v3069 = vld [vmem:[%s2 + $0x2b8] sm:$0xff]
  %v3070 = vld [vmem:[%s2 + $0x2c0] sm:$0xff]
  %v3071 = vld [vmem:[%s2 + $0x2c8] sm:$0xff]
  %v3072 = vld [vmem:[%s2 + $0x2d0] sm:$0xff]
  %v3073 = vld [vmem:[%s2 + $0x2d8] sm:$0xff]
  %v3074 = vld [vmem:[%s2 + $0x2e0] sm:$0xff]
  %v3075 = vld [vmem:[%s2 + $0x2e8] sm:$0xff]
  %v3076 = vld [vmem:[%s2 + $0x2f0] sm:$0xff]
  %v3077 = vld [vmem:[%s2 + $0x2f8] sm:$0xff]
  %v3078 = vld [vmem:[%s4] sm:$0x3f]
  %v3080 = vlaneseq
  %v3081 = vshrl.u32 %v3080, 7
  %v3082 = vsub.s32 0, %v3081
  %v3083 = vrot.slane %v3078, %v3082
  %v3084 = vlaneseq
  %v3085 = vshrl.u32 %v3084, 7
  %v3086 = vsub.s32 1, %v3085
  %v3087 = vrot.slane %v3078, %v3086
  %v3088 = vlaneseq
  %v3089 = vshrl.u32 %v3088, 7
  %v3090 = vsub.s32 2, %v3089
  %v3091 = vrot.slane %v3078, %v3090
  %v3092 = vlaneseq
  %v3093 = vshrl.u32 %v3092, 7
  %v3094 = vsub.s32 3, %v3093
  %v3095 = vrot.slane %v3078, %v3094
  %v3096 = vlaneseq
  %v3097 = vshrl.u32 %v3096, 7
  %v3098 = vsub.s32 4, %v3097
  %v3099 = vrot.slane %v3078, %v3098
  %v3100 = vlaneseq
  %v3101 = vshrl.u32 %v3100, 7
  %v3102 = vsub.s32 5, %v3101
  %v3103 = vrot.slane %v3078, %v3102
  %3110 = vmatprep.subr.mxu0 %v2983
  %3111 = vmatpush1.msra.mxu0 %v2982
  %3112 = vmatprep.subr.mxu0 %v2989
  %3113 = vmatpush1.msra.mxu0 %v2988
  %3114 = vmatprep.subr.mxu0 %v2995
  %3115 = vmatpush1.msra.mxu0 %v2994
  %3116 = vmatprep.subr.mxu0 %v3001
  %3117 = vmatpush1.msra.mxu0 %v3000
  %3118 = vmatprep.subr.mxu0 %v3007
  %3119 = vmatpush1.msra.mxu0 %v3006
  %3120 = vmatprep.subr.mxu0 %v3013
  %3121 = vmatpush1.msra.mxu0 %v3012
  %3122 = vmatprep.subr.mxu0 %v3019
  %3123 = vmatpush1.msra.mxu0 %v3018
  %3124 = vmatprep.subr.mxu0 %v3025
  %3125 = vmatpush1.msra.mxu0 %v3024
  %3126 = vmatprep.subr.mxu0 %v3031
  %3127 = vmatpush1.msra.mxu0 %v3030
  %3128 = vmatprep.subr.mxu0 %v3037
  %3129 = vmatpush1.msra.mxu0 %v3036
  %3130 = vmatprep.subr.mxu0 %v3043
  %3131 = vmatpush1.msra.mxu0 %v3042
  %3132 = vmatprep.subr.mxu0 %v3049
  %3133 = vmatpush1.msra.mxu0 %v3048
  %3134 = vmatprep.subr.mxu0 %v3055
  %3135 = vmatpush1.msra.mxu0 %v3054
  %3136 = vmatprep.subr.mxu0 %v3061
  %3137 = vmatpush1.msra.mxu0 %v3060
  %3138 = vmatprep.subr.mxu0 %v3067
  %3139 = vmatpush1.msra.mxu0 %v3066
  %3140 = vmatprep.subr.mxu0 %v3073
  %3141 = vmatpush1.msra.mxu0 %v3072
  %3142 = vmatprep.subr.mxu0 0.0
  %3143 = vmatpush1.msra.mxu0 0.0
  %3144 = vmatprep.subr.mxu0 0.0
  %3145 = vmatpush1.msra.mxu0 0.0
  %3146 = vmatprep.subr.mxu0 0.0
  %3147 = vmatpush1.msra.mxu0 0.0
  %3148 = vmatprep.subr.mxu0 0.0
  %3149 = vmatpush1.msra.mxu0 0.0
  %3150 = vmatprep.subr.mxu0 0.0
  %3151 = vmatpush1.msra.mxu0 0.0
  %3152 = vmatprep.subr.mxu0 0.0
  %3153 = vmatpush1.msra.mxu0 0.0
  %3154 = vmatprep.subr.mxu0 0.0
  %3155 = vmatpush1.msra.mxu0 0.0
  %3156 = vmatprep.subr.mxu0 0.0
  %3157 = vmatpush1.msra.mxu0 0.0
  %3158 = vmatprep.subr.mxu0 0.0
  %3159 = vmatpush1.msra.mxu0 0.0
  %3160 = vmatprep.subr.mxu0 0.0
  %3161 = vmatpush1.msra.mxu0 0.0
  %3162 = vmatprep.subr.mxu0 0.0
  %3163 = vmatpush1.msra.mxu0 0.0
  %3164 = vmatprep.subr.mxu0 0.0
  %3165 = vmatpush1.msra.mxu0 0.0
  %3166 = vmatprep.subr.mxu0 0.0
  %3167 = vmatpush1.msra.mxu0 0.0
  %3168 = vmatprep.subr.mxu0 0.0
  %3169 = vmatpush1.msra.mxu0 0.0
  %3170 = vmatprep.subr.mxu0 0.0
  %3171 = vmatpush1.msra.mxu0 0.0
  %3172 = vmatprep.subr.mxu0 0.0
  %3173 = vmatpush1.msra.mxu0 0.0
  %3174 = vmatprep.mubr.f32.mxu0 0.0
  %3175 = vmatmul.mubr.f32.gmra.mrb[0].mxu0 %v2956
  %v3176 = vpop.f32.mrb[0].mxu0
  %v3177 = vadd.f32 %v3083, %v3176
  %v3178 = vpop.f32.mrb[0].mxu0
  %v3179 = vadd.f32 %v3087, %v3178
  %3180 = vmatprep.mubr.f32.mxu0 0.0
  %3181 = vmatmul.mubr.f32.gmra.mrb[0].mxu0 %v2977
  %v3182 = vpop.f32.mrb[0].mxu0
  %v3183 = vpop.f32.mrb[0].mxu0
  %3184 = vdwg.mxu0
  %3185 = vmatprep.subr.mxu0 %v2985
  %3186 = vmatpush1.msra.mxu0 %v2984
  %3187 = vmatprep.subr.mxu0 %v2991
  %3188 = vmatpush1.msra.mxu0 %v2990
  %3189 = vmatprep.subr.mxu0 %v2997
  %3190 = vmatpush1.msra.mxu0 %v2996
  %3191 = vmatprep.subr.mxu0 %v3003
  %3192 = vmatpush1.msra.mxu0 %v3002
  %3193 = vmatprep.subr.mxu0 %v3009
  %3194 = vmatpush1.msra.mxu0 %v3008
  %3195 = vmatprep.subr.mxu0 %v3015
  %3196 = vmatpush1.msra.mxu0 %v3014
  %3197 = vmatprep.subr.mxu0 %v3021
  %3198 = vmatpush1.msra.mxu0 %v3020
  %3199 = vmatprep.subr.mxu0 %v3027
  %3200 = vmatpush1.msra.mxu0 %v3026
  %3201 = vmatprep.subr.mxu0 %v3033
  %3202 = vmatpush1.msra.mxu0 %v3032
  %3203 = vmatprep.subr.mxu0 %v3039
  %3204 = vmatpush1.msra.mxu0 %v3038
  %3205 = vmatprep.subr.mxu0 %v3045
  %3206 = vmatpush1.msra.mxu0 %v3044
  %3207 = vmatprep.subr.mxu0 %v3051
  %3208 = vmatpush1.msra.mxu0 %v3050
  %3209 = vmatprep.subr.mxu0 %v3057
  %3210 = vmatpush1.msra.mxu0 %v3056
  %3211 = vmatprep.subr.mxu0 %v3063
  %3212 = vmatpush1.msra.mxu0 %v3062
  %3213 = vmatprep.subr.mxu0 %v3069
  %3214 = vmatpush1.msra.mxu0 %v3068
  %3215 = vmatprep.subr.mxu0 %v3075
  %3216 = vmatpush1.msra.mxu0 %v3074
  %3217 = vmatprep.subr.mxu0 0.0
  %3218 = vmatpush1.msra.mxu0 0.0
  %3219 = vmatprep.subr.mxu0 0.0
  %3220 = vmatpush1.msra.mxu0 0.0
  %3221 = vmatprep.subr.mxu0 0.0
  %3222 = vmatpush1.msra.mxu0 0.0
  %3223 = vmatprep.subr.mxu0 0.0
  %3224 = vmatpush1.msra.mxu0 0.0
  %3225 = vmatprep.subr.mxu0 0.0
  %3226 = vmatpush1.msra.mxu0 0.0
  %3227 = vmatprep.subr.mxu0 0.0
  %3228 = vmatpush1.msra.mxu0 0.0
  %3229 = vmatprep.subr.mxu0 0.0
  %3230 = vmatpush1.msra.mxu0 0.0
  %3231 = vmatprep.subr.mxu0 0.0
  %3232 = vmatpush1.msra.mxu0 0.0
  %3233 = vmatprep.subr.mxu0 0.0
  %3234 = vmatpush1.msra.mxu0 0.0
  %3235 = vmatprep.subr.mxu0 0.0
  %3236 = vmatpush1.msra.mxu0 0.0
  %3237 = vmatprep.subr.mxu0 0.0
  %3238 = vmatpush1.msra.mxu0 0.0
  %3239 = vmatprep.subr.mxu0 0.0
  %3240 = vmatpush1.msra.mxu0 0.0
  %3241 = vmatprep.subr.mxu0 0.0
  %3242 = vmatpush1.msra.mxu0 0.0
  %3243 = vmatprep.subr.mxu0 0.0
  %3244 = vmatpush1.msra.mxu0 0.0
  %3245 = vmatprep.subr.mxu0 0.0
  %3246 = vmatpush1.msra.mxu0 0.0
  %3247 = vmatprep.subr.mxu0 0.0
  %3248 = vmatpush1.msra.mxu0 0.0
  %3249 = vmatprep.mubr.f32.mxu0 0.0
  %3250 = vmatmul.mubr.f32.gmra.mrb[0].mxu0 %v2956
  %v3251 = vpop.f32.mrb[0].mxu0
  %v3252 = vadd.f32 %v3091, %v3251
  %v3253 = vpop.f32.mrb[0].mxu0
  %3254 = vmatprep.mubr.f32.mxu0 0.0
  %3255 = vmatmul.mubr.f32.gmra.mrb[0].mxu0 %v2977
  %v3256 = vpop.f32.mrb[0].mxu0
  %v3257 = vpop.f32.mrb[0].mxu0
  %v3258 = vadd.f32 %v3095, %v3257
  %3259 = vdwg.mxu0
  %3260 = vmatprep.subr.mxu0 %v2987
  %3261 = vmatpush1.msra.mxu0 %v2986
  %3262 = vmatprep.subr.mxu0 %v2993
  %3263 = vmatpush1.msra.mxu0 %v2992
  %3264 = vmatprep.subr.mxu0 %v2999
  %3265 = vmatpush1.msra.mxu0 %v2998
  %3266 = vmatprep.subr.mxu0 %v3005
  %3267 = vmatpush1.msra.mxu0 %v3004
  %3268 = vmatprep.subr.mxu0 %v3011
  %3269 = vmatpush1.msra.mxu0 %v3010
  %3270 = vmatprep.subr.mxu0 %v3017
  %3271 = vmatpush1.msra.mxu0 %v3016
  %3272 = vmatprep.subr.mxu0 %v3023
  %3273 = vmatpush1.msra.mxu0 %v3022
  %3274 = vmatprep.subr.mxu0 %v3029
  %3275 = vmatpush1.msra.mxu0 %v3028
  %3276 = vmatprep.subr.mxu0 %v3035
  %3277 = vmatpush1.msra.mxu0 %v3034
  %3278 = vmatprep.subr.mxu0 %v3041
  %3279 = vmatpush1.msra.mxu0 %v3040
  %3280 = vmatprep.subr.mxu0 %v3047
  %3281 = vmatpush1.msra.mxu0 %v3046
  %3282 = vmatprep.subr.mxu0 %v3053
  %3283 = vmatpush1.msra.mxu0 %v3052
  %3284 = vmatprep.subr.mxu0 %v3059
  %3285 = vmatpush1.msra.mxu0 %v3058
  %3286 = vmatprep.subr.mxu0 %v3065
  %3287 = vmatpush1.msra.mxu0 %v3064
  %3288 = vmatprep.subr.mxu0 %v3071
  %3289 = vmatpush1.msra.mxu0 %v3070
  %3290 = vmatprep.subr.mxu0 %v3077
  %3291 = vmatpush1.msra.mxu0 %v3076
  %3292 = vmatprep.subr.mxu0 0.0
  %3293 = vmatpush1.msra.mxu0 0.0
  %3294 = vmatprep.subr.mxu0 0.0
  %3295 = vmatpush1.msra.mxu0 0.0
  %3296 = vmatprep.subr.mxu0 0.0
  %3297 = vmatpush1.msra.mxu0 0.0
  %3298 = vmatprep.subr.mxu0 0.0
  %3299 = vmatpush1.msra.mxu0 0.0
  %3300 = vmatprep.subr.mxu0 0.0
  %3301 = vmatpush1.msra.mxu0 0.0
  %3302 = vmatprep.subr.mxu0 0.0
  %3303 = vmatpush1.msra.mxu0 0.0
  %3304 = vmatprep.subr.mxu0 0.0
  %3305 = vmatpush1.msra.mxu0 0.0
  %3306 = vmatprep.subr.mxu0 0.0
  %3307 = vmatpush1.msra.mxu0 0.0
  %3308 = vmatprep.subr.mxu0 0.0
  %3309 = vmatpush1.msra.mxu0 0.0
  %3310 = vmatprep.subr.mxu0 0.0
  %3311 = vmatpush1.msra.mxu0 0.0
  %3312 = vmatprep.subr.mxu0 0.0
  %3313 = vmatpush1.msra.mxu0 0.0
  %3314 = vmatprep.subr.mxu0 0.0
  %3315 = vmatpush1.msra.mxu0 0.0
  %3316 = vmatprep.subr.mxu0 0.0
  %3317 = vmatpush1.msra.mxu0 0.0
  %3318 = vmatprep.subr.mxu0 0.0
  %3319 = vmatpush1.msra.mxu0 0.0
  %3320 = vmatprep.subr.mxu0 0.0
  %3321 = vmatpush1.msra.mxu0 0.0
  %3322 = vmatprep.subr.mxu0 0.0
  %3323 = vmatpush1.msra.mxu0 0.0
  %3324 = vmatprep.mubr.f32.mxu0 0.0
  %3325 = vmatmul.mubr.f32.gmra.mrb[0].mxu0 %v2956
  %v3326 = vpop.f32.mrb[0].mxu0
  %v3327 = vpop.f32.mrb[0].mxu0
  %3328 = vmatprep.mubr.f32.mxu0 0.0
  %3329 = vmatmul.mubr.f32.gmra.mrb[0].mxu0 %v2977
  %v3330 = vpop.f32.mrb[0].mxu0
  %v3331 = vadd.f32 %v3099, %v3330
  %v3332 = vpop.f32.mrb[0].mxu0
  %v3333 = vadd.f32 %v3103, %v3332
  %3334 = vdwg.mxu0
  %v3335 = vld [vmem:[%s1308] sm:$0xff]
  %v3336 = vld [vmem:[%s1308 + $0x8] sm:$0xff]
  %v3337 = vld [vmem:[%s1308 + $0x10] sm:$0xff]
  %v3338 = vld [vmem:[%s1304 + $0x18] sm:$0xff]
  %v3339 = vld [vmem:[%s1304 + $0x20] sm:$0xff]
  %v3340 = vld [vmem:[%s1304 + $0x28] sm:$0xff]
  %v3341 = vadd.f32 %v3335, %v3177
  %v3342 = vxor.u32 %v3341, 2147483648
  %v3343 = vmul.f32 %v3342, 1.442695
  %v3344 = vpow.pop %v3343
  %v3345 = vadd.f32 %v3344, 1.0
  %v3346 = vrcp.pop %v3345
  %v3347 = vmul.f32 1.0, %v3346
  %v3348 = vadd.f32 %v3336, %v3179
  %v3349 = vxor.u32 %v3348, 2147483648
  %v3350 = vmul.f32 %v3349, 1.442695
  %v3351 = vpow.pop %v3350
  %v3352 = vadd.f32 %v3351, 1.0
  %v3353 = vrcp.pop %v3352
  %v3354 = vmul.f32 1.0, %v3353
  %v3355 = vmul.f32 %v3347, %v3252
  %v3356 = vadd.f32 %v3337, %v3355
  %v3357 = vtanh.pop %v3356
  %v3358 = vsub.f32 1.0, %v3354
  %v3359 = vmul.f32 %v3358, %v3357
  %v3360 = vmul.f32 %v3354, %v2956
  %v3361 = vadd.f32 %v3359, %v3360
  %v3362 = vadd.f32 %v3338, %v3258
  %v3363 = vxor.u32 %v3362, 2147483648
  %v3364 = vmul.f32 %v3363, 1.442695
  %v3365 = vpow.pop %v3364
  %v3366 = vadd.f32 %v3365, 1.0
  %v3367 = vrcp.pop %v3366
  %v3368 = vmul.f32 1.0, %v3367
  %v3369 = vadd.f32 %v3339, %v3331
  %v3370 = vxor.u32 %v3369, 2147483648
  %v3371 = vmul.f32 %v3370, 1.442695
  %v3372 = vpow.pop %v3371
  %v3373 = vadd.f32 %v3372, 1.0
  %v3374 = vrcp.pop %v3373
  %v3375 = vmul.f32 1.0, %v3374
  %v3376 = vmul.f32 %v3368, %v3333
  %v3377 = vadd.f32 %v3340, %v3376
  %v3378 = vtanh.pop %v3377
  %v3379 = vsub.f32 1.0, %v3375
  %v3380 = vmul.f32 %v3379, %v3378
  %v3381 = vmul.f32 %v3375, %v2977
  %v3382 = vadd.f32 %v3380, %v3381
  %s3383 = scalar_lea.vmem %s5, 48
  %3384 = vst [vmem:[%s3383] sm:$0xff] %v3361
  %s3385 = scalar_lea.vmem %s6, 8
  %3386 = vst [vmem:[%s3385] sm:$0xff] %v3382
  %v3387 = vld [vmem:[%s2] sm:$0xff]
  %v3388 = vld [vmem:[%s2 + $0x8] sm:$0xff]
  %v3389 = vld [vmem:[%s2 + $0x10] sm:$0xff]
  %v3390 = vld [vmem:[%s2 + $0x18] sm:$0xff]
  %v3391 = vld [vmem:[%s2 + $0x20] sm:$0xff]
  %v3392 = vld [vmem:[%s2 + $0x28] sm:$0xff]
  %v3393 = vld [vmem:[%s2 + $0x30] sm:$0xff]
  %v3394 = vld [vmem:[%s2 + $0x38] sm:$0xff]
  %v3395 = vld [vmem:[%s2 + $0x40] sm:$0xff]
  %v3396 = vld [vmem:[%s2 + $0x48] sm:$0xff]
  %v3397 = vld [vmem:[%s2 + $0x50] sm:$0xff]
  %v3398 = vld [vmem:[%s2 + $0x58] sm:$0xff]
  %v3399 = vld [vmem:[%s2 + $0x60] sm:$0xff]
  %v3400 = vld [vmem:[%s2 + $0x68] sm:$0xff]
  %v3401 = vld [vmem:[%s2 + $0x70] sm:$0xff]
  %v3402 = vld [vmem:[%s2 + $0x78] sm:$0xff]
  %v3403 = vld [vmem:[%s2 + $0x80] sm:$0xff]
  %v3404 = vld [vmem:[%s2 + $0x88] sm:$0xff]
  %v3405 = vld [vmem:[%s2 + $0x90] sm:$0xff]
  %v3406 = vld [vmem:[%s2 + $0x98] sm:$0xff]
  %v3407 = vld [vmem:[%s2 + $0xa0] sm:$0xff]
  %v3408 = vld [vmem:[%s2 + $0xa8] sm:$0xff]
  %v3409 = vld [vmem:[%s2 + $0xb0] sm:$0xff]
  %v3410 = vld [vmem:[%s2 + $0xb8] sm:$0xff]
  %v3411 = vld [vmem:[%s2 + $0xc0] sm:$0xff]
  %v3412 = vld [vmem:[%s2 + $0xc8] sm:$0xff]
  %v3413 = vld [vmem:[%s2 + $0xd0] sm:$0xff]
  %v3414 = vld [vmem:[%s2 + $0xd8] sm:$0xff]
  %v3415 = vld [vmem:[%s2 + $0xe0] sm:$0xff]
  %v3416 = vld [vmem:[%s2 + $0xe8] sm:$0xff]
  %v3417 = vld [vmem:[%s2 + $0xf0] sm:$0xff]
  %v3418 = vld [vmem:[%s2 + $0xf8] sm:$0xff]
  %v3419 = vld [vmem:[%s2 + $0x100] sm:$0xff]
  %v3420 = vld [vmem:[%s2 + $0x108] sm:$0xff]
  %v3421 = vld [vmem:[%s2 + $0x110] sm:$0xff]
  %v3422 = vld [vmem:[%s2 + $0x118] sm:$0xff]
  %v3423 = vld [vmem:[%s2 + $0x120] sm:$0xff]
  %v3424 = vld [vmem:[%s2 + $0x128] sm:$0xff]
  %v3425 = vld [vmem:[%s2 + $0x130] sm:$0xff]
  %v3426 = vld [vmem:[%s2 + $0x138] sm:$0xff]
  %v3427 = vld [vmem:[%s2 + $0x140] sm:$0xff]
  %v3428 = vld [vmem:[%s2 + $0x148] sm:$0xff]
  %v3429 = vld [vmem:[%s2 + $0x150] sm:$0xff]
  %v3430 = vld [vmem:[%s2 + $0x158] sm:$0xff]
  %v3431 = vld [vmem:[%s2 + $0x160] sm:$0xff]
  %v3432 = vld [vmem:[%s2 + $0x168] sm:$0xff]
  %v3433 = vld [vmem:[%s2 + $0x170] sm:$0xff]
  %v3434 = vld [vmem:[%s2 + $0x178] sm:$0xff]
  %v3435 = vld [vmem:[%s2 + $0x180] sm:$0xff]
  %v3436 = vld [vmem:[%s2 + $0x188] sm:$0xff]
  %v3437 = vld [vmem:[%s2 + $0x190] sm:$0xff]
  %v3438 = vld [vmem:[%s2 + $0x198] sm:$0xff]
  %v3439 = vld [vmem:[%s2 + $0x1a0] sm:$0xff]
  %v3440 = vld [vmem:[%s2 + $0x1a8] sm:$0xff]
  %v3441 = vld [vmem:[%s2 + $0x1b0] sm:$0xff]
  %v3442 = vld [vmem:[%s2 + $0x1b8] sm:$0xff]
  %v3443 = vld [vmem:[%s2 + $0x1c0] sm:$0xff]
  %v3444 = vld [vmem:[%s2 + $0x1c8] sm:$0xff]
  %v3445 = vld [vmem:[%s2 + $0x1d0] sm:$0xff]
  %v3446 = vld [vmem:[%s2 + $0x1d8] sm:$0xff]
  %v3447 = vld [vmem:[%s2 + $0x1e0] sm:$0xff]
  %v3448 = vld [vmem:[%s2 + $0x1e8] sm:$0xff]
  %v3449 = vld [vmem:[%s2 + $0x1f0] sm:$0xff]
  %v3450 = vld [vmem:[%s2 + $0x1f8] sm:$0xff]
  %v3451 = vld [vmem:[%s2 + $0x200] sm:$0xff]
  %v3452 = vld [vmem:[%s2 + $0x208] sm:$0xff]
  %v3453 = vld [vmem:[%s2 + $0x210] sm:$0xff]
  %v3454 = vld [vmem:[%s2 + $0x218] sm:$0xff]
  %v3455 = vld [vmem:[%s2 + $0x220] sm:$0xff]
  %v3456 = vld [vmem:[%s2 + $0x228] sm:$0xff]
  %v3457 = vld [vmem:[%s2 + $0x230] sm:$0xff]
  %v3458 = vld [vmem:[%s2 + $0x238] sm:$0xff]
  %v3459 = vld [vmem:[%s2 + $0x240] sm:$0xff]
  %v3460 = vld [vmem:[%s2 + $0x248] sm:$0xff]
  %v3461 = vld [vmem:[%s2 + $0x250] sm:$0xff]
  %v3462 = vld [vmem:[%s2 + $0x258] sm:$0xff]
  %v3463 = vld [vmem:[%s2 + $0x260] sm:$0xff]
  %v3464 = vld [vmem:[%s2 + $0x268] sm:$0xff]
  %v3465 = vld [vmem:[%s2 + $0x270] sm:$0xff]
  %v3466 = vld [vmem:[%s2 + $0x278] sm:$0xff]
  %v3467 = vld [vmem:[%s2 + $0x280] sm:$0xff]
  %v3468 = vld [vmem:[%s2 + $0x288] sm:$0xff]
  %v3469 = vld [vmem:[%s2 + $0x290] sm:$0xff]
  %v3470 = vld [vmem:[%s2 + $0x298] sm:$0xff]
  %v3471 = vld [vmem:[%s2 + $0x2a0] sm:$0xff]
  %v3472 = vld [vmem:[%s2 + $0x2a8] sm:$0xff]
  %v3473 = vld [vmem:[%s2 + $0x2b0] sm:$0xff]
  %v3474 = vld [vmem:[%s2 + $0x2b8] sm:$0xff]
  %v3475 = vld [vmem:[%s2 + $0x2c0] sm:$0xff]
  %v3476 = vld [vmem:[%s2 + $0x2c8] sm:$0xff]
  %v3477 = vld [vmem:[%s2 + $0x2d0] sm:$0xff]
  %v3478 = vld [vmem:[%s2 + $0x2d8] sm:$0xff]
  %v3479 = vld [vmem:[%s2 + $0x2e0] sm:$0xff]
  %v3480 = vld [vmem:[%s2 + $0x2e8] sm:$0xff]
  %v3481 = vld [vmem:[%s2 + $0x2f0] sm:$0xff]
  %v3482 = vld [vmem:[%s2 + $0x2f8] sm:$0xff]
  %v3483 = vld [vmem:[%s4] sm:$0x3f]
  %v3485 = vlaneseq
  %v3486 = vshrl.u32 %v3485, 7
  %v3487 = vsub.s32 0, %v3486
  %v3488 = vrot.slane %v3483, %v3487
  %v3489 = vlaneseq
  %v3490 = vshrl.u32 %v3489, 7
  %v3491 = vsub.s32 1, %v3490
  %v3492 = vrot.slane %v3483, %v3491
  %v3493 = vlaneseq
  %v3494 = vshrl.u32 %v3493, 7
  %v3495 = vsub.s32 2, %v3494
  %v3496 = vrot.slane %v3483, %v3495
  %v3497 = vlaneseq
  %v3498 = vshrl.u32 %v3497, 7
  %v3499 = vsub.s32 3, %v3498
  %v3500 = vrot.slane %v3483, %v3499
  %v3501 = vlaneseq
  %v3502 = vshrl.u32 %v3501, 7
  %v3503 = vsub.s32 4, %v3502
  %v3504 = vrot.slane %v3483, %v3503
  %v3505 = vlaneseq
  %v3506 = vshrl.u32 %v3505, 7
  %v3507 = vsub.s32 5, %v3506
  %v3508 = vrot.slane %v3483, %v3507
  %3515 = vmatprep.subr.mxu0 %v3388
  %3516 = vmatpush1.msra.mxu0 %v3387
  %3517 = vmatprep.subr.mxu0 %v3394
  %3518 = vmatpush1.msra.mxu0 %v3393
  %3519 = vmatprep.subr.mxu0 %v3400
  %3520 = vmatpush1.msra.mxu0 %v3399
  %3521 = vmatprep.subr.mxu0 %v3406
  %3522 = vmatpush1.msra.mxu0 %v3405
  %3523 = vmatprep.subr.mxu0 %v3412
  %3524 = vmatpush1.msra.mxu0 %v3411
  %3525 = vmatprep.subr.mxu0 %v3418
  %3526 = vmatpush1.msra.mxu0 %v3417
  %3527 = vmatprep.subr.mxu0 %v3424
  %3528 = vmatpush1.msra.mxu0 %v3423
  %3529 = vmatprep.subr.mxu0 %v3430
  %3530 = vmatpush1.msra.mxu0 %v3429
  %3531 = vmatprep.subr.mxu0 %v3436
  %3532 = vmatpush1.msra.mxu0 %v3435
  %3533 = vmatprep.subr.mxu0 %v3442
  %3534 = vmatpush1.msra.mxu0 %v3441
  %3535 = vmatprep.subr.mxu0 %v3448
  %3536 = vmatpush1.msra.mxu0 %v3447
  %3537 = vmatprep.subr.mxu0 %v3454
  %3538 = vmatpush1.msra.mxu0 %v3453
  %3539 = vmatprep.subr.mxu0 %v3460
  %3540 = vmatpush1.msra.mxu0 %v3459
  %3541 = vmatprep.subr.mxu0 %v3466
  %3542 = vmatpush1.msra.mxu0 %v3465
  %3543 = vmatprep.subr.mxu0 %v3472
  %3544 = vmatpush1.msra.mxu0 %v3471
  %3545 = vmatprep.subr.mxu0 %v3478
  %3546 = vmatpush1.msra.mxu0 %v3477
  %3547 = vmatprep.subr.mxu0 0.0
  %3548 = vmatpush1.msra.mxu0 0.0
  %3549 = vmatprep.subr.mxu0 0.0
  %3550 = vmatpush1.msra.mxu0 0.0
  %3551 = vmatprep.subr.mxu0 0.0
  %3552 = vmatpush1.msra.mxu0 0.0
  %3553 = vmatprep.subr.mxu0 0.0
  %3554 = vmatpush1.msra.mxu0 0.0
  %3555 = vmatprep.subr.mxu0 0.0
  %3556 = vmatpush1.msra.mxu0 0.0
  %3557 = vmatprep.subr.mxu0 0.0
  %3558 = vmatpush1.msra.mxu0 0.0
  %3559 = vmatprep.subr.mxu0 0.0
  %3560 = vmatpush1.msra.mxu0 0.0
  %3561 = vmatprep.subr.mxu0 0.0
  %3562 = vmatpush1.msra.mxu0 0.0
  %3563 = vmatprep.subr.mxu0 0.0
  %3564 = vmatpush1.msra.mxu0 0.0
  %3565 = vmatprep.subr.mxu0 0.0
  %3566 = vmatpush1.msra.mxu0 0.0
  %3567 = vmatprep.subr.mxu0 0.0
  %3568 = vmatpush1.msra.mxu0 0.0
  %3569 = vmatprep.subr.mxu0 0.0
  %3570 = vmatpush1.msra.mxu0 0.0
  %3571 = vmatprep.subr.mxu0 0.0
  %3572 = vmatpush1.msra.mxu0 0.0
  %3573 = vmatprep.subr.mxu0 0.0
  %3574 = vmatpush1.msra.mxu0 0.0
  %3575 = vmatprep.subr.mxu0 0.0
  %3576 = vmatpush1.msra.mxu0 0.0
  %3577 = vmatprep.subr.mxu0 0.0
  %3578 = vmatpush1.msra.mxu0 0.0
  %3579 = vmatprep.mubr.f32.mxu0 0.0
  %3580 = vmatmul.mubr.f32.gmra.mrb[0].mxu0 %v3361
  %v3581 = vpop.f32.mrb[0].mxu0
  %v3582 = vadd.f32 %v3488, %v3581
  %v3583 = vpop.f32.mrb[0].mxu0
  %v3584 = vadd.f32 %v3492, %v3583
  %3585 = vmatprep.mubr.f32.mxu0 0.0
  %3586 = vmatmul.mubr.f32.gmra.mrb[0].mxu0 %v3382
  %v3587 = vpop.f32.mrb[0].mxu0
  %v3588 = vpop.f32.mrb[0].mxu0
  %3589 = vdwg.mxu0
  %3590 = vmatprep.subr.mxu0 %v3390
  %3591 = vmatpush1.msra.mxu0 %v3389
  %3592 = vmatprep.subr.mxu0 %v3396
  %3593 = vmatpush1.msra.mxu0 %v3395
  %3594 = vmatprep.subr.mxu0 %v3402
  %3595 = vmatpush1.msra.mxu0 %v3401
  %3596 = vmatprep.subr.mxu0 %v3408
  %3597 = vmatpush1.msra.mxu0 %v3407
  %3598 = vmatprep.subr.mxu0 %v3414
  %3599 = vmatpush1.msra.mxu0 %v3413
  %3600 = vmatprep.subr.mxu0 %v3420
  %3601 = vmatpush1.msra.mxu0 %v3419
  %3602 = vmatprep.subr.mxu0 %v3426
  %3603 = vmatpush1.msra.mxu0 %v3425
  %3604 = vmatprep.subr.mxu0 %v3432
  %3605 = vmatpush1.msra.mxu0 %v3431
  %3606 = vmatprep.subr.mxu0 %v3438
  %3607 = vmatpush1.msra.mxu0 %v3437
  %3608 = vmatprep.subr.mxu0 %v3444
  %3609 = vmatpush1.msra.mxu0 %v3443
  %3610 = vmatprep.subr.mxu0 %v3450
  %3611 = vmatpush1.msra.mxu0 %v3449
  %3612 = vmatprep.subr.mxu0 %v3456
  %3613 = vmatpush1.msra.mxu0 %v3455
  %3614 = vmatprep.subr.mxu0 %v3462
  %3615 = vmatpush1.msra.mxu0 %v3461
  %3616 = vmatprep.subr.mxu0 %v3468
  %3617 = vmatpush1.msra.mxu0 %v3467
  %3618 = vmatprep.subr.mxu0 %v3474
  %3619 = vmatpush1.msra.mxu0 %v3473
  %3620 = vmatprep.subr.mxu0 %v3480
  %3621 = vmatpush1.msra.mxu0 %v3479
  %3622 = vmatprep.subr.mxu0 0.0
  %3623 = vmatpush1.msra.mxu0 0.0
  %3624 = vmatprep.subr.mxu0 0.0
  %3625 = vmatpush1.msra.mxu0 0.0
  %3626 = vmatprep.subr.mxu0 0.0
  %3627 = vmatpush1.msra.mxu0 0.0
  %3628 = vmatprep.subr.mxu0 0.0
  %3629 = vmatpush1.msra.mxu0 0.0
  %3630 = vmatprep.subr.mxu0 0.0
  %3631 = vmatpush1.msra.mxu0 0.0
  %3632 = vmatprep.subr.mxu0 0.0
  %3633 = vmatpush1.msra.mxu0 0.0
  %3634 = vmatprep.subr.mxu0 0.0
  %3635 = vmatpush1.msra.mxu0 0.0
  %3636 = vmatprep.subr.mxu0 0.0
  %3637 = vmatpush1.msra.mxu0 0.0
  %3638 = vmatprep.subr.mxu0 0.0
  %3639 = vmatpush1.msra.mxu0 0.0
  %3640 = vmatprep.subr.mxu0 0.0
  %3641 = vmatpush1.msra.mxu0 0.0
  %3642 = vmatprep.subr.mxu0 0.0
  %3643 = vmatpush1.msra.mxu0 0.0
  %3644 = vmatprep.subr.mxu0 0.0
  %3645 = vmatpush1.msra.mxu0 0.0
  %3646 = vmatprep.subr.mxu0 0.0
  %3647 = vmatpush1.msra.mxu0 0.0
  %3648 = vmatprep.subr.mxu0 0.0
  %3649 = vmatpush1.msra.mxu0 0.0
  %3650 = vmatprep.subr.mxu0 0.0
  %3651 = vmatpush1.msra.mxu0 0.0
  %3652 = vmatprep.subr.mxu0 0.0
  %3653 = vmatpush1.msra.mxu0 0.0
  %3654 = vmatprep.mubr.f32.mxu0 0.0
  %3655 = vmatmul.mubr.f32.gmra.mrb[0].mxu0 %v3361
  %v3656 = vpop.f32.mrb[0].mxu0
  %v3657 = vadd.f32 %v3496, %v3656
  %v3658 = vpop.f32.mrb[0].mxu0
  %3659 = vmatprep.mubr.f32.mxu0 0.0
  %3660 = vmatmul.mubr.f32.gmra.mrb[0].mxu0 %v3382
  %v3661 = vpop.f32.mrb[0].mxu0
  %v3662 = vpop.f32.mrb[0].mxu0
  %v3663 = vadd.f32 %v3500, %v3662
  %3664 = vdwg.mxu0
  %3665 = vmatprep.subr.mxu0 %v3392
  %3666 = vmatpush1.msra.mxu0 %v3391
  %3667 = vmatprep.subr.mxu0 %v3398
  %3668 = vmatpush1.msra.mxu0 %v3397
  %3669 = vmatprep.subr.mxu0 %v3404
  %3670 = vmatpush1.msra.mxu0 %v3403
  %3671 = vmatprep.subr.mxu0 %v3410
  %3672 = vmatpush1.msra.mxu0 %v3409
  %3673 = vmatprep.subr.mxu0 %v3416
  %3674 = vmatpush1.msra.mxu0 %v3415
  %3675 = vmatprep.subr.mxu0 %v3422
  %3676 = vmatpush1.msra.mxu0 %v3421
  %3677 = vmatprep.subr.mxu0 %v3428
  %3678 = vmatpush1.msra.mxu0 %v3427
  %3679 = vmatprep.subr.mxu0 %v3434
  %3680 = vmatpush1.msra.mxu0 %v3433
  %3681 = vmatprep.subr.mxu0 %v3440
  %3682 = vmatpush1.msra.mxu0 %v3439
  %3683 = vmatprep.subr.mxu0 %v3446
  %3684 = vmatpush1.msra.mxu0 %v3445
  %3685 = vmatprep.subr.mxu0 %v3452
  %3686 = vmatpush1.msra.mxu0 %v3451
  %3687 = vmatprep.subr.mxu0 %v3458
  %3688 = vmatpush1.msra.mxu0 %v3457
  %3689 = vmatprep.subr.mxu0 %v3464
  %3690 = vmatpush1.msra.mxu0 %v3463
  %3691 = vmatprep.subr.mxu0 %v3470
  %3692 = vmatpush1.msra.mxu0 %v3469
  %3693 = vmatprep.subr.mxu0 %v3476
  %3694 = vmatpush1.msra.mxu0 %v3475
  %3695 = vmatprep.subr.mxu0 %v3482
  %3696 = vmatpush1.msra.mxu0 %v3481
  %3697 = vmatprep.subr.mxu0 0.0
  %3698 = vmatpush1.msra.mxu0 0.0
  %3699 = vmatprep.subr.mxu0 0.0
  %3700 = vmatpush1.msra.mxu0 0.0
  %3701 = vmatprep.subr.mxu0 0.0
  %3702 = vmatpush1.msra.mxu0 0.0
  %3703 = vmatprep.subr.mxu0 0.0
  %3704 = vmatpush1.msra.mxu0 0.0
  %3705 = vmatprep.subr.mxu0 0.0
  %3706 = vmatpush1.msra.mxu0 0.0
  %3707 = vmatprep.subr.mxu0 0.0
  %3708 = vmatpush1.msra.mxu0 0.0
  %3709 = vmatprep.subr.mxu0 0.0
  %3710 = vmatpush1.msra.mxu0 0.0
  %3711 = vmatprep.subr.mxu0 0.0
  %3712 = vmatpush1.msra.mxu0 0.0
  %3713 = vmatprep.subr.mxu0 0.0
  %3714 = vmatpush1.msra.mxu0 0.0
  %3715 = vmatprep.subr.mxu0 0.0
  %3716 = vmatpush1.msra.mxu0 0.0
  %3717 = vmatprep.subr.mxu0 0.0
  %3718 = vmatpush1.msra.mxu0 0.0
  %3719 = vmatprep.subr.mxu0 0.0
  %3720 = vmatpush1.msra.mxu0 0.0
  %3721 = vmatprep.subr.mxu0 0.0
  %3722 = vmatpush1.msra.mxu0 0.0
  %3723 = vmatprep.subr.mxu0 0.0
  %3724 = vmatpush1.msra.mxu0 0.0
  %3725 = vmatprep.subr.mxu0 0.0
  %3726 = vmatpush1.msra.mxu0 0.0
  %3727 = vmatprep.subr.mxu0 0.0
  %3728 = vmatpush1.msra.mxu0 0.0
  %3729 = vmatprep.mubr.f32.mxu0 0.0
  %3730 = vmatmul.mubr.f32.gmra.mrb[0].mxu0 %v3361
  %v3731 = vpop.f32.mrb[0].mxu0
  %v3732 = vpop.f32.mrb[0].mxu0
  %3733 = vmatprep.mubr.f32.mxu0 0.0
  %3734 = vmatmul.mubr.f32.gmra.mrb[0].mxu0 %v3382
  %v3735 = vpop.f32.mrb[0].mxu0
  %v3736 = vadd.f32 %v3504, %v3735
  %v3737 = vpop.f32.mrb[0].mxu0
  %v3738 = vadd.f32 %v3508, %v3737
  %3739 = vdwg.mxu0
  %v3740 = vld [vmem:[%s902] sm:$0xff]
  %v3741 = vld [vmem:[%s902 + $0x8] sm:$0xff]
  %v3742 = vld [vmem:[%s902 + $0x10] sm:$0xff]
  %v3743 = vld [vmem:[#allocation2 + $0x18] sm:$0xff]
  %v3744 = vld [vmem:[#allocation2 + $0x20] sm:$0xff]
  %v3745 = vld [vmem:[#allocation2 + $0x28] sm:$0xff]
  %v3746 = vadd.f32 %v3740, %v3582
  %v3747 = vxor.u32 %v3746, 2147483648
  %v3748 = vmul.f32 %v3747, 1.442695
  %v3749 = vpow.pop %v3748
  %v3750 = vadd.f32 %v3749, 1.0
  %v3751 = vrcp.pop %v3750
  %v3752 = vmul.f32 1.0, %v3751
  %v3753 = vadd.f32 %v3741, %v3584
  %v3754 = vxor.u32 %v3753, 2147483648
  %v3755 = vmul.f32 %v3754, 1.442695
  %v3756 = vpow.pop %v3755
  %v3757 = vadd.f32 %v3756, 1.0
  %v3758 = vrcp.pop %v3757
  %v3759 = vmul.f32 1.0, %v3758
  %v3760 = vmul.f32 %v3752, %v3657
  %v3761 = vadd.f32 %v3742, %v3760
  %v3762 = vtanh.pop %v3761
  %v3763 = vsub.f32 1.0, %v3759
  %v3764 = vmul.f32 %v3763, %v3762
  %v3765 = vmul.f32 %v3759, %v3361
  %v3766 = vadd.f32 %v3764, %v3765
  %v3767 = vadd.f32 %v3743, %v3663
  %v3768 = vxor.u32 %v3767, 2147483648
  %v3769 = vmul.f32 %v3768, 1.442695
  %v3770 = vpow.pop %v3769
  %v3771 = vadd.f32 %v3770, 1.0
  %v3772 = vrcp.pop %v3771
  %v3773 = vmul.f32 1.0, %v3772
  %v3774 = vadd.f32 %v3744, %v3736
  %v3775 = vxor.u32 %v3774, 2147483648
  %v3776 = vmul.f32 %v3775, 1.442695
  %v3777 = vpow.pop %v3776
  %v3778 = vadd.f32 %v3777, 1.0
  %v3779 = vrcp.pop %v3778
  %v3780 = vmul.f32 1.0, %v3779
  %v3781 = vmul.f32 %v3773, %v3738
  %v3782 = vadd.f32 %v3745, %v3781
  %v3783 = vtanh.pop %v3782
  %v3784 = vsub.f32 1.0, %v3780
  %v3785 = vmul.f32 %v3784, %v3783
  %v3786 = vmul.f32 %v3780, %v3382
  %v3787 = vadd.f32 %v3785, %v3786
  %s3788 = scalar_lea.vmem %s5, 56
  %3789 = vst [vmem:[%s3788] sm:$0xff] %v3766
  %3790 = vst [vmem:[%s6] sm:$0xff] %v3787
  %3791 = vst [vmem:[%s7] sm:$0xff] %v3766
  %3792 = vst [vmem:[%s7 + $0x8] sm:$0xff] %v3787
  // Predicated region
  $region22: #{net_forward.3} parent=0 // pred_check
    _
  $region23: #{net_forward.3} parent=0 // pred_check_branch
    %3794 = sbr.rel (0) target = $region25
  $region24: #{net_forward.3} parent=0 // pred_region
    _
  $region25: #{net_forward.3} parent=0 // pred_fallthru
    _
  // Predicated region
  $region26: #{net_forward.3} parent=0 // pred_check
    _
  $region27: #{net_forward.3} parent=0 // pred_check_branch
    %3796 = sbr.rel (0) target = $region29
  $region28: #{net_forward.3} parent=0 // pred_region
    _
  $region29: #{net_forward.3} parent=0 // pred_fallthru
    _
  // Predicated region
  $region30: #{net_forward.3} parent=0 // pred_check
    _
  $region31: #{net_forward.3} parent=0 // pred_check_branch
    %3798 = sbr.rel (0) target = $region33
  $region32: #{net_forward.3} parent=0 // pred_region
    _
  $region33: #{net_forward.3} parent=0 // pred_fallthru
    _
  // Predicated region
  $region34: #{net_forward.3} parent=0 // pred_check
    _
  $region35: #{net_forward.3} parent=0 // pred_check_branch
    %3800 = sbr.rel (0) target = $region37
  $region36: #{net_forward.3} parent=0 // pred_region
    _
  $region37: #{net_forward.3} parent=0 // pred_fallthru
    _
  // Predicated region
  $region38: #{net_forward.3} parent=0 // pred_check
    _
  $region39: #{net_forward.3} parent=0 // pred_check_branch
    %3802 = sbr.rel (0) target = $region41
  $region40: #{net_forward.3} parent=0 // pred_region
    _
  $region41: #{net_forward.3} parent=0 // pred_fallthru
    _
  // Predicated region
  $region42: #{net_forward.3} parent=0 // pred_check
    _
  $region43: #{net_forward.3} parent=0 // pred_check_branch
    %3804 = sbr.rel (0) target = $region45
  $region44: #{net_forward.3} parent=0 // pred_region
    _
  $region45: #{net_forward.3} parent=0 // pred_fallthru
    _

</llo_original>
